<compile_context>
chip_gen: v6e
topology: v6e:2x2x1
jax: 0.10.0
libtpu: 0.0.40
codegen_flags: <defaults>
</compile_context>

<pallas_src>
import jax
import jax.numpy as jnp
from jax.experimental import pallas as pl
from jax.experimental.pallas import tpu as pltpu

_TB = 8      # batch tile (sublane aligned)
_C1 = 128    # conv1 out channels padded 20 -> 128
_C2 = 128    # conv2 out channels padded 50 -> 128
_F1 = 512    # fc1 width padded 500 -> 512
_F2 = 128    # fc2 width padded 10 -> 128 (lane-dense output store)


# ----------------------------------------------------------------------------
# Fused kernel: conv1+ReLU+pool -> conv2+ReLU+pool -> fc1+ReLU -> fc2
# ----------------------------------------------------------------------------
def _mnist_fused_kernel(x_ref, w1_ref, b1_ref, w2_ref, b2_ref,
                        w3_ref, b3_ref, w4_ref, b4_ref, o_ref,
                        p1_ref, acc2_ref):
    """One batch tile (TB samples) of the full forward pass.

    x_ref   : (28, 28, TB, 1)      input images (batch on sublanes)
    w1_ref  : (32, 128)  f32       conv1: rows = tap i*5+j, cols = out channel
    w2_ref  : (25, 128, 128)       conv2: [tap, ci, co]
    w3_ref  : (16, 128, 512)       fc1: NCHW flatten folded into [h*4+w, c, n]
    w4_ref  : (512, 128)           fc2
    o_ref   : (TB, 128)            padded logits (lane-dense store)
    p1_ref  : (12, 12, TB, 128)    VMEM scratch: pooled conv1 activations
    acc2_ref: (8*8*TB, 128) f32    VMEM scratch: conv2 accumulator
    """
    f32 = jnp.float32
    mm_dt = w2_ref.dtype          # bf16 on v6e/v7x, f32 otherwise

    # ---- conv1 (1->20, 5x5) + ReLU + 2x2 maxpool, one output row-pair/iter.
    # C_in == 1, so conv1 is 25 broadcast FMAs on the VPU (an MXU im2col would
    # spend comparable VPU work just building the K=25 patch matrix).
    @pl.loop(0, 12)
    def _conv1_rows(r):
        a0 = jnp.zeros((24, _TB, _C1), f32) + b1_ref[0]   # conv out row 2r
        a1 = jnp.zeros((24, _TB, _C1), f32) + b1_ref[0]   # conv out row 2r+1
        for i in range(6):                                # input rows 2r..2r+5
            row = x_ref[2 * r + i]                        # (28, TB, 1)
            for j in range(5):
                xb = jnp.broadcast_to(row[j:j + 24], (24, _TB, _C1))
                if i < 5:
                    a0 = a0 + xb * w1_ref[i * 5 + j]
                if i >= 1:
                    a1 = a1 + xb * w1_ref[(i - 1) * 5 + j]
        rowmax = jnp.maximum(jnp.maximum(a0, 0.0), jnp.maximum(a1, 0.0))
        rowmax = rowmax.reshape(12, 2, _TB, _C1)          # pool along W
        p1_ref[r] = jnp.maximum(rowmax[:, 0], rowmax[:, 1])

    # ---- conv2 (20->50, 5x5): 25 accumulated MXU matmuls over shifted
    #      windows of the pooled conv1 tile (im2col stays in VMEM).
    acc2_ref[...] = jnp.broadcast_to(b2_ref[...], (64 * _TB, _C2)).astype(f32)

    @pl.loop(0, 5)
    def _conv2_i(i):
        @pl.loop(0, 5)
        def _conv2_j(j):
            lhs = p1_ref[pl.ds(i, 8), pl.ds(j, 8)]        # (8, 8, TB, 128)
            lhs = lhs.reshape(64 * _TB, _C1).astype(mm_dt)
            acc2_ref[...] += jnp.dot(lhs, w2_ref[i * 5 + j],
                                     preferred_element_type=f32)

    # ReLU + 2x2 maxpool (leading-dim reshapes only; TB=8 keeps them aligned).
    y2 = jnp.maximum(acc2_ref[...], 0.0).reshape(8, 8, _TB, _C2)
    y2 = y2.reshape(4, 2, 8, _TB, _C2)
    y2 = jnp.maximum(y2[:, 0], y2[:, 1])                  # (4, 8, TB, 128)
    y2 = y2.reshape(4, 4, 2, _TB, _C2)
    p2 = jnp.maximum(y2[:, :, 0], y2[:, :, 1])            # (4, 4, TB, 128)

    # ---- fc1 (800->500) + ReLU.  PyTorch's NCHW flatten is folded into the
    #      weight layout -> 16 accumulated (TB,128)@(128,512) matmuls.
    h = jnp.zeros((_TB, _F1), f32) + b3_ref[...]
    for s in range(16):
        h = h + jnp.dot(p2[s // 4, s % 4].astype(mm_dt), w3_ref[s],
                        preferred_element_type=f32)
    h = jnp.maximum(h, 0.0)

    # ---- fc2 (500->10), padded to 128 lanes for an unmasked store.
    out = jnp.dot(h.astype(mm_dt), w4_ref[...], preferred_element_type=f32)
    o_ref[...] = out + b4_ref[...]


# ----------------------------------------------------------------------------
# One-time weight prep (hoisted out of the traced forward)
# ----------------------------------------------------------------------------
def prepare_params(params, matmul_dtype=jnp.float32):
    """Pad weights to lane-dense shapes and fold all layout transposes.

    matmul_dtype: dtype of the MXU weight operands (jnp.bfloat16 recommended on
    v6e/v7x).  Accumulation and epilogues are always f32.
    """
    f32 = jnp.float32
    # conv1 (20,1,5,5) -> (32,128): rows = tap i*5+j, cols = out channel.
    w1 = params["conv1_w"].astype(f32).reshape(20, 25).T
    w1p = jnp.zeros((32, _C1), f32).at[:25, :20].set(w1)
    b1p = jnp.zeros((1, _C1), f32).at[0, :20].set(params["conv1_b"].astype(f32))
    # conv2 (50,20,5,5) -> (25,128,128): [tap, ci, co].
    w2 = jnp.transpose(params["conv2_w"].astype(f32), (2, 3, 1, 0)).reshape(25, 20, 50)
    w2p = jnp.zeros((25, _C1, _C2), f32).at[:, :20, :50].set(w2).astype(matmul_dtype)
    b2p = jnp.zeros((1, _C2), f32).at[0, :50].set(params["conv2_b"].astype(f32))
    # fc1 (500,800), torch flatten k = c*16 + h*4 + w  ->  (16,128,512)[h*4+w, c, n].
    w3 = params["fc1_w"].astype(f32).reshape(500, 50, 4, 4)
    w3 = jnp.transpose(w3, (2, 3, 1, 0)).reshape(16, 50, 500)
    w3p = jnp.zeros((16, _C2, _F1), f32).at[:, :50, :500].set(w3).astype(matmul_dtype)
    b3p = jnp.zeros((1, _F1), f32).at[0, :500].set(params["fc1_b"].astype(f32))
    # fc2 (10,500) -> (512,128).
    w4p = (jnp.zeros((_F1, _F2), f32)
           .at[:500, :10].set(params["fc2_w"].astype(f32).T).astype(matmul_dtype))
    b4p = jnp.zeros((1, _F2), f32).at[0, :10].set(params["fc2_b"].astype(f32))
    return dict(w1=w1p, b1=b1p, w2=w2p, b2=b2p, w3=w3p, b3=b3p, w4=w4p, b4=b4p)


# ----------------------------------------------------------------------------
# Forward pass wrapper (matches PyTorch MNISTNet.forward)
# ----------------------------------------------------------------------------
def mnist_forward(x_nchw, prep):
    """x_nchw: (B, 1, 28, 28) float32 -> (B, 10) float32 logits."""
    B = x_nchw.shape[0]
    nb = (B + _TB - 1) // _TB
    b_pad = nb * _TB
    x = x_nchw.astype(jnp.float32).reshape(B, 28, 28)
    if b_pad != B:
        x = jnp.pad(x, ((0, b_pad - B), (0, 0), (0, 0)))
    # (nb, 28, 28, TB, 1): batch tile on sublanes, size-1 lane for broadcasting.
    x5 = x.reshape(nb, _TB, 28, 28).transpose(0, 2, 3, 1).reshape(nb, 28, 28, _TB, 1)

    out = pl.pallas_call(
        _mnist_fused_kernel,
        out_shape=jax.ShapeDtypeStruct((b_pad, _F2), jnp.float32),
        grid=(nb,),
        in_specs=[
            pl.BlockSpec((None, 28, 28, _TB, 1), lambda i: (i, 0, 0, 0, 0)),
            pl.BlockSpec((32, _C1), lambda i: (0, 0)),
            pl.BlockSpec((1, _C1), lambda i: (0, 0)),
            pl.BlockSpec((25, _C1, _C2), lambda i: (0, 0, 0)),
            pl.BlockSpec((1, _C2), lambda i: (0, 0)),
            pl.BlockSpec((16, _C2, _F1), lambda i: (0, 0, 0)),
            pl.BlockSpec((1, _F1), lambda i: (0, 0)),
            pl.BlockSpec((_F1, _F2), lambda i: (0, 0)),
            pl.BlockSpec((1, _F2), lambda i: (0, 0)),
        ],
        out_specs=pl.BlockSpec((_TB, _F2), lambda i: (i, 0)),
        scratch_shapes=[
            pltpu.VMEM((12, 12, _TB, _C1), jnp.float32),
            pltpu.VMEM((64 * _TB, _C2), jnp.float32),
        ],
        compiler_params=pltpu.CompilerParams(
            dimension_semantics=("parallel",),          # megacore over batch tiles
            vmem_limit_bytes=48 * 1024 * 1024,          # headroom under v7x 64 MiB
        ),
    )(x5, prep["w1"], prep["b1"], prep["w2"], prep["b2"],
      prep["w3"], prep["b3"], prep["w4"], prep["b4"])
    return out[:B, :10]


# ----------------------------------------------------------------------------
# Pure-JAX reference (PyTorch semantics) for the correctness check
# ----------------------------------------------------------------------------
def reference_forward(x_nchw, params):
    dn = ("NCHW", "OIHW", "NCHW")
    y = jax.lax.conv_general_dilated(x_nchw, params["conv1_w"], (1, 1), "VALID",
                                     dimension_numbers=dn)
    y = jnp.maximum(y + params["conv1_b"][None, :, None, None], 0.0)
    y = jax.lax.reduce_window(y, -jnp.inf, jax.lax.max, (1, 1, 2, 2), (1, 1, 2, 2), "VALID")
    y = jax.lax.conv_general_dilated(y, params["conv2_w"], (1, 1), "VALID",
                                     dimension_numbers=dn)
    y = jnp.maximum(y + params["conv2_b"][None, :, None, None], 0.0)
    y = jax.lax.reduce_window(y, -jnp.inf, jax.lax.max, (1, 1, 2, 2), (1, 1, 2, 2), "VALID")
    y = y.reshape(y.shape[0], -1)
    y = jnp.maximum(y @ params["fc1_w"].T + params["fc1_b"], 0.0)
    return y @ params["fc2_w"].T + params["fc2_b"]


def init_params(key):
    ks = jax.random.split(key, 8)

    def w_init(k, shape, fan_in):
        return (jax.random.normal(k, shape, jnp.float32) / jnp.sqrt(fan_in)).astype(jnp.float32)

    return {
        "conv1_w": w_init(ks[0], (20, 1, 5, 5), 25),
        "conv1_b": w_init(ks[1], (20,), 25),
        "conv2_w": w_init(ks[2], (50, 20, 5, 5), 500),
        "conv2_b": w_init(ks[3], (50,), 500),
        "fc1_w": w_init(ks[4], (500, 800), 800),
        "fc1_b": w_init(ks[5], (500,), 800),
        "fc2_w": w_init(ks[6], (10, 500), 500),
        "fc2_b": w_init(ks[7], (10,), 500),
    }


if __name__ == "__main__":
    key = jax.random.PRNGKey(0)
    k_x, k_p = jax.random.split(key)

    # MNIST geometry is fixed by fc1 (4*4*50): input must be (B, 1, 28, 28).
    x = jax.random.normal(k_x, (2, 1, 28, 28), jnp.float32)
    params = init_params(k_p)
    ref = jax.block_until_ready(reference_forward(x, params))

    fwd = jax.jit(mnist_forward)

    # float32 MXU operands: tight check against the PyTorch/XLA semantics.
    out_f32 = jax.block_until_ready(fwd(x, prepare_params(params, jnp.float32)))
    assert out_f32.shape == (2, 10), out_f32.shape
    err32 = float(jnp.max(jnp.abs(out_f32 - ref)))
    assert jnp.allclose(out_f32, ref, rtol=5e-3, atol=5e-3), f"f32 max abs diff {err32}"

    # bfloat16 MXU operands (recommended on v6e/v7x), f32 accumulation/epilogue.
    out_bf16 = jax.block_until_ready(fwd(x, prepare_params(params, jnp.bfloat16)))
    err16 = float(jnp.max(jnp.abs(out_bf16 - ref)))
    assert jnp.allclose(out_bf16, ref, rtol=5e-2, atol=5e-2), f"bf16 max abs diff {err16}"

    print("KERNEL_OK")
</pallas_src>

<mosaic_0001>
module attributes {stable_mosaic.version = 11 : i64} {
  func.func @_mnist_fused_kernel(%arg0: i32, %arg1: memref<1x28x28x8x1xf32, #tpu.memory_space<vmem>>, %arg2: memref<32x128xf32, #tpu.memory_space<vmem>>, %arg3: memref<1x128xf32, #tpu.memory_space<vmem>>, %arg4: memref<25x128x128xf32, #tpu.memory_space<vmem>>, %arg5: memref<1x128xf32, #tpu.memory_space<vmem>>, %arg6: memref<16x128x512xf32, #tpu.memory_space<vmem>>, %arg7: memref<1x512xf32, #tpu.memory_space<vmem>>, %arg8: memref<512x128xf32, #tpu.memory_space<vmem>>, %arg9: memref<1x128xf32, #tpu.memory_space<vmem>>, %arg10: memref<8x128xf32, #tpu.memory_space<vmem>>, %arg11: memref<12x12x8x128xf32, #tpu.memory_space<vmem>>, %arg12: memref<512x128xf32, #tpu.memory_space<vmem>>) attributes {dimension_semantics = [#tpu.dimension_semantics<parallel>], iteration_bounds = array<i64: 1>, scalar_prefetch = 0 : i64, scratch_operands = 2 : i64, tpu.core_type = #tpu.core_type<tc>, window_params = [{transform_indices = @transform_0, window_bounds = array<i64: 1, 28, 28, 8, 1>}, {pipeline_mode = #tpu.pipeline_mode<synchronous>, transform_indices = @transform_1, window_bounds = array<i64: 32, 128>}, {pipeline_mode = #tpu.pipeline_mode<synchronous>, transform_indices = @transform_2, window_bounds = array<i64: 1, 128>}, {pipeline_mode = #tpu.pipeline_mode<synchronous>, transform_indices = @transform_3, window_bounds = array<i64: 25, 128, 128>}, {pipeline_mode = #tpu.pipeline_mode<synchronous>, transform_indices = @transform_4, window_bounds = array<i64: 1, 128>}, {pipeline_mode = #tpu.pipeline_mode<synchronous>, transform_indices = @transform_5, window_bounds = array<i64: 16, 128, 512>}, {pipeline_mode = #tpu.pipeline_mode<synchronous>, transform_indices = @transform_6, window_bounds = array<i64: 1, 512>}, {pipeline_mode = #tpu.pipeline_mode<synchronous>, transform_indices = @transform_7, window_bounds = array<i64: 512, 128>}, {pipeline_mode = #tpu.pipeline_mode<synchronous>, transform_indices = @transform_8, window_bounds = array<i64: 1, 128>}, {transform_indices = @transform_9, window_bounds = array<i64: 8, 128>}]} {
    %c0_i32 = arith.constant 0 : i32
    %c12_i32 = arith.constant 12 : i32
    %0 = arith.addi %c0_i32, %c12_i32 : i32
    %c1_i32 = arith.constant 1 : i32
    scf.for %arg13 = %c0_i32 to %0 step %c1_i32  : i32 {
      %c1_i32_69 = arith.constant 1 : i32
      %130 = arith.muli %arg13, %c1_i32_69 : i32
      %c0_i32_70 = arith.constant 0 : i32
      %131 = arith.addi %c0_i32_70, %130 : i32
      %cst_71 = arith.constant 0.000000e+00 : f32
      %132 = vector.broadcast %cst_71 : f32 to vector<24x8x128xf32>
      %c0_72 = arith.constant 0 : index
      %c0_73 = arith.constant 0 : index
      %133 = vector.load %arg3[%c0_72, %c0_73] : memref<1x128xf32, #tpu.memory_space<vmem>>, vector<1x128xf32>
      %134 = vector.shape_cast %133 : vector<1x128xf32> to vector<128xf32>
      %135 = vector.shape_cast %134 : vector<128xf32> to vector<1x1x128xf32>
      %136 = vector.broadcast %135 : vector<1x1x128xf32> to vector<24x8x128xf32>
      %137 = arith.addf %132, %136 : vector<24x8x128xf32>
      %cst_74 = arith.constant 0.000000e+00 : f32
      %138 = vector.broadcast %cst_74 : f32 to vector<24x8x128xf32>
      %c0_75 = arith.constant 0 : index
      %c0_76 = arith.constant 0 : index
      %139 = vector.load %arg3[%c0_75, %c0_76] : memref<1x128xf32, #tpu.memory_space<vmem>>, vector<1x128xf32>
      %140 = vector.shape_cast %139 : vector<1x128xf32> to vector<128xf32>
      %141 = vector.shape_cast %140 : vector<128xf32> to vector<1x1x128xf32>
      %142 = vector.broadcast %141 : vector<1x1x128xf32> to vector<24x8x128xf32>
      %143 = arith.addf %138, %142 : vector<24x8x128xf32>
      %c2_i32 = arith.constant 2 : i32
      %144 = arith.muli %c2_i32, %131 : i32
      %c0_i32_77 = arith.constant 0 : i32
      %145 = arith.addi %144, %c0_i32_77 : i32
      %c0_78 = arith.constant 0 : index
      %146 = arith.index_cast %145 : i32 to index
      %c0_79 = arith.constant 0 : index
      %c0_80 = arith.constant 0 : index
      %c0_81 = arith.constant 0 : index
      %147 = vector.load %arg1[%c0_78, %146, %c0_79, %c0_80, %c0_81] : memref<1x28x28x8x1xf32, #tpu.memory_space<vmem>>, vector<1x1x28x8x1xf32>
      %148 = vector.shape_cast %147 : vector<1x1x28x8x1xf32> to vector<28x8x1xf32>
      %149 = vector.extract_strided_slice %148 {offsets = [0, 0, 0], sizes = [24, 8, 1], strides = [1, 1, 1]} : vector<28x8x1xf32> to vector<24x8x1xf32>
      %150 = vector.shape_cast %149 : vector<24x8x1xf32> to vector<24x8x1xf32>
      %151 = vector.broadcast %150 : vector<24x8x1xf32> to vector<24x8x128xf32>
      %c0_82 = arith.constant 0 : index
      %c0_83 = arith.constant 0 : index
      %152 = vector.load %arg2[%c0_82, %c0_83] : memref<32x128xf32, #tpu.memory_space<vmem>>, vector<1x128xf32>
      %153 = vector.shape_cast %152 : vector<1x128xf32> to vector<128xf32>
      %154 = vector.shape_cast %153 : vector<128xf32> to vector<1x1x128xf32>
      %155 = vector.broadcast %154 : vector<1x1x128xf32> to vector<24x8x128xf32>
      %156 = arith.mulf %151, %155 : vector<24x8x128xf32>
      %157 = arith.addf %137, %156 : vector<24x8x128xf32>
      %158 = vector.extract_strided_slice %148 {offsets = [1, 0, 0], sizes = [24, 8, 1], strides = [1, 1, 1]} : vector<28x8x1xf32> to vector<24x8x1xf32>
      %159 = vector.shape_cast %158 : vector<24x8x1xf32> to vector<24x8x1xf32>
      %160 = vector.broadcast %159 : vector<24x8x1xf32> to vector<24x8x128xf32>
      %c1_84 = arith.constant 1 : index
      %c0_85 = arith.constant 0 : index
      %161 = vector.load %arg2[%c1_84, %c0_85] : memref<32x128xf32, #tpu.memory_space<vmem>>, vector<1x128xf32>
      %162 = vector.shape_cast %161 : vector<1x128xf32> to vector<128xf32>
      %163 = vector.shape_cast %162 : vector<128xf32> to vector<1x1x128xf32>
      %164 = vector.broadcast %163 : vector<1x1x128xf32> to vector<24x8x128xf32>
      %165 = arith.mulf %160, %164 : vector<24x8x128xf32>
      %166 = arith.addf %157, %165 : vector<24x8x128xf32>
      %167 = vector.extract_strided_slice %148 {offsets = [2, 0, 0], sizes = [24, 8, 1], strides = [1, 1, 1]} : vector<28x8x1xf32> to vector<24x8x1xf32>
      %168 = vector.shape_cast %167 : vector<24x8x1xf32> to vector<24x8x1xf32>
      %169 = vector.broadcast %168 : vector<24x8x1xf32> to vector<24x8x128xf32>
      %c2_86 = arith.constant 2 : index
      %c0_87 = arith.constant 0 : index
      %170 = vector.load %arg2[%c2_86, %c0_87] : memref<32x128xf32, #tpu.memory_space<vmem>>, vector<1x128xf32>
      %171 = vector.shape_cast %170 : vector<1x128xf32> to vector<128xf32>
      %172 = vector.shape_cast %171 : vector<128xf32> to vector<1x1x128xf32>
      %173 = vector.broadcast %172 : vector<1x1x128xf32> to vector<24x8x128xf32>
      %174 = arith.mulf %169, %173 : vector<24x8x128xf32>
      %175 = arith.addf %166, %174 : vector<24x8x128xf32>
      %176 = vector.extract_strided_slice %148 {offsets = [3, 0, 0], sizes = [24, 8, 1], strides = [1, 1, 1]} : vector<28x8x1xf32> to vector<24x8x1xf32>
      %177 = vector.shape_cast %176 : vector<24x8x1xf32> to vector<24x8x1xf32>
      %178 = vector.broadcast %177 : vector<24x8x1xf32> to vector<24x8x128xf32>
      %c3_88 = arith.constant 3 : index
      %c0_89 = arith.constant 0 : index
      %179 = vector.load %arg2[%c3_88, %c0_89] : memref<32x128xf32, #tpu.memory_space<vmem>>, vector<1x128xf32>
      %180 = vector.shape_cast %179 : vector<1x128xf32> to vector<128xf32>
      %181 = vector.shape_cast %180 : vector<128xf32> to vector<1x1x128xf32>
      %182 = vector.broadcast %181 : vector<1x1x128xf32> to vector<24x8x128xf32>
      %183 = arith.mulf %178, %182 : vector<24x8x128xf32>
      %184 = arith.addf %175, %183 : vector<24x8x128xf32>
      %185 = vector.extract_strided_slice %148 {offsets = [4, 0, 0], sizes = [24, 8, 1], strides = [1, 1, 1]} : vector<28x8x1xf32> to vector<24x8x1xf32>
      %186 = vector.shape_cast %185 : vector<24x8x1xf32> to vector<24x8x1xf32>
      %187 = vector.broadcast %186 : vector<24x8x1xf32> to vector<24x8x128xf32>
      %c4_90 = arith.constant 4 : index
      %c0_91 = arith.constant 0 : index
      %188 = vector.load %arg2[%c4_90, %c0_91] : memref<32x128xf32, #tpu.memory_space<vmem>>, vector<1x128xf32>
      %189 = vector.shape_cast %188 : vector<1x128xf32> to vector<128xf32>
      %190 = vector.shape_cast %189 : vector<128xf32> to vector<1x1x128xf32>
      %191 = vector.broadcast %190 : vector<1x1x128xf32> to vector<24x8x128xf32>
      %192 = arith.mulf %187, %191 : vector<24x8x128xf32>
      %193 = arith.addf %184, %192 : vector<24x8x128xf32>
      %c2_i32_92 = arith.constant 2 : i32
      %194 = arith.muli %c2_i32_92, %131 : i32
      %c1_i32_93 = arith.constant 1 : i32
      %195 = arith.addi %194, %c1_i32_93 : i32
      %c0_94 = arith.constant 0 : index
      %196 = arith.index_cast %195 : i32 to index
      %c0_95 = arith.constant 0 : index
      %c0_96 = arith.constant 0 : index
      %c0_97 = arith.constant 0 : index
      %197 = vector.load %arg1[%c0_94, %196, %c0_95, %c0_96, %c0_97] : memref<1x28x28x8x1xf32, #tpu.memory_space<vmem>>, vector<1x1x28x8x1xf32>
      %198 = vector.shape_cast %197 : vector<1x1x28x8x1xf32> to vector<28x8x1xf32>
      %199 = vector.extract_strided_slice %198 {offsets = [0, 0, 0], sizes = [24, 8, 1], strides = [1, 1, 1]} : vector<28x8x1xf32> to vector<24x8x1xf32>
      %200 = vector.shape_cast %199 : vector<24x8x1xf32> to vector<24x8x1xf32>
      %201 = vector.broadcast %200 : vector<24x8x1xf32> to vector<24x8x128xf32>
      %c5_98 = arith.constant 5 : index
      %c0_99 = arith.constant 0 : index
      %202 = vector.load %arg2[%c5_98, %c0_99] : memref<32x128xf32, #tpu.memory_space<vmem>>, vector<1x128xf32>
      %203 = vector.shape_cast %202 : vector<1x128xf32> to vector<128xf32>
      %204 = vector.shape_cast %203 : vector<128xf32> to vector<1x1x128xf32>
      %205 = vector.broadcast %204 : vector<1x1x128xf32> to vector<24x8x128xf32>
      %206 = arith.mulf %201, %205 : vector<24x8x128xf32>
      %207 = arith.addf %193, %206 : vector<24x8x128xf32>
      %c0_100 = arith.constant 0 : index
      %c0_101 = arith.constant 0 : index
      %208 = vector.load %arg2[%c0_100, %c0_101] : memref<32x128xf32, #tpu.memory_space<vmem>>, vector<1x128xf32>
      %209 = vector.shape_cast %208 : vector<1x128xf32> to vector<128xf32>
      %210 = vector.shape_cast %209 : vector<128xf32> to vector<1x1x128xf32>
      %211 = vector.broadcast %210 : vector<1x1x128xf32> to vector<24x8x128xf32>
      %212 = arith.mulf %201, %211 : vector<24x8x128xf32>
      %213 = arith.addf %143, %212 : vector<24x8x128xf32>
      %214 = vector.extract_strided_slice %198 {offsets = [1, 0, 0], sizes = [24, 8, 1], strides = [1, 1, 1]} : vector<28x8x1xf32> to vector<24x8x1xf32>
      %215 = vector.shape_cast %214 : vector<24x8x1xf32> to vector<24x8x1xf32>
      %216 = vector.broadcast %215 : vector<24x8x1xf32> to vector<24x8x128xf32>
      %c6_102 = arith.constant 6 : index
      %c0_103 = arith.constant 0 : index
      %217 = vector.load %arg2[%c6_102, %c0_103] : memref<32x128xf32, #tpu.memory_space<vmem>>, vector<1x128xf32>
      %218 = vector.shape_cast %217 : vector<1x128xf32> to vector<128xf32>
      %219 = vector.shape_cast %218 : vector<128xf32> to vector<1x1x128xf32>
      %220 = vector.broadcast %219 : vector<1x1x128xf32> to vector<24x8x128xf32>
      %221 = arith.mulf %216, %220 : vector<24x8x128xf32>
      %222 = arith.addf %207, %221 : vector<24x8x128xf32>
      %c1_104 = arith.constant 1 : index
      %c0_105 = arith.constant 0 : index
      %223 = vector.load %arg2[%c1_104, %c0_105] : memref<32x128xf32, #tpu.memory_space<vmem>>, vector<1x128xf32>
      %224 = vector.shape_cast %223 : vector<1x128xf32> to vector<128xf32>
      %225 = vector.shape_cast %224 : vector<128xf32> to vector<1x1x128xf32>
      %226 = vector.broadcast %225 : vector<1x1x128xf32> to vector<24x8x128xf32>
      %227 = arith.mulf %216, %226 : vector<24x8x128xf32>
      %228 = arith.addf %213, %227 : vector<24x8x128xf32>
      %229 = vector.extract_strided_slice %198 {offsets = [2, 0, 0], sizes = [24, 8, 1], strides = [1, 1, 1]} : vector<28x8x1xf32> to vector<24x8x1xf32>
      %230 = vector.shape_cast %229 : vector<24x8x1xf32> to vector<24x8x1xf32>
      %231 = vector.broadcast %230 : vector<24x8x1xf32> to vector<24x8x128xf32>
      %c7_106 = arith.constant 7 : index
      %c0_107 = arith.constant 0 : index
      %232 = vector.load %arg2[%c7_106, %c0_107] : memref<32x128xf32, #tpu.memory_space<vmem>>, vector<1x128xf32>
      %233 = vector.shape_cast %232 : vector<1x128xf32> to vector<128xf32>
      %234 = vector.shape_cast %233 : vector<128xf32> to vector<1x1x128xf32>
      %235 = vector.broadcast %234 : vector<1x1x128xf32> to vector<24x8x128xf32>
      %236 = arith.mulf %231, %235 : vector<24x8x128xf32>
      %237 = arith.addf %222, %236 : vector<24x8x128xf32>
      %c2_108 = arith.constant 2 : index
      %c0_109 = arith.constant 0 : index
      %238 = vector.load %arg2[%c2_108, %c0_109] : memref<32x128xf32, #tpu.memory_space<vmem>>, vector<1x128xf32>
      %239 = vector.shape_cast %238 : vector<1x128xf32> to vector<128xf32>
      %240 = vector.shape_cast %239 : vector<128xf32> to vector<1x1x128xf32>
      %241 = vector.broadcast %240 : vector<1x1x128xf32> to vector<24x8x128xf32>
      %242 = arith.mulf %231, %241 : vector<24x8x128xf32>
      %243 = arith.addf %228, %242 : vector<24x8x128xf32>
      %244 = vector.extract_strided_slice %198 {offsets = [3, 0, 0], sizes = [24, 8, 1], strides = [1, 1, 1]} : vector<28x8x1xf32> to vector<24x8x1xf32>
      %245 = vector.shape_cast %244 : vector<24x8x1xf32> to vector<24x8x1xf32>
      %246 = vector.broadcast %245 : vector<24x8x1xf32> to vector<24x8x128xf32>
      %c8_110 = arith.constant 8 : index
      %c0_111 = arith.constant 0 : index
      %247 = vector.load %arg2[%c8_110, %c0_111] : memref<32x128xf32, #tpu.memory_space<vmem>>, vector<1x128xf32>
      %248 = vector.shape_cast %247 : vector<1x128xf32> to vector<128xf32>
      %249 = vector.shape_cast %248 : vector<128xf32> to vector<1x1x128xf32>
      %250 = vector.broadcast %249 : vector<1x1x128xf32> to vector<24x8x128xf32>
      %251 = arith.mulf %246, %250 : vector<24x8x128xf32>
      %252 = arith.addf %237, %251 : vector<24x8x128xf32>
      %c3_112 = arith.constant 3 : index
      %c0_113 = arith.constant 0 : index
      %253 = vector.load %arg2[%c3_112, %c0_113] : memref<32x128xf32, #tpu.memory_space<vmem>>, vector<1x128xf32>
      %254 = vector.shape_cast %253 : vector<1x128xf32> to vector<128xf32>
      %255 = vector.shape_cast %254 : vector<128xf32> to vector<1x1x128xf32>
      %256 = vector.broadcast %255 : vector<1x1x128xf32> to vector<24x8x128xf32>
      %257 = arith.mulf %246, %256 : vector<24x8x128xf32>
      %258 = arith.addf %243, %257 : vector<24x8x128xf32>
      %259 = vector.extract_strided_slice %198 {offsets = [4, 0, 0], sizes = [24, 8, 1], strides = [1, 1, 1]} : vector<28x8x1xf32> to vector<24x8x1xf32>
      %260 = vector.shape_cast %259 : vector<24x8x1xf32> to vector<24x8x1xf32>
      %261 = vector.broadcast %260 : vector<24x8x1xf32> to vector<24x8x128xf32>
      %c9_114 = arith.constant 9 : index
      %c0_115 = arith.constant 0 : index
      %262 = vector.load %arg2[%c9_114, %c0_115] : memref<32x128xf32, #tpu.memory_space<vmem>>, vector<1x128xf32>
      %263 = vector.shape_cast %262 : vector<1x128xf32> to vector<128xf32>
      %264 = vector.shape_cast %263 : vector<128xf32> to vector<1x1x128xf32>
      %265 = vector.broadcast %264 : vector<1x1x128xf32> to vector<24x8x128xf32>
      %266 = arith.mulf %261, %265 : vector<24x8x128xf32>
      %267 = arith.addf %252, %266 : vector<24x8x128xf32>
      %c4_116 = arith.constant 4 : index
      %c0_117 = arith.constant 0 : index
      %268 = vector.load %arg2[%c4_116, %c0_117] : memref<32x128xf32, #tpu.memory_space<vmem>>, vector<1x128xf32>
      %269 = vector.shape_cast %268 : vector<1x128xf32> to vector<128xf32>
      %270 = vector.shape_cast %269 : vector<128xf32> to vector<1x1x128xf32>
      %271 = vector.broadcast %270 : vector<1x1x128xf32> to vector<24x8x128xf32>
      %272 = arith.mulf %261, %271 : vector<24x8x128xf32>
      %273 = arith.addf %258, %272 : vector<24x8x128xf32>
      %c2_i32_118 = arith.constant 2 : i32
      %274 = arith.muli %c2_i32_118, %131 : i32
      %c2_i32_119 = arith.constant 2 : i32
      %275 = arith.addi %274, %c2_i32_119 : i32
      %c0_120 = arith.constant 0 : index
      %276 = arith.index_cast %275 : i32 to index
      %c0_121 = arith.constant 0 : index
      %c0_122 = arith.constant 0 : index
      %c0_123 = arith.constant 0 : index
      %277 = vector.load %arg1[%c0_120, %276, %c0_121, %c0_122, %c0_123] : memref<1x28x28x8x1xf32, #tpu.memory_space<vmem>>, vector<1x1x28x8x1xf32>
      %278 = vector.shape_cast %277 : vector<1x1x28x8x1xf32> to vector<28x8x1xf32>
      %279 = vector.extract_strided_slice %278 {offsets = [0, 0, 0], sizes = [24, 8, 1], strides = [1, 1, 1]} : vector<28x8x1xf32> to vector<24x8x1xf32>
      %280 = vector.shape_cast %279 : vector<24x8x1xf32> to vector<24x8x1xf32>
      %281 = vector.broadcast %280 : vector<24x8x1xf32> to vector<24x8x128xf32>
      %c10_124 = arith.constant 10 : index
      %c0_125 = arith.constant 0 : index
      %282 = vector.load %arg2[%c10_124, %c0_125] : memref<32x128xf32, #tpu.memory_space<vmem>>, vector<1x128xf32>
      %283 = vector.shape_cast %282 : vector<1x128xf32> to vector<128xf32>
      %284 = vector.shape_cast %283 : vector<128xf32> to vector<1x1x128xf32>
      %285 = vector.broadcast %284 : vector<1x1x128xf32> to vector<24x8x128xf32>
      %286 = arith.mulf %281, %285 : vector<24x8x128xf32>
      %287 = arith.addf %267, %286 : vector<24x8x128xf32>
      %c5_126 = arith.constant 5 : index
      %c0_127 = arith.constant 0 : index
      %288 = vector.load %arg2[%c5_126, %c0_127] : memref<32x128xf32, #tpu.memory_space<vmem>>, vector<1x128xf32>
      %289 = vector.shape_cast %288 : vector<1x128xf32> to vector<128xf32>
      %290 = vector.shape_cast %289 : vector<128xf32> to vector<1x1x128xf32>
      %291 = vector.broadcast %290 : vector<1x1x128xf32> to vector<24x8x128xf32>
      %292 = arith.mulf %281, %291 : vector<24x8x128xf32>
      %293 = arith.addf %273, %292 : vector<24x8x128xf32>
      %294 = vector.extract_strided_slice %278 {offsets = [1, 0, 0], sizes = [24, 8, 1], strides = [1, 1, 1]} : vector<28x8x1xf32> to vector<24x8x1xf32>
      %295 = vector.shape_cast %294 : vector<24x8x1xf32> to vector<24x8x1xf32>
      %296 = vector.broadcast %295 : vector<24x8x1xf32> to vector<24x8x128xf32>
      %c11_128 = arith.constant 11 : index
      %c0_129 = arith.constant 0 : index
      %297 = vector.load %arg2[%c11_128, %c0_129] : memref<32x128xf32, #tpu.memory_space<vmem>>, vector<1x128xf32>
      %298 = vector.shape_cast %297 : vector<1x128xf32> to vector<128xf32>
      %299 = vector.shape_cast %298 : vector<128xf32> to vector<1x1x128xf32>
      %300 = vector.broadcast %299 : vector<1x1x128xf32> to vector<24x8x128xf32>
      %301 = arith.mulf %296, %300 : vector<24x8x128xf32>
      %302 = arith.addf %287, %301 : vector<24x8x128xf32>
      %c6_130 = arith.constant 6 : index
      %c0_131 = arith.constant 0 : index
      %303 = vector.load %arg2[%c6_130, %c0_131] : memref<32x128xf32, #tpu.memory_space<vmem>>, vector<1x128xf32>
      %304 = vector.shape_cast %303 : vector<1x128xf32> to vector<128xf32>
      %305 = vector.shape_cast %304 : vector<128xf32> to vector<1x1x128xf32>
      %306 = vector.broadcast %305 : vector<1x1x128xf32> to vector<24x8x128xf32>
      %307 = arith.mulf %296, %306 : vector<24x8x128xf32>
      %308 = arith.addf %293, %307 : vector<24x8x128xf32>
      %309 = vector.extract_strided_slice %278 {offsets = [2, 0, 0], sizes = [24, 8, 1], strides = [1, 1, 1]} : vector<28x8x1xf32> to vector<24x8x1xf32>
      %310 = vector.shape_cast %309 : vector<24x8x1xf32> to vector<24x8x1xf32>
      %311 = vector.broadcast %310 : vector<24x8x1xf32> to vector<24x8x128xf32>
      %c12_132 = arith.constant 12 : index
      %c0_133 = arith.constant 0 : index
      %312 = vector.load %arg2[%c12_132, %c0_133] : memref<32x128xf32, #tpu.memory_space<vmem>>, vector<1x128xf32>
      %313 = vector.shape_cast %312 : vector<1x128xf32> to vector<128xf32>
      %314 = vector.shape_cast %313 : vector<128xf32> to vector<1x1x128xf32>
      %315 = vector.broadcast %314 : vector<1x1x128xf32> to vector<24x8x128xf32>
      %316 = arith.mulf %311, %315 : vector<24x8x128xf32>
      %317 = arith.addf %302, %316 : vector<24x8x128xf32>
      %c7_134 = arith.constant 7 : index
      %c0_135 = arith.constant 0 : index
      %318 = vector.load %arg2[%c7_134, %c0_135] : memref<32x128xf32, #tpu.memory_space<vmem>>, vector<1x128xf32>
      %319 = vector.shape_cast %318 : vector<1x128xf32> to vector<128xf32>
      %320 = vector.shape_cast %319 : vector<128xf32> to vector<1x1x128xf32>
      %321 = vector.broadcast %320 : vector<1x1x128xf32> to vector<24x8x128xf32>
      %322 = arith.mulf %311, %321 : vector<24x8x128xf32>
      %323 = arith.addf %308, %322 : vector<24x8x128xf32>
      %324 = vector.extract_strided_slice %278 {offsets = [3, 0, 0], sizes = [24, 8, 1], strides = [1, 1, 1]} : vector<28x8x1xf32> to vector<24x8x1xf32>
      %325 = vector.shape_cast %324 : vector<24x8x1xf32> to vector<24x8x1xf32>
      %326 = vector.broadcast %325 : vector<24x8x1xf32> to vector<24x8x128xf32>
      %c13_136 = arith.constant 13 : index
      %c0_137 = arith.constant 0 : index
      %327 = vector.load %arg2[%c13_136, %c0_137] : memref<32x128xf32, #tpu.memory_space<vmem>>, vector<1x128xf32>
      %328 = vector.shape_cast %327 : vector<1x128xf32> to vector<128xf32>
      %329 = vector.shape_cast %328 : vector<128xf32> to vector<1x1x128xf32>
      %330 = vector.broadcast %329 : vector<1x1x128xf32> to vector<24x8x128xf32>
      %331 = arith.mulf %326, %330 : vector<24x8x128xf32>
      %332 = arith.addf %317, %331 : vector<24x8x128xf32>
      %c8_138 = arith.constant 8 : index
      %c0_139 = arith.constant 0 : index
      %333 = vector.load %arg2[%c8_138, %c0_139] : memref<32x128xf32, #tpu.memory_space<vmem>>, vector<1x128xf32>
      %334 = vector.shape_cast %333 : vector<1x128xf32> to vector<128xf32>
      %335 = vector.shape_cast %334 : vector<128xf32> to vector<1x1x128xf32>
      %336 = vector.broadcast %335 : vector<1x1x128xf32> to vector<24x8x128xf32>
      %337 = arith.mulf %326, %336 : vector<24x8x128xf32>
      %338 = arith.addf %323, %337 : vector<24x8x128xf32>
      %339 = vector.extract_strided_slice %278 {offsets = [4, 0, 0], sizes = [24, 8, 1], strides = [1, 1, 1]} : vector<28x8x1xf32> to vector<24x8x1xf32>
      %340 = vector.shape_cast %339 : vector<24x8x1xf32> to vector<24x8x1xf32>
      %341 = vector.broadcast %340 : vector<24x8x1xf32> to vector<24x8x128xf32>
      %c14_140 = arith.constant 14 : index
      %c0_141 = arith.constant 0 : index
      %342 = vector.load %arg2[%c14_140, %c0_141] : memref<32x128xf32, #tpu.memory_space<vmem>>, vector<1x128xf32>
      %343 = vector.shape_cast %342 : vector<1x128xf32> to vector<128xf32>
      %344 = vector.shape_cast %343 : vector<128xf32> to vector<1x1x128xf32>
      %345 = vector.broadcast %344 : vector<1x1x128xf32> to vector<24x8x128xf32>
      %346 = arith.mulf %341, %345 : vector<24x8x128xf32>
      %347 = arith.addf %332, %346 : vector<24x8x128xf32>
      %c9_142 = arith.constant 9 : index
      %c0_143 = arith.constant 0 : index
      %348 = vector.load %arg2[%c9_142, %c0_143] : memref<32x128xf32, #tpu.memory_space<vmem>>, vector<1x128xf32>
      %349 = vector.shape_cast %348 : vector<1x128xf32> to vector<128xf32>
      %350 = vector.shape_cast %349 : vector<128xf32> to vector<1x1x128xf32>
      %351 = vector.broadcast %350 : vector<1x1x128xf32> to vector<24x8x128xf32>
      %352 = arith.mulf %341, %351 : vector<24x8x128xf32>
      %353 = arith.addf %338, %352 : vector<24x8x128xf32>
      %c2_i32_144 = arith.constant 2 : i32
      %354 = arith.muli %c2_i32_144, %131 : i32
      %c3_i32 = arith.constant 3 : i32
      %355 = arith.addi %354, %c3_i32 : i32
      %c0_145 = arith.constant 0 : index
      %356 = arith.index_cast %355 : i32 to index
      %c0_146 = arith.constant 0 : index
      %c0_147 = arith.constant 0 : index
      %c0_148 = arith.constant 0 : index
      %357 = vector.load %arg1[%c0_145, %356, %c0_146, %c0_147, %c0_148] : memref<1x28x28x8x1xf32, #tpu.memory_space<vmem>>, vector<1x1x28x8x1xf32>
      %358 = vector.shape_cast %357 : vector<1x1x28x8x1xf32> to vector<28x8x1xf32>
      %359 = vector.extract_strided_slice %358 {offsets = [0, 0, 0], sizes = [24, 8, 1], strides = [1, 1, 1]} : vector<28x8x1xf32> to vector<24x8x1xf32>
      %360 = vector.shape_cast %359 : vector<24x8x1xf32> to vector<24x8x1xf32>
      %361 = vector.broadcast %360 : vector<24x8x1xf32> to vector<24x8x128xf32>
      %c15_149 = arith.constant 15 : index
      %c0_150 = arith.constant 0 : index
      %362 = vector.load %arg2[%c15_149, %c0_150] : memref<32x128xf32, #tpu.memory_space<vmem>>, vector<1x128xf32>
      %363 = vector.shape_cast %362 : vector<1x128xf32> to vector<128xf32>
      %364 = vector.shape_cast %363 : vector<128xf32> to vector<1x1x128xf32>
      %365 = vector.broadcast %364 : vector<1x1x128xf32> to vector<24x8x128xf32>
      %366 = arith.mulf %361, %365 : vector<24x8x128xf32>
      %367 = arith.addf %347, %366 : vector<24x8x128xf32>
      %c10_151 = arith.constant 10 : index
      %c0_152 = arith.constant 0 : index
      %368 = vector.load %arg2[%c10_151, %c0_152] : memref<32x128xf32, #tpu.memory_space<vmem>>, vector<1x128xf32>
      %369 = vector.shape_cast %368 : vector<1x128xf32> to vector<128xf32>
      %370 = vector.shape_cast %369 : vector<128xf32> to vector<1x1x128xf32>
      %371 = vector.broadcast %370 : vector<1x1x128xf32> to vector<24x8x128xf32>
      %372 = arith.mulf %361, %371 : vector<24x8x128xf32>
      %373 = arith.addf %353, %372 : vector<24x8x128xf32>
      %374 = vector.extract_strided_slice %358 {offsets = [1, 0, 0], sizes = [24, 8, 1], strides = [1, 1, 1]} : vector<28x8x1xf32> to vector<24x8x1xf32>
      %375 = vector.shape_cast %374 : vector<24x8x1xf32> to vector<24x8x1xf32>
      %376 = vector.broadcast %375 : vector<24x8x1xf32> to vector<24x8x128xf32>
      %c16 = arith.constant 16 : index
      %c0_153 = arith.constant 0 : index
      %377 = vector.load %arg2[%c16, %c0_153] : memref<32x128xf32, #tpu.memory_space<vmem>>, vector<1x128xf32>
      %378 = vector.shape_cast %377 : vector<1x128xf32> to vector<128xf32>
      %379 = vector.shape_cast %378 : vector<128xf32> to vector<1x1x128xf32>
      %380 = vector.broadcast %379 : vector<1x1x128xf32> to vector<24x8x128xf32>
      %381 = arith.mulf %376, %380 : vector<24x8x128xf32>
      %382 = arith.addf %367, %381 : vector<24x8x128xf32>
      %c11_154 = arith.constant 11 : index
      %c0_155 = arith.constant 0 : index
      %383 = vector.load %arg2[%c11_154, %c0_155] : memref<32x128xf32, #tpu.memory_space<vmem>>, vector<1x128xf32>
      %384 = vector.shape_cast %383 : vector<1x128xf32> to vector<128xf32>
      %385 = vector.shape_cast %384 : vector<128xf32> to vector<1x1x128xf32>
      %386 = vector.broadcast %385 : vector<1x1x128xf32> to vector<24x8x128xf32>
      %387 = arith.mulf %376, %386 : vector<24x8x128xf32>
      %388 = arith.addf %373, %387 : vector<24x8x128xf32>
      %389 = vector.extract_strided_slice %358 {offsets = [2, 0, 0], sizes = [24, 8, 1], strides = [1, 1, 1]} : vector<28x8x1xf32> to vector<24x8x1xf32>
      %390 = vector.shape_cast %389 : vector<24x8x1xf32> to vector<24x8x1xf32>
      %391 = vector.broadcast %390 : vector<24x8x1xf32> to vector<24x8x128xf32>
      %c17 = arith.constant 17 : index
      %c0_156 = arith.constant 0 : index
      %392 = vector.load %arg2[%c17, %c0_156] : memref<32x128xf32, #tpu.memory_space<vmem>>, vector<1x128xf32>
      %393 = vector.shape_cast %392 : vector<1x128xf32> to vector<128xf32>
      %394 = vector.shape_cast %393 : vector<128xf32> to vector<1x1x128xf32>
      %395 = vector.broadcast %394 : vector<1x1x128xf32> to vector<24x8x128xf32>
      %396 = arith.mulf %391, %395 : vector<24x8x128xf32>
      %397 = arith.addf %382, %396 : vector<24x8x128xf32>
      %c12_157 = arith.constant 12 : index
      %c0_158 = arith.constant 0 : index
      %398 = vector.load %arg2[%c12_157, %c0_158] : memref<32x128xf32, #tpu.memory_space<vmem>>, vector<1x128xf32>
      %399 = vector.shape_cast %398 : vector<1x128xf32> to vector<128xf32>
      %400 = vector.shape_cast %399 : vector<128xf32> to vector<1x1x128xf32>
      %401 = vector.broadcast %400 : vector<1x1x128xf32> to vector<24x8x128xf32>
      %402 = arith.mulf %391, %401 : vector<24x8x128xf32>
      %403 = arith.addf %388, %402 : vector<24x8x128xf32>
      %404 = vector.extract_strided_slice %358 {offsets = [3, 0, 0], sizes = [24, 8, 1], strides = [1, 1, 1]} : vector<28x8x1xf32> to vector<24x8x1xf32>
      %405 = vector.shape_cast %404 : vector<24x8x1xf32> to vector<24x8x1xf32>
      %406 = vector.broadcast %405 : vector<24x8x1xf32> to vector<24x8x128xf32>
      %c18 = arith.constant 18 : index
      %c0_159 = arith.constant 0 : index
      %407 = vector.load %arg2[%c18, %c0_159] : memref<32x128xf32, #tpu.memory_space<vmem>>, vector<1x128xf32>
      %408 = vector.shape_cast %407 : vector<1x128xf32> to vector<128xf32>
      %409 = vector.shape_cast %408 : vector<128xf32> to vector<1x1x128xf32>
      %410 = vector.broadcast %409 : vector<1x1x128xf32> to vector<24x8x128xf32>
      %411 = arith.mulf %406, %410 : vector<24x8x128xf32>
      %412 = arith.addf %397, %411 : vector<24x8x128xf32>
      %c13_160 = arith.constant 13 : index
      %c0_161 = arith.constant 0 : index
      %413 = vector.load %arg2[%c13_160, %c0_161] : memref<32x128xf32, #tpu.memory_space<vmem>>, vector<1x128xf32>
      %414 = vector.shape_cast %413 : vector<1x128xf32> to vector<128xf32>
      %415 = vector.shape_cast %414 : vector<128xf32> to vector<1x1x128xf32>
      %416 = vector.broadcast %415 : vector<1x1x128xf32> to vector<24x8x128xf32>
      %417 = arith.mulf %406, %416 : vector<24x8x128xf32>
      %418 = arith.addf %403, %417 : vector<24x8x128xf32>
      %419 = vector.extract_strided_slice %358 {offsets = [4, 0, 0], sizes = [24, 8, 1], strides = [1, 1, 1]} : vector<28x8x1xf32> to vector<24x8x1xf32>
      %420 = vector.shape_cast %419 : vector<24x8x1xf32> to vector<24x8x1xf32>
      %421 = vector.broadcast %420 : vector<24x8x1xf32> to vector<24x8x128xf32>
      %c19 = arith.constant 19 : index
      %c0_162 = arith.constant 0 : index
      %422 = vector.load %arg2[%c19, %c0_162] : memref<32x128xf32, #tpu.memory_space<vmem>>, vector<1x128xf32>
      %423 = vector.shape_cast %422 : vector<1x128xf32> to vector<128xf32>
      %424 = vector.shape_cast %423 : vector<128xf32> to vector<1x1x128xf32>
      %425 = vector.broadcast %424 : vector<1x1x128xf32> to vector<24x8x128xf32>
      %426 = arith.mulf %421, %425 : vector<24x8x128xf32>
      %427 = arith.addf %412, %426 : vector<24x8x128xf32>
      %c14_163 = arith.constant 14 : index
      %c0_164 = arith.constant 0 : index
      %428 = vector.load %arg2[%c14_163, %c0_164] : memref<32x128xf32, #tpu.memory_space<vmem>>, vector<1x128xf32>
      %429 = vector.shape_cast %428 : vector<1x128xf32> to vector<128xf32>
      %430 = vector.shape_cast %429 : vector<128xf32> to vector<1x1x128xf32>
      %431 = vector.broadcast %430 : vector<1x1x128xf32> to vector<24x8x128xf32>
      %432 = arith.mulf %421, %431 : vector<24x8x128xf32>
      %433 = arith.addf %418, %432 : vector<24x8x128xf32>
      %c2_i32_165 = arith.constant 2 : i32
      %434 = arith.muli %c2_i32_165, %131 : i32
      %c4_i32 = arith.constant 4 : i32
      %435 = arith.addi %434, %c4_i32 : i32
      %c0_166 = arith.constant 0 : index
      %436 = arith.index_cast %435 : i32 to index
      %c0_167 = arith.constant 0 : index
      %c0_168 = arith.constant 0 : index
      %c0_169 = arith.constant 0 : index
      %437 = vector.load %arg1[%c0_166, %436, %c0_167, %c0_168, %c0_169] : memref<1x28x28x8x1xf32, #tpu.memory_space<vmem>>, vector<1x1x28x8x1xf32>
      %438 = vector.shape_cast %437 : vector<1x1x28x8x1xf32> to vector<28x8x1xf32>
      %439 = vector.extract_strided_slice %438 {offsets = [0, 0, 0], sizes = [24, 8, 1], strides = [1, 1, 1]} : vector<28x8x1xf32> to vector<24x8x1xf32>
      %440 = vector.shape_cast %439 : vector<24x8x1xf32> to vector<24x8x1xf32>
      %441 = vector.broadcast %440 : vector<24x8x1xf32> to vector<24x8x128xf32>
      %c20 = arith.constant 20 : index
      %c0_170 = arith.constant 0 : index
      %442 = vector.load %arg2[%c20, %c0_170] : memref<32x128xf32, #tpu.memory_space<vmem>>, vector<1x128xf32>
      %443 = vector.shape_cast %442 : vector<1x128xf32> to vector<128xf32>
      %444 = vector.shape_cast %443 : vector<128xf32> to vector<1x1x128xf32>
      %445 = vector.broadcast %444 : vector<1x1x128xf32> to vector<24x8x128xf32>
      %446 = arith.mulf %441, %445 : vector<24x8x128xf32>
      %447 = arith.addf %427, %446 : vector<24x8x128xf32>
      %c15_171 = arith.constant 15 : index
      %c0_172 = arith.constant 0 : index
      %448 = vector.load %arg2[%c15_171, %c0_172] : memref<32x128xf32, #tpu.memory_space<vmem>>, vector<1x128xf32>
      %449 = vector.shape_cast %448 : vector<1x128xf32> to vector<128xf32>
      %450 = vector.shape_cast %449 : vector<128xf32> to vector<1x1x128xf32>
      %451 = vector.broadcast %450 : vector<1x1x128xf32> to vector<24x8x128xf32>
      %452 = arith.mulf %441, %451 : vector<24x8x128xf32>
      %453 = arith.addf %433, %452 : vector<24x8x128xf32>
      %454 = vector.extract_strided_slice %438 {offsets = [1, 0, 0], sizes = [24, 8, 1], strides = [1, 1, 1]} : vector<28x8x1xf32> to vector<24x8x1xf32>
      %455 = vector.shape_cast %454 : vector<24x8x1xf32> to vector<24x8x1xf32>
      %456 = vector.broadcast %455 : vector<24x8x1xf32> to vector<24x8x128xf32>
      %c21 = arith.constant 21 : index
      %c0_173 = arith.constant 0 : index
      %457 = vector.load %arg2[%c21, %c0_173] : memref<32x128xf32, #tpu.memory_space<vmem>>, vector<1x128xf32>
      %458 = vector.shape_cast %457 : vector<1x128xf32> to vector<128xf32>
      %459 = vector.shape_cast %458 : vector<128xf32> to vector<1x1x128xf32>
      %460 = vector.broadcast %459 : vector<1x1x128xf32> to vector<24x8x128xf32>
      %461 = arith.mulf %456, %460 : vector<24x8x128xf32>
      %462 = arith.addf %447, %461 : vector<24x8x128xf32>
      %c16_174 = arith.constant 16 : index
      %c0_175 = arith.constant 0 : index
      %463 = vector.load %arg2[%c16_174, %c0_175] : memref<32x128xf32, #tpu.memory_space<vmem>>, vector<1x128xf32>
      %464 = vector.shape_cast %463 : vector<1x128xf32> to vector<128xf32>
      %465 = vector.shape_cast %464 : vector<128xf32> to vector<1x1x128xf32>
      %466 = vector.broadcast %465 : vector<1x1x128xf32> to vector<24x8x128xf32>
      %467 = arith.mulf %456, %466 : vector<24x8x128xf32>
      %468 = arith.addf %453, %467 : vector<24x8x128xf32>
      %469 = vector.extract_strided_slice %438 {offsets = [2, 0, 0], sizes = [24, 8, 1], strides = [1, 1, 1]} : vector<28x8x1xf32> to vector<24x8x1xf32>
      %470 = vector.shape_cast %469 : vector<24x8x1xf32> to vector<24x8x1xf32>
      %471 = vector.broadcast %470 : vector<24x8x1xf32> to vector<24x8x128xf32>
      %c22 = arith.constant 22 : index
      %c0_176 = arith.constant 0 : index
      %472 = vector.load %arg2[%c22, %c0_176] : memref<32x128xf32, #tpu.memory_space<vmem>>, vector<1x128xf32>
      %473 = vector.shape_cast %472 : vector<1x128xf32> to vector<128xf32>
      %474 = vector.shape_cast %473 : vector<128xf32> to vector<1x1x128xf32>
      %475 = vector.broadcast %474 : vector<1x1x128xf32> to vector<24x8x128xf32>
      %476 = arith.mulf %471, %475 : vector<24x8x128xf32>
      %477 = arith.addf %462, %476 : vector<24x8x128xf32>
      %c17_177 = arith.constant 17 : index
      %c0_178 = arith.constant 0 : index
      %478 = vector.load %arg2[%c17_177, %c0_178] : memref<32x128xf32, #tpu.memory_space<vmem>>, vector<1x128xf32>
      %479 = vector.shape_cast %478 : vector<1x128xf32> to vector<128xf32>
      %480 = vector.shape_cast %479 : vector<128xf32> to vector<1x1x128xf32>
      %481 = vector.broadcast %480 : vector<1x1x128xf32> to vector<24x8x128xf32>
      %482 = arith.mulf %471, %481 : vector<24x8x128xf32>
      %483 = arith.addf %468, %482 : vector<24x8x128xf32>
      %484 = vector.extract_strided_slice %438 {offsets = [3, 0, 0], sizes = [24, 8, 1], strides = [1, 1, 1]} : vector<28x8x1xf32> to vector<24x8x1xf32>
      %485 = vector.shape_cast %484 : vector<24x8x1xf32> to vector<24x8x1xf32>
      %486 = vector.broadcast %485 : vector<24x8x1xf32> to vector<24x8x128xf32>
      %c23 = arith.constant 23 : index
      %c0_179 = arith.constant 0 : index
      %487 = vector.load %arg2[%c23, %c0_179] : memref<32x128xf32, #tpu.memory_space<vmem>>, vector<1x128xf32>
      %488 = vector.shape_cast %487 : vector<1x128xf32> to vector<128xf32>
      %489 = vector.shape_cast %488 : vector<128xf32> to vector<1x1x128xf32>
      %490 = vector.broadcast %489 : vector<1x1x128xf32> to vector<24x8x128xf32>
      %491 = arith.mulf %486, %490 : vector<24x8x128xf32>
      %492 = arith.addf %477, %491 : vector<24x8x128xf32>
      %c18_180 = arith.constant 18 : index
      %c0_181 = arith.constant 0 : index
      %493 = vector.load %arg2[%c18_180, %c0_181] : memref<32x128xf32, #tpu.memory_space<vmem>>, vector<1x128xf32>
      %494 = vector.shape_cast %493 : vector<1x128xf32> to vector<128xf32>
      %495 = vector.shape_cast %494 : vector<128xf32> to vector<1x1x128xf32>
      %496 = vector.broadcast %495 : vector<1x1x128xf32> to vector<24x8x128xf32>
      %497 = arith.mulf %486, %496 : vector<24x8x128xf32>
      %498 = arith.addf %483, %497 : vector<24x8x128xf32>
      %499 = vector.extract_strided_slice %438 {offsets = [4, 0, 0], sizes = [24, 8, 1], strides = [1, 1, 1]} : vector<28x8x1xf32> to vector<24x8x1xf32>
      %500 = vector.shape_cast %499 : vector<24x8x1xf32> to vector<24x8x1xf32>
      %501 = vector.broadcast %500 : vector<24x8x1xf32> to vector<24x8x128xf32>
      %c24 = arith.constant 24 : index
      %c0_182 = arith.constant 0 : index
      %502 = vector.load %arg2[%c24, %c0_182] : memref<32x128xf32, #tpu.memory_space<vmem>>, vector<1x128xf32>
      %503 = vector.shape_cast %502 : vector<1x128xf32> to vector<128xf32>
      %504 = vector.shape_cast %503 : vector<128xf32> to vector<1x1x128xf32>
      %505 = vector.broadcast %504 : vector<1x1x128xf32> to vector<24x8x128xf32>
      %506 = arith.mulf %501, %505 : vector<24x8x128xf32>
      %507 = arith.addf %492, %506 : vector<24x8x128xf32>
      %c19_183 = arith.constant 19 : index
      %c0_184 = arith.constant 0 : index
      %508 = vector.load %arg2[%c19_183, %c0_184] : memref<32x128xf32, #tpu.memory_space<vmem>>, vector<1x128xf32>
      %509 = vector.shape_cast %508 : vector<1x128xf32> to vector<128xf32>
      %510 = vector.shape_cast %509 : vector<128xf32> to vector<1x1x128xf32>
      %511 = vector.broadcast %510 : vector<1x1x128xf32> to vector<24x8x128xf32>
      %512 = arith.mulf %501, %511 : vector<24x8x128xf32>
      %513 = arith.addf %498, %512 : vector<24x8x128xf32>
      %c2_i32_185 = arith.constant 2 : i32
      %514 = arith.muli %c2_i32_185, %131 : i32
      %c5_i32_186 = arith.constant 5 : i32
      %515 = arith.addi %514, %c5_i32_186 : i32
      %c0_187 = arith.constant 0 : index
      %516 = arith.index_cast %515 : i32 to index
      %c0_188 = arith.constant 0 : index
      %c0_189 = arith.constant 0 : index
      %c0_190 = arith.constant 0 : index
      %517 = vector.load %arg1[%c0_187, %516, %c0_188, %c0_189, %c0_190] : memref<1x28x28x8x1xf32, #tpu.memory_space<vmem>>, vector<1x1x28x8x1xf32>
      %518 = vector.shape_cast %517 : vector<1x1x28x8x1xf32> to vector<28x8x1xf32>
      %519 = vector.extract_strided_slice %518 {offsets = [0, 0, 0], sizes = [24, 8, 1], strides = [1, 1, 1]} : vector<28x8x1xf32> to vector<24x8x1xf32>
      %520 = vector.shape_cast %519 : vector<24x8x1xf32> to vector<24x8x1xf32>
      %521 = vector.broadcast %520 : vector<24x8x1xf32> to vector<24x8x128xf32>
      %c20_191 = arith.constant 20 : index
      %c0_192 = arith.constant 0 : index
      %522 = vector.load %arg2[%c20_191, %c0_192] : memref<32x128xf32, #tpu.memory_space<vmem>>, vector<1x128xf32>
      %523 = vector.shape_cast %522 : vector<1x128xf32> to vector<128xf32>
      %524 = vector.shape_cast %523 : vector<128xf32> to vector<1x1x128xf32>
      %525 = vector.broadcast %524 : vector<1x1x128xf32> to vector<24x8x128xf32>
      %526 = arith.mulf %521, %525 : vector<24x8x128xf32>
      %527 = arith.addf %513, %526 : vector<24x8x128xf32>
      %528 = vector.extract_strided_slice %518 {offsets = [1, 0, 0], sizes = [24, 8, 1], strides = [1, 1, 1]} : vector<28x8x1xf32> to vector<24x8x1xf32>
      %529 = vector.shape_cast %528 : vector<24x8x1xf32> to vector<24x8x1xf32>
      %530 = vector.broadcast %529 : vector<24x8x1xf32> to vector<24x8x128xf32>
      %c21_193 = arith.constant 21 : index
      %c0_194 = arith.constant 0 : index
      %531 = vector.load %arg2[%c21_193, %c0_194] : memref<32x128xf32, #tpu.memory_space<vmem>>, vector<1x128xf32>
      %532 = vector.shape_cast %531 : vector<1x128xf32> to vector<128xf32>
      %533 = vector.shape_cast %532 : vector<128xf32> to vector<1x1x128xf32>
      %534 = vector.broadcast %533 : vector<1x1x128xf32> to vector<24x8x128xf32>
      %535 = arith.mulf %530, %534 : vector<24x8x128xf32>
      %536 = arith.addf %527, %535 : vector<24x8x128xf32>
      %537 = vector.extract_strided_slice %518 {offsets = [2, 0, 0], sizes = [24, 8, 1], strides = [1, 1, 1]} : vector<28x8x1xf32> to vector<24x8x1xf32>
      %538 = vector.shape_cast %537 : vector<24x8x1xf32> to vector<24x8x1xf32>
      %539 = vector.broadcast %538 : vector<24x8x1xf32> to vector<24x8x128xf32>
      %c22_195 = arith.constant 22 : index
      %c0_196 = arith.constant 0 : index
      %540 = vector.load %arg2[%c22_195, %c0_196] : memref<32x128xf32, #tpu.memory_space<vmem>>, vector<1x128xf32>
      %541 = vector.shape_cast %540 : vector<1x128xf32> to vector<128xf32>
      %542 = vector.shape_cast %541 : vector<128xf32> to vector<1x1x128xf32>
      %543 = vector.broadcast %542 : vector<1x1x128xf32> to vector<24x8x128xf32>
      %544 = arith.mulf %539, %543 : vector<24x8x128xf32>
      %545 = arith.addf %536, %544 : vector<24x8x128xf32>
      %546 = vector.extract_strided_slice %518 {offsets = [3, 0, 0], sizes = [24, 8, 1], strides = [1, 1, 1]} : vector<28x8x1xf32> to vector<24x8x1xf32>
      %547 = vector.shape_cast %546 : vector<24x8x1xf32> to vector<24x8x1xf32>
      %548 = vector.broadcast %547 : vector<24x8x1xf32> to vector<24x8x128xf32>
      %c23_197 = arith.constant 23 : index
      %c0_198 = arith.constant 0 : index
      %549 = vector.load %arg2[%c23_197, %c0_198] : memref<32x128xf32, #tpu.memory_space<vmem>>, vector<1x128xf32>
      %550 = vector.shape_cast %549 : vector<1x128xf32> to vector<128xf32>
      %551 = vector.shape_cast %550 : vector<128xf32> to vector<1x1x128xf32>
      %552 = vector.broadcast %551 : vector<1x1x128xf32> to vector<24x8x128xf32>
      %553 = arith.mulf %548, %552 : vector<24x8x128xf32>
      %554 = arith.addf %545, %553 : vector<24x8x128xf32>
      %555 = vector.extract_strided_slice %518 {offsets = [4, 0, 0], sizes = [24, 8, 1], strides = [1, 1, 1]} : vector<28x8x1xf32> to vector<24x8x1xf32>
      %556 = vector.shape_cast %555 : vector<24x8x1xf32> to vector<24x8x1xf32>
      %557 = vector.broadcast %556 : vector<24x8x1xf32> to vector<24x8x128xf32>
      %c24_199 = arith.constant 24 : index
      %c0_200 = arith.constant 0 : index
      %558 = vector.load %arg2[%c24_199, %c0_200] : memref<32x128xf32, #tpu.memory_space<vmem>>, vector<1x128xf32>
      %559 = vector.shape_cast %558 : vector<1x128xf32> to vector<128xf32>
      %560 = vector.shape_cast %559 : vector<128xf32> to vector<1x1x128xf32>
      %561 = vector.broadcast %560 : vector<1x1x128xf32> to vector<24x8x128xf32>
      %562 = arith.mulf %557, %561 : vector<24x8x128xf32>
      %563 = arith.addf %554, %562 : vector<24x8x128xf32>
      %cst_201 = arith.constant 0.000000e+00 : f32
      %564 = vector.broadcast %cst_201 : f32 to vector<24x8x128xf32>
      %565 = arith.maximumf %507, %564 : vector<24x8x128xf32>
      %cst_202 = arith.constant 0.000000e+00 : f32
      %566 = vector.broadcast %cst_202 : f32 to vector<24x8x128xf32>
      %567 = arith.maximumf %563, %566 : vector<24x8x128xf32>
      %568 = arith.maximumf %565, %567 : vector<24x8x128xf32>
      %569 = vector.shape_cast %568 : vector<24x8x128xf32> to vector<12x2x8x128xf32>
      %570 = vector.extract_strided_slice %569 {offsets = [0, 0, 0, 0], sizes = [12, 1, 8, 128], strides = [1, 1, 1, 1]} : vector<12x2x8x128xf32> to vector<12x1x8x128xf32>
      %571 = vector.shape_cast %570 : vector<12x1x8x128xf32> to vector<12x8x128xf32>
      %572 = vector.extract_strided_slice %569 {offsets = [0, 1, 0, 0], sizes = [12, 1, 8, 128], strides = [1, 1, 1, 1]} : vector<12x2x8x128xf32> to vector<12x1x8x128xf32>
      %573 = vector.shape_cast %572 : vector<12x1x8x128xf32> to vector<12x8x128xf32>
      %574 = arith.maximumf %571, %573 : vector<12x8x128xf32>
      %575 = arith.index_cast %131 : i32 to index
      %c0_203 = arith.constant 0 : index
      %c0_204 = arith.constant 0 : index
      %c0_205 = arith.constant 0 : index
      %576 = vector.load %arg11[%575, %c0_203, %c0_204, %c0_205] : memref<12x12x8x128xf32, #tpu.memory_space<vmem>>, vector<1x12x8x128xf32>
      %577 = vector.shape_cast %576 : vector<1x12x8x128xf32> to vector<12x8x128xf32>
      %578 = vector.shape_cast %574 : vector<12x8x128xf32> to vector<1x12x8x128xf32>
      tpu.vector_store %arg11[%575, %c0_203, %c0_204, %c0_205], %578 {strides = array<i32>} : memref<12x12x8x128xf32, #tpu.memory_space<vmem>>, vector<1x12x8x128xf32>,
    }
    %c12_i32_0 = arith.constant 12 : i32
    %c0 = arith.constant 0 : index
    %c0_1 = arith.constant 0 : index
    %1 = vector.load %arg5[%c0, %c0_1] : memref<1x128xf32, #tpu.memory_space<vmem>>, vector<1x128xf32>
    %2 = vector.shape_cast %1 : vector<1x128xf32> to vector<1x128xf32>
    %3 = vector.broadcast %2 : vector<1x128xf32> to vector<512x128xf32>
    %c0_2 = arith.constant 0 : index
    %c0_3 = arith.constant 0 : index
    %4 = vector.load %arg12[%c0_2, %c0_3] : memref<512x128xf32, #tpu.memory_space<vmem>>, vector<512x128xf32>
    tpu.vector_store %arg12[%c0_2, %c0_3], %3 {strides = array<i32>} : memref<512x128xf32, #tpu.memory_space<vmem>>, vector<512x128xf32>,
    %c0_i32_4 = arith.constant 0 : i32
    %c5_i32 = arith.constant 5 : i32
    %5 = arith.addi %c0_i32_4, %c5_i32 : i32
    %c1_i32_5 = arith.constant 1 : i32
    scf.for %arg13 = %c0_i32_4 to %5 step %c1_i32_5  : i32 {
      %c1_i32_69 = arith.constant 1 : i32
      %130 = arith.muli %arg13, %c1_i32_69 : i32
      %c0_i32_70 = arith.constant 0 : i32
      %131 = arith.addi %c0_i32_70, %130 : i32
      %c0_i32_71 = arith.constant 0 : i32
      %c5_i32_72 = arith.constant 5 : i32
      %132 = arith.addi %c0_i32_71, %c5_i32_72 : i32
      %c1_i32_73 = arith.constant 1 : i32
      scf.for %arg14 = %c0_i32_71 to %132 step %c1_i32_73  : i32 {
        %c1_i32_75 = arith.constant 1 : i32
        %133 = arith.muli %arg14, %c1_i32_75 : i32
        %c0_i32_76 = arith.constant 0 : i32
        %134 = arith.addi %c0_i32_76, %133 : i32
        %135 = arith.index_cast %131 : i32 to index
        %136 = arith.index_cast %134 : i32 to index
        %c0_77 = arith.constant 0 : index
        %c0_78 = arith.constant 0 : index
        %137 = vector.load %arg11[%135, %136, %c0_77, %c0_78] : memref<12x12x8x128xf32, #tpu.memory_space<vmem>>, vector<8x8x8x128xf32>
        %138 = vector.shape_cast %137 : vector<8x8x8x128xf32> to vector<512x128xf32>
        %c0_79 = arith.constant 0 : index
        %c0_80 = arith.constant 0 : index
        %139 = vector.load %arg12[%c0_79, %c0_80] : memref<512x128xf32, #tpu.memory_space<vmem>>, vector<512x128xf32>
        %c5_i32_81 = arith.constant 5 : i32
        %140 = arith.muli %131, %c5_i32_81 : i32
        %141 = arith.addi %140, %134 : i32
        %142 = arith.index_cast %141 : i32 to index
        %c0_82 = arith.constant 0 : index
        %c0_83 = arith.constant 0 : index
        %143 = vector.load %arg4[%142, %c0_82, %c0_83] : memref<25x128x128xf32, #tpu.memory_space<vmem>>, vector<1x128x128xf32>
        %144 = vector.shape_cast %143 : vector<1x128x128xf32> to vector<128x128xf32>
        %cst_84 = arith.constant dense<0.000000e+00> : vector<512x128xf32>
        %145 = tpu.matmul %138, %144, %cst_84 {dimension_numbers = #tpu.dot_dimension_numbers<[1], [0], [0], [1], [0, 0, 1, 1], [], []>} : vector<512x128xf32>, vector<128x128xf32>, vector<512x128xf32> -> vector<512x128xf32>
        %146 = arith.addf %139, %145 : vector<512x128xf32>
        %c0_85 = arith.constant 0 : index
        %c0_86 = arith.constant 0 : index
        %147 = vector.load %arg12[%c0_85, %c0_86] : memref<512x128xf32, #tpu.memory_space<vmem>>, vector<512x128xf32>
        tpu.vector_store %arg12[%c0_85, %c0_86], %146 {strides = array<i32>} : memref<512x128xf32, #tpu.memory_space<vmem>>, vector<512x128xf32>,
      }
      %c5_i32_74 = arith.constant 5 : i32
    }
    %c5_i32_6 = arith.constant 5 : i32
    %c0_7 = arith.constant 0 : index
    %c0_8 = arith.constant 0 : index
    %6 = vector.load %arg12[%c0_7, %c0_8] : memref<512x128xf32, #tpu.memory_space<vmem>>, vector<512x128xf32>
    %cst = arith.constant 0.000000e+00 : f32
    %7 = vector.broadcast %cst : f32 to vector<512x128xf32>
    %8 = arith.maximumf %6, %7 : vector<512x128xf32>
    %9 = vector.shape_cast %8 : vector<512x128xf32> to vector<8x8x8x128xf32>
    %10 = vector.shape_cast %9 : vector<8x8x8x128xf32> to vector<4x2x8x8x128xf32>
    %11 = vector.extract_strided_slice %10 {offsets = [0, 0, 0, 0, 0], sizes = [4, 1, 8, 8, 128], strides = [1, 1, 1, 1, 1]} : vector<4x2x8x8x128xf32> to vector<4x1x8x8x128xf32>
    %12 = vector.shape_cast %11 : vector<4x1x8x8x128xf32> to vector<4x8x8x128xf32>
    %13 = vector.extract_strided_slice %10 {offsets = [0, 1, 0, 0, 0], sizes = [4, 1, 8, 8, 128], strides = [1, 1, 1, 1, 1]} : vector<4x2x8x8x128xf32> to vector<4x1x8x8x128xf32>
    %14 = vector.shape_cast %13 : vector<4x1x8x8x128xf32> to vector<4x8x8x128xf32>
    %15 = arith.maximumf %12, %14 : vector<4x8x8x128xf32>
    %16 = vector.shape_cast %15 : vector<4x8x8x128xf32> to vector<4x4x2x8x128xf32>
    %17 = vector.extract_strided_slice %16 {offsets = [0, 0, 0, 0, 0], sizes = [4, 4, 1, 8, 128], strides = [1, 1, 1, 1, 1]} : vector<4x4x2x8x128xf32> to vector<4x4x1x8x128xf32>
    %18 = vector.shape_cast %17 : vector<4x4x1x8x128xf32> to vector<4x4x8x128xf32>
    %19 = vector.extract_strided_slice %16 {offsets = [0, 0, 1, 0, 0], sizes = [4, 4, 1, 8, 128], strides = [1, 1, 1, 1, 1]} : vector<4x4x2x8x128xf32> to vector<4x4x1x8x128xf32>
    %20 = vector.shape_cast %19 : vector<4x4x1x8x128xf32> to vector<4x4x8x128xf32>
    %21 = arith.maximumf %18, %20 : vector<4x4x8x128xf32>
    %cst_9 = arith.constant 0.000000e+00 : f32
    %22 = vector.broadcast %cst_9 : f32 to vector<8x512xf32>
    %c0_10 = arith.constant 0 : index
    %c0_11 = arith.constant 0 : index
    %23 = vector.load %arg7[%c0_10, %c0_11] : memref<1x512xf32, #tpu.memory_space<vmem>>, vector<1x512xf32>
    %24 = vector.broadcast %23 : vector<1x512xf32> to vector<8x512xf32>
    %25 = arith.addf %22, %24 : vector<8x512xf32>
    %26 = vector.extract_strided_slice %21 {offsets = [0, 0, 0, 0], sizes = [1, 1, 8, 128], strides = [1, 1, 1, 1]} : vector<4x4x8x128xf32> to vector<1x1x8x128xf32>
    %27 = vector.shape_cast %26 : vector<1x1x8x128xf32> to vector<8x128xf32>
    %c0_12 = arith.constant 0 : index
    %c0_13 = arith.constant 0 : index
    %c0_14 = arith.constant 0 : index
    %28 = vector.load %arg6[%c0_12, %c0_13, %c0_14] : memref<16x128x512xf32, #tpu.memory_space<vmem>>, vector<1x128x512xf32>
    %29 = vector.shape_cast %28 : vector<1x128x512xf32> to vector<128x512xf32>
    %cst_15 = arith.constant dense<0.000000e+00> : vector<8x512xf32>
    %30 = tpu.matmul %27, %29, %cst_15 {dimension_numbers = #tpu.dot_dimension_numbers<[1], [0], [0], [1], [0, 0, 1, 1], [], []>} : vector<8x128xf32>, vector<128x512xf32>, vector<8x512xf32> -> vector<8x512xf32>
    %31 = arith.addf %25, %30 : vector<8x512xf32>
    %32 = vector.extract_strided_slice %21 {offsets = [0, 1, 0, 0], sizes = [1, 1, 8, 128], strides = [1, 1, 1, 1]} : vector<4x4x8x128xf32> to vector<1x1x8x128xf32>
    %33 = vector.shape_cast %32 : vector<1x1x8x128xf32> to vector<8x128xf32>
    %c1 = arith.constant 1 : index
    %c0_16 = arith.constant 0 : index
    %c0_17 = arith.constant 0 : index
    %34 = vector.load %arg6[%c1, %c0_16, %c0_17] : memref<16x128x512xf32, #tpu.memory_space<vmem>>, vector<1x128x512xf32>
    %35 = vector.shape_cast %34 : vector<1x128x512xf32> to vector<128x512xf32>
    %cst_18 = arith.constant dense<0.000000e+00> : vector<8x512xf32>
    %36 = tpu.matmul %33, %35, %cst_18 {dimension_numbers = #tpu.dot_dimension_numbers<[1], [0], [0], [1], [0, 0, 1, 1], [], []>} : vector<8x128xf32>, vector<128x512xf32>, vector<8x512xf32> -> vector<8x512xf32>
    %37 = arith.addf %31, %36 : vector<8x512xf32>
    %38 = vector.extract_strided_slice %21 {offsets = [0, 2, 0, 0], sizes = [1, 1, 8, 128], strides = [1, 1, 1, 1]} : vector<4x4x8x128xf32> to vector<1x1x8x128xf32>
    %39 = vector.shape_cast %38 : vector<1x1x8x128xf32> to vector<8x128xf32>
    %c2 = arith.constant 2 : index
    %c0_19 = arith.constant 0 : index
    %c0_20 = arith.constant 0 : index
    %40 = vector.load %arg6[%c2, %c0_19, %c0_20] : memref<16x128x512xf32, #tpu.memory_space<vmem>>, vector<1x128x512xf32>
    %41 = vector.shape_cast %40 : vector<1x128x512xf32> to vector<128x512xf32>
    %cst_21 = arith.constant dense<0.000000e+00> : vector<8x512xf32>
    %42 = tpu.matmul %39, %41, %cst_21 {dimension_numbers = #tpu.dot_dimension_numbers<[1], [0], [0], [1], [0, 0, 1, 1], [], []>} : vector<8x128xf32>, vector<128x512xf32>, vector<8x512xf32> -> vector<8x512xf32>
    %43 = arith.addf %37, %42 : vector<8x512xf32>
    %44 = vector.extract_strided_slice %21 {offsets = [0, 3, 0, 0], sizes = [1, 1, 8, 128], strides = [1, 1, 1, 1]} : vector<4x4x8x128xf32> to vector<1x1x8x128xf32>
    %45 = vector.shape_cast %44 : vector<1x1x8x128xf32> to vector<8x128xf32>
    %c3 = arith.constant 3 : index
    %c0_22 = arith.constant 0 : index
    %c0_23 = arith.constant 0 : index
    %46 = vector.load %arg6[%c3, %c0_22, %c0_23] : memref<16x128x512xf32, #tpu.memory_space<vmem>>, vector<1x128x512xf32>
    %47 = vector.shape_cast %46 : vector<1x128x512xf32> to vector<128x512xf32>
    %cst_24 = arith.constant dense<0.000000e+00> : vector<8x512xf32>
    %48 = tpu.matmul %45, %47, %cst_24 {dimension_numbers = #tpu.dot_dimension_numbers<[1], [0], [0], [1], [0, 0, 1, 1], [], []>} : vector<8x128xf32>, vector<128x512xf32>, vector<8x512xf32> -> vector<8x512xf32>
    %49 = arith.addf %43, %48 : vector<8x512xf32>
    %50 = vector.extract_strided_slice %21 {offsets = [1, 0, 0, 0], sizes = [1, 1, 8, 128], strides = [1, 1, 1, 1]} : vector<4x4x8x128xf32> to vector<1x1x8x128xf32>
    %51 = vector.shape_cast %50 : vector<1x1x8x128xf32> to vector<8x128xf32>
    %c4 = arith.constant 4 : index
    %c0_25 = arith.constant 0 : index
    %c0_26 = arith.constant 0 : index
    %52 = vector.load %arg6[%c4, %c0_25, %c0_26] : memref<16x128x512xf32, #tpu.memory_space<vmem>>, vector<1x128x512xf32>
    %53 = vector.shape_cast %52 : vector<1x128x512xf32> to vector<128x512xf32>
    %cst_27 = arith.constant dense<0.000000e+00> : vector<8x512xf32>
    %54 = tpu.matmul %51, %53, %cst_27 {dimension_numbers = #tpu.dot_dimension_numbers<[1], [0], [0], [1], [0, 0, 1, 1], [], []>} : vector<8x128xf32>, vector<128x512xf32>, vector<8x512xf32> -> vector<8x512xf32>
    %55 = arith.addf %49, %54 : vector<8x512xf32>
    %56 = vector.extract_strided_slice %21 {offsets = [1, 1, 0, 0], sizes = [1, 1, 8, 128], strides = [1, 1, 1, 1]} : vector<4x4x8x128xf32> to vector<1x1x8x128xf32>
    %57 = vector.shape_cast %56 : vector<1x1x8x128xf32> to vector<8x128xf32>
    %c5 = arith.constant 5 : index
    %c0_28 = arith.constant 0 : index
    %c0_29 = arith.constant 0 : index
    %58 = vector.load %arg6[%c5, %c0_28, %c0_29] : memref<16x128x512xf32, #tpu.memory_space<vmem>>, vector<1x128x512xf32>
    %59 = vector.shape_cast %58 : vector<1x128x512xf32> to vector<128x512xf32>
    %cst_30 = arith.constant dense<0.000000e+00> : vector<8x512xf32>
    %60 = tpu.matmul %57, %59, %cst_30 {dimension_numbers = #tpu.dot_dimension_numbers<[1], [0], [0], [1], [0, 0, 1, 1], [], []>} : vector<8x128xf32>, vector<128x512xf32>, vector<8x512xf32> -> vector<8x512xf32>
    %61 = arith.addf %55, %60 : vector<8x512xf32>
    %62 = vector.extract_strided_slice %21 {offsets = [1, 2, 0, 0], sizes = [1, 1, 8, 128], strides = [1, 1, 1, 1]} : vector<4x4x8x128xf32> to vector<1x1x8x128xf32>
    %63 = vector.shape_cast %62 : vector<1x1x8x128xf32> to vector<8x128xf32>
    %c6 = arith.constant 6 : index
    %c0_31 = arith.constant 0 : index
    %c0_32 = arith.constant 0 : index
    %64 = vector.load %arg6[%c6, %c0_31, %c0_32] : memref<16x128x512xf32, #tpu.memory_space<vmem>>, vector<1x128x512xf32>
    %65 = vector.shape_cast %64 : vector<1x128x512xf32> to vector<128x512xf32>
    %cst_33 = arith.constant dense<0.000000e+00> : vector<8x512xf32>
    %66 = tpu.matmul %63, %65, %cst_33 {dimension_numbers = #tpu.dot_dimension_numbers<[1], [0], [0], [1], [0, 0, 1, 1], [], []>} : vector<8x128xf32>, vector<128x512xf32>, vector<8x512xf32> -> vector<8x512xf32>
    %67 = arith.addf %61, %66 : vector<8x512xf32>
    %68 = vector.extract_strided_slice %21 {offsets = [1, 3, 0, 0], sizes = [1, 1, 8, 128], strides = [1, 1, 1, 1]} : vector<4x4x8x128xf32> to vector<1x1x8x128xf32>
    %69 = vector.shape_cast %68 : vector<1x1x8x128xf32> to vector<8x128xf32>
    %c7 = arith.constant 7 : index
    %c0_34 = arith.constant 0 : index
    %c0_35 = arith.constant 0 : index
    %70 = vector.load %arg6[%c7, %c0_34, %c0_35] : memref<16x128x512xf32, #tpu.memory_space<vmem>>, vector<1x128x512xf32>
    %71 = vector.shape_cast %70 : vector<1x128x512xf32> to vector<128x512xf32>
    %cst_36 = arith.constant dense<0.000000e+00> : vector<8x512xf32>
    %72 = tpu.matmul %69, %71, %cst_36 {dimension_numbers = #tpu.dot_dimension_numbers<[1], [0], [0], [1], [0, 0, 1, 1], [], []>} : vector<8x128xf32>, vector<128x512xf32>, vector<8x512xf32> -> vector<8x512xf32>
    %73 = arith.addf %67, %72 : vector<8x512xf32>
    %74 = vector.extract_strided_slice %21 {offsets = [2, 0, 0, 0], sizes = [1, 1, 8, 128], strides = [1, 1, 1, 1]} : vector<4x4x8x128xf32> to vector<1x1x8x128xf32>
    %75 = vector.shape_cast %74 : vector<1x1x8x128xf32> to vector<8x128xf32>
    %c8 = arith.constant 8 : index
    %c0_37 = arith.constant 0 : index
    %c0_38 = arith.constant 0 : index
    %76 = vector.load %arg6[%c8, %c0_37, %c0_38] : memref<16x128x512xf32, #tpu.memory_space<vmem>>, vector<1x128x512xf32>
    %77 = vector.shape_cast %76 : vector<1x128x512xf32> to vector<128x512xf32>
    %cst_39 = arith.constant dense<0.000000e+00> : vector<8x512xf32>
    %78 = tpu.matmul %75, %77, %cst_39 {dimension_numbers = #tpu.dot_dimension_numbers<[1], [0], [0], [1], [0, 0, 1, 1], [], []>} : vector<8x128xf32>, vector<128x512xf32>, vector<8x512xf32> -> vector<8x512xf32>
    %79 = arith.addf %73, %78 : vector<8x512xf32>
    %80 = vector.extract_strided_slice %21 {offsets = [2, 1, 0, 0], sizes = [1, 1, 8, 128], strides = [1, 1, 1, 1]} : vector<4x4x8x128xf32> to vector<1x1x8x128xf32>
    %81 = vector.shape_cast %80 : vector<1x1x8x128xf32> to vector<8x128xf32>
    %c9 = arith.constant 9 : index
    %c0_40 = arith.constant 0 : index
    %c0_41 = arith.constant 0 : index
    %82 = vector.load %arg6[%c9, %c0_40, %c0_41] : memref<16x128x512xf32, #tpu.memory_space<vmem>>, vector<1x128x512xf32>
    %83 = vector.shape_cast %82 : vector<1x128x512xf32> to vector<128x512xf32>
    %cst_42 = arith.constant dense<0.000000e+00> : vector<8x512xf32>
    %84 = tpu.matmul %81, %83, %cst_42 {dimension_numbers = #tpu.dot_dimension_numbers<[1], [0], [0], [1], [0, 0, 1, 1], [], []>} : vector<8x128xf32>, vector<128x512xf32>, vector<8x512xf32> -> vector<8x512xf32>
    %85 = arith.addf %79, %84 : vector<8x512xf32>
    %86 = vector.extract_strided_slice %21 {offsets = [2, 2, 0, 0], sizes = [1, 1, 8, 128], strides = [1, 1, 1, 1]} : vector<4x4x8x128xf32> to vector<1x1x8x128xf32>
    %87 = vector.shape_cast %86 : vector<1x1x8x128xf32> to vector<8x128xf32>
    %c10 = arith.constant 10 : index
    %c0_43 = arith.constant 0 : index
    %c0_44 = arith.constant 0 : index
    %88 = vector.load %arg6[%c10, %c0_43, %c0_44] : memref<16x128x512xf32, #tpu.memory_space<vmem>>, vector<1x128x512xf32>
    %89 = vector.shape_cast %88 : vector<1x128x512xf32> to vector<128x512xf32>
    %cst_45 = arith.constant dense<0.000000e+00> : vector<8x512xf32>
    %90 = tpu.matmul %87, %89, %cst_45 {dimension_numbers = #tpu.dot_dimension_numbers<[1], [0], [0], [1], [0, 0, 1, 1], [], []>} : vector<8x128xf32>, vector<128x512xf32>, vector<8x512xf32> -> vector<8x512xf32>
    %91 = arith.addf %85, %90 : vector<8x512xf32>
    %92 = vector.extract_strided_slice %21 {offsets = [2, 3, 0, 0], sizes = [1, 1, 8, 128], strides = [1, 1, 1, 1]} : vector<4x4x8x128xf32> to vector<1x1x8x128xf32>
    %93 = vector.shape_cast %92 : vector<1x1x8x128xf32> to vector<8x128xf32>
    %c11 = arith.constant 11 : index
    %c0_46 = arith.constant 0 : index
    %c0_47 = arith.constant 0 : index
    %94 = vector.load %arg6[%c11, %c0_46, %c0_47] : memref<16x128x512xf32, #tpu.memory_space<vmem>>, vector<1x128x512xf32>
    %95 = vector.shape_cast %94 : vector<1x128x512xf32> to vector<128x512xf32>
    %cst_48 = arith.constant dense<0.000000e+00> : vector<8x512xf32>
    %96 = tpu.matmul %93, %95, %cst_48 {dimension_numbers = #tpu.dot_dimension_numbers<[1], [0], [0], [1], [0, 0, 1, 1], [], []>} : vector<8x128xf32>, vector<128x512xf32>, vector<8x512xf32> -> vector<8x512xf32>
    %97 = arith.addf %91, %96 : vector<8x512xf32>
    %98 = vector.extract_strided_slice %21 {offsets = [3, 0, 0, 0], sizes = [1, 1, 8, 128], strides = [1, 1, 1, 1]} : vector<4x4x8x128xf32> to vector<1x1x8x128xf32>
    %99 = vector.shape_cast %98 : vector<1x1x8x128xf32> to vector<8x128xf32>
    %c12 = arith.constant 12 : index
    %c0_49 = arith.constant 0 : index
    %c0_50 = arith.constant 0 : index
    %100 = vector.load %arg6[%c12, %c0_49, %c0_50] : memref<16x128x512xf32, #tpu.memory_space<vmem>>, vector<1x128x512xf32>
    %101 = vector.shape_cast %100 : vector<1x128x512xf32> to vector<128x512xf32>
    %cst_51 = arith.constant dense<0.000000e+00> : vector<8x512xf32>
    %102 = tpu.matmul %99, %101, %cst_51 {dimension_numbers = #tpu.dot_dimension_numbers<[1], [0], [0], [1], [0, 0, 1, 1], [], []>} : vector<8x128xf32>, vector<128x512xf32>, vector<8x512xf32> -> vector<8x512xf32>
    %103 = arith.addf %97, %102 : vector<8x512xf32>
    %104 = vector.extract_strided_slice %21 {offsets = [3, 1, 0, 0], sizes = [1, 1, 8, 128], strides = [1, 1, 1, 1]} : vector<4x4x8x128xf32> to vector<1x1x8x128xf32>
    %105 = vector.shape_cast %104 : vector<1x1x8x128xf32> to vector<8x128xf32>
    %c13 = arith.constant 13 : index
    %c0_52 = arith.constant 0 : index
    %c0_53 = arith.constant 0 : index
    %106 = vector.load %arg6[%c13, %c0_52, %c0_53] : memref<16x128x512xf32, #tpu.memory_space<vmem>>, vector<1x128x512xf32>
    %107 = vector.shape_cast %106 : vector<1x128x512xf32> to vector<128x512xf32>
    %cst_54 = arith.constant dense<0.000000e+00> : vector<8x512xf32>
    %108 = tpu.matmul %105, %107, %cst_54 {dimension_numbers = #tpu.dot_dimension_numbers<[1], [0], [0], [1], [0, 0, 1, 1], [], []>} : vector<8x128xf32>, vector<128x512xf32>, vector<8x512xf32> -> vector<8x512xf32>
    %109 = arith.addf %103, %108 : vector<8x512xf32>
    %110 = vector.extract_strided_slice %21 {offsets = [3, 2, 0, 0], sizes = [1, 1, 8, 128], strides = [1, 1, 1, 1]} : vector<4x4x8x128xf32> to vector<1x1x8x128xf32>
    %111 = vector.shape_cast %110 : vector<1x1x8x128xf32> to vector<8x128xf32>
    %c14 = arith.constant 14 : index
    %c0_55 = arith.constant 0 : index
    %c0_56 = arith.constant 0 : index
    %112 = vector.load %arg6[%c14, %c0_55, %c0_56] : memref<16x128x512xf32, #tpu.memory_space<vmem>>, vector<1x128x512xf32>
    %113 = vector.shape_cast %112 : vector<1x128x512xf32> to vector<128x512xf32>
    %cst_57 = arith.constant dense<0.000000e+00> : vector<8x512xf32>
    %114 = tpu.matmul %111, %113, %cst_57 {dimension_numbers = #tpu.dot_dimension_numbers<[1], [0], [0], [1], [0, 0, 1, 1], [], []>} : vector<8x128xf32>, vector<128x512xf32>, vector<8x512xf32> -> vector<8x512xf32>
    %115 = arith.addf %109, %114 : vector<8x512xf32>
    %116 = vector.extract_strided_slice %21 {offsets = [3, 3, 0, 0], sizes = [1, 1, 8, 128], strides = [1, 1, 1, 1]} : vector<4x4x8x128xf32> to vector<1x1x8x128xf32>
    %117 = vector.shape_cast %116 : vector<1x1x8x128xf32> to vector<8x128xf32>
    %c15 = arith.constant 15 : index
    %c0_58 = arith.constant 0 : index
    %c0_59 = arith.constant 0 : index
    %118 = vector.load %arg6[%c15, %c0_58, %c0_59] : memref<16x128x512xf32, #tpu.memory_space<vmem>>, vector<1x128x512xf32>
    %119 = vector.shape_cast %118 : vector<1x128x512xf32> to vector<128x512xf32>
    %cst_60 = arith.constant dense<0.000000e+00> : vector<8x512xf32>
    %120 = tpu.matmul %117, %119, %cst_60 {dimension_numbers = #tpu.dot_dimension_numbers<[1], [0], [0], [1], [0, 0, 1, 1], [], []>} : vector<8x128xf32>, vector<128x512xf32>, vector<8x512xf32> -> vector<8x512xf32>
    %121 = arith.addf %115, %120 : vector<8x512xf32>
    %cst_61 = arith.constant 0.000000e+00 : f32
    %122 = vector.broadcast %cst_61 : f32 to vector<8x512xf32>
    %123 = arith.maximumf %121, %122 : vector<8x512xf32>
    %c0_62 = arith.constant 0 : index
    %c0_63 = arith.constant 0 : index
    %124 = vector.load %arg8[%c0_62, %c0_63] : memref<512x128xf32, #tpu.memory_space<vmem>>, vector<512x128xf32>
    %cst_64 = arith.constant dense<0.000000e+00> : vector<8x128xf32>
    %125 = tpu.matmul %123, %124, %cst_64 {dimension_numbers = #tpu.dot_dimension_numbers<[1], [0], [0], [1], [0, 0, 1, 1], [], []>} : vector<8x512xf32>, vector<512x128xf32>, vector<8x128xf32> -> vector<8x128xf32>
    %c0_65 = arith.constant 0 : index
    %c0_66 = arith.constant 0 : index
    %126 = vector.load %arg9[%c0_65, %c0_66] : memref<1x128xf32, #tpu.memory_space<vmem>>, vector<1x128xf32>
    %127 = vector.broadcast %126 : vector<1x128xf32> to vector<8x128xf32>
    %128 = arith.addf %125, %127 : vector<8x128xf32>
    %c0_67 = arith.constant 0 : index
    %c0_68 = arith.constant 0 : index
    %129 = vector.load %arg10[%c0_67, %c0_68] : memref<8x128xf32, #tpu.memory_space<vmem>>, vector<8x128xf32>
    tpu.vector_store %arg10[%c0_67, %c0_68], %128 {strides = array<i32>} : memref<8x128xf32, #tpu.memory_space<vmem>>, vector<8x128xf32>,
    return
  }
  func.func @transform_0(%arg0: i32) -> (i32, i32, i32, i32, i32) {
    %c0_i32 = arith.constant 0 : i32
    %c0_i32_0 = arith.constant 0 : i32
    %c0_i32_1 = arith.constant 0 : i32
    %c0_i32_2 = arith.constant 0 : i32
    %c0_i32_3 = arith.constant 0 : i32
    return %arg0, %c0_i32, %c0_i32_0, %c0_i32_1, %c0_i32_2 : i32, i32, i32, i32, i32
  }
  func.func @transform_1(%arg0: i32) -> (i32, i32) {
    %c0_i32 = arith.constant 0 : i32
    %c0_i32_0 = arith.constant 0 : i32
    %c0_i32_1 = arith.constant 0 : i32
    return %c0_i32, %c0_i32_0 : i32, i32
  }
  func.func @transform_2(%arg0: i32) -> (i32, i32) {
    %c0_i32 = arith.constant 0 : i32
    %c0_i32_0 = arith.constant 0 : i32
    %c0_i32_1 = arith.constant 0 : i32
    return %c0_i32, %c0_i32_0 : i32, i32
  }
  func.func @transform_3(%arg0: i32) -> (i32, i32, i32) {
    %c0_i32 = arith.constant 0 : i32
    %c0_i32_0 = arith.constant 0 : i32
    %c0_i32_1 = arith.constant 0 : i32
    %c0_i32_2 = arith.constant 0 : i32
    return %c0_i32, %c0_i32_0, %c0_i32_1 : i32, i32, i32
  }
  func.func @transform_4(%arg0: i32) -> (i32, i32) {
    %c0_i32 = arith.constant 0 : i32
    %c0_i32_0 = arith.constant 0 : i32
    %c0_i32_1 = arith.constant 0 : i32
    return %c0_i32, %c0_i32_0 : i32, i32
  }
  func.func @transform_5(%arg0: i32) -> (i32, i32, i32) {
    %c0_i32 = arith.constant 0 : i32
    %c0_i32_0 = arith.constant 0 : i32
    %c0_i32_1 = arith.constant 0 : i32
    %c0_i32_2 = arith.constant 0 : i32
    return %c0_i32, %c0_i32_0, %c0_i32_1 : i32, i32, i32
  }
  func.func @transform_6(%arg0: i32) -> (i32, i32) {
    %c0_i32 = arith.constant 0 : i32
    %c0_i32_0 = arith.constant 0 : i32
    %c0_i32_1 = arith.constant 0 : i32
    return %c0_i32, %c0_i32_0 : i32, i32
  }
  func.func @transform_7(%arg0: i32) -> (i32, i32) {
    %c0_i32 = arith.constant 0 : i32
    %c0_i32_0 = arith.constant 0 : i32
    %c0_i32_1 = arith.constant 0 : i32
    return %c0_i32, %c0_i32_0 : i32, i32
  }
  func.func @transform_8(%arg0: i32) -> (i32, i32) {
    %c0_i32 = arith.constant 0 : i32
    %c0_i32_0 = arith.constant 0 : i32
    %c0_i32_1 = arith.constant 0 : i32
    return %c0_i32, %c0_i32_0 : i32, i32
  }
  func.func @transform_9(%arg0: i32) -> (i32, i32) {
    %c0_i32 = arith.constant 0 : i32
    %c0_i32_0 = arith.constant 0 : i32
    return %arg0, %c0_i32 : i32, i32
  }
}

</mosaic_0001>

<llo_original>
// kernel: mnist_forward.1
$region0: #{mnist_forward.1}
  #allocation0 [shape = 'u32[]', space=smem, size = 0x4, offset = 0x4, fixed_abs, tag = 'smem constant byte address 0x4 - core index']
  #allocation1 [shape = 'u32[144,128]{1,0:T(1,128)}', space=vmem, size = 0x12000, scoped, tag = 'internal scratch']
  #allocation2 [shape = 'f32[12,12,8,128]{3,2,1,0:T(8,128)}', space=vmem, size = 0x90000, scoped, tag = 'scratch operand']
  #allocation3 [shape = 'f32[512,128]{1,0:T(8,128)}', space=vmem, size = 0x40000, scoped, tag = 'scratch operand']
  %s0 = inlined_call_operand.vmem [shape: f32[1,28,28,8,1], index: 0, kind: input, shape index: {}]
  %s1 = inlined_call_operand.vmem [shape: f32[32,128], index: 1, kind: input, shape index: {}]
  %s2 = inlined_call_operand.vmem [shape: f32[1,128], index: 2, kind: input, shape index: {}]
  %s3 = inlined_call_operand.vmem [shape: f32[25,128,128], index: 3, kind: input, shape index: {}]
  %s4 = inlined_call_operand.vmem [shape: f32[1,128], index: 4, kind: input, shape index: {}]
  %s5 = inlined_call_operand.hbm [shape: f32[16,128,512], index: 5, kind: input, shape index: {}]
  %s6 = inlined_call_operand.vmem [shape: f32[1,512], index: 6, kind: input, shape index: {}]
  %s7 = inlined_call_operand.vmem [shape: f32[512,128], index: 7, kind: input, shape index: {}]
  %s8 = inlined_call_operand.vmem [shape: f32[1,128], index: 8, kind: input, shape index: {}]
  %s9 = inlined_call_operand.vmem [shape: f32[8,128], index: 9, kind: output, shape index: {}]
  %s10 = sld [smem:[#allocation0]]
  $region71: #{mnist_forward.1} parent=0
    _
  %s12 = ssub.s32 1, %s10
  %s13 = scalar_select 0, %s12, %s10
  $region1: #{mnist_forward.1} parent=0
    #allocation4 [shape = 'u8[4194304]{0}', space=vmem, size = 0x400000, scoped, tag = 'input window, operand 5, single buffered']
    #allocation5 [shape = 's32[1]{0}', space=sflag, size = 0x4, scoped, tag = 'scoped memory for mnist_forward.1']
    %14 = vsyncpa [#allocation5], 0
    // Predicated region
    $region2: #{mnist_forward.1} parent=1 // pred_check
      _
    $region3: #{mnist_forward.1} parent=1 // pred_check_branch
      %16 = sbr.rel (0) target = $region5
    $region4: #{mnist_forward.1} parent=1 // pred_region
      _
    $region5: #{mnist_forward.1} parent=1 // pred_fallthru
      _
    // Predicated region
    $region6: #{mnist_forward.1} parent=1 // pred_check
      _
    $region7: #{mnist_forward.1} parent=1 // pred_check_branch
      %18 = sbr.rel (0) target = $region9
    $region8: #{mnist_forward.1} parent=1 // pred_region
      _
    $region9: #{mnist_forward.1} parent=1 // pred_fallthru
      _
    // Predicated region
    $region10: #{mnist_forward.1} parent=1 // pred_check
      _
    $region11: #{mnist_forward.1} parent=1 // pred_check_branch
      %20 = sbr.rel (0) target = $region13
    $region12: #{mnist_forward.1} parent=1 // pred_region
      _
    $region13: #{mnist_forward.1} parent=1 // pred_fallthru
      _
    // Predicated region
    $region14: #{mnist_forward.1} parent=1 // pred_check
      _
    $region15: #{mnist_forward.1} parent=1 // pred_check_branch
      %22 = sbr.rel (0) target = $region17
    $region16: #{mnist_forward.1} parent=1 // pred_region
      _
    $region17: #{mnist_forward.1} parent=1 // pred_fallthru
      _
    // Predicated region
    $region18: #{mnist_forward.1} parent=1 // pred_check
      _
    $region19: #{mnist_forward.1} parent=1 // pred_check_branch
      %24 = sbr.rel (0) target = $region21
    $region20: #{mnist_forward.1} parent=1 // pred_region
      _
    $region21: #{mnist_forward.1} parent=1 // pred_fallthru
      _
    // Predicated region
    $region22: #{mnist_forward.1} parent=1 // pred_check
      _
    $region23: #{mnist_forward.1} parent=1 // pred_check_branch
      %26 = sbr.rel (0) target = $region25
    $region24: #{mnist_forward.1} parent=1 // pred_region
      %s28 = ssub.s32 131072, 131072
      %29 = vsyncadd [#allocation5], %s28
      %s30 = sshll.u32 [#allocation4], 4
      %s31 = int_to_ptr.vmem [resolvable:$true] %s30
      %36 = dma.hbm_to_vmem [thread:$0]  %s5, 131072, %s31, [#allocation5], 512, 512, 32
    $region25: #{mnist_forward.1} parent=1 // pred_fallthru
      _
    // Predicated region
    $region26: #{mnist_forward.1} parent=1 // pred_check
      _
    $region27: #{mnist_forward.1} parent=1 // pred_check_branch
      %38 = sbr.rel (0) target = $region29
    $region28: #{mnist_forward.1} parent=1 // pred_region
      _
    $region29: #{mnist_forward.1} parent=1 // pred_fallthru
      _
    // Predicated region
    $region30: #{mnist_forward.1} parent=1 // pred_check
      _
    $region31: #{mnist_forward.1} parent=1 // pred_check_branch
      %40 = sbr.rel (0) target = $region33
    $region32: #{mnist_forward.1} parent=1 // pred_region
      _
    $region33: #{mnist_forward.1} parent=1 // pred_fallthru
      _
    // Predicated region
    $region34: #{mnist_forward.1} parent=1 // pred_check
      _
    $region35: #{mnist_forward.1} parent=1 // pred_check_branch
      %42 = sbr.rel (0) target = $region37
    $region36: #{mnist_forward.1} parent=1 // pred_region
      _
    $region37: #{mnist_forward.1} parent=1 // pred_fallthru
      _
    // Predicated region
    $region38: #{mnist_forward.1} parent=1 // pred_check
      _
    $region39: #{mnist_forward.1} parent=1 // pred_check_branch
      %44 = sbr.rel (0) target = $region41
    $region40: #{mnist_forward.1} parent=1 // pred_region
      %45 = dma.done [#allocation5], 131072
    $region41: #{mnist_forward.1} parent=1 // pred_fallthru
      _
    loop: start=0, step=1, limit=12
    $region42: #{mnist_forward.1} parent=1 // loop_pre_header
      _
    $region43: #{mnist_forward.1} parent=1 // loop_header
      %s47 = sphi 0, %s51
      %p48 = scmp.ge.s32.totalorder %s47, 12
    $region44: #{mnist_forward.1} parent=1 // loop_header_branch
      %50 = sbr.rel (%p48) target = $region48
    $region45: #{mnist_forward.1} parent=1 // loop_body
      %v52 = vld [vmem:[%s2] sm:$0x1]
      %v54 = vlaneseq
      %v55 = vshrl.u32 %v54, 7
      %v56 = vsub.s32 0, %v55
      %v57 = vrot.slane %v52, %v56
      %v59 = vadd.f32 %v57, 0.0
      %s60 = smul.u32 %s47, 2
      %s61 = smul.u32 %s60, 224
      %s62 = scalar_lea.vmem %s0, %s61
      %v63 = vld [vmem:[%s62] sm:$0xff]
      %v64 = vld [vmem:[%s62 + $0x8] sm:$0xff]
      %v65 = vld [vmem:[%s62 + $0x10] sm:$0xff]
      %v66 = vld [vmem:[%s62 + $0x18] sm:$0xff]
      %v67 = vld [vmem:[%s62 + $0x20] sm:$0xff]
      %v68 = vld [vmem:[%s62 + $0x28] sm:$0xff]
      %v69 = vld [vmem:[%s62 + $0x30] sm:$0xff]
      %v70 = vld [vmem:[%s62 + $0x38] sm:$0xff]
      %v71 = vld [vmem:[%s62 + $0x40] sm:$0xff]
      %v72 = vld [vmem:[%s62 + $0x48] sm:$0xff]
      %v73 = vld [vmem:[%s62 + $0x50] sm:$0xff]
      %v74 = vld [vmem:[%s62 + $0x58] sm:$0xff]
      %v75 = vld [vmem:[%s62 + $0x60] sm:$0xff]
      %v76 = vld [vmem:[%s62 + $0x68] sm:$0xff]
      %v77 = vld [vmem:[%s62 + $0x70] sm:$0xff]
      %v78 = vld [vmem:[%s62 + $0x78] sm:$0xff]
      %v79 = vld [vmem:[%s62 + $0x80] sm:$0xff]
      %v80 = vld [vmem:[%s62 + $0x88] sm:$0xff]
      %v81 = vld [vmem:[%s62 + $0x90] sm:$0xff]
      %v82 = vld [vmem:[%s62 + $0x98] sm:$0xff]
      %v83 = vld [vmem:[%s62 + $0xa0] sm:$0xff]
      %v84 = vld [vmem:[%s62 + $0xa8] sm:$0xff]
      %v85 = vld [vmem:[%s62 + $0xb0] sm:$0xff]
      %v86 = vld [vmem:[%s62 + $0xb8] sm:$0xff]
      %v87 = vld [vmem:[%s62 + $0xc0] sm:$0xff]
      %v88 = vld [vmem:[%s62 + $0xc8] sm:$0xff]
      %v89 = vld [vmem:[%s62 + $0xd0] sm:$0xff]
      %v90 = vld [vmem:[%s62 + $0xd8] sm:$0xff]
      %92 = vset.pattern.permute.xlu0 0
      %93 = vperm.xlu0 %92, %v63
      %v94 = vpop.permute.xlu0 %93
      %97 = vset.pattern.permute.xlu0 0
      %98 = vperm.xlu0 %97, %v64
      %v99 = vpop.permute.xlu0 %98
      %102 = vset.pattern.permute.xlu0 0
      %103 = vperm.xlu0 %102, %v65
      %v104 = vpop.permute.xlu0 %103
      %107 = vset.pattern.permute.xlu0 0
      %108 = vperm.xlu0 %107, %v66
      %v109 = vpop.permute.xlu0 %108
      %112 = vset.pattern.permute.xlu0 0
      %113 = vperm.xlu0 %112, %v67
      %v114 = vpop.permute.xlu0 %113
      %117 = vset.pattern.permute.xlu0 0
      %118 = vperm.xlu0 %117, %v68
      %v119 = vpop.permute.xlu0 %118
      %122 = vset.pattern.permute.xlu0 0
      %123 = vperm.xlu0 %122, %v69
      %v124 = vpop.permute.xlu0 %123
      %127 = vset.pattern.permute.xlu0 0
      %128 = vperm.xlu0 %127, %v70
      %v129 = vpop.permute.xlu0 %128
      %132 = vset.pattern.permute.xlu0 0
      %133 = vperm.xlu0 %132, %v71
      %v134 = vpop.permute.xlu0 %133
      %137 = vset.pattern.permute.xlu0 0
      %138 = vperm.xlu0 %137, %v72
      %v139 = vpop.permute.xlu0 %138
      %142 = vset.pattern.permute.xlu0 0
      %143 = vperm.xlu0 %142, %v73
      %v144 = vpop.permute.xlu0 %143
      %147 = vset.pattern.permute.xlu0 0
      %148 = vperm.xlu0 %147, %v74
      %v149 = vpop.permute.xlu0 %148
      %152 = vset.pattern.permute.xlu0 0
      %153 = vperm.xlu0 %152, %v75
      %v154 = vpop.permute.xlu0 %153
      %157 = vset.pattern.permute.xlu0 0
      %158 = vperm.xlu0 %157, %v76
      %v159 = vpop.permute.xlu0 %158
      %162 = vset.pattern.permute.xlu0 0
      %163 = vperm.xlu0 %162, %v77
      %v164 = vpop.permute.xlu0 %163
      %167 = vset.pattern.permute.xlu0 0
      %168 = vperm.xlu0 %167, %v78
      %v169 = vpop.permute.xlu0 %168
      %172 = vset.pattern.permute.xlu0 0
      %173 = vperm.xlu0 %172, %v79
      %v174 = vpop.permute.xlu0 %173
      %177 = vset.pattern.permute.xlu0 0
      %178 = vperm.xlu0 %177, %v80
      %v179 = vpop.permute.xlu0 %178
      %182 = vset.pattern.permute.xlu0 0
      %183 = vperm.xlu0 %182, %v81
      %v184 = vpop.permute.xlu0 %183
      %187 = vset.pattern.permute.xlu0 0
      %188 = vperm.xlu0 %187, %v82
      %v189 = vpop.permute.xlu0 %188
      %192 = vset.pattern.permute.xlu0 0
      %193 = vperm.xlu0 %192, %v83
      %v194 = vpop.permute.xlu0 %193
      %197 = vset.pattern.permute.xlu0 0
      %198 = vperm.xlu0 %197, %v84
      %v199 = vpop.permute.xlu0 %198
      %202 = vset.pattern.permute.xlu0 0
      %203 = vperm.xlu0 %202, %v85
      %v204 = vpop.permute.xlu0 %203
      %207 = vset.pattern.permute.xlu0 0
      %208 = vperm.xlu0 %207, %v86
      %v209 = vpop.permute.xlu0 %208
      %v211 = vld [vmem:[%s1] sm:$0x1]
      %v212 = vlaneseq
      %v213 = vshrl.u32 %v212, 7
      %v214 = vsub.s32 0, %v213
      %v215 = vrot.slane %v211, %v214
      %v216 = vmul.f32 %v94, %v215
      %v217 = vmul.f32 %v99, %v215
      %v218 = vmul.f32 %v104, %v215
      %v219 = vmul.f32 %v109, %v215
      %v220 = vmul.f32 %v114, %v215
      %v221 = vmul.f32 %v119, %v215
      %v222 = vmul.f32 %v124, %v215
      %v223 = vmul.f32 %v129, %v215
      %v224 = vmul.f32 %v134, %v215
      %v225 = vmul.f32 %v139, %v215
      %v226 = vmul.f32 %v144, %v215
      %v227 = vmul.f32 %v149, %v215
      %v228 = vmul.f32 %v154, %v215
      %v229 = vmul.f32 %v159, %v215
      %v230 = vmul.f32 %v164, %v215
      %v231 = vmul.f32 %v169, %v215
      %v232 = vmul.f32 %v174, %v215
      %v233 = vmul.f32 %v179, %v215
      %v234 = vmul.f32 %v184, %v215
      %v235 = vmul.f32 %v189, %v215
      %v236 = vmul.f32 %v194, %v215
      %v237 = vmul.f32 %v199, %v215
      %v238 = vmul.f32 %v204, %v215
      %v239 = vmul.f32 %v209, %v215
      %v240 = vadd.f32 %v59, %v216
      %v241 = vadd.f32 %v59, %v217
      %v242 = vadd.f32 %v59, %v218
      %v243 = vadd.f32 %v59, %v219
      %v244 = vadd.f32 %v59, %v220
      %v245 = vadd.f32 %v59, %v221
      %v246 = vadd.f32 %v59, %v222
      %v247 = vadd.f32 %v59, %v223
      %v248 = vadd.f32 %v59, %v224
      %v249 = vadd.f32 %v59, %v225
      %v250 = vadd.f32 %v59, %v226
      %v251 = vadd.f32 %v59, %v227
      %v252 = vadd.f32 %v59, %v228
      %v253 = vadd.f32 %v59, %v229
      %v254 = vadd.f32 %v59, %v230
      %v255 = vadd.f32 %v59, %v231
      %v256 = vadd.f32 %v59, %v232
      %v257 = vadd.f32 %v59, %v233
      %v258 = vadd.f32 %v59, %v234
      %v259 = vadd.f32 %v59, %v235
      %v260 = vadd.f32 %v59, %v236
      %v261 = vadd.f32 %v59, %v237
      %v262 = vadd.f32 %v59, %v238
      %v263 = vadd.f32 %v59, %v239
      %265 = vset.pattern.permute.xlu0 0
      %266 = vperm.xlu0 %265, %v87
      %v267 = vpop.permute.xlu0 %266
      %v269 = vld [vmem:[%s1 + $0x1] sm:$0x1]
      %v270 = vlaneseq
      %v271 = vshrl.u32 %v270, 7
      %v272 = vsub.s32 0, %v271
      %v273 = vrot.slane %v269, %v272
      %v274 = vmul.f32 %v99, %v273
      %v275 = vmul.f32 %v104, %v273
      %v276 = vmul.f32 %v109, %v273
      %v277 = vmul.f32 %v114, %v273
      %v278 = vmul.f32 %v119, %v273
      %v279 = vmul.f32 %v124, %v273
      %v280 = vmul.f32 %v129, %v273
      %v281 = vmul.f32 %v134, %v273
      %v282 = vmul.f32 %v139, %v273
      %v283 = vmul.f32 %v144, %v273
      %v284 = vmul.f32 %v149, %v273
      %v285 = vmul.f32 %v154, %v273
      %v286 = vmul.f32 %v159, %v273
      %v287 = vmul.f32 %v164, %v273
      %v288 = vmul.f32 %v169, %v273
      %v289 = vmul.f32 %v174, %v273
      %v290 = vmul.f32 %v179, %v273
      %v291 = vmul.f32 %v184, %v273
      %v292 = vmul.f32 %v189, %v273
      %v293 = vmul.f32 %v194, %v273
      %v294 = vmul.f32 %v199, %v273
      %v295 = vmul.f32 %v204, %v273
      %v296 = vmul.f32 %v209, %v273
      %v297 = vmul.f32 %v267, %v273
      %v298 = vadd.f32 %v240, %v274
      %v299 = vadd.f32 %v241, %v275
      %v300 = vadd.f32 %v242, %v276
      %v301 = vadd.f32 %v243, %v277
      %v302 = vadd.f32 %v244, %v278
      %v303 = vadd.f32 %v245, %v279
      %v304 = vadd.f32 %v246, %v280
      %v305 = vadd.f32 %v247, %v281
      %v306 = vadd.f32 %v248, %v282
      %v307 = vadd.f32 %v249, %v283
      %v308 = vadd.f32 %v250, %v284
      %v309 = vadd.f32 %v251, %v285
      %v310 = vadd.f32 %v252, %v286
      %v311 = vadd.f32 %v253, %v287
      %v312 = vadd.f32 %v254, %v288
      %v313 = vadd.f32 %v255, %v289
      %v314 = vadd.f32 %v256, %v290
      %v315 = vadd.f32 %v257, %v291
      %v316 = vadd.f32 %v258, %v292
      %v317 = vadd.f32 %v259, %v293
      %v318 = vadd.f32 %v260, %v294
      %v319 = vadd.f32 %v261, %v295
      %v320 = vadd.f32 %v262, %v296
      %v321 = vadd.f32 %v263, %v297
      %323 = vset.pattern.permute.xlu0 0
      %324 = vperm.xlu0 %323, %v88
      %v325 = vpop.permute.xlu0 %324
      %v327 = vld [vmem:[%s1 + $0x2] sm:$0x1]
      %v328 = vlaneseq
      %v329 = vshrl.u32 %v328, 7
      %v330 = vsub.s32 0, %v329
      %v331 = vrot.slane %v327, %v330
      %v332 = vmul.f32 %v104, %v331
      %v333 = vmul.f32 %v109, %v331
      %v334 = vmul.f32 %v114, %v331
      %v335 = vmul.f32 %v119, %v331
      %v336 = vmul.f32 %v124, %v331
      %v337 = vmul.f32 %v129, %v331
      %v338 = vmul.f32 %v134, %v331
      %v339 = vmul.f32 %v139, %v331
      %v340 = vmul.f32 %v144, %v331
      %v341 = vmul.f32 %v149, %v331
      %v342 = vmul.f32 %v154, %v331
      %v343 = vmul.f32 %v159, %v331
      %v344 = vmul.f32 %v164, %v331
      %v345 = vmul.f32 %v169, %v331
      %v346 = vmul.f32 %v174, %v331
      %v347 = vmul.f32 %v179, %v331
      %v348 = vmul.f32 %v184, %v331
      %v349 = vmul.f32 %v189, %v331
      %v350 = vmul.f32 %v194, %v331
      %v351 = vmul.f32 %v199, %v331
      %v352 = vmul.f32 %v204, %v331
      %v353 = vmul.f32 %v209, %v331
      %v354 = vmul.f32 %v267, %v331
      %v355 = vmul.f32 %v325, %v331
      %v356 = vadd.f32 %v298, %v332
      %v357 = vadd.f32 %v299, %v333
      %v358 = vadd.f32 %v300, %v334
      %v359 = vadd.f32 %v301, %v335
      %v360 = vadd.f32 %v302, %v336
      %v361 = vadd.f32 %v303, %v337
      %v362 = vadd.f32 %v304, %v338
      %v363 = vadd.f32 %v305, %v339
      %v364 = vadd.f32 %v306, %v340
      %v365 = vadd.f32 %v307, %v341
      %v366 = vadd.f32 %v308, %v342
      %v367 = vadd.f32 %v309, %v343
      %v368 = vadd.f32 %v310, %v344
      %v369 = vadd.f32 %v311, %v345
      %v370 = vadd.f32 %v312, %v346
      %v371 = vadd.f32 %v313, %v347
      %v372 = vadd.f32 %v314, %v348
      %v373 = vadd.f32 %v315, %v349
      %v374 = vadd.f32 %v316, %v350
      %v375 = vadd.f32 %v317, %v351
      %v376 = vadd.f32 %v318, %v352
      %v377 = vadd.f32 %v319, %v353
      %v378 = vadd.f32 %v320, %v354
      %v379 = vadd.f32 %v321, %v355
      %381 = vset.pattern.permute.xlu0 0
      %382 = vperm.xlu0 %381, %v89
      %v383 = vpop.permute.xlu0 %382
      %v385 = vld [vmem:[%s1 + $0x3] sm:$0x1]
      %v386 = vlaneseq
      %v387 = vshrl.u32 %v386, 7
      %v388 = vsub.s32 0, %v387
      %v389 = vrot.slane %v385, %v388
      %v390 = vmul.f32 %v109, %v389
      %v391 = vmul.f32 %v114, %v389
      %v392 = vmul.f32 %v119, %v389
      %v393 = vmul.f32 %v124, %v389
      %v394 = vmul.f32 %v129, %v389
      %v395 = vmul.f32 %v134, %v389
      %v396 = vmul.f32 %v139, %v389
      %v397 = vmul.f32 %v144, %v389
      %v398 = vmul.f32 %v149, %v389
      %v399 = vmul.f32 %v154, %v389
      %v400 = vmul.f32 %v159, %v389
      %v401 = vmul.f32 %v164, %v389
      %v402 = vmul.f32 %v169, %v389
      %v403 = vmul.f32 %v174, %v389
      %v404 = vmul.f32 %v179, %v389
      %v405 = vmul.f32 %v184, %v389
      %v406 = vmul.f32 %v189, %v389
      %v407 = vmul.f32 %v194, %v389
      %v408 = vmul.f32 %v199, %v389
      %v409 = vmul.f32 %v204, %v389
      %v410 = vmul.f32 %v209, %v389
      %v411 = vmul.f32 %v267, %v389
      %v412 = vmul.f32 %v325, %v389
      %v413 = vmul.f32 %v383, %v389
      %v414 = vadd.f32 %v356, %v390
      %v415 = vadd.f32 %v357, %v391
      %v416 = vadd.f32 %v358, %v392
      %v417 = vadd.f32 %v359, %v393
      %v418 = vadd.f32 %v360, %v394
      %v419 = vadd.f32 %v361, %v395
      %v420 = vadd.f32 %v362, %v396
      %v421 = vadd.f32 %v363, %v397
      %v422 = vadd.f32 %v364, %v398
      %v423 = vadd.f32 %v365, %v399
      %v424 = vadd.f32 %v366, %v400
      %v425 = vadd.f32 %v367, %v401
      %v426 = vadd.f32 %v368, %v402
      %v427 = vadd.f32 %v369, %v403
      %v428 = vadd.f32 %v370, %v404
      %v429 = vadd.f32 %v371, %v405
      %v430 = vadd.f32 %v372, %v406
      %v431 = vadd.f32 %v373, %v407
      %v432 = vadd.f32 %v374, %v408
      %v433 = vadd.f32 %v375, %v409
      %v434 = vadd.f32 %v376, %v410
      %v435 = vadd.f32 %v377, %v411
      %v436 = vadd.f32 %v378, %v412
      %v437 = vadd.f32 %v379, %v413
      %439 = vset.pattern.permute.xlu0 0
      %440 = vperm.xlu0 %439, %v90
      %v441 = vpop.permute.xlu0 %440
      %v443 = vld [vmem:[%s1 + $0x4] sm:$0x1]
      %v444 = vlaneseq
      %v445 = vshrl.u32 %v444, 7
      %v446 = vsub.s32 0, %v445
      %v447 = vrot.slane %v443, %v446
      %v448 = vmul.f32 %v114, %v447
      %v449 = vmul.f32 %v119, %v447
      %v450 = vmul.f32 %v124, %v447
      %v451 = vmul.f32 %v129, %v447
      %v452 = vmul.f32 %v134, %v447
      %v453 = vmul.f32 %v139, %v447
      %v454 = vmul.f32 %v144, %v447
      %v455 = vmul.f32 %v149, %v447
      %v456 = vmul.f32 %v154, %v447
      %v457 = vmul.f32 %v159, %v447
      %v458 = vmul.f32 %v164, %v447
      %v459 = vmul.f32 %v169, %v447
      %v460 = vmul.f32 %v174, %v447
      %v461 = vmul.f32 %v179, %v447
      %v462 = vmul.f32 %v184, %v447
      %v463 = vmul.f32 %v189, %v447
      %v464 = vmul.f32 %v194, %v447
      %v465 = vmul.f32 %v199, %v447
      %v466 = vmul.f32 %v204, %v447
      %v467 = vmul.f32 %v209, %v447
      %v468 = vmul.f32 %v267, %v447
      %v469 = vmul.f32 %v325, %v447
      %v470 = vmul.f32 %v383, %v447
      %v471 = vmul.f32 %v441, %v447
      %v472 = vadd.f32 %v414, %v448
      %v473 = vadd.f32 %v415, %v449
      %v474 = vadd.f32 %v416, %v450
      %v475 = vadd.f32 %v417, %v451
      %v476 = vadd.f32 %v418, %v452
      %v477 = vadd.f32 %v419, %v453
      %v478 = vadd.f32 %v420, %v454
      %v479 = vadd.f32 %v421, %v455
      %v480 = vadd.f32 %v422, %v456
      %v481 = vadd.f32 %v423, %v457
      %v482 = vadd.f32 %v424, %v458
      %v483 = vadd.f32 %v425, %v459
      %v484 = vadd.f32 %v426, %v460
      %v485 = vadd.f32 %v427, %v461
      %v486 = vadd.f32 %v428, %v462
      %v487 = vadd.f32 %v429, %v463
      %v488 = vadd.f32 %v430, %v464
      %v489 = vadd.f32 %v431, %v465
      %v490 = vadd.f32 %v432, %v466
      %v491 = vadd.f32 %v433, %v467
      %v492 = vadd.f32 %v434, %v468
      %v493 = vadd.f32 %v435, %v469
      %v494 = vadd.f32 %v436, %v470
      %v495 = vadd.f32 %v437, %v471
      %s496 = sadd.s32 %s60, 1
      %s497 = smul.u32 %s496, 224
      %s498 = scalar_lea.vmem %s0, %s497
      %v499 = vld [vmem:[%s498] sm:$0xff]
      %v500 = vld [vmem:[%s498 + $0x8] sm:$0xff]
      %v501 = vld [vmem:[%s498 + $0x10] sm:$0xff]
      %v502 = vld [vmem:[%s498 + $0x18] sm:$0xff]
      %v503 = vld [vmem:[%s498 + $0x20] sm:$0xff]
      %v504 = vld [vmem:[%s498 + $0x28] sm:$0xff]
      %v505 = vld [vmem:[%s498 + $0x30] sm:$0xff]
      %v506 = vld [vmem:[%s498 + $0x38] sm:$0xff]
      %v507 = vld [vmem:[%s498 + $0x40] sm:$0xff]
      %v508 = vld [vmem:[%s498 + $0x48] sm:$0xff]
      %v509 = vld [vmem:[%s498 + $0x50] sm:$0xff]
      %v510 = vld [vmem:[%s498 + $0x58] sm:$0xff]
      %v511 = vld [vmem:[%s498 + $0x60] sm:$0xff]
      %v512 = vld [vmem:[%s498 + $0x68] sm:$0xff]
      %v513 = vld [vmem:[%s498 + $0x70] sm:$0xff]
      %v514 = vld [vmem:[%s498 + $0x78] sm:$0xff]
      %v515 = vld [vmem:[%s498 + $0x80] sm:$0xff]
      %v516 = vld [vmem:[%s498 + $0x88] sm:$0xff]
      %v517 = vld [vmem:[%s498 + $0x90] sm:$0xff]
      %v518 = vld [vmem:[%s498 + $0x98] sm:$0xff]
      %v519 = vld [vmem:[%s498 + $0xa0] sm:$0xff]
      %v520 = vld [vmem:[%s498 + $0xa8] sm:$0xff]
      %v521 = vld [vmem:[%s498 + $0xb0] sm:$0xff]
      %v522 = vld [vmem:[%s498 + $0xb8] sm:$0xff]
      %v523 = vld [vmem:[%s498 + $0xc0] sm:$0xff]
      %v524 = vld [vmem:[%s498 + $0xc8] sm:$0xff]
      %v525 = vld [vmem:[%s498 + $0xd0] sm:$0xff]
      %v526 = vld [vmem:[%s498 + $0xd8] sm:$0xff]
      %528 = vset.pattern.permute.xlu0 0
      %529 = vperm.xlu0 %528, %v499
      %v530 = vpop.permute.xlu0 %529
      %533 = vset.pattern.permute.xlu0 0
      %534 = vperm.xlu0 %533, %v500
      %v535 = vpop.permute.xlu0 %534
      %538 = vset.pattern.permute.xlu0 0
      %539 = vperm.xlu0 %538, %v501
      %v540 = vpop.permute.xlu0 %539
      %543 = vset.pattern.permute.xlu0 0
      %544 = vperm.xlu0 %543, %v502
      %v545 = vpop.permute.xlu0 %544
      %548 = vset.pattern.permute.xlu0 0
      %549 = vperm.xlu0 %548, %v503
      %v550 = vpop.permute.xlu0 %549
      %553 = vset.pattern.permute.xlu0 0
      %554 = vperm.xlu0 %553, %v504
      %v555 = vpop.permute.xlu0 %554
      %558 = vset.pattern.permute.xlu0 0
      %559 = vperm.xlu0 %558, %v505
      %v560 = vpop.permute.xlu0 %559
      %563 = vset.pattern.permute.xlu0 0
      %564 = vperm.xlu0 %563, %v506
      %v565 = vpop.permute.xlu0 %564
      %568 = vset.pattern.permute.xlu0 0
      %569 = vperm.xlu0 %568, %v507
      %v570 = vpop.permute.xlu0 %569
      %573 = vset.pattern.permute.xlu0 0
      %574 = vperm.xlu0 %573, %v508
      %v575 = vpop.permute.xlu0 %574
      %578 = vset.pattern.permute.xlu0 0
      %579 = vperm.xlu0 %578, %v509
      %v580 = vpop.permute.xlu0 %579
      %583 = vset.pattern.permute.xlu0 0
      %584 = vperm.xlu0 %583, %v510
      %v585 = vpop.permute.xlu0 %584
      %588 = vset.pattern.permute.xlu0 0
      %589 = vperm.xlu0 %588, %v511
      %v590 = vpop.permute.xlu0 %589
      %593 = vset.pattern.permute.xlu0 0
      %594 = vperm.xlu0 %593, %v512
      %v595 = vpop.permute.xlu0 %594
      %598 = vset.pattern.permute.xlu0 0
      %599 = vperm.xlu0 %598, %v513
      %v600 = vpop.permute.xlu0 %599
      %603 = vset.pattern.permute.xlu0 0
      %604 = vperm.xlu0 %603, %v514
      %v605 = vpop.permute.xlu0 %604
      %608 = vset.pattern.permute.xlu0 0
      %609 = vperm.xlu0 %608, %v515
      %v610 = vpop.permute.xlu0 %609
      %613 = vset.pattern.permute.xlu0 0
      %614 = vperm.xlu0 %613, %v516
      %v615 = vpop.permute.xlu0 %614
      %618 = vset.pattern.permute.xlu0 0
      %619 = vperm.xlu0 %618, %v517
      %v620 = vpop.permute.xlu0 %619
      %623 = vset.pattern.permute.xlu0 0
      %624 = vperm.xlu0 %623, %v518
      %v625 = vpop.permute.xlu0 %624
      %628 = vset.pattern.permute.xlu0 0
      %629 = vperm.xlu0 %628, %v519
      %v630 = vpop.permute.xlu0 %629
      %633 = vset.pattern.permute.xlu0 0
      %634 = vperm.xlu0 %633, %v520
      %v635 = vpop.permute.xlu0 %634
      %638 = vset.pattern.permute.xlu0 0
      %639 = vperm.xlu0 %638, %v521
      %v640 = vpop.permute.xlu0 %639
      %643 = vset.pattern.permute.xlu0 0
      %644 = vperm.xlu0 %643, %v522
      %v645 = vpop.permute.xlu0 %644
      %v647 = vld [vmem:[%s1 + $0x5] sm:$0x1]
      %v648 = vlaneseq
      %v649 = vshrl.u32 %v648, 7
      %v650 = vsub.s32 0, %v649
      %v651 = vrot.slane %v647, %v650
      %v652 = vmul.f32 %v530, %v651
      %v653 = vmul.f32 %v535, %v651
      %v654 = vmul.f32 %v540, %v651
      %v655 = vmul.f32 %v545, %v651
      %v656 = vmul.f32 %v550, %v651
      %v657 = vmul.f32 %v555, %v651
      %v658 = vmul.f32 %v560, %v651
      %v659 = vmul.f32 %v565, %v651
      %v660 = vmul.f32 %v570, %v651
      %v661 = vmul.f32 %v575, %v651
      %v662 = vmul.f32 %v580, %v651
      %v663 = vmul.f32 %v585, %v651
      %v664 = vmul.f32 %v590, %v651
      %v665 = vmul.f32 %v595, %v651
      %v666 = vmul.f32 %v600, %v651
      %v667 = vmul.f32 %v605, %v651
      %v668 = vmul.f32 %v610, %v651
      %v669 = vmul.f32 %v615, %v651
      %v670 = vmul.f32 %v620, %v651
      %v671 = vmul.f32 %v625, %v651
      %v672 = vmul.f32 %v630, %v651
      %v673 = vmul.f32 %v635, %v651
      %v674 = vmul.f32 %v640, %v651
      %v675 = vmul.f32 %v645, %v651
      %v676 = vadd.f32 %v472, %v652
      %v677 = vadd.f32 %v473, %v653
      %v678 = vadd.f32 %v474, %v654
      %v679 = vadd.f32 %v475, %v655
      %v680 = vadd.f32 %v476, %v656
      %v681 = vadd.f32 %v477, %v657
      %v682 = vadd.f32 %v478, %v658
      %v683 = vadd.f32 %v479, %v659
      %v684 = vadd.f32 %v480, %v660
      %v685 = vadd.f32 %v481, %v661
      %v686 = vadd.f32 %v482, %v662
      %v687 = vadd.f32 %v483, %v663
      %v688 = vadd.f32 %v484, %v664
      %v689 = vadd.f32 %v485, %v665
      %v690 = vadd.f32 %v486, %v666
      %v691 = vadd.f32 %v487, %v667
      %v692 = vadd.f32 %v488, %v668
      %v693 = vadd.f32 %v489, %v669
      %v694 = vadd.f32 %v490, %v670
      %v695 = vadd.f32 %v491, %v671
      %v696 = vadd.f32 %v492, %v672
      %v697 = vadd.f32 %v493, %v673
      %v698 = vadd.f32 %v494, %v674
      %v699 = vadd.f32 %v495, %v675
      %v700 = vmul.f32 %v530, %v215
      %v701 = vmul.f32 %v535, %v215
      %v702 = vmul.f32 %v540, %v215
      %v703 = vmul.f32 %v545, %v215
      %v704 = vmul.f32 %v550, %v215
      %v705 = vmul.f32 %v555, %v215
      %v706 = vmul.f32 %v560, %v215
      %v707 = vmul.f32 %v565, %v215
      %v708 = vmul.f32 %v570, %v215
      %v709 = vmul.f32 %v575, %v215
      %v710 = vmul.f32 %v580, %v215
      %v711 = vmul.f32 %v585, %v215
      %v712 = vmul.f32 %v590, %v215
      %v713 = vmul.f32 %v595, %v215
      %v714 = vmul.f32 %v600, %v215
      %v715 = vmul.f32 %v605, %v215
      %v716 = vmul.f32 %v610, %v215
      %v717 = vmul.f32 %v615, %v215
      %v718 = vmul.f32 %v620, %v215
      %v719 = vmul.f32 %v625, %v215
      %v720 = vmul.f32 %v630, %v215
      %v721 = vmul.f32 %v635, %v215
      %v722 = vmul.f32 %v640, %v215
      %v723 = vmul.f32 %v645, %v215
      %v724 = vadd.f32 %v59, %v700
      %v725 = vadd.f32 %v59, %v701
      %v726 = vadd.f32 %v59, %v702
      %v727 = vadd.f32 %v59, %v703
      %v728 = vadd.f32 %v59, %v704
      %v729 = vadd.f32 %v59, %v705
      %v730 = vadd.f32 %v59, %v706
      %v731 = vadd.f32 %v59, %v707
      %v732 = vadd.f32 %v59, %v708
      %v733 = vadd.f32 %v59, %v709
      %v734 = vadd.f32 %v59, %v710
      %v735 = vadd.f32 %v59, %v711
      %v736 = vadd.f32 %v59, %v712
      %v737 = vadd.f32 %v59, %v713
      %v738 = vadd.f32 %v59, %v714
      %v739 = vadd.f32 %v59, %v715
      %v740 = vadd.f32 %v59, %v716
      %v741 = vadd.f32 %v59, %v717
      %v742 = vadd.f32 %v59, %v718
      %v743 = vadd.f32 %v59, %v719
      %v744 = vadd.f32 %v59, %v720
      %v745 = vadd.f32 %v59, %v721
      %v746 = vadd.f32 %v59, %v722
      %v747 = vadd.f32 %v59, %v723
      %749 = vset.pattern.permute.xlu0 0
      %750 = vperm.xlu0 %749, %v523
      %v751 = vpop.permute.xlu0 %750
      %v753 = vld [vmem:[%s1 + $0x6] sm:$0x1]
      %v754 = vlaneseq
      %v755 = vshrl.u32 %v754, 7
      %v756 = vsub.s32 0, %v755
      %v757 = vrot.slane %v753, %v756
      %v758 = vmul.f32 %v535, %v757
      %v759 = vmul.f32 %v540, %v757
      %v760 = vmul.f32 %v545, %v757
      %v761 = vmul.f32 %v550, %v757
      %v762 = vmul.f32 %v555, %v757
      %v763 = vmul.f32 %v560, %v757
      %v764 = vmul.f32 %v565, %v757
      %v765 = vmul.f32 %v570, %v757
      %v766 = vmul.f32 %v575, %v757
      %v767 = vmul.f32 %v580, %v757
      %v768 = vmul.f32 %v585, %v757
      %v769 = vmul.f32 %v590, %v757
      %v770 = vmul.f32 %v595, %v757
      %v771 = vmul.f32 %v600, %v757
      %v772 = vmul.f32 %v605, %v757
      %v773 = vmul.f32 %v610, %v757
      %v774 = vmul.f32 %v615, %v757
      %v775 = vmul.f32 %v620, %v757
      %v776 = vmul.f32 %v625, %v757
      %v777 = vmul.f32 %v630, %v757
      %v778 = vmul.f32 %v635, %v757
      %v779 = vmul.f32 %v640, %v757
      %v780 = vmul.f32 %v645, %v757
      %v781 = vmul.f32 %v751, %v757
      %v782 = vadd.f32 %v676, %v758
      %v783 = vadd.f32 %v677, %v759
      %v784 = vadd.f32 %v678, %v760
      %v785 = vadd.f32 %v679, %v761
      %v786 = vadd.f32 %v680, %v762
      %v787 = vadd.f32 %v681, %v763
      %v788 = vadd.f32 %v682, %v764
      %v789 = vadd.f32 %v683, %v765
      %v790 = vadd.f32 %v684, %v766
      %v791 = vadd.f32 %v685, %v767
      %v792 = vadd.f32 %v686, %v768
      %v793 = vadd.f32 %v687, %v769
      %v794 = vadd.f32 %v688, %v770
      %v795 = vadd.f32 %v689, %v771
      %v796 = vadd.f32 %v690, %v772
      %v797 = vadd.f32 %v691, %v773
      %v798 = vadd.f32 %v692, %v774
      %v799 = vadd.f32 %v693, %v775
      %v800 = vadd.f32 %v694, %v776
      %v801 = vadd.f32 %v695, %v777
      %v802 = vadd.f32 %v696, %v778
      %v803 = vadd.f32 %v697, %v779
      %v804 = vadd.f32 %v698, %v780
      %v805 = vadd.f32 %v699, %v781
      %v806 = vmul.f32 %v535, %v273
      %v807 = vmul.f32 %v540, %v273
      %v808 = vmul.f32 %v545, %v273
      %v809 = vmul.f32 %v550, %v273
      %v810 = vmul.f32 %v555, %v273
      %v811 = vmul.f32 %v560, %v273
      %v812 = vmul.f32 %v565, %v273
      %v813 = vmul.f32 %v570, %v273
      %v814 = vmul.f32 %v575, %v273
      %v815 = vmul.f32 %v580, %v273
      %v816 = vmul.f32 %v585, %v273
      %v817 = vmul.f32 %v590, %v273
      %v818 = vmul.f32 %v595, %v273
      %v819 = vmul.f32 %v600, %v273
      %v820 = vmul.f32 %v605, %v273
      %v821 = vmul.f32 %v610, %v273
      %v822 = vmul.f32 %v615, %v273
      %v823 = vmul.f32 %v620, %v273
      %v824 = vmul.f32 %v625, %v273
      %v825 = vmul.f32 %v630, %v273
      %v826 = vmul.f32 %v635, %v273
      %v827 = vmul.f32 %v640, %v273
      %v828 = vmul.f32 %v645, %v273
      %v829 = vmul.f32 %v751, %v273
      %v830 = vadd.f32 %v724, %v806
      %v831 = vadd.f32 %v725, %v807
      %v832 = vadd.f32 %v726, %v808
      %v833 = vadd.f32 %v727, %v809
      %v834 = vadd.f32 %v728, %v810
      %v835 = vadd.f32 %v729, %v811
      %v836 = vadd.f32 %v730, %v812
      %v837 = vadd.f32 %v731, %v813
      %v838 = vadd.f32 %v732, %v814
      %v839 = vadd.f32 %v733, %v815
      %v840 = vadd.f32 %v734, %v816
      %v841 = vadd.f32 %v735, %v817
      %v842 = vadd.f32 %v736, %v818
      %v843 = vadd.f32 %v737, %v819
      %v844 = vadd.f32 %v738, %v820
      %v845 = vadd.f32 %v739, %v821
      %v846 = vadd.f32 %v740, %v822
      %v847 = vadd.f32 %v741, %v823
      %v848 = vadd.f32 %v742, %v824
      %v849 = vadd.f32 %v743, %v825
      %v850 = vadd.f32 %v744, %v826
      %v851 = vadd.f32 %v745, %v827
      %v852 = vadd.f32 %v746, %v828
      %v853 = vadd.f32 %v747, %v829
      %855 = vset.pattern.permute.xlu0 0
      %856 = vperm.xlu0 %855, %v524
      %v857 = vpop.permute.xlu0 %856
      %v859 = vld [vmem:[%s1 + $0x7] sm:$0x1]
      %v860 = vlaneseq
      %v861 = vshrl.u32 %v860, 7
      %v862 = vsub.s32 0, %v861
      %v863 = vrot.slane %v859, %v862
      %v864 = vmul.f32 %v540, %v863
      %v865 = vmul.f32 %v545, %v863
      %v866 = vmul.f32 %v550, %v863
      %v867 = vmul.f32 %v555, %v863
      %v868 = vmul.f32 %v560, %v863
      %v869 = vmul.f32 %v565, %v863
      %v870 = vmul.f32 %v570, %v863
      %v871 = vmul.f32 %v575, %v863
      %v872 = vmul.f32 %v580, %v863
      %v873 = vmul.f32 %v585, %v863
      %v874 = vmul.f32 %v590, %v863
      %v875 = vmul.f32 %v595, %v863
      %v876 = vmul.f32 %v600, %v863
      %v877 = vmul.f32 %v605, %v863
      %v878 = vmul.f32 %v610, %v863
      %v879 = vmul.f32 %v615, %v863
      %v880 = vmul.f32 %v620, %v863
      %v881 = vmul.f32 %v625, %v863
      %v882 = vmul.f32 %v630, %v863
      %v883 = vmul.f32 %v635, %v863
      %v884 = vmul.f32 %v640, %v863
      %v885 = vmul.f32 %v645, %v863
      %v886 = vmul.f32 %v751, %v863
      %v887 = vmul.f32 %v857, %v863
      %v888 = vadd.f32 %v782, %v864
      %v889 = vadd.f32 %v783, %v865
      %v890 = vadd.f32 %v784, %v866
      %v891 = vadd.f32 %v785, %v867
      %v892 = vadd.f32 %v786, %v868
      %v893 = vadd.f32 %v787, %v869
      %v894 = vadd.f32 %v788, %v870
      %v895 = vadd.f32 %v789, %v871
      %v896 = vadd.f32 %v790, %v872
      %v897 = vadd.f32 %v791, %v873
      %v898 = vadd.f32 %v792, %v874
      %v899 = vadd.f32 %v793, %v875
      %v900 = vadd.f32 %v794, %v876
      %v901 = vadd.f32 %v795, %v877
      %v902 = vadd.f32 %v796, %v878
      %v903 = vadd.f32 %v797, %v879
      %v904 = vadd.f32 %v798, %v880
      %v905 = vadd.f32 %v799, %v881
      %v906 = vadd.f32 %v800, %v882
      %v907 = vadd.f32 %v801, %v883
      %v908 = vadd.f32 %v802, %v884
      %v909 = vadd.f32 %v803, %v885
      %v910 = vadd.f32 %v804, %v886
      %v911 = vadd.f32 %v805, %v887
      %v912 = vmul.f32 %v540, %v331
      %v913 = vmul.f32 %v545, %v331
      %v914 = vmul.f32 %v550, %v331
      %v915 = vmul.f32 %v555, %v331
      %v916 = vmul.f32 %v560, %v331
      %v917 = vmul.f32 %v565, %v331
      %v918 = vmul.f32 %v570, %v331
      %v919 = vmul.f32 %v575, %v331
      %v920 = vmul.f32 %v580, %v331
      %v921 = vmul.f32 %v585, %v331
      %v922 = vmul.f32 %v590, %v331
      %v923 = vmul.f32 %v595, %v331
      %v924 = vmul.f32 %v600, %v331
      %v925 = vmul.f32 %v605, %v331
      %v926 = vmul.f32 %v610, %v331
      %v927 = vmul.f32 %v615, %v331
      %v928 = vmul.f32 %v620, %v331
      %v929 = vmul.f32 %v625, %v331
      %v930 = vmul.f32 %v630, %v331
      %v931 = vmul.f32 %v635, %v331
      %v932 = vmul.f32 %v640, %v331
      %v933 = vmul.f32 %v645, %v331
      %v934 = vmul.f32 %v751, %v331
      %v935 = vmul.f32 %v857, %v331
      %v936 = vadd.f32 %v830, %v912
      %v937 = vadd.f32 %v831, %v913
      %v938 = vadd.f32 %v832, %v914
      %v939 = vadd.f32 %v833, %v915
      %v940 = vadd.f32 %v834, %v916
      %v941 = vadd.f32 %v835, %v917
      %v942 = vadd.f32 %v836, %v918
      %v943 = vadd.f32 %v837, %v919
      %v944 = vadd.f32 %v838, %v920
      %v945 = vadd.f32 %v839, %v921
      %v946 = vadd.f32 %v840, %v922
      %v947 = vadd.f32 %v841, %v923
      %v948 = vadd.f32 %v842, %v924
      %v949 = vadd.f32 %v843, %v925
      %v950 = vadd.f32 %v844, %v926
      %v951 = vadd.f32 %v845, %v927
      %v952 = vadd.f32 %v846, %v928
      %v953 = vadd.f32 %v847, %v929
      %v954 = vadd.f32 %v848, %v930
      %v955 = vadd.f32 %v849, %v931
      %v956 = vadd.f32 %v850, %v932
      %v957 = vadd.f32 %v851, %v933
      %v958 = vadd.f32 %v852, %v934
      %v959 = vadd.f32 %v853, %v935
      %961 = vset.pattern.permute.xlu0 0
      %962 = vperm.xlu0 %961, %v525
      %v963 = vpop.permute.xlu0 %962
      %v965 = vld [vmem:[%s1 + $0x8] sm:$0x1]
      %v966 = vlaneseq
      %v967 = vshrl.u32 %v966, 7
      %v968 = vsub.s32 0, %v967
      %v969 = vrot.slane %v965, %v968
      %v970 = vmul.f32 %v545, %v969
      %v971 = vmul.f32 %v550, %v969
      %v972 = vmul.f32 %v555, %v969
      %v973 = vmul.f32 %v560, %v969
      %v974 = vmul.f32 %v565, %v969
      %v975 = vmul.f32 %v570, %v969
      %v976 = vmul.f32 %v575, %v969
      %v977 = vmul.f32 %v580, %v969
      %v978 = vmul.f32 %v585, %v969
      %v979 = vmul.f32 %v590, %v969
      %v980 = vmul.f32 %v595, %v969
      %v981 = vmul.f32 %v600, %v969
      %v982 = vmul.f32 %v605, %v969
      %v983 = vmul.f32 %v610, %v969
      %v984 = vmul.f32 %v615, %v969
      %v985 = vmul.f32 %v620, %v969
      %v986 = vmul.f32 %v625, %v969
      %v987 = vmul.f32 %v630, %v969
      %v988 = vmul.f32 %v635, %v969
      %v989 = vmul.f32 %v640, %v969
      %v990 = vmul.f32 %v645, %v969
      %v991 = vmul.f32 %v751, %v969
      %v992 = vmul.f32 %v857, %v969
      %v993 = vmul.f32 %v963, %v969
      %v994 = vadd.f32 %v888, %v970
      %v995 = vadd.f32 %v889, %v971
      %v996 = vadd.f32 %v890, %v972
      %v997 = vadd.f32 %v891, %v973
      %v998 = vadd.f32 %v892, %v974
      %v999 = vadd.f32 %v893, %v975
      %v1000 = vadd.f32 %v894, %v976
      %v1001 = vadd.f32 %v895, %v977
      %v1002 = vadd.f32 %v896, %v978
      %v1003 = vadd.f32 %v897, %v979
      %v1004 = vadd.f32 %v898, %v980
      %v1005 = vadd.f32 %v899, %v981
      %v1006 = vadd.f32 %v900, %v982
      %v1007 = vadd.f32 %v901, %v983
      %v1008 = vadd.f32 %v902, %v984
      %v1009 = vadd.f32 %v903, %v985
      %v1010 = vadd.f32 %v904, %v986
      %v1011 = vadd.f32 %v905, %v987
      %v1012 = vadd.f32 %v906, %v988
      %v1013 = vadd.f32 %v907, %v989
      %v1014 = vadd.f32 %v908, %v990
      %v1015 = vadd.f32 %v909, %v991
      %v1016 = vadd.f32 %v910, %v992
      %v1017 = vadd.f32 %v911, %v993
      %v1018 = vmul.f32 %v545, %v389
      %v1019 = vmul.f32 %v550, %v389
      %v1020 = vmul.f32 %v555, %v389
      %v1021 = vmul.f32 %v560, %v389
      %v1022 = vmul.f32 %v565, %v389
      %v1023 = vmul.f32 %v570, %v389
      %v1024 = vmul.f32 %v575, %v389
      %v1025 = vmul.f32 %v580, %v389
      %v1026 = vmul.f32 %v585, %v389
      %v1027 = vmul.f32 %v590, %v389
      %v1028 = vmul.f32 %v595, %v389
      %v1029 = vmul.f32 %v600, %v389
      %v1030 = vmul.f32 %v605, %v389
      %v1031 = vmul.f32 %v610, %v389
      %v1032 = vmul.f32 %v615, %v389
      %v1033 = vmul.f32 %v620, %v389
      %v1034 = vmul.f32 %v625, %v389
      %v1035 = vmul.f32 %v630, %v389
      %v1036 = vmul.f32 %v635, %v389
      %v1037 = vmul.f32 %v640, %v389
      %v1038 = vmul.f32 %v645, %v389
      %v1039 = vmul.f32 %v751, %v389
      %v1040 = vmul.f32 %v857, %v389
      %v1041 = vmul.f32 %v963, %v389
      %v1042 = vadd.f32 %v936, %v1018
      %v1043 = vadd.f32 %v937, %v1019
      %v1044 = vadd.f32 %v938, %v1020
      %v1045 = vadd.f32 %v939, %v1021
      %v1046 = vadd.f32 %v940, %v1022
      %v1047 = vadd.f32 %v941, %v1023
      %v1048 = vadd.f32 %v942, %v1024
      %v1049 = vadd.f32 %v943, %v1025
      %v1050 = vadd.f32 %v944, %v1026
      %v1051 = vadd.f32 %v945, %v1027
      %v1052 = vadd.f32 %v946, %v1028
      %v1053 = vadd.f32 %v947, %v1029
      %v1054 = vadd.f32 %v948, %v1030
      %v1055 = vadd.f32 %v949, %v1031
      %v1056 = vadd.f32 %v950, %v1032
      %v1057 = vadd.f32 %v951, %v1033
      %v1058 = vadd.f32 %v952, %v1034
      %v1059 = vadd.f32 %v953, %v1035
      %v1060 = vadd.f32 %v954, %v1036
      %v1061 = vadd.f32 %v955, %v1037
      %v1062 = vadd.f32 %v956, %v1038
      %v1063 = vadd.f32 %v957, %v1039
      %v1064 = vadd.f32 %v958, %v1040
      %v1065 = vadd.f32 %v959, %v1041
      %1067 = vset.pattern.permute.xlu0 0
      %1068 = vperm.xlu0 %1067, %v526
      %v1069 = vpop.permute.xlu0 %1068
      %v1071 = vld [vmem:[%s1 + $0x9] sm:$0x1]
      %v1072 = vlaneseq
      %v1073 = vshrl.u32 %v1072, 7
      %v1074 = vsub.s32 0, %v1073
      %v1075 = vrot.slane %v1071, %v1074
      %v1076 = vmul.f32 %v550, %v1075
      %v1077 = vmul.f32 %v555, %v1075
      %v1078 = vmul.f32 %v560, %v1075
      %v1079 = vmul.f32 %v565, %v1075
      %v1080 = vmul.f32 %v570, %v1075
      %v1081 = vmul.f32 %v575, %v1075
      %v1082 = vmul.f32 %v580, %v1075
      %v1083 = vmul.f32 %v585, %v1075
      %v1084 = vmul.f32 %v590, %v1075
      %v1085 = vmul.f32 %v595, %v1075
      %v1086 = vmul.f32 %v600, %v1075
      %v1087 = vmul.f32 %v605, %v1075
      %v1088 = vmul.f32 %v610, %v1075
      %v1089 = vmul.f32 %v615, %v1075
      %v1090 = vmul.f32 %v620, %v1075
      %v1091 = vmul.f32 %v625, %v1075
      %v1092 = vmul.f32 %v630, %v1075
      %v1093 = vmul.f32 %v635, %v1075
      %v1094 = vmul.f32 %v640, %v1075
      %v1095 = vmul.f32 %v645, %v1075
      %v1096 = vmul.f32 %v751, %v1075
      %v1097 = vmul.f32 %v857, %v1075
      %v1098 = vmul.f32 %v963, %v1075
      %v1099 = vmul.f32 %v1069, %v1075
      %v1100 = vadd.f32 %v994, %v1076
      %v1101 = vadd.f32 %v995, %v1077
      %v1102 = vadd.f32 %v996, %v1078
      %v1103 = vadd.f32 %v997, %v1079
      %v1104 = vadd.f32 %v998, %v1080
      %v1105 = vadd.f32 %v999, %v1081
      %v1106 = vadd.f32 %v1000, %v1082
      %v1107 = vadd.f32 %v1001, %v1083
      %v1108 = vadd.f32 %v1002, %v1084
      %v1109 = vadd.f32 %v1003, %v1085
      %v1110 = vadd.f32 %v1004, %v1086
      %v1111 = vadd.f32 %v1005, %v1087
      %v1112 = vadd.f32 %v1006, %v1088
      %v1113 = vadd.f32 %v1007, %v1089
      %v1114 = vadd.f32 %v1008, %v1090
      %v1115 = vadd.f32 %v1009, %v1091
      %v1116 = vadd.f32 %v1010, %v1092
      %v1117 = vadd.f32 %v1011, %v1093
      %v1118 = vadd.f32 %v1012, %v1094
      %v1119 = vadd.f32 %v1013, %v1095
      %v1120 = vadd.f32 %v1014, %v1096
      %v1121 = vadd.f32 %v1015, %v1097
      %v1122 = vadd.f32 %v1016, %v1098
      %v1123 = vadd.f32 %v1017, %v1099
      %v1124 = vmul.f32 %v550, %v447
      %v1125 = vmul.f32 %v555, %v447
      %v1126 = vmul.f32 %v560, %v447
      %v1127 = vmul.f32 %v565, %v447
      %v1128 = vmul.f32 %v570, %v447
      %v1129 = vmul.f32 %v575, %v447
      %v1130 = vmul.f32 %v580, %v447
      %v1131 = vmul.f32 %v585, %v447
      %v1132 = vmul.f32 %v590, %v447
      %v1133 = vmul.f32 %v595, %v447
      %v1134 = vmul.f32 %v600, %v447
      %v1135 = vmul.f32 %v605, %v447
      %v1136 = vmul.f32 %v610, %v447
      %v1137 = vmul.f32 %v615, %v447
      %v1138 = vmul.f32 %v620, %v447
      %v1139 = vmul.f32 %v625, %v447
      %v1140 = vmul.f32 %v630, %v447
      %v1141 = vmul.f32 %v635, %v447
      %v1142 = vmul.f32 %v640, %v447
      %v1143 = vmul.f32 %v645, %v447
      %v1144 = vmul.f32 %v751, %v447
      %v1145 = vmul.f32 %v857, %v447
      %v1146 = vmul.f32 %v963, %v447
      %v1147 = vmul.f32 %v1069, %v447
      %v1148 = vadd.f32 %v1042, %v1124
      %v1149 = vadd.f32 %v1043, %v1125
      %v1150 = vadd.f32 %v1044, %v1126
      %v1151 = vadd.f32 %v1045, %v1127
      %v1152 = vadd.f32 %v1046, %v1128
      %v1153 = vadd.f32 %v1047, %v1129
      %v1154 = vadd.f32 %v1048, %v1130
      %v1155 = vadd.f32 %v1049, %v1131
      %v1156 = vadd.f32 %v1050, %v1132
      %v1157 = vadd.f32 %v1051, %v1133
      %v1158 = vadd.f32 %v1052, %v1134
      %v1159 = vadd.f32 %v1053, %v1135
      %v1160 = vadd.f32 %v1054, %v1136
      %v1161 = vadd.f32 %v1055, %v1137
      %v1162 = vadd.f32 %v1056, %v1138
      %v1163 = vadd.f32 %v1057, %v1139
      %v1164 = vadd.f32 %v1058, %v1140
      %v1165 = vadd.f32 %v1059, %v1141
      %v1166 = vadd.f32 %v1060, %v1142
      %v1167 = vadd.f32 %v1061, %v1143
      %v1168 = vadd.f32 %v1062, %v1144
      %v1169 = vadd.f32 %v1063, %v1145
      %v1170 = vadd.f32 %v1064, %v1146
      %v1171 = vadd.f32 %v1065, %v1147
      %s1172 = sadd.s32 %s60, 2
      %s1173 = smul.u32 %s1172, 224
      %s1174 = scalar_lea.vmem %s0, %s1173
      %v1175 = vld [vmem:[%s1174] sm:$0xff]
      %v1176 = vld [vmem:[%s1174 + $0x8] sm:$0xff]
      %v1177 = vld [vmem:[%s1174 + $0x10] sm:$0xff]
      %v1178 = vld [vmem:[%s1174 + $0x18] sm:$0xff]
      %v1179 = vld [vmem:[%s1174 + $0x20] sm:$0xff]
      %v1180 = vld [vmem:[%s1174 + $0x28] sm:$0xff]
      %v1181 = vld [vmem:[%s1174 + $0x30] sm:$0xff]
      %v1182 = vld [vmem:[%s1174 + $0x38] sm:$0xff]
      %v1183 = vld [vmem:[%s1174 + $0x40] sm:$0xff]
      %v1184 = vld [vmem:[%s1174 + $0x48] sm:$0xff]
      %v1185 = vld [vmem:[%s1174 + $0x50] sm:$0xff]
      %v1186 = vld [vmem:[%s1174 + $0x58] sm:$0xff]
      %v1187 = vld [vmem:[%s1174 + $0x60] sm:$0xff]
      %v1188 = vld [vmem:[%s1174 + $0x68] sm:$0xff]
      %v1189 = vld [vmem:[%s1174 + $0x70] sm:$0xff]
      %v1190 = vld [vmem:[%s1174 + $0x78] sm:$0xff]
      %v1191 = vld [vmem:[%s1174 + $0x80] sm:$0xff]
      %v1192 = vld [vmem:[%s1174 + $0x88] sm:$0xff]
      %v1193 = vld [vmem:[%s1174 + $0x90] sm:$0xff]
      %v1194 = vld [vmem:[%s1174 + $0x98] sm:$0xff]
      %v1195 = vld [vmem:[%s1174 + $0xa0] sm:$0xff]
      %v1196 = vld [vmem:[%s1174 + $0xa8] sm:$0xff]
      %v1197 = vld [vmem:[%s1174 + $0xb0] sm:$0xff]
      %v1198 = vld [vmem:[%s1174 + $0xb8] sm:$0xff]
      %v1199 = vld [vmem:[%s1174 + $0xc0] sm:$0xff]
      %v1200 = vld [vmem:[%s1174 + $0xc8] sm:$0xff]
      %v1201 = vld [vmem:[%s1174 + $0xd0] sm:$0xff]
      %v1202 = vld [vmem:[%s1174 + $0xd8] sm:$0xff]
      %1204 = vset.pattern.permute.xlu0 0
      %1205 = vperm.xlu0 %1204, %v1175
      %v1206 = vpop.permute.xlu0 %1205
      %1209 = vset.pattern.permute.xlu0 0
      %1210 = vperm.xlu0 %1209, %v1176
      %v1211 = vpop.permute.xlu0 %1210
      %1214 = vset.pattern.permute.xlu0 0
      %1215 = vperm.xlu0 %1214, %v1177
      %v1216 = vpop.permute.xlu0 %1215
      %1219 = vset.pattern.permute.xlu0 0
      %1220 = vperm.xlu0 %1219, %v1178
      %v1221 = vpop.permute.xlu0 %1220
      %1224 = vset.pattern.permute.xlu0 0
      %1225 = vperm.xlu0 %1224, %v1179
      %v1226 = vpop.permute.xlu0 %1225
      %1229 = vset.pattern.permute.xlu0 0
      %1230 = vperm.xlu0 %1229, %v1180
      %v1231 = vpop.permute.xlu0 %1230
      %1234 = vset.pattern.permute.xlu0 0
      %1235 = vperm.xlu0 %1234, %v1181
      %v1236 = vpop.permute.xlu0 %1235
      %1239 = vset.pattern.permute.xlu0 0
      %1240 = vperm.xlu0 %1239, %v1182
      %v1241 = vpop.permute.xlu0 %1240
      %1244 = vset.pattern.permute.xlu0 0
      %1245 = vperm.xlu0 %1244, %v1183
      %v1246 = vpop.permute.xlu0 %1245
      %1249 = vset.pattern.permute.xlu0 0
      %1250 = vperm.xlu0 %1249, %v1184
      %v1251 = vpop.permute.xlu0 %1250
      %1254 = vset.pattern.permute.xlu0 0
      %1255 = vperm.xlu0 %1254, %v1185
      %v1256 = vpop.permute.xlu0 %1255
      %1259 = vset.pattern.permute.xlu0 0
      %1260 = vperm.xlu0 %1259, %v1186
      %v1261 = vpop.permute.xlu0 %1260
      %1264 = vset.pattern.permute.xlu0 0
      %1265 = vperm.xlu0 %1264, %v1187
      %v1266 = vpop.permute.xlu0 %1265
      %1269 = vset.pattern.permute.xlu0 0
      %1270 = vperm.xlu0 %1269, %v1188
      %v1271 = vpop.permute.xlu0 %1270
      %1274 = vset.pattern.permute.xlu0 0
      %1275 = vperm.xlu0 %1274, %v1189
      %v1276 = vpop.permute.xlu0 %1275
      %1279 = vset.pattern.permute.xlu0 0
      %1280 = vperm.xlu0 %1279, %v1190
      %v1281 = vpop.permute.xlu0 %1280
      %1284 = vset.pattern.permute.xlu0 0
      %1285 = vperm.xlu0 %1284, %v1191
      %v1286 = vpop.permute.xlu0 %1285
      %1289 = vset.pattern.permute.xlu0 0
      %1290 = vperm.xlu0 %1289, %v1192
      %v1291 = vpop.permute.xlu0 %1290
      %1294 = vset.pattern.permute.xlu0 0
      %1295 = vperm.xlu0 %1294, %v1193
      %v1296 = vpop.permute.xlu0 %1295
      %1299 = vset.pattern.permute.xlu0 0
      %1300 = vperm.xlu0 %1299, %v1194
      %v1301 = vpop.permute.xlu0 %1300
      %1304 = vset.pattern.permute.xlu0 0
      %1305 = vperm.xlu0 %1304, %v1195
      %v1306 = vpop.permute.xlu0 %1305
      %1309 = vset.pattern.permute.xlu0 0
      %1310 = vperm.xlu0 %1309, %v1196
      %v1311 = vpop.permute.xlu0 %1310
      %1314 = vset.pattern.permute.xlu0 0
      %1315 = vperm.xlu0 %1314, %v1197
      %v1316 = vpop.permute.xlu0 %1315
      %1319 = vset.pattern.permute.xlu0 0
      %1320 = vperm.xlu0 %1319, %v1198
      %v1321 = vpop.permute.xlu0 %1320
      %v1323 = vld [vmem:[%s1 + $0xa] sm:$0x1]
      %v1324 = vlaneseq
      %v1325 = vshrl.u32 %v1324, 7
      %v1326 = vsub.s32 0, %v1325
      %v1327 = vrot.slane %v1323, %v1326
      %v1328 = vmul.f32 %v1206, %v1327
      %v1329 = vmul.f32 %v1211, %v1327
      %v1330 = vmul.f32 %v1216, %v1327
      %v1331 = vmul.f32 %v1221, %v1327
      %v1332 = vmul.f32 %v1226, %v1327
      %v1333 = vmul.f32 %v1231, %v1327
      %v1334 = vmul.f32 %v1236, %v1327
      %v1335 = vmul.f32 %v1241, %v1327
      %v1336 = vmul.f32 %v1246, %v1327
      %v1337 = vmul.f32 %v1251, %v1327
      %v1338 = vmul.f32 %v1256, %v1327
      %v1339 = vmul.f32 %v1261, %v1327
      %v1340 = vmul.f32 %v1266, %v1327
      %v1341 = vmul.f32 %v1271, %v1327
      %v1342 = vmul.f32 %v1276, %v1327
      %v1343 = vmul.f32 %v1281, %v1327
      %v1344 = vmul.f32 %v1286, %v1327
      %v1345 = vmul.f32 %v1291, %v1327
      %v1346 = vmul.f32 %v1296, %v1327
      %v1347 = vmul.f32 %v1301, %v1327
      %v1348 = vmul.f32 %v1306, %v1327
      %v1349 = vmul.f32 %v1311, %v1327
      %v1350 = vmul.f32 %v1316, %v1327
      %v1351 = vmul.f32 %v1321, %v1327
      %v1352 = vadd.f32 %v1100, %v1328
      %v1353 = vadd.f32 %v1101, %v1329
      %v1354 = vadd.f32 %v1102, %v1330
      %v1355 = vadd.f32 %v1103, %v1331
      %v1356 = vadd.f32 %v1104, %v1332
      %v1357 = vadd.f32 %v1105, %v1333
      %v1358 = vadd.f32 %v1106, %v1334
      %v1359 = vadd.f32 %v1107, %v1335
      %v1360 = vadd.f32 %v1108, %v1336
      %v1361 = vadd.f32 %v1109, %v1337
      %v1362 = vadd.f32 %v1110, %v1338
      %v1363 = vadd.f32 %v1111, %v1339
      %v1364 = vadd.f32 %v1112, %v1340
      %v1365 = vadd.f32 %v1113, %v1341
      %v1366 = vadd.f32 %v1114, %v1342
      %v1367 = vadd.f32 %v1115, %v1343
      %v1368 = vadd.f32 %v1116, %v1344
      %v1369 = vadd.f32 %v1117, %v1345
      %v1370 = vadd.f32 %v1118, %v1346
      %v1371 = vadd.f32 %v1119, %v1347
      %v1372 = vadd.f32 %v1120, %v1348
      %v1373 = vadd.f32 %v1121, %v1349
      %v1374 = vadd.f32 %v1122, %v1350
      %v1375 = vadd.f32 %v1123, %v1351
      %v1376 = vmul.f32 %v1206, %v651
      %v1377 = vmul.f32 %v1211, %v651
      %v1378 = vmul.f32 %v1216, %v651
      %v1379 = vmul.f32 %v1221, %v651
      %v1380 = vmul.f32 %v1226, %v651
      %v1381 = vmul.f32 %v1231, %v651
      %v1382 = vmul.f32 %v1236, %v651
      %v1383 = vmul.f32 %v1241, %v651
      %v1384 = vmul.f32 %v1246, %v651
      %v1385 = vmul.f32 %v1251, %v651
      %v1386 = vmul.f32 %v1256, %v651
      %v1387 = vmul.f32 %v1261, %v651
      %v1388 = vmul.f32 %v1266, %v651
      %v1389 = vmul.f32 %v1271, %v651
      %v1390 = vmul.f32 %v1276, %v651
      %v1391 = vmul.f32 %v1281, %v651
      %v1392 = vmul.f32 %v1286, %v651
      %v1393 = vmul.f32 %v1291, %v651
      %v1394 = vmul.f32 %v1296, %v651
      %v1395 = vmul.f32 %v1301, %v651
      %v1396 = vmul.f32 %v1306, %v651
      %v1397 = vmul.f32 %v1311, %v651
      %v1398 = vmul.f32 %v1316, %v651
      %v1399 = vmul.f32 %v1321, %v651
      %v1400 = vadd.f32 %v1148, %v1376
      %v1401 = vadd.f32 %v1149, %v1377
      %v1402 = vadd.f32 %v1150, %v1378
      %v1403 = vadd.f32 %v1151, %v1379
      %v1404 = vadd.f32 %v1152, %v1380
      %v1405 = vadd.f32 %v1153, %v1381
      %v1406 = vadd.f32 %v1154, %v1382
      %v1407 = vadd.f32 %v1155, %v1383
      %v1408 = vadd.f32 %v1156, %v1384
      %v1409 = vadd.f32 %v1157, %v1385
      %v1410 = vadd.f32 %v1158, %v1386
      %v1411 = vadd.f32 %v1159, %v1387
      %v1412 = vadd.f32 %v1160, %v1388
      %v1413 = vadd.f32 %v1161, %v1389
      %v1414 = vadd.f32 %v1162, %v1390
      %v1415 = vadd.f32 %v1163, %v1391
      %v1416 = vadd.f32 %v1164, %v1392
      %v1417 = vadd.f32 %v1165, %v1393
      %v1418 = vadd.f32 %v1166, %v1394
      %v1419 = vadd.f32 %v1167, %v1395
      %v1420 = vadd.f32 %v1168, %v1396
      %v1421 = vadd.f32 %v1169, %v1397
      %v1422 = vadd.f32 %v1170, %v1398
      %v1423 = vadd.f32 %v1171, %v1399
      %1425 = vset.pattern.permute.xlu0 0
      %1426 = vperm.xlu0 %1425, %v1199
      %v1427 = vpop.permute.xlu0 %1426
      %v1429 = vld [vmem:[%s1 + $0xb] sm:$0x1]
      %v1430 = vlaneseq
      %v1431 = vshrl.u32 %v1430, 7
      %v1432 = vsub.s32 0, %v1431
      %v1433 = vrot.slane %v1429, %v1432
      %v1434 = vmul.f32 %v1211, %v1433
      %v1435 = vmul.f32 %v1216, %v1433
      %v1436 = vmul.f32 %v1221, %v1433
      %v1437 = vmul.f32 %v1226, %v1433
      %v1438 = vmul.f32 %v1231, %v1433
      %v1439 = vmul.f32 %v1236, %v1433
      %v1440 = vmul.f32 %v1241, %v1433
      %v1441 = vmul.f32 %v1246, %v1433
      %v1442 = vmul.f32 %v1251, %v1433
      %v1443 = vmul.f32 %v1256, %v1433
      %v1444 = vmul.f32 %v1261, %v1433
      %v1445 = vmul.f32 %v1266, %v1433
      %v1446 = vmul.f32 %v1271, %v1433
      %v1447 = vmul.f32 %v1276, %v1433
      %v1448 = vmul.f32 %v1281, %v1433
      %v1449 = vmul.f32 %v1286, %v1433
      %v1450 = vmul.f32 %v1291, %v1433
      %v1451 = vmul.f32 %v1296, %v1433
      %v1452 = vmul.f32 %v1301, %v1433
      %v1453 = vmul.f32 %v1306, %v1433
      %v1454 = vmul.f32 %v1311, %v1433
      %v1455 = vmul.f32 %v1316, %v1433
      %v1456 = vmul.f32 %v1321, %v1433
      %v1457 = vmul.f32 %v1427, %v1433
      %v1458 = vadd.f32 %v1352, %v1434
      %v1459 = vadd.f32 %v1353, %v1435
      %v1460 = vadd.f32 %v1354, %v1436
      %v1461 = vadd.f32 %v1355, %v1437
      %v1462 = vadd.f32 %v1356, %v1438
      %v1463 = vadd.f32 %v1357, %v1439
      %v1464 = vadd.f32 %v1358, %v1440
      %v1465 = vadd.f32 %v1359, %v1441
      %v1466 = vadd.f32 %v1360, %v1442
      %v1467 = vadd.f32 %v1361, %v1443
      %v1468 = vadd.f32 %v1362, %v1444
      %v1469 = vadd.f32 %v1363, %v1445
      %v1470 = vadd.f32 %v1364, %v1446
      %v1471 = vadd.f32 %v1365, %v1447
      %v1472 = vadd.f32 %v1366, %v1448
      %v1473 = vadd.f32 %v1367, %v1449
      %v1474 = vadd.f32 %v1368, %v1450
      %v1475 = vadd.f32 %v1369, %v1451
      %v1476 = vadd.f32 %v1370, %v1452
      %v1477 = vadd.f32 %v1371, %v1453
      %v1478 = vadd.f32 %v1372, %v1454
      %v1479 = vadd.f32 %v1373, %v1455
      %v1480 = vadd.f32 %v1374, %v1456
      %v1481 = vadd.f32 %v1375, %v1457
      %v1482 = vmul.f32 %v1211, %v757
      %v1483 = vmul.f32 %v1216, %v757
      %v1484 = vmul.f32 %v1221, %v757
      %v1485 = vmul.f32 %v1226, %v757
      %v1486 = vmul.f32 %v1231, %v757
      %v1487 = vmul.f32 %v1236, %v757
      %v1488 = vmul.f32 %v1241, %v757
      %v1489 = vmul.f32 %v1246, %v757
      %v1490 = vmul.f32 %v1251, %v757
      %v1491 = vmul.f32 %v1256, %v757
      %v1492 = vmul.f32 %v1261, %v757
      %v1493 = vmul.f32 %v1266, %v757
      %v1494 = vmul.f32 %v1271, %v757
      %v1495 = vmul.f32 %v1276, %v757
      %v1496 = vmul.f32 %v1281, %v757
      %v1497 = vmul.f32 %v1286, %v757
      %v1498 = vmul.f32 %v1291, %v757
      %v1499 = vmul.f32 %v1296, %v757
      %v1500 = vmul.f32 %v1301, %v757
      %v1501 = vmul.f32 %v1306, %v757
      %v1502 = vmul.f32 %v1311, %v757
      %v1503 = vmul.f32 %v1316, %v757
      %v1504 = vmul.f32 %v1321, %v757
      %v1505 = vmul.f32 %v1427, %v757
      %v1506 = vadd.f32 %v1400, %v1482
      %v1507 = vadd.f32 %v1401, %v1483
      %v1508 = vadd.f32 %v1402, %v1484
      %v1509 = vadd.f32 %v1403, %v1485
      %v1510 = vadd.f32 %v1404, %v1486
      %v1511 = vadd.f32 %v1405, %v1487
      %v1512 = vadd.f32 %v1406, %v1488
      %v1513 = vadd.f32 %v1407, %v1489
      %v1514 = vadd.f32 %v1408, %v1490
      %v1515 = vadd.f32 %v1409, %v1491
      %v1516 = vadd.f32 %v1410, %v1492
      %v1517 = vadd.f32 %v1411, %v1493
      %v1518 = vadd.f32 %v1412, %v1494
      %v1519 = vadd.f32 %v1413, %v1495
      %v1520 = vadd.f32 %v1414, %v1496
      %v1521 = vadd.f32 %v1415, %v1497
      %v1522 = vadd.f32 %v1416, %v1498
      %v1523 = vadd.f32 %v1417, %v1499
      %v1524 = vadd.f32 %v1418, %v1500
      %v1525 = vadd.f32 %v1419, %v1501
      %v1526 = vadd.f32 %v1420, %v1502
      %v1527 = vadd.f32 %v1421, %v1503
      %v1528 = vadd.f32 %v1422, %v1504
      %v1529 = vadd.f32 %v1423, %v1505
      %1531 = vset.pattern.permute.xlu0 0
      %1532 = vperm.xlu0 %1531, %v1200
      %v1533 = vpop.permute.xlu0 %1532
      %v1535 = vld [vmem:[%s1 + $0xc] sm:$0x1]
      %v1536 = vlaneseq
      %v1537 = vshrl.u32 %v1536, 7
      %v1538 = vsub.s32 0, %v1537
      %v1539 = vrot.slane %v1535, %v1538
      %v1540 = vmul.f32 %v1216, %v1539
      %v1541 = vmul.f32 %v1221, %v1539
      %v1542 = vmul.f32 %v1226, %v1539
      %v1543 = vmul.f32 %v1231, %v1539
      %v1544 = vmul.f32 %v1236, %v1539
      %v1545 = vmul.f32 %v1241, %v1539
      %v1546 = vmul.f32 %v1246, %v1539
      %v1547 = vmul.f32 %v1251, %v1539
      %v1548 = vmul.f32 %v1256, %v1539
      %v1549 = vmul.f32 %v1261, %v1539
      %v1550 = vmul.f32 %v1266, %v1539
      %v1551 = vmul.f32 %v1271, %v1539
      %v1552 = vmul.f32 %v1276, %v1539
      %v1553 = vmul.f32 %v1281, %v1539
      %v1554 = vmul.f32 %v1286, %v1539
      %v1555 = vmul.f32 %v1291, %v1539
      %v1556 = vmul.f32 %v1296, %v1539
      %v1557 = vmul.f32 %v1301, %v1539
      %v1558 = vmul.f32 %v1306, %v1539
      %v1559 = vmul.f32 %v1311, %v1539
      %v1560 = vmul.f32 %v1316, %v1539
      %v1561 = vmul.f32 %v1321, %v1539
      %v1562 = vmul.f32 %v1427, %v1539
      %v1563 = vmul.f32 %v1533, %v1539
      %v1564 = vadd.f32 %v1458, %v1540
      %v1565 = vadd.f32 %v1459, %v1541
      %v1566 = vadd.f32 %v1460, %v1542
      %v1567 = vadd.f32 %v1461, %v1543
      %v1568 = vadd.f32 %v1462, %v1544
      %v1569 = vadd.f32 %v1463, %v1545
      %v1570 = vadd.f32 %v1464, %v1546
      %v1571 = vadd.f32 %v1465, %v1547
      %v1572 = vadd.f32 %v1466, %v1548
      %v1573 = vadd.f32 %v1467, %v1549
      %v1574 = vadd.f32 %v1468, %v1550
      %v1575 = vadd.f32 %v1469, %v1551
      %v1576 = vadd.f32 %v1470, %v1552
      %v1577 = vadd.f32 %v1471, %v1553
      %v1578 = vadd.f32 %v1472, %v1554
      %v1579 = vadd.f32 %v1473, %v1555
      %v1580 = vadd.f32 %v1474, %v1556
      %v1581 = vadd.f32 %v1475, %v1557
      %v1582 = vadd.f32 %v1476, %v1558
      %v1583 = vadd.f32 %v1477, %v1559
      %v1584 = vadd.f32 %v1478, %v1560
      %v1585 = vadd.f32 %v1479, %v1561
      %v1586 = vadd.f32 %v1480, %v1562
      %v1587 = vadd.f32 %v1481, %v1563
      %v1588 = vmul.f32 %v1216, %v863
      %v1589 = vmul.f32 %v1221, %v863
      %v1590 = vmul.f32 %v1226, %v863
      %v1591 = vmul.f32 %v1231, %v863
      %v1592 = vmul.f32 %v1236, %v863
      %v1593 = vmul.f32 %v1241, %v863
      %v1594 = vmul.f32 %v1246, %v863
      %v1595 = vmul.f32 %v1251, %v863
      %v1596 = vmul.f32 %v1256, %v863
      %v1597 = vmul.f32 %v1261, %v863
      %v1598 = vmul.f32 %v1266, %v863
      %v1599 = vmul.f32 %v1271, %v863
      %v1600 = vmul.f32 %v1276, %v863
      %v1601 = vmul.f32 %v1281, %v863
      %v1602 = vmul.f32 %v1286, %v863
      %v1603 = vmul.f32 %v1291, %v863
      %v1604 = vmul.f32 %v1296, %v863
      %v1605 = vmul.f32 %v1301, %v863
      %v1606 = vmul.f32 %v1306, %v863
      %v1607 = vmul.f32 %v1311, %v863
      %v1608 = vmul.f32 %v1316, %v863
      %v1609 = vmul.f32 %v1321, %v863
      %v1610 = vmul.f32 %v1427, %v863
      %v1611 = vmul.f32 %v1533, %v863
      %v1612 = vadd.f32 %v1506, %v1588
      %v1613 = vadd.f32 %v1507, %v1589
      %v1614 = vadd.f32 %v1508, %v1590
      %v1615 = vadd.f32 %v1509, %v1591
      %v1616 = vadd.f32 %v1510, %v1592
      %v1617 = vadd.f32 %v1511, %v1593
      %v1618 = vadd.f32 %v1512, %v1594
      %v1619 = vadd.f32 %v1513, %v1595
      %v1620 = vadd.f32 %v1514, %v1596
      %v1621 = vadd.f32 %v1515, %v1597
      %v1622 = vadd.f32 %v1516, %v1598
      %v1623 = vadd.f32 %v1517, %v1599
      %v1624 = vadd.f32 %v1518, %v1600
      %v1625 = vadd.f32 %v1519, %v1601
      %v1626 = vadd.f32 %v1520, %v1602
      %v1627 = vadd.f32 %v1521, %v1603
      %v1628 = vadd.f32 %v1522, %v1604
      %v1629 = vadd.f32 %v1523, %v1605
      %v1630 = vadd.f32 %v1524, %v1606
      %v1631 = vadd.f32 %v1525, %v1607
      %v1632 = vadd.f32 %v1526, %v1608
      %v1633 = vadd.f32 %v1527, %v1609
      %v1634 = vadd.f32 %v1528, %v1610
      %v1635 = vadd.f32 %v1529, %v1611
      %1637 = vset.pattern.permute.xlu0 0
      %1638 = vperm.xlu0 %1637, %v1201
      %v1639 = vpop.permute.xlu0 %1638
      %v1641 = vld [vmem:[%s1 + $0xd] sm:$0x1]
      %v1642 = vlaneseq
      %v1643 = vshrl.u32 %v1642, 7
      %v1644 = vsub.s32 0, %v1643
      %v1645 = vrot.slane %v1641, %v1644
      %v1646 = vmul.f32 %v1221, %v1645
      %v1647 = vmul.f32 %v1226, %v1645
      %v1648 = vmul.f32 %v1231, %v1645
      %v1649 = vmul.f32 %v1236, %v1645
      %v1650 = vmul.f32 %v1241, %v1645
      %v1651 = vmul.f32 %v1246, %v1645
      %v1652 = vmul.f32 %v1251, %v1645
      %v1653 = vmul.f32 %v1256, %v1645
      %v1654 = vmul.f32 %v1261, %v1645
      %v1655 = vmul.f32 %v1266, %v1645
      %v1656 = vmul.f32 %v1271, %v1645
      %v1657 = vmul.f32 %v1276, %v1645
      %v1658 = vmul.f32 %v1281, %v1645
      %v1659 = vmul.f32 %v1286, %v1645
      %v1660 = vmul.f32 %v1291, %v1645
      %v1661 = vmul.f32 %v1296, %v1645
      %v1662 = vmul.f32 %v1301, %v1645
      %v1663 = vmul.f32 %v1306, %v1645
      %v1664 = vmul.f32 %v1311, %v1645
      %v1665 = vmul.f32 %v1316, %v1645
      %v1666 = vmul.f32 %v1321, %v1645
      %v1667 = vmul.f32 %v1427, %v1645
      %v1668 = vmul.f32 %v1533, %v1645
      %v1669 = vmul.f32 %v1639, %v1645
      %v1670 = vadd.f32 %v1564, %v1646
      %v1671 = vadd.f32 %v1565, %v1647
      %v1672 = vadd.f32 %v1566, %v1648
      %v1673 = vadd.f32 %v1567, %v1649
      %v1674 = vadd.f32 %v1568, %v1650
      %v1675 = vadd.f32 %v1569, %v1651
      %v1676 = vadd.f32 %v1570, %v1652
      %v1677 = vadd.f32 %v1571, %v1653
      %v1678 = vadd.f32 %v1572, %v1654
      %v1679 = vadd.f32 %v1573, %v1655
      %v1680 = vadd.f32 %v1574, %v1656
      %v1681 = vadd.f32 %v1575, %v1657
      %v1682 = vadd.f32 %v1576, %v1658
      %v1683 = vadd.f32 %v1577, %v1659
      %v1684 = vadd.f32 %v1578, %v1660
      %v1685 = vadd.f32 %v1579, %v1661
      %v1686 = vadd.f32 %v1580, %v1662
      %v1687 = vadd.f32 %v1581, %v1663
      %v1688 = vadd.f32 %v1582, %v1664
      %v1689 = vadd.f32 %v1583, %v1665
      %v1690 = vadd.f32 %v1584, %v1666
      %v1691 = vadd.f32 %v1585, %v1667
      %v1692 = vadd.f32 %v1586, %v1668
      %v1693 = vadd.f32 %v1587, %v1669
      %v1694 = vmul.f32 %v1221, %v969
      %v1695 = vmul.f32 %v1226, %v969
      %v1696 = vmul.f32 %v1231, %v969
      %v1697 = vmul.f32 %v1236, %v969
      %v1698 = vmul.f32 %v1241, %v969
      %v1699 = vmul.f32 %v1246, %v969
      %v1700 = vmul.f32 %v1251, %v969
      %v1701 = vmul.f32 %v1256, %v969
      %v1702 = vmul.f32 %v1261, %v969
      %v1703 = vmul.f32 %v1266, %v969
      %v1704 = vmul.f32 %v1271, %v969
      %v1705 = vmul.f32 %v1276, %v969
      %v1706 = vmul.f32 %v1281, %v969
      %v1707 = vmul.f32 %v1286, %v969
      %v1708 = vmul.f32 %v1291, %v969
      %v1709 = vmul.f32 %v1296, %v969
      %v1710 = vmul.f32 %v1301, %v969
      %v1711 = vmul.f32 %v1306, %v969
      %v1712 = vmul.f32 %v1311, %v969
      %v1713 = vmul.f32 %v1316, %v969
      %v1714 = vmul.f32 %v1321, %v969
      %v1715 = vmul.f32 %v1427, %v969
      %v1716 = vmul.f32 %v1533, %v969
      %v1717 = vmul.f32 %v1639, %v969
      %v1718 = vadd.f32 %v1612, %v1694
      %v1719 = vadd.f32 %v1613, %v1695
      %v1720 = vadd.f32 %v1614, %v1696
      %v1721 = vadd.f32 %v1615, %v1697
      %v1722 = vadd.f32 %v1616, %v1698
      %v1723 = vadd.f32 %v1617, %v1699
      %v1724 = vadd.f32 %v1618, %v1700
      %v1725 = vadd.f32 %v1619, %v1701
      %v1726 = vadd.f32 %v1620, %v1702
      %v1727 = vadd.f32 %v1621, %v1703
      %v1728 = vadd.f32 %v1622, %v1704
      %v1729 = vadd.f32 %v1623, %v1705
      %v1730 = vadd.f32 %v1624, %v1706
      %v1731 = vadd.f32 %v1625, %v1707
      %v1732 = vadd.f32 %v1626, %v1708
      %v1733 = vadd.f32 %v1627, %v1709
      %v1734 = vadd.f32 %v1628, %v1710
      %v1735 = vadd.f32 %v1629, %v1711
      %v1736 = vadd.f32 %v1630, %v1712
      %v1737 = vadd.f32 %v1631, %v1713
      %v1738 = vadd.f32 %v1632, %v1714
      %v1739 = vadd.f32 %v1633, %v1715
      %v1740 = vadd.f32 %v1634, %v1716
      %v1741 = vadd.f32 %v1635, %v1717
      %1743 = vset.pattern.permute.xlu0 0
      %1744 = vperm.xlu0 %1743, %v1202
      %v1745 = vpop.permute.xlu0 %1744
      %v1747 = vld [vmem:[%s1 + $0xe] sm:$0x1]
      %v1748 = vlaneseq
      %v1749 = vshrl.u32 %v1748, 7
      %v1750 = vsub.s32 0, %v1749
      %v1751 = vrot.slane %v1747, %v1750
      %v1752 = vmul.f32 %v1226, %v1751
      %v1753 = vmul.f32 %v1231, %v1751
      %v1754 = vmul.f32 %v1236, %v1751
      %v1755 = vmul.f32 %v1241, %v1751
      %v1756 = vmul.f32 %v1246, %v1751
      %v1757 = vmul.f32 %v1251, %v1751
      %v1758 = vmul.f32 %v1256, %v1751
      %v1759 = vmul.f32 %v1261, %v1751
      %v1760 = vmul.f32 %v1266, %v1751
      %v1761 = vmul.f32 %v1271, %v1751
      %v1762 = vmul.f32 %v1276, %v1751
      %v1763 = vmul.f32 %v1281, %v1751
      %v1764 = vmul.f32 %v1286, %v1751
      %v1765 = vmul.f32 %v1291, %v1751
      %v1766 = vmul.f32 %v1296, %v1751
      %v1767 = vmul.f32 %v1301, %v1751
      %v1768 = vmul.f32 %v1306, %v1751
      %v1769 = vmul.f32 %v1311, %v1751
      %v1770 = vmul.f32 %v1316, %v1751
      %v1771 = vmul.f32 %v1321, %v1751
      %v1772 = vmul.f32 %v1427, %v1751
      %v1773 = vmul.f32 %v1533, %v1751
      %v1774 = vmul.f32 %v1639, %v1751
      %v1775 = vmul.f32 %v1745, %v1751
      %v1776 = vadd.f32 %v1670, %v1752
      %v1777 = vadd.f32 %v1671, %v1753
      %v1778 = vadd.f32 %v1672, %v1754
      %v1779 = vadd.f32 %v1673, %v1755
      %v1780 = vadd.f32 %v1674, %v1756
      %v1781 = vadd.f32 %v1675, %v1757
      %v1782 = vadd.f32 %v1676, %v1758
      %v1783 = vadd.f32 %v1677, %v1759
      %v1784 = vadd.f32 %v1678, %v1760
      %v1785 = vadd.f32 %v1679, %v1761
      %v1786 = vadd.f32 %v1680, %v1762
      %v1787 = vadd.f32 %v1681, %v1763
      %v1788 = vadd.f32 %v1682, %v1764
      %v1789 = vadd.f32 %v1683, %v1765
      %v1790 = vadd.f32 %v1684, %v1766
      %v1791 = vadd.f32 %v1685, %v1767
      %v1792 = vadd.f32 %v1686, %v1768
      %v1793 = vadd.f32 %v1687, %v1769
      %v1794 = vadd.f32 %v1688, %v1770
      %v1795 = vadd.f32 %v1689, %v1771
      %v1796 = vadd.f32 %v1690, %v1772
      %v1797 = vadd.f32 %v1691, %v1773
      %v1798 = vadd.f32 %v1692, %v1774
      %v1799 = vadd.f32 %v1693, %v1775
      %v1800 = vmul.f32 %v1226, %v1075
      %v1801 = vmul.f32 %v1231, %v1075
      %v1802 = vmul.f32 %v1236, %v1075
      %v1803 = vmul.f32 %v1241, %v1075
      %v1804 = vmul.f32 %v1246, %v1075
      %v1805 = vmul.f32 %v1251, %v1075
      %v1806 = vmul.f32 %v1256, %v1075
      %v1807 = vmul.f32 %v1261, %v1075
      %v1808 = vmul.f32 %v1266, %v1075
      %v1809 = vmul.f32 %v1271, %v1075
      %v1810 = vmul.f32 %v1276, %v1075
      %v1811 = vmul.f32 %v1281, %v1075
      %v1812 = vmul.f32 %v1286, %v1075
      %v1813 = vmul.f32 %v1291, %v1075
      %v1814 = vmul.f32 %v1296, %v1075
      %v1815 = vmul.f32 %v1301, %v1075
      %v1816 = vmul.f32 %v1306, %v1075
      %v1817 = vmul.f32 %v1311, %v1075
      %v1818 = vmul.f32 %v1316, %v1075
      %v1819 = vmul.f32 %v1321, %v1075
      %v1820 = vmul.f32 %v1427, %v1075
      %v1821 = vmul.f32 %v1533, %v1075
      %v1822 = vmul.f32 %v1639, %v1075
      %v1823 = vmul.f32 %v1745, %v1075
      %v1824 = vadd.f32 %v1718, %v1800
      %v1825 = vadd.f32 %v1719, %v1801
      %v1826 = vadd.f32 %v1720, %v1802
      %v1827 = vadd.f32 %v1721, %v1803
      %v1828 = vadd.f32 %v1722, %v1804
      %v1829 = vadd.f32 %v1723, %v1805
      %v1830 = vadd.f32 %v1724, %v1806
      %v1831 = vadd.f32 %v1725, %v1807
      %v1832 = vadd.f32 %v1726, %v1808
      %v1833 = vadd.f32 %v1727, %v1809
      %v1834 = vadd.f32 %v1728, %v1810
      %v1835 = vadd.f32 %v1729, %v1811
      %v1836 = vadd.f32 %v1730, %v1812
      %v1837 = vadd.f32 %v1731, %v1813
      %v1838 = vadd.f32 %v1732, %v1814
      %v1839 = vadd.f32 %v1733, %v1815
      %v1840 = vadd.f32 %v1734, %v1816
      %v1841 = vadd.f32 %v1735, %v1817
      %v1842 = vadd.f32 %v1736, %v1818
      %v1843 = vadd.f32 %v1737, %v1819
      %v1844 = vadd.f32 %v1738, %v1820
      %v1845 = vadd.f32 %v1739, %v1821
      %v1846 = vadd.f32 %v1740, %v1822
      %v1847 = vadd.f32 %v1741, %v1823
      %s1848 = sadd.s32 %s60, 3
      %s1849 = smul.u32 %s1848, 224
      %s1850 = scalar_lea.vmem %s0, %s1849
      %v1851 = vld [vmem:[%s1850] sm:$0xff]
      %v1852 = vld [vmem:[%s1850 + $0x8] sm:$0xff]
      %v1853 = vld [vmem:[%s1850 + $0x10] sm:$0xff]
      %v1854 = vld [vmem:[%s1850 + $0x18] sm:$0xff]
      %v1855 = vld [vmem:[%s1850 + $0x20] sm:$0xff]
      %v1856 = vld [vmem:[%s1850 + $0x28] sm:$0xff]
      %v1857 = vld [vmem:[%s1850 + $0x30] sm:$0xff]
      %v1858 = vld [vmem:[%s1850 + $0x38] sm:$0xff]
      %v1859 = vld [vmem:[%s1850 + $0x40] sm:$0xff]
      %v1860 = vld [vmem:[%s1850 + $0x48] sm:$0xff]
      %v1861 = vld [vmem:[%s1850 + $0x50] sm:$0xff]
      %v1862 = vld [vmem:[%s1850 + $0x58] sm:$0xff]
      %v1863 = vld [vmem:[%s1850 + $0x60] sm:$0xff]
      %v1864 = vld [vmem:[%s1850 + $0x68] sm:$0xff]
      %v1865 = vld [vmem:[%s1850 + $0x70] sm:$0xff]
      %v1866 = vld [vmem:[%s1850 + $0x78] sm:$0xff]
      %v1867 = vld [vmem:[%s1850 + $0x80] sm:$0xff]
      %v1868 = vld [vmem:[%s1850 + $0x88] sm:$0xff]
      %v1869 = vld [vmem:[%s1850 + $0x90] sm:$0xff]
      %v1870 = vld [vmem:[%s1850 + $0x98] sm:$0xff]
      %v1871 = vld [vmem:[%s1850 + $0xa0] sm:$0xff]
      %v1872 = vld [vmem:[%s1850 + $0xa8] sm:$0xff]
      %v1873 = vld [vmem:[%s1850 + $0xb0] sm:$0xff]
      %v1874 = vld [vmem:[%s1850 + $0xb8] sm:$0xff]
      %v1875 = vld [vmem:[%s1850 + $0xc0] sm:$0xff]
      %v1876 = vld [vmem:[%s1850 + $0xc8] sm:$0xff]
      %v1877 = vld [vmem:[%s1850 + $0xd0] sm:$0xff]
      %v1878 = vld [vmem:[%s1850 + $0xd8] sm:$0xff]
      %1880 = vset.pattern.permute.xlu0 0
      %1881 = vperm.xlu0 %1880, %v1851
      %v1882 = vpop.permute.xlu0 %1881
      %1885 = vset.pattern.permute.xlu0 0
      %1886 = vperm.xlu0 %1885, %v1852
      %v1887 = vpop.permute.xlu0 %1886
      %1890 = vset.pattern.permute.xlu0 0
      %1891 = vperm.xlu0 %1890, %v1853
      %v1892 = vpop.permute.xlu0 %1891
      %1895 = vset.pattern.permute.xlu0 0
      %1896 = vperm.xlu0 %1895, %v1854
      %v1897 = vpop.permute.xlu0 %1896
      %1900 = vset.pattern.permute.xlu0 0
      %1901 = vperm.xlu0 %1900, %v1855
      %v1902 = vpop.permute.xlu0 %1901
      %1905 = vset.pattern.permute.xlu0 0
      %1906 = vperm.xlu0 %1905, %v1856
      %v1907 = vpop.permute.xlu0 %1906
      %1910 = vset.pattern.permute.xlu0 0
      %1911 = vperm.xlu0 %1910, %v1857
      %v1912 = vpop.permute.xlu0 %1911
      %1915 = vset.pattern.permute.xlu0 0
      %1916 = vperm.xlu0 %1915, %v1858
      %v1917 = vpop.permute.xlu0 %1916
      %1920 = vset.pattern.permute.xlu0 0
      %1921 = vperm.xlu0 %1920, %v1859
      %v1922 = vpop.permute.xlu0 %1921
      %1925 = vset.pattern.permute.xlu0 0
      %1926 = vperm.xlu0 %1925, %v1860
      %v1927 = vpop.permute.xlu0 %1926
      %1930 = vset.pattern.permute.xlu0 0
      %1931 = vperm.xlu0 %1930, %v1861
      %v1932 = vpop.permute.xlu0 %1931
      %1935 = vset.pattern.permute.xlu0 0
      %1936 = vperm.xlu0 %1935, %v1862
      %v1937 = vpop.permute.xlu0 %1936
      %1940 = vset.pattern.permute.xlu0 0
      %1941 = vperm.xlu0 %1940, %v1863
      %v1942 = vpop.permute.xlu0 %1941
      %1945 = vset.pattern.permute.xlu0 0
      %1946 = vperm.xlu0 %1945, %v1864
      %v1947 = vpop.permute.xlu0 %1946
      %1950 = vset.pattern.permute.xlu0 0
      %1951 = vperm.xlu0 %1950, %v1865
      %v1952 = vpop.permute.xlu0 %1951
      %1955 = vset.pattern.permute.xlu0 0
      %1956 = vperm.xlu0 %1955, %v1866
      %v1957 = vpop.permute.xlu0 %1956
      %1960 = vset.pattern.permute.xlu0 0
      %1961 = vperm.xlu0 %1960, %v1867
      %v1962 = vpop.permute.xlu0 %1961
      %1965 = vset.pattern.permute.xlu0 0
      %1966 = vperm.xlu0 %1965, %v1868
      %v1967 = vpop.permute.xlu0 %1966
      %1970 = vset.pattern.permute.xlu0 0
      %1971 = vperm.xlu0 %1970, %v1869
      %v1972 = vpop.permute.xlu0 %1971
      %1975 = vset.pattern.permute.xlu0 0
      %1976 = vperm.xlu0 %1975, %v1870
      %v1977 = vpop.permute.xlu0 %1976
      %1980 = vset.pattern.permute.xlu0 0
      %1981 = vperm.xlu0 %1980, %v1871
      %v1982 = vpop.permute.xlu0 %1981
      %1985 = vset.pattern.permute.xlu0 0
      %1986 = vperm.xlu0 %1985, %v1872
      %v1987 = vpop.permute.xlu0 %1986
      %1990 = vset.pattern.permute.xlu0 0
      %1991 = vperm.xlu0 %1990, %v1873
      %v1992 = vpop.permute.xlu0 %1991
      %1995 = vset.pattern.permute.xlu0 0
      %1996 = vperm.xlu0 %1995, %v1874
      %v1997 = vpop.permute.xlu0 %1996
      %v1999 = vld [vmem:[%s1 + $0xf] sm:$0x1]
      %v2000 = vlaneseq
      %v2001 = vshrl.u32 %v2000, 7
      %v2002 = vsub.s32 0, %v2001
      %v2003 = vrot.slane %v1999, %v2002
      %v2004 = vmul.f32 %v1882, %v2003
      %v2005 = vmul.f32 %v1887, %v2003
      %v2006 = vmul.f32 %v1892, %v2003
      %v2007 = vmul.f32 %v1897, %v2003
      %v2008 = vmul.f32 %v1902, %v2003
      %v2009 = vmul.f32 %v1907, %v2003
      %v2010 = vmul.f32 %v1912, %v2003
      %v2011 = vmul.f32 %v1917, %v2003
      %v2012 = vmul.f32 %v1922, %v2003
      %v2013 = vmul.f32 %v1927, %v2003
      %v2014 = vmul.f32 %v1932, %v2003
      %v2015 = vmul.f32 %v1937, %v2003
      %v2016 = vmul.f32 %v1942, %v2003
      %v2017 = vmul.f32 %v1947, %v2003
      %v2018 = vmul.f32 %v1952, %v2003
      %v2019 = vmul.f32 %v1957, %v2003
      %v2020 = vmul.f32 %v1962, %v2003
      %v2021 = vmul.f32 %v1967, %v2003
      %v2022 = vmul.f32 %v1972, %v2003
      %v2023 = vmul.f32 %v1977, %v2003
      %v2024 = vmul.f32 %v1982, %v2003
      %v2025 = vmul.f32 %v1987, %v2003
      %v2026 = vmul.f32 %v1992, %v2003
      %v2027 = vmul.f32 %v1997, %v2003
      %v2028 = vadd.f32 %v1776, %v2004
      %v2029 = vadd.f32 %v1777, %v2005
      %v2030 = vadd.f32 %v1778, %v2006
      %v2031 = vadd.f32 %v1779, %v2007
      %v2032 = vadd.f32 %v1780, %v2008
      %v2033 = vadd.f32 %v1781, %v2009
      %v2034 = vadd.f32 %v1782, %v2010
      %v2035 = vadd.f32 %v1783, %v2011
      %v2036 = vadd.f32 %v1784, %v2012
      %v2037 = vadd.f32 %v1785, %v2013
      %v2038 = vadd.f32 %v1786, %v2014
      %v2039 = vadd.f32 %v1787, %v2015
      %v2040 = vadd.f32 %v1788, %v2016
      %v2041 = vadd.f32 %v1789, %v2017
      %v2042 = vadd.f32 %v1790, %v2018
      %v2043 = vadd.f32 %v1791, %v2019
      %v2044 = vadd.f32 %v1792, %v2020
      %v2045 = vadd.f32 %v1793, %v2021
      %v2046 = vadd.f32 %v1794, %v2022
      %v2047 = vadd.f32 %v1795, %v2023
      %v2048 = vadd.f32 %v1796, %v2024
      %v2049 = vadd.f32 %v1797, %v2025
      %v2050 = vadd.f32 %v1798, %v2026
      %v2051 = vadd.f32 %v1799, %v2027
      %v2052 = vmul.f32 %v1882, %v1327
      %v2053 = vmul.f32 %v1887, %v1327
      %v2054 = vmul.f32 %v1892, %v1327
      %v2055 = vmul.f32 %v1897, %v1327
      %v2056 = vmul.f32 %v1902, %v1327
      %v2057 = vmul.f32 %v1907, %v1327
      %v2058 = vmul.f32 %v1912, %v1327
      %v2059 = vmul.f32 %v1917, %v1327
      %v2060 = vmul.f32 %v1922, %v1327
      %v2061 = vmul.f32 %v1927, %v1327
      %v2062 = vmul.f32 %v1932, %v1327
      %v2063 = vmul.f32 %v1937, %v1327
      %v2064 = vmul.f32 %v1942, %v1327
      %v2065 = vmul.f32 %v1947, %v1327
      %v2066 = vmul.f32 %v1952, %v1327
      %v2067 = vmul.f32 %v1957, %v1327
      %v2068 = vmul.f32 %v1962, %v1327
      %v2069 = vmul.f32 %v1967, %v1327
      %v2070 = vmul.f32 %v1972, %v1327
      %v2071 = vmul.f32 %v1977, %v1327
      %v2072 = vmul.f32 %v1982, %v1327
      %v2073 = vmul.f32 %v1987, %v1327
      %v2074 = vmul.f32 %v1992, %v1327
      %v2075 = vmul.f32 %v1997, %v1327
      %v2076 = vadd.f32 %v1824, %v2052
      %v2077 = vadd.f32 %v1825, %v2053
      %v2078 = vadd.f32 %v1826, %v2054
      %v2079 = vadd.f32 %v1827, %v2055
      %v2080 = vadd.f32 %v1828, %v2056
      %v2081 = vadd.f32 %v1829, %v2057
      %v2082 = vadd.f32 %v1830, %v2058
      %v2083 = vadd.f32 %v1831, %v2059
      %v2084 = vadd.f32 %v1832, %v2060
      %v2085 = vadd.f32 %v1833, %v2061
      %v2086 = vadd.f32 %v1834, %v2062
      %v2087 = vadd.f32 %v1835, %v2063
      %v2088 = vadd.f32 %v1836, %v2064
      %v2089 = vadd.f32 %v1837, %v2065
      %v2090 = vadd.f32 %v1838, %v2066
      %v2091 = vadd.f32 %v1839, %v2067
      %v2092 = vadd.f32 %v1840, %v2068
      %v2093 = vadd.f32 %v1841, %v2069
      %v2094 = vadd.f32 %v1842, %v2070
      %v2095 = vadd.f32 %v1843, %v2071
      %v2096 = vadd.f32 %v1844, %v2072
      %v2097 = vadd.f32 %v1845, %v2073
      %v2098 = vadd.f32 %v1846, %v2074
      %v2099 = vadd.f32 %v1847, %v2075
      %2101 = vset.pattern.permute.xlu0 0
      %2102 = vperm.xlu0 %2101, %v1875
      %v2103 = vpop.permute.xlu0 %2102
      %v2105 = vld [vmem:[%s1 + $0x10] sm:$0x1]
      %v2106 = vlaneseq
      %v2107 = vshrl.u32 %v2106, 7
      %v2108 = vsub.s32 0, %v2107
      %v2109 = vrot.slane %v2105, %v2108
      %v2110 = vmul.f32 %v1887, %v2109
      %v2111 = vmul.f32 %v1892, %v2109
      %v2112 = vmul.f32 %v1897, %v2109
      %v2113 = vmul.f32 %v1902, %v2109
      %v2114 = vmul.f32 %v1907, %v2109
      %v2115 = vmul.f32 %v1912, %v2109
      %v2116 = vmul.f32 %v1917, %v2109
      %v2117 = vmul.f32 %v1922, %v2109
      %v2118 = vmul.f32 %v1927, %v2109
      %v2119 = vmul.f32 %v1932, %v2109
      %v2120 = vmul.f32 %v1937, %v2109
      %v2121 = vmul.f32 %v1942, %v2109
      %v2122 = vmul.f32 %v1947, %v2109
      %v2123 = vmul.f32 %v1952, %v2109
      %v2124 = vmul.f32 %v1957, %v2109
      %v2125 = vmul.f32 %v1962, %v2109
      %v2126 = vmul.f32 %v1967, %v2109
      %v2127 = vmul.f32 %v1972, %v2109
      %v2128 = vmul.f32 %v1977, %v2109
      %v2129 = vmul.f32 %v1982, %v2109
      %v2130 = vmul.f32 %v1987, %v2109
      %v2131 = vmul.f32 %v1992, %v2109
      %v2132 = vmul.f32 %v1997, %v2109
      %v2133 = vmul.f32 %v2103, %v2109
      %v2134 = vadd.f32 %v2028, %v2110
      %v2135 = vadd.f32 %v2029, %v2111
      %v2136 = vadd.f32 %v2030, %v2112
      %v2137 = vadd.f32 %v2031, %v2113
      %v2138 = vadd.f32 %v2032, %v2114
      %v2139 = vadd.f32 %v2033, %v2115
      %v2140 = vadd.f32 %v2034, %v2116
      %v2141 = vadd.f32 %v2035, %v2117
      %v2142 = vadd.f32 %v2036, %v2118
      %v2143 = vadd.f32 %v2037, %v2119
      %v2144 = vadd.f32 %v2038, %v2120
      %v2145 = vadd.f32 %v2039, %v2121
      %v2146 = vadd.f32 %v2040, %v2122
      %v2147 = vadd.f32 %v2041, %v2123
      %v2148 = vadd.f32 %v2042, %v2124
      %v2149 = vadd.f32 %v2043, %v2125
      %v2150 = vadd.f32 %v2044, %v2126
      %v2151 = vadd.f32 %v2045, %v2127
      %v2152 = vadd.f32 %v2046, %v2128
      %v2153 = vadd.f32 %v2047, %v2129
      %v2154 = vadd.f32 %v2048, %v2130
      %v2155 = vadd.f32 %v2049, %v2131
      %v2156 = vadd.f32 %v2050, %v2132
      %v2157 = vadd.f32 %v2051, %v2133
      %v2158 = vmul.f32 %v1887, %v1433
      %v2159 = vmul.f32 %v1892, %v1433
      %v2160 = vmul.f32 %v1897, %v1433
      %v2161 = vmul.f32 %v1902, %v1433
      %v2162 = vmul.f32 %v1907, %v1433
      %v2163 = vmul.f32 %v1912, %v1433
      %v2164 = vmul.f32 %v1917, %v1433
      %v2165 = vmul.f32 %v1922, %v1433
      %v2166 = vmul.f32 %v1927, %v1433
      %v2167 = vmul.f32 %v1932, %v1433
      %v2168 = vmul.f32 %v1937, %v1433
      %v2169 = vmul.f32 %v1942, %v1433
      %v2170 = vmul.f32 %v1947, %v1433
      %v2171 = vmul.f32 %v1952, %v1433
      %v2172 = vmul.f32 %v1957, %v1433
      %v2173 = vmul.f32 %v1962, %v1433
      %v2174 = vmul.f32 %v1967, %v1433
      %v2175 = vmul.f32 %v1972, %v1433
      %v2176 = vmul.f32 %v1977, %v1433
      %v2177 = vmul.f32 %v1982, %v1433
      %v2178 = vmul.f32 %v1987, %v1433
      %v2179 = vmul.f32 %v1992, %v1433
      %v2180 = vmul.f32 %v1997, %v1433
      %v2181 = vmul.f32 %v2103, %v1433
      %v2182 = vadd.f32 %v2076, %v2158
      %v2183 = vadd.f32 %v2077, %v2159
      %v2184 = vadd.f32 %v2078, %v2160
      %v2185 = vadd.f32 %v2079, %v2161
      %v2186 = vadd.f32 %v2080, %v2162
      %v2187 = vadd.f32 %v2081, %v2163
      %v2188 = vadd.f32 %v2082, %v2164
      %v2189 = vadd.f32 %v2083, %v2165
      %v2190 = vadd.f32 %v2084, %v2166
      %v2191 = vadd.f32 %v2085, %v2167
      %v2192 = vadd.f32 %v2086, %v2168
      %v2193 = vadd.f32 %v2087, %v2169
      %v2194 = vadd.f32 %v2088, %v2170
      %v2195 = vadd.f32 %v2089, %v2171
      %v2196 = vadd.f32 %v2090, %v2172
      %v2197 = vadd.f32 %v2091, %v2173
      %v2198 = vadd.f32 %v2092, %v2174
      %v2199 = vadd.f32 %v2093, %v2175
      %v2200 = vadd.f32 %v2094, %v2176
      %v2201 = vadd.f32 %v2095, %v2177
      %v2202 = vadd.f32 %v2096, %v2178
      %v2203 = vadd.f32 %v2097, %v2179
      %v2204 = vadd.f32 %v2098, %v2180
      %v2205 = vadd.f32 %v2099, %v2181
      %2207 = vset.pattern.permute.xlu0 0
      %2208 = vperm.xlu0 %2207, %v1876
      %v2209 = vpop.permute.xlu0 %2208
      %v2211 = vld [vmem:[%s1 + $0x11] sm:$0x1]
      %v2212 = vlaneseq
      %v2213 = vshrl.u32 %v2212, 7
      %v2214 = vsub.s32 0, %v2213
      %v2215 = vrot.slane %v2211, %v2214
      %v2216 = vmul.f32 %v1892, %v2215
      %v2217 = vmul.f32 %v1897, %v2215
      %v2218 = vmul.f32 %v1902, %v2215
      %v2219 = vmul.f32 %v1907, %v2215
      %v2220 = vmul.f32 %v1912, %v2215
      %v2221 = vmul.f32 %v1917, %v2215
      %v2222 = vmul.f32 %v1922, %v2215
      %v2223 = vmul.f32 %v1927, %v2215
      %v2224 = vmul.f32 %v1932, %v2215
      %v2225 = vmul.f32 %v1937, %v2215
      %v2226 = vmul.f32 %v1942, %v2215
      %v2227 = vmul.f32 %v1947, %v2215
      %v2228 = vmul.f32 %v1952, %v2215
      %v2229 = vmul.f32 %v1957, %v2215
      %v2230 = vmul.f32 %v1962, %v2215
      %v2231 = vmul.f32 %v1967, %v2215
      %v2232 = vmul.f32 %v1972, %v2215
      %v2233 = vmul.f32 %v1977, %v2215
      %v2234 = vmul.f32 %v1982, %v2215
      %v2235 = vmul.f32 %v1987, %v2215
      %v2236 = vmul.f32 %v1992, %v2215
      %v2237 = vmul.f32 %v1997, %v2215
      %v2238 = vmul.f32 %v2103, %v2215
      %v2239 = vmul.f32 %v2209, %v2215
      %v2240 = vadd.f32 %v2134, %v2216
      %v2241 = vadd.f32 %v2135, %v2217
      %v2242 = vadd.f32 %v2136, %v2218
      %v2243 = vadd.f32 %v2137, %v2219
      %v2244 = vadd.f32 %v2138, %v2220
      %v2245 = vadd.f32 %v2139, %v2221
      %v2246 = vadd.f32 %v2140, %v2222
      %v2247 = vadd.f32 %v2141, %v2223
      %v2248 = vadd.f32 %v2142, %v2224
      %v2249 = vadd.f32 %v2143, %v2225
      %v2250 = vadd.f32 %v2144, %v2226
      %v2251 = vadd.f32 %v2145, %v2227
      %v2252 = vadd.f32 %v2146, %v2228
      %v2253 = vadd.f32 %v2147, %v2229
      %v2254 = vadd.f32 %v2148, %v2230
      %v2255 = vadd.f32 %v2149, %v2231
      %v2256 = vadd.f32 %v2150, %v2232
      %v2257 = vadd.f32 %v2151, %v2233
      %v2258 = vadd.f32 %v2152, %v2234
      %v2259 = vadd.f32 %v2153, %v2235
      %v2260 = vadd.f32 %v2154, %v2236
      %v2261 = vadd.f32 %v2155, %v2237
      %v2262 = vadd.f32 %v2156, %v2238
      %v2263 = vadd.f32 %v2157, %v2239
      %v2264 = vmul.f32 %v1892, %v1539
      %v2265 = vmul.f32 %v1897, %v1539
      %v2266 = vmul.f32 %v1902, %v1539
      %v2267 = vmul.f32 %v1907, %v1539
      %v2268 = vmul.f32 %v1912, %v1539
      %v2269 = vmul.f32 %v1917, %v1539
      %v2270 = vmul.f32 %v1922, %v1539
      %v2271 = vmul.f32 %v1927, %v1539
      %v2272 = vmul.f32 %v1932, %v1539
      %v2273 = vmul.f32 %v1937, %v1539
      %v2274 = vmul.f32 %v1942, %v1539
      %v2275 = vmul.f32 %v1947, %v1539
      %v2276 = vmul.f32 %v1952, %v1539
      %v2277 = vmul.f32 %v1957, %v1539
      %v2278 = vmul.f32 %v1962, %v1539
      %v2279 = vmul.f32 %v1967, %v1539
      %v2280 = vmul.f32 %v1972, %v1539
      %v2281 = vmul.f32 %v1977, %v1539
      %v2282 = vmul.f32 %v1982, %v1539
      %v2283 = vmul.f32 %v1987, %v1539
      %v2284 = vmul.f32 %v1992, %v1539
      %v2285 = vmul.f32 %v1997, %v1539
      %v2286 = vmul.f32 %v2103, %v1539
      %v2287 = vmul.f32 %v2209, %v1539
      %v2288 = vadd.f32 %v2182, %v2264
      %v2289 = vadd.f32 %v2183, %v2265
      %v2290 = vadd.f32 %v2184, %v2266
      %v2291 = vadd.f32 %v2185, %v2267
      %v2292 = vadd.f32 %v2186, %v2268
      %v2293 = vadd.f32 %v2187, %v2269
      %v2294 = vadd.f32 %v2188, %v2270
      %v2295 = vadd.f32 %v2189, %v2271
      %v2296 = vadd.f32 %v2190, %v2272
      %v2297 = vadd.f32 %v2191, %v2273
      %v2298 = vadd.f32 %v2192, %v2274
      %v2299 = vadd.f32 %v2193, %v2275
      %v2300 = vadd.f32 %v2194, %v2276
      %v2301 = vadd.f32 %v2195, %v2277
      %v2302 = vadd.f32 %v2196, %v2278
      %v2303 = vadd.f32 %v2197, %v2279
      %v2304 = vadd.f32 %v2198, %v2280
      %v2305 = vadd.f32 %v2199, %v2281
      %v2306 = vadd.f32 %v2200, %v2282
      %v2307 = vadd.f32 %v2201, %v2283
      %v2308 = vadd.f32 %v2202, %v2284
      %v2309 = vadd.f32 %v2203, %v2285
      %v2310 = vadd.f32 %v2204, %v2286
      %v2311 = vadd.f32 %v2205, %v2287
      %2313 = vset.pattern.permute.xlu0 0
      %2314 = vperm.xlu0 %2313, %v1877
      %v2315 = vpop.permute.xlu0 %2314
      %v2317 = vld [vmem:[%s1 + $0x12] sm:$0x1]
      %v2318 = vlaneseq
      %v2319 = vshrl.u32 %v2318, 7
      %v2320 = vsub.s32 0, %v2319
      %v2321 = vrot.slane %v2317, %v2320
      %v2322 = vmul.f32 %v1897, %v2321
      %v2323 = vmul.f32 %v1902, %v2321
      %v2324 = vmul.f32 %v1907, %v2321
      %v2325 = vmul.f32 %v1912, %v2321
      %v2326 = vmul.f32 %v1917, %v2321
      %v2327 = vmul.f32 %v1922, %v2321
      %v2328 = vmul.f32 %v1927, %v2321
      %v2329 = vmul.f32 %v1932, %v2321
      %v2330 = vmul.f32 %v1937, %v2321
      %v2331 = vmul.f32 %v1942, %v2321
      %v2332 = vmul.f32 %v1947, %v2321
      %v2333 = vmul.f32 %v1952, %v2321
      %v2334 = vmul.f32 %v1957, %v2321
      %v2335 = vmul.f32 %v1962, %v2321
      %v2336 = vmul.f32 %v1967, %v2321
      %v2337 = vmul.f32 %v1972, %v2321
      %v2338 = vmul.f32 %v1977, %v2321
      %v2339 = vmul.f32 %v1982, %v2321
      %v2340 = vmul.f32 %v1987, %v2321
      %v2341 = vmul.f32 %v1992, %v2321
      %v2342 = vmul.f32 %v1997, %v2321
      %v2343 = vmul.f32 %v2103, %v2321
      %v2344 = vmul.f32 %v2209, %v2321
      %v2345 = vmul.f32 %v2315, %v2321
      %v2346 = vadd.f32 %v2240, %v2322
      %v2347 = vadd.f32 %v2241, %v2323
      %v2348 = vadd.f32 %v2242, %v2324
      %v2349 = vadd.f32 %v2243, %v2325
      %v2350 = vadd.f32 %v2244, %v2326
      %v2351 = vadd.f32 %v2245, %v2327
      %v2352 = vadd.f32 %v2246, %v2328
      %v2353 = vadd.f32 %v2247, %v2329
      %v2354 = vadd.f32 %v2248, %v2330
      %v2355 = vadd.f32 %v2249, %v2331
      %v2356 = vadd.f32 %v2250, %v2332
      %v2357 = vadd.f32 %v2251, %v2333
      %v2358 = vadd.f32 %v2252, %v2334
      %v2359 = vadd.f32 %v2253, %v2335
      %v2360 = vadd.f32 %v2254, %v2336
      %v2361 = vadd.f32 %v2255, %v2337
      %v2362 = vadd.f32 %v2256, %v2338
      %v2363 = vadd.f32 %v2257, %v2339
      %v2364 = vadd.f32 %v2258, %v2340
      %v2365 = vadd.f32 %v2259, %v2341
      %v2366 = vadd.f32 %v2260, %v2342
      %v2367 = vadd.f32 %v2261, %v2343
      %v2368 = vadd.f32 %v2262, %v2344
      %v2369 = vadd.f32 %v2263, %v2345
      %v2370 = vmul.f32 %v1897, %v1645
      %v2371 = vmul.f32 %v1902, %v1645
      %v2372 = vmul.f32 %v1907, %v1645
      %v2373 = vmul.f32 %v1912, %v1645
      %v2374 = vmul.f32 %v1917, %v1645
      %v2375 = vmul.f32 %v1922, %v1645
      %v2376 = vmul.f32 %v1927, %v1645
      %v2377 = vmul.f32 %v1932, %v1645
      %v2378 = vmul.f32 %v1937, %v1645
      %v2379 = vmul.f32 %v1942, %v1645
      %v2380 = vmul.f32 %v1947, %v1645
      %v2381 = vmul.f32 %v1952, %v1645
      %v2382 = vmul.f32 %v1957, %v1645
      %v2383 = vmul.f32 %v1962, %v1645
      %v2384 = vmul.f32 %v1967, %v1645
      %v2385 = vmul.f32 %v1972, %v1645
      %v2386 = vmul.f32 %v1977, %v1645
      %v2387 = vmul.f32 %v1982, %v1645
      %v2388 = vmul.f32 %v1987, %v1645
      %v2389 = vmul.f32 %v1992, %v1645
      %v2390 = vmul.f32 %v1997, %v1645
      %v2391 = vmul.f32 %v2103, %v1645
      %v2392 = vmul.f32 %v2209, %v1645
      %v2393 = vmul.f32 %v2315, %v1645
      %v2394 = vadd.f32 %v2288, %v2370
      %v2395 = vadd.f32 %v2289, %v2371
      %v2396 = vadd.f32 %v2290, %v2372
      %v2397 = vadd.f32 %v2291, %v2373
      %v2398 = vadd.f32 %v2292, %v2374
      %v2399 = vadd.f32 %v2293, %v2375
      %v2400 = vadd.f32 %v2294, %v2376
      %v2401 = vadd.f32 %v2295, %v2377
      %v2402 = vadd.f32 %v2296, %v2378
      %v2403 = vadd.f32 %v2297, %v2379
      %v2404 = vadd.f32 %v2298, %v2380
      %v2405 = vadd.f32 %v2299, %v2381
      %v2406 = vadd.f32 %v2300, %v2382
      %v2407 = vadd.f32 %v2301, %v2383
      %v2408 = vadd.f32 %v2302, %v2384
      %v2409 = vadd.f32 %v2303, %v2385
      %v2410 = vadd.f32 %v2304, %v2386
      %v2411 = vadd.f32 %v2305, %v2387
      %v2412 = vadd.f32 %v2306, %v2388
      %v2413 = vadd.f32 %v2307, %v2389
      %v2414 = vadd.f32 %v2308, %v2390
      %v2415 = vadd.f32 %v2309, %v2391
      %v2416 = vadd.f32 %v2310, %v2392
      %v2417 = vadd.f32 %v2311, %v2393
      %2419 = vset.pattern.permute.xlu0 0
      %2420 = vperm.xlu0 %2419, %v1878
      %v2421 = vpop.permute.xlu0 %2420
      %v2423 = vld [vmem:[%s1 + $0x13] sm:$0x1]
      %v2424 = vlaneseq
      %v2425 = vshrl.u32 %v2424, 7
      %v2426 = vsub.s32 0, %v2425
      %v2427 = vrot.slane %v2423, %v2426
      %v2428 = vmul.f32 %v1902, %v2427
      %v2429 = vmul.f32 %v1907, %v2427
      %v2430 = vmul.f32 %v1912, %v2427
      %v2431 = vmul.f32 %v1917, %v2427
      %v2432 = vmul.f32 %v1922, %v2427
      %v2433 = vmul.f32 %v1927, %v2427
      %v2434 = vmul.f32 %v1932, %v2427
      %v2435 = vmul.f32 %v1937, %v2427
      %v2436 = vmul.f32 %v1942, %v2427
      %v2437 = vmul.f32 %v1947, %v2427
      %v2438 = vmul.f32 %v1952, %v2427
      %v2439 = vmul.f32 %v1957, %v2427
      %v2440 = vmul.f32 %v1962, %v2427
      %v2441 = vmul.f32 %v1967, %v2427
      %v2442 = vmul.f32 %v1972, %v2427
      %v2443 = vmul.f32 %v1977, %v2427
      %v2444 = vmul.f32 %v1982, %v2427
      %v2445 = vmul.f32 %v1987, %v2427
      %v2446 = vmul.f32 %v1992, %v2427
      %v2447 = vmul.f32 %v1997, %v2427
      %v2448 = vmul.f32 %v2103, %v2427
      %v2449 = vmul.f32 %v2209, %v2427
      %v2450 = vmul.f32 %v2315, %v2427
      %v2451 = vmul.f32 %v2421, %v2427
      %v2452 = vadd.f32 %v2346, %v2428
      %v2453 = vadd.f32 %v2347, %v2429
      %v2454 = vadd.f32 %v2348, %v2430
      %v2455 = vadd.f32 %v2349, %v2431
      %v2456 = vadd.f32 %v2350, %v2432
      %v2457 = vadd.f32 %v2351, %v2433
      %v2458 = vadd.f32 %v2352, %v2434
      %v2459 = vadd.f32 %v2353, %v2435
      %v2460 = vadd.f32 %v2354, %v2436
      %v2461 = vadd.f32 %v2355, %v2437
      %v2462 = vadd.f32 %v2356, %v2438
      %v2463 = vadd.f32 %v2357, %v2439
      %v2464 = vadd.f32 %v2358, %v2440
      %v2465 = vadd.f32 %v2359, %v2441
      %v2466 = vadd.f32 %v2360, %v2442
      %v2467 = vadd.f32 %v2361, %v2443
      %v2468 = vadd.f32 %v2362, %v2444
      %v2469 = vadd.f32 %v2363, %v2445
      %v2470 = vadd.f32 %v2364, %v2446
      %v2471 = vadd.f32 %v2365, %v2447
      %v2472 = vadd.f32 %v2366, %v2448
      %v2473 = vadd.f32 %v2367, %v2449
      %v2474 = vadd.f32 %v2368, %v2450
      %v2475 = vadd.f32 %v2369, %v2451
      %v2476 = vmul.f32 %v1902, %v1751
      %v2477 = vmul.f32 %v1907, %v1751
      %v2478 = vmul.f32 %v1912, %v1751
      %v2479 = vmul.f32 %v1917, %v1751
      %v2480 = vmul.f32 %v1922, %v1751
      %v2481 = vmul.f32 %v1927, %v1751
      %v2482 = vmul.f32 %v1932, %v1751
      %v2483 = vmul.f32 %v1937, %v1751
      %v2484 = vmul.f32 %v1942, %v1751
      %v2485 = vmul.f32 %v1947, %v1751
      %v2486 = vmul.f32 %v1952, %v1751
      %v2487 = vmul.f32 %v1957, %v1751
      %v2488 = vmul.f32 %v1962, %v1751
      %v2489 = vmul.f32 %v1967, %v1751
      %v2490 = vmul.f32 %v1972, %v1751
      %v2491 = vmul.f32 %v1977, %v1751
      %v2492 = vmul.f32 %v1982, %v1751
      %v2493 = vmul.f32 %v1987, %v1751
      %v2494 = vmul.f32 %v1992, %v1751
      %v2495 = vmul.f32 %v1997, %v1751
      %v2496 = vmul.f32 %v2103, %v1751
      %v2497 = vmul.f32 %v2209, %v1751
      %v2498 = vmul.f32 %v2315, %v1751
      %v2499 = vmul.f32 %v2421, %v1751
      %v2500 = vadd.f32 %v2394, %v2476
      %v2501 = vadd.f32 %v2395, %v2477
      %v2502 = vadd.f32 %v2396, %v2478
      %v2503 = vadd.f32 %v2397, %v2479
      %v2504 = vadd.f32 %v2398, %v2480
      %v2505 = vadd.f32 %v2399, %v2481
      %v2506 = vadd.f32 %v2400, %v2482
      %v2507 = vadd.f32 %v2401, %v2483
      %v2508 = vadd.f32 %v2402, %v2484
      %v2509 = vadd.f32 %v2403, %v2485
      %v2510 = vadd.f32 %v2404, %v2486
      %v2511 = vadd.f32 %v2405, %v2487
      %v2512 = vadd.f32 %v2406, %v2488
      %v2513 = vadd.f32 %v2407, %v2489
      %v2514 = vadd.f32 %v2408, %v2490
      %v2515 = vadd.f32 %v2409, %v2491
      %v2516 = vadd.f32 %v2410, %v2492
      %v2517 = vadd.f32 %v2411, %v2493
      %v2518 = vadd.f32 %v2412, %v2494
      %v2519 = vadd.f32 %v2413, %v2495
      %v2520 = vadd.f32 %v2414, %v2496
      %v2521 = vadd.f32 %v2415, %v2497
      %v2522 = vadd.f32 %v2416, %v2498
      %v2523 = vadd.f32 %v2417, %v2499
      %s2524 = sadd.s32 %s60, 4
      %s2525 = smul.u32 %s2524, 224
      %s2526 = scalar_lea.vmem %s0, %s2525
      %v2527 = vld [vmem:[%s2526] sm:$0xff]
      %v2528 = vld [vmem:[%s2526 + $0x8] sm:$0xff]
      %v2529 = vld [vmem:[%s2526 + $0x10] sm:$0xff]
      %v2530 = vld [vmem:[%s2526 + $0x18] sm:$0xff]
      %v2531 = vld [vmem:[%s2526 + $0x20] sm:$0xff]
      %v2532 = vld [vmem:[%s2526 + $0x28] sm:$0xff]
      %v2533 = vld [vmem:[%s2526 + $0x30] sm:$0xff]
      %v2534 = vld [vmem:[%s2526 + $0x38] sm:$0xff]
      %v2535 = vld [vmem:[%s2526 + $0x40] sm:$0xff]
      %v2536 = vld [vmem:[%s2526 + $0x48] sm:$0xff]
      %v2537 = vld [vmem:[%s2526 + $0x50] sm:$0xff]
      %v2538 = vld [vmem:[%s2526 + $0x58] sm:$0xff]
      %v2539 = vld [vmem:[%s2526 + $0x60] sm:$0xff]
      %v2540 = vld [vmem:[%s2526 + $0x68] sm:$0xff]
      %v2541 = vld [vmem:[%s2526 + $0x70] sm:$0xff]
      %v2542 = vld [vmem:[%s2526 + $0x78] sm:$0xff]
      %v2543 = vld [vmem:[%s2526 + $0x80] sm:$0xff]
      %v2544 = vld [vmem:[%s2526 + $0x88] sm:$0xff]
      %v2545 = vld [vmem:[%s2526 + $0x90] sm:$0xff]
      %v2546 = vld [vmem:[%s2526 + $0x98] sm:$0xff]
      %v2547 = vld [vmem:[%s2526 + $0xa0] sm:$0xff]
      %v2548 = vld [vmem:[%s2526 + $0xa8] sm:$0xff]
      %v2549 = vld [vmem:[%s2526 + $0xb0] sm:$0xff]
      %v2550 = vld [vmem:[%s2526 + $0xb8] sm:$0xff]
      %v2551 = vld [vmem:[%s2526 + $0xc0] sm:$0xff]
      %v2552 = vld [vmem:[%s2526 + $0xc8] sm:$0xff]
      %v2553 = vld [vmem:[%s2526 + $0xd0] sm:$0xff]
      %v2554 = vld [vmem:[%s2526 + $0xd8] sm:$0xff]
      %2556 = vset.pattern.permute.xlu0 0
      %2557 = vperm.xlu0 %2556, %v2527
      %v2558 = vpop.permute.xlu0 %2557
      %2561 = vset.pattern.permute.xlu0 0
      %2562 = vperm.xlu0 %2561, %v2528
      %v2563 = vpop.permute.xlu0 %2562
      %2566 = vset.pattern.permute.xlu0 0
      %2567 = vperm.xlu0 %2566, %v2529
      %v2568 = vpop.permute.xlu0 %2567
      %2571 = vset.pattern.permute.xlu0 0
      %2572 = vperm.xlu0 %2571, %v2530
      %v2573 = vpop.permute.xlu0 %2572
      %2576 = vset.pattern.permute.xlu0 0
      %2577 = vperm.xlu0 %2576, %v2531
      %v2578 = vpop.permute.xlu0 %2577
      %2581 = vset.pattern.permute.xlu0 0
      %2582 = vperm.xlu0 %2581, %v2532
      %v2583 = vpop.permute.xlu0 %2582
      %2586 = vset.pattern.permute.xlu0 0
      %2587 = vperm.xlu0 %2586, %v2533
      %v2588 = vpop.permute.xlu0 %2587
      %2591 = vset.pattern.permute.xlu0 0
      %2592 = vperm.xlu0 %2591, %v2534
      %v2593 = vpop.permute.xlu0 %2592
      %2596 = vset.pattern.permute.xlu0 0
      %2597 = vperm.xlu0 %2596, %v2535
      %v2598 = vpop.permute.xlu0 %2597
      %2601 = vset.pattern.permute.xlu0 0
      %2602 = vperm.xlu0 %2601, %v2536
      %v2603 = vpop.permute.xlu0 %2602
      %2606 = vset.pattern.permute.xlu0 0
      %2607 = vperm.xlu0 %2606, %v2537
      %v2608 = vpop.permute.xlu0 %2607
      %2611 = vset.pattern.permute.xlu0 0
      %2612 = vperm.xlu0 %2611, %v2538
      %v2613 = vpop.permute.xlu0 %2612
      %2616 = vset.pattern.permute.xlu0 0
      %2617 = vperm.xlu0 %2616, %v2539
      %v2618 = vpop.permute.xlu0 %2617
      %2621 = vset.pattern.permute.xlu0 0
      %2622 = vperm.xlu0 %2621, %v2540
      %v2623 = vpop.permute.xlu0 %2622
      %2626 = vset.pattern.permute.xlu0 0
      %2627 = vperm.xlu0 %2626, %v2541
      %v2628 = vpop.permute.xlu0 %2627
      %2631 = vset.pattern.permute.xlu0 0
      %2632 = vperm.xlu0 %2631, %v2542
      %v2633 = vpop.permute.xlu0 %2632
      %2636 = vset.pattern.permute.xlu0 0
      %2637 = vperm.xlu0 %2636, %v2543
      %v2638 = vpop.permute.xlu0 %2637
      %2641 = vset.pattern.permute.xlu0 0
      %2642 = vperm.xlu0 %2641, %v2544
      %v2643 = vpop.permute.xlu0 %2642
      %2646 = vset.pattern.permute.xlu0 0
      %2647 = vperm.xlu0 %2646, %v2545
      %v2648 = vpop.permute.xlu0 %2647
      %2651 = vset.pattern.permute.xlu0 0
      %2652 = vperm.xlu0 %2651, %v2546
      %v2653 = vpop.permute.xlu0 %2652
      %2656 = vset.pattern.permute.xlu0 0
      %2657 = vperm.xlu0 %2656, %v2547
      %v2658 = vpop.permute.xlu0 %2657
      %2661 = vset.pattern.permute.xlu0 0
      %2662 = vperm.xlu0 %2661, %v2548
      %v2663 = vpop.permute.xlu0 %2662
      %2666 = vset.pattern.permute.xlu0 0
      %2667 = vperm.xlu0 %2666, %v2549
      %v2668 = vpop.permute.xlu0 %2667
      %2671 = vset.pattern.permute.xlu0 0
      %2672 = vperm.xlu0 %2671, %v2550
      %v2673 = vpop.permute.xlu0 %2672
      %v2675 = vld [vmem:[%s1 + $0x14] sm:$0x1]
      %v2676 = vlaneseq
      %v2677 = vshrl.u32 %v2676, 7
      %v2678 = vsub.s32 0, %v2677
      %v2679 = vrot.slane %v2675, %v2678
      %v2680 = vmul.f32 %v2558, %v2679
      %v2681 = vmul.f32 %v2563, %v2679
      %v2682 = vmul.f32 %v2568, %v2679
      %v2683 = vmul.f32 %v2573, %v2679
      %v2684 = vmul.f32 %v2578, %v2679
      %v2685 = vmul.f32 %v2583, %v2679
      %v2686 = vmul.f32 %v2588, %v2679
      %v2687 = vmul.f32 %v2593, %v2679
      %v2688 = vmul.f32 %v2598, %v2679
      %v2689 = vmul.f32 %v2603, %v2679
      %v2690 = vmul.f32 %v2608, %v2679
      %v2691 = vmul.f32 %v2613, %v2679
      %v2692 = vmul.f32 %v2618, %v2679
      %v2693 = vmul.f32 %v2623, %v2679
      %v2694 = vmul.f32 %v2628, %v2679
      %v2695 = vmul.f32 %v2633, %v2679
      %v2696 = vmul.f32 %v2638, %v2679
      %v2697 = vmul.f32 %v2643, %v2679
      %v2698 = vmul.f32 %v2648, %v2679
      %v2699 = vmul.f32 %v2653, %v2679
      %v2700 = vmul.f32 %v2658, %v2679
      %v2701 = vmul.f32 %v2663, %v2679
      %v2702 = vmul.f32 %v2668, %v2679
      %v2703 = vmul.f32 %v2673, %v2679
      %v2704 = vadd.f32 %v2452, %v2680
      %v2705 = vadd.f32 %v2453, %v2681
      %v2706 = vadd.f32 %v2454, %v2682
      %v2707 = vadd.f32 %v2455, %v2683
      %v2708 = vadd.f32 %v2456, %v2684
      %v2709 = vadd.f32 %v2457, %v2685
      %v2710 = vadd.f32 %v2458, %v2686
      %v2711 = vadd.f32 %v2459, %v2687
      %v2712 = vadd.f32 %v2460, %v2688
      %v2713 = vadd.f32 %v2461, %v2689
      %v2714 = vadd.f32 %v2462, %v2690
      %v2715 = vadd.f32 %v2463, %v2691
      %v2716 = vadd.f32 %v2464, %v2692
      %v2717 = vadd.f32 %v2465, %v2693
      %v2718 = vadd.f32 %v2466, %v2694
      %v2719 = vadd.f32 %v2467, %v2695
      %v2720 = vadd.f32 %v2468, %v2696
      %v2721 = vadd.f32 %v2469, %v2697
      %v2722 = vadd.f32 %v2470, %v2698
      %v2723 = vadd.f32 %v2471, %v2699
      %v2724 = vadd.f32 %v2472, %v2700
      %v2725 = vadd.f32 %v2473, %v2701
      %v2726 = vadd.f32 %v2474, %v2702
      %v2727 = vadd.f32 %v2475, %v2703
      %v2728 = vmul.f32 %v2558, %v2003
      %v2729 = vmul.f32 %v2563, %v2003
      %v2730 = vmul.f32 %v2568, %v2003
      %v2731 = vmul.f32 %v2573, %v2003
      %v2732 = vmul.f32 %v2578, %v2003
      %v2733 = vmul.f32 %v2583, %v2003
      %v2734 = vmul.f32 %v2588, %v2003
      %v2735 = vmul.f32 %v2593, %v2003
      %v2736 = vmul.f32 %v2598, %v2003
      %v2737 = vmul.f32 %v2603, %v2003
      %v2738 = vmul.f32 %v2608, %v2003
      %v2739 = vmul.f32 %v2613, %v2003
      %v2740 = vmul.f32 %v2618, %v2003
      %v2741 = vmul.f32 %v2623, %v2003
      %v2742 = vmul.f32 %v2628, %v2003
      %v2743 = vmul.f32 %v2633, %v2003
      %v2744 = vmul.f32 %v2638, %v2003
      %v2745 = vmul.f32 %v2643, %v2003
      %v2746 = vmul.f32 %v2648, %v2003
      %v2747 = vmul.f32 %v2653, %v2003
      %v2748 = vmul.f32 %v2658, %v2003
      %v2749 = vmul.f32 %v2663, %v2003
      %v2750 = vmul.f32 %v2668, %v2003
      %v2751 = vmul.f32 %v2673, %v2003
      %v2752 = vadd.f32 %v2500, %v2728
      %v2753 = vadd.f32 %v2501, %v2729
      %v2754 = vadd.f32 %v2502, %v2730
      %v2755 = vadd.f32 %v2503, %v2731
      %v2756 = vadd.f32 %v2504, %v2732
      %v2757 = vadd.f32 %v2505, %v2733
      %v2758 = vadd.f32 %v2506, %v2734
      %v2759 = vadd.f32 %v2507, %v2735
      %v2760 = vadd.f32 %v2508, %v2736
      %v2761 = vadd.f32 %v2509, %v2737
      %v2762 = vadd.f32 %v2510, %v2738
      %v2763 = vadd.f32 %v2511, %v2739
      %v2764 = vadd.f32 %v2512, %v2740
      %v2765 = vadd.f32 %v2513, %v2741
      %v2766 = vadd.f32 %v2514, %v2742
      %v2767 = vadd.f32 %v2515, %v2743
      %v2768 = vadd.f32 %v2516, %v2744
      %v2769 = vadd.f32 %v2517, %v2745
      %v2770 = vadd.f32 %v2518, %v2746
      %v2771 = vadd.f32 %v2519, %v2747
      %v2772 = vadd.f32 %v2520, %v2748
      %v2773 = vadd.f32 %v2521, %v2749
      %v2774 = vadd.f32 %v2522, %v2750
      %v2775 = vadd.f32 %v2523, %v2751
      %2777 = vset.pattern.permute.xlu0 0
      %2778 = vperm.xlu0 %2777, %v2551
      %v2779 = vpop.permute.xlu0 %2778
      %v2781 = vld [vmem:[%s1 + $0x15] sm:$0x1]
      %v2782 = vlaneseq
      %v2783 = vshrl.u32 %v2782, 7
      %v2784 = vsub.s32 0, %v2783
      %v2785 = vrot.slane %v2781, %v2784
      %v2786 = vmul.f32 %v2563, %v2785
      %v2787 = vmul.f32 %v2568, %v2785
      %v2788 = vmul.f32 %v2573, %v2785
      %v2789 = vmul.f32 %v2578, %v2785
      %v2790 = vmul.f32 %v2583, %v2785
      %v2791 = vmul.f32 %v2588, %v2785
      %v2792 = vmul.f32 %v2593, %v2785
      %v2793 = vmul.f32 %v2598, %v2785
      %v2794 = vmul.f32 %v2603, %v2785
      %v2795 = vmul.f32 %v2608, %v2785
      %v2796 = vmul.f32 %v2613, %v2785
      %v2797 = vmul.f32 %v2618, %v2785
      %v2798 = vmul.f32 %v2623, %v2785
      %v2799 = vmul.f32 %v2628, %v2785
      %v2800 = vmul.f32 %v2633, %v2785
      %v2801 = vmul.f32 %v2638, %v2785
      %v2802 = vmul.f32 %v2643, %v2785
      %v2803 = vmul.f32 %v2648, %v2785
      %v2804 = vmul.f32 %v2653, %v2785
      %v2805 = vmul.f32 %v2658, %v2785
      %v2806 = vmul.f32 %v2663, %v2785
      %v2807 = vmul.f32 %v2668, %v2785
      %v2808 = vmul.f32 %v2673, %v2785
      %v2809 = vmul.f32 %v2779, %v2785
      %v2810 = vadd.f32 %v2704, %v2786
      %v2811 = vadd.f32 %v2705, %v2787
      %v2812 = vadd.f32 %v2706, %v2788
      %v2813 = vadd.f32 %v2707, %v2789
      %v2814 = vadd.f32 %v2708, %v2790
      %v2815 = vadd.f32 %v2709, %v2791
      %v2816 = vadd.f32 %v2710, %v2792
      %v2817 = vadd.f32 %v2711, %v2793
      %v2818 = vadd.f32 %v2712, %v2794
      %v2819 = vadd.f32 %v2713, %v2795
      %v2820 = vadd.f32 %v2714, %v2796
      %v2821 = vadd.f32 %v2715, %v2797
      %v2822 = vadd.f32 %v2716, %v2798
      %v2823 = vadd.f32 %v2717, %v2799
      %v2824 = vadd.f32 %v2718, %v2800
      %v2825 = vadd.f32 %v2719, %v2801
      %v2826 = vadd.f32 %v2720, %v2802
      %v2827 = vadd.f32 %v2721, %v2803
      %v2828 = vadd.f32 %v2722, %v2804
      %v2829 = vadd.f32 %v2723, %v2805
      %v2830 = vadd.f32 %v2724, %v2806
      %v2831 = vadd.f32 %v2725, %v2807
      %v2832 = vadd.f32 %v2726, %v2808
      %v2833 = vadd.f32 %v2727, %v2809
      %v2834 = vmul.f32 %v2563, %v2109
      %v2835 = vmul.f32 %v2568, %v2109
      %v2836 = vmul.f32 %v2573, %v2109
      %v2837 = vmul.f32 %v2578, %v2109
      %v2838 = vmul.f32 %v2583, %v2109
      %v2839 = vmul.f32 %v2588, %v2109
      %v2840 = vmul.f32 %v2593, %v2109
      %v2841 = vmul.f32 %v2598, %v2109
      %v2842 = vmul.f32 %v2603, %v2109
      %v2843 = vmul.f32 %v2608, %v2109
      %v2844 = vmul.f32 %v2613, %v2109
      %v2845 = vmul.f32 %v2618, %v2109
      %v2846 = vmul.f32 %v2623, %v2109
      %v2847 = vmul.f32 %v2628, %v2109
      %v2848 = vmul.f32 %v2633, %v2109
      %v2849 = vmul.f32 %v2638, %v2109
      %v2850 = vmul.f32 %v2643, %v2109
      %v2851 = vmul.f32 %v2648, %v2109
      %v2852 = vmul.f32 %v2653, %v2109
      %v2853 = vmul.f32 %v2658, %v2109
      %v2854 = vmul.f32 %v2663, %v2109
      %v2855 = vmul.f32 %v2668, %v2109
      %v2856 = vmul.f32 %v2673, %v2109
      %v2857 = vmul.f32 %v2779, %v2109
      %v2858 = vadd.f32 %v2752, %v2834
      %v2859 = vadd.f32 %v2753, %v2835
      %v2860 = vadd.f32 %v2754, %v2836
      %v2861 = vadd.f32 %v2755, %v2837
      %v2862 = vadd.f32 %v2756, %v2838
      %v2863 = vadd.f32 %v2757, %v2839
      %v2864 = vadd.f32 %v2758, %v2840
      %v2865 = vadd.f32 %v2759, %v2841
      %v2866 = vadd.f32 %v2760, %v2842
      %v2867 = vadd.f32 %v2761, %v2843
      %v2868 = vadd.f32 %v2762, %v2844
      %v2869 = vadd.f32 %v2763, %v2845
      %v2870 = vadd.f32 %v2764, %v2846
      %v2871 = vadd.f32 %v2765, %v2847
      %v2872 = vadd.f32 %v2766, %v2848
      %v2873 = vadd.f32 %v2767, %v2849
      %v2874 = vadd.f32 %v2768, %v2850
      %v2875 = vadd.f32 %v2769, %v2851
      %v2876 = vadd.f32 %v2770, %v2852
      %v2877 = vadd.f32 %v2771, %v2853
      %v2878 = vadd.f32 %v2772, %v2854
      %v2879 = vadd.f32 %v2773, %v2855
      %v2880 = vadd.f32 %v2774, %v2856
      %v2881 = vadd.f32 %v2775, %v2857
      %2883 = vset.pattern.permute.xlu0 0
      %2884 = vperm.xlu0 %2883, %v2552
      %v2885 = vpop.permute.xlu0 %2884
      %v2887 = vld [vmem:[%s1 + $0x16] sm:$0x1]
      %v2888 = vlaneseq
      %v2889 = vshrl.u32 %v2888, 7
      %v2890 = vsub.s32 0, %v2889
      %v2891 = vrot.slane %v2887, %v2890
      %v2892 = vmul.f32 %v2568, %v2891
      %v2893 = vmul.f32 %v2573, %v2891
      %v2894 = vmul.f32 %v2578, %v2891
      %v2895 = vmul.f32 %v2583, %v2891
      %v2896 = vmul.f32 %v2588, %v2891
      %v2897 = vmul.f32 %v2593, %v2891
      %v2898 = vmul.f32 %v2598, %v2891
      %v2899 = vmul.f32 %v2603, %v2891
      %v2900 = vmul.f32 %v2608, %v2891
      %v2901 = vmul.f32 %v2613, %v2891
      %v2902 = vmul.f32 %v2618, %v2891
      %v2903 = vmul.f32 %v2623, %v2891
      %v2904 = vmul.f32 %v2628, %v2891
      %v2905 = vmul.f32 %v2633, %v2891
      %v2906 = vmul.f32 %v2638, %v2891
      %v2907 = vmul.f32 %v2643, %v2891
      %v2908 = vmul.f32 %v2648, %v2891
      %v2909 = vmul.f32 %v2653, %v2891
      %v2910 = vmul.f32 %v2658, %v2891
      %v2911 = vmul.f32 %v2663, %v2891
      %v2912 = vmul.f32 %v2668, %v2891
      %v2913 = vmul.f32 %v2673, %v2891
      %v2914 = vmul.f32 %v2779, %v2891
      %v2915 = vmul.f32 %v2885, %v2891
      %v2916 = vadd.f32 %v2810, %v2892
      %v2917 = vadd.f32 %v2811, %v2893
      %v2918 = vadd.f32 %v2812, %v2894
      %v2919 = vadd.f32 %v2813, %v2895
      %v2920 = vadd.f32 %v2814, %v2896
      %v2921 = vadd.f32 %v2815, %v2897
      %v2922 = vadd.f32 %v2816, %v2898
      %v2923 = vadd.f32 %v2817, %v2899
      %v2924 = vadd.f32 %v2818, %v2900
      %v2925 = vadd.f32 %v2819, %v2901
      %v2926 = vadd.f32 %v2820, %v2902
      %v2927 = vadd.f32 %v2821, %v2903
      %v2928 = vadd.f32 %v2822, %v2904
      %v2929 = vadd.f32 %v2823, %v2905
      %v2930 = vadd.f32 %v2824, %v2906
      %v2931 = vadd.f32 %v2825, %v2907
      %v2932 = vadd.f32 %v2826, %v2908
      %v2933 = vadd.f32 %v2827, %v2909
      %v2934 = vadd.f32 %v2828, %v2910
      %v2935 = vadd.f32 %v2829, %v2911
      %v2936 = vadd.f32 %v2830, %v2912
      %v2937 = vadd.f32 %v2831, %v2913
      %v2938 = vadd.f32 %v2832, %v2914
      %v2939 = vadd.f32 %v2833, %v2915
      %v2940 = vmul.f32 %v2568, %v2215
      %v2941 = vmul.f32 %v2573, %v2215
      %v2942 = vmul.f32 %v2578, %v2215
      %v2943 = vmul.f32 %v2583, %v2215
      %v2944 = vmul.f32 %v2588, %v2215
      %v2945 = vmul.f32 %v2593, %v2215
      %v2946 = vmul.f32 %v2598, %v2215
      %v2947 = vmul.f32 %v2603, %v2215
      %v2948 = vmul.f32 %v2608, %v2215
      %v2949 = vmul.f32 %v2613, %v2215
      %v2950 = vmul.f32 %v2618, %v2215
      %v2951 = vmul.f32 %v2623, %v2215
      %v2952 = vmul.f32 %v2628, %v2215
      %v2953 = vmul.f32 %v2633, %v2215
      %v2954 = vmul.f32 %v2638, %v2215
      %v2955 = vmul.f32 %v2643, %v2215
      %v2956 = vmul.f32 %v2648, %v2215
      %v2957 = vmul.f32 %v2653, %v2215
      %v2958 = vmul.f32 %v2658, %v2215
      %v2959 = vmul.f32 %v2663, %v2215
      %v2960 = vmul.f32 %v2668, %v2215
      %v2961 = vmul.f32 %v2673, %v2215
      %v2962 = vmul.f32 %v2779, %v2215
      %v2963 = vmul.f32 %v2885, %v2215
      %v2964 = vadd.f32 %v2858, %v2940
      %v2965 = vadd.f32 %v2859, %v2941
      %v2966 = vadd.f32 %v2860, %v2942
      %v2967 = vadd.f32 %v2861, %v2943
      %v2968 = vadd.f32 %v2862, %v2944
      %v2969 = vadd.f32 %v2863, %v2945
      %v2970 = vadd.f32 %v2864, %v2946
      %v2971 = vadd.f32 %v2865, %v2947
      %v2972 = vadd.f32 %v2866, %v2948
      %v2973 = vadd.f32 %v2867, %v2949
      %v2974 = vadd.f32 %v2868, %v2950
      %v2975 = vadd.f32 %v2869, %v2951
      %v2976 = vadd.f32 %v2870, %v2952
      %v2977 = vadd.f32 %v2871, %v2953
      %v2978 = vadd.f32 %v2872, %v2954
      %v2979 = vadd.f32 %v2873, %v2955
      %v2980 = vadd.f32 %v2874, %v2956
      %v2981 = vadd.f32 %v2875, %v2957
      %v2982 = vadd.f32 %v2876, %v2958
      %v2983 = vadd.f32 %v2877, %v2959
      %v2984 = vadd.f32 %v2878, %v2960
      %v2985 = vadd.f32 %v2879, %v2961
      %v2986 = vadd.f32 %v2880, %v2962
      %v2987 = vadd.f32 %v2881, %v2963
      %2989 = vset.pattern.permute.xlu0 0
      %2990 = vperm.xlu0 %2989, %v2553
      %v2991 = vpop.permute.xlu0 %2990
      %v2993 = vld [vmem:[%s1 + $0x17] sm:$0x1]
      %v2994 = vlaneseq
      %v2995 = vshrl.u32 %v2994, 7
      %v2996 = vsub.s32 0, %v2995
      %v2997 = vrot.slane %v2993, %v2996
      %v2998 = vmul.f32 %v2573, %v2997
      %v2999 = vmul.f32 %v2578, %v2997
      %v3000 = vmul.f32 %v2583, %v2997
      %v3001 = vmul.f32 %v2588, %v2997
      %v3002 = vmul.f32 %v2593, %v2997
      %v3003 = vmul.f32 %v2598, %v2997
      %v3004 = vmul.f32 %v2603, %v2997
      %v3005 = vmul.f32 %v2608, %v2997
      %v3006 = vmul.f32 %v2613, %v2997
      %v3007 = vmul.f32 %v2618, %v2997
      %v3008 = vmul.f32 %v2623, %v2997
      %v3009 = vmul.f32 %v2628, %v2997
      %v3010 = vmul.f32 %v2633, %v2997
      %v3011 = vmul.f32 %v2638, %v2997
      %v3012 = vmul.f32 %v2643, %v2997
      %v3013 = vmul.f32 %v2648, %v2997
      %v3014 = vmul.f32 %v2653, %v2997
      %v3015 = vmul.f32 %v2658, %v2997
      %v3016 = vmul.f32 %v2663, %v2997
      %v3017 = vmul.f32 %v2668, %v2997
      %v3018 = vmul.f32 %v2673, %v2997
      %v3019 = vmul.f32 %v2779, %v2997
      %v3020 = vmul.f32 %v2885, %v2997
      %v3021 = vmul.f32 %v2991, %v2997
      %v3022 = vadd.f32 %v2916, %v2998
      %v3023 = vadd.f32 %v2917, %v2999
      %v3024 = vadd.f32 %v2918, %v3000
      %v3025 = vadd.f32 %v2919, %v3001
      %v3026 = vadd.f32 %v2920, %v3002
      %v3027 = vadd.f32 %v2921, %v3003
      %v3028 = vadd.f32 %v2922, %v3004
      %v3029 = vadd.f32 %v2923, %v3005
      %v3030 = vadd.f32 %v2924, %v3006
      %v3031 = vadd.f32 %v2925, %v3007
      %v3032 = vadd.f32 %v2926, %v3008
      %v3033 = vadd.f32 %v2927, %v3009
      %v3034 = vadd.f32 %v2928, %v3010
      %v3035 = vadd.f32 %v2929, %v3011
      %v3036 = vadd.f32 %v2930, %v3012
      %v3037 = vadd.f32 %v2931, %v3013
      %v3038 = vadd.f32 %v2932, %v3014
      %v3039 = vadd.f32 %v2933, %v3015
      %v3040 = vadd.f32 %v2934, %v3016
      %v3041 = vadd.f32 %v2935, %v3017
      %v3042 = vadd.f32 %v2936, %v3018
      %v3043 = vadd.f32 %v2937, %v3019
      %v3044 = vadd.f32 %v2938, %v3020
      %v3045 = vadd.f32 %v2939, %v3021
      %v3046 = vmul.f32 %v2573, %v2321
      %v3047 = vmul.f32 %v2578, %v2321
      %v3048 = vmul.f32 %v2583, %v2321
      %v3049 = vmul.f32 %v2588, %v2321
      %v3050 = vmul.f32 %v2593, %v2321
      %v3051 = vmul.f32 %v2598, %v2321
      %v3052 = vmul.f32 %v2603, %v2321
      %v3053 = vmul.f32 %v2608, %v2321
      %v3054 = vmul.f32 %v2613, %v2321
      %v3055 = vmul.f32 %v2618, %v2321
      %v3056 = vmul.f32 %v2623, %v2321
      %v3057 = vmul.f32 %v2628, %v2321
      %v3058 = vmul.f32 %v2633, %v2321
      %v3059 = vmul.f32 %v2638, %v2321
      %v3060 = vmul.f32 %v2643, %v2321
      %v3061 = vmul.f32 %v2648, %v2321
      %v3062 = vmul.f32 %v2653, %v2321
      %v3063 = vmul.f32 %v2658, %v2321
      %v3064 = vmul.f32 %v2663, %v2321
      %v3065 = vmul.f32 %v2668, %v2321
      %v3066 = vmul.f32 %v2673, %v2321
      %v3067 = vmul.f32 %v2779, %v2321
      %v3068 = vmul.f32 %v2885, %v2321
      %v3069 = vmul.f32 %v2991, %v2321
      %v3070 = vadd.f32 %v2964, %v3046
      %v3071 = vadd.f32 %v2965, %v3047
      %v3072 = vadd.f32 %v2966, %v3048
      %v3073 = vadd.f32 %v2967, %v3049
      %v3074 = vadd.f32 %v2968, %v3050
      %v3075 = vadd.f32 %v2969, %v3051
      %v3076 = vadd.f32 %v2970, %v3052
      %v3077 = vadd.f32 %v2971, %v3053
      %v3078 = vadd.f32 %v2972, %v3054
      %v3079 = vadd.f32 %v2973, %v3055
      %v3080 = vadd.f32 %v2974, %v3056
      %v3081 = vadd.f32 %v2975, %v3057
      %v3082 = vadd.f32 %v2976, %v3058
      %v3083 = vadd.f32 %v2977, %v3059
      %v3084 = vadd.f32 %v2978, %v3060
      %v3085 = vadd.f32 %v2979, %v3061
      %v3086 = vadd.f32 %v2980, %v3062
      %v3087 = vadd.f32 %v2981, %v3063
      %v3088 = vadd.f32 %v2982, %v3064
      %v3089 = vadd.f32 %v2983, %v3065
      %v3090 = vadd.f32 %v2984, %v3066
      %v3091 = vadd.f32 %v2985, %v3067
      %v3092 = vadd.f32 %v2986, %v3068
      %v3093 = vadd.f32 %v2987, %v3069
      %3095 = vset.pattern.permute.xlu0 0
      %3096 = vperm.xlu0 %3095, %v2554
      %v3097 = vpop.permute.xlu0 %3096
      %v3099 = vld [vmem:[%s1 + $0x18] sm:$0x1]
      %v3100 = vlaneseq
      %v3101 = vshrl.u32 %v3100, 7
      %v3102 = vsub.s32 0, %v3101
      %v3103 = vrot.slane %v3099, %v3102
      %v3104 = vmul.f32 %v2578, %v3103
      %v3105 = vmul.f32 %v2583, %v3103
      %v3106 = vmul.f32 %v2588, %v3103
      %v3107 = vmul.f32 %v2593, %v3103
      %v3108 = vmul.f32 %v2598, %v3103
      %v3109 = vmul.f32 %v2603, %v3103
      %v3110 = vmul.f32 %v2608, %v3103
      %v3111 = vmul.f32 %v2613, %v3103
      %v3112 = vmul.f32 %v2618, %v3103
      %v3113 = vmul.f32 %v2623, %v3103
      %v3114 = vmul.f32 %v2628, %v3103
      %v3115 = vmul.f32 %v2633, %v3103
      %v3116 = vmul.f32 %v2638, %v3103
      %v3117 = vmul.f32 %v2643, %v3103
      %v3118 = vmul.f32 %v2648, %v3103
      %v3119 = vmul.f32 %v2653, %v3103
      %v3120 = vmul.f32 %v2658, %v3103
      %v3121 = vmul.f32 %v2663, %v3103
      %v3122 = vmul.f32 %v2668, %v3103
      %v3123 = vmul.f32 %v2673, %v3103
      %v3124 = vmul.f32 %v2779, %v3103
      %v3125 = vmul.f32 %v2885, %v3103
      %v3126 = vmul.f32 %v2991, %v3103
      %v3127 = vmul.f32 %v3097, %v3103
      %v3128 = vadd.f32 %v3022, %v3104
      %v3129 = vadd.f32 %v3023, %v3105
      %v3130 = vadd.f32 %v3024, %v3106
      %v3131 = vadd.f32 %v3025, %v3107
      %v3132 = vadd.f32 %v3026, %v3108
      %v3133 = vadd.f32 %v3027, %v3109
      %v3134 = vadd.f32 %v3028, %v3110
      %v3135 = vadd.f32 %v3029, %v3111
      %v3136 = vadd.f32 %v3030, %v3112
      %v3137 = vadd.f32 %v3031, %v3113
      %v3138 = vadd.f32 %v3032, %v3114
      %v3139 = vadd.f32 %v3033, %v3115
      %v3140 = vadd.f32 %v3034, %v3116
      %v3141 = vadd.f32 %v3035, %v3117
      %v3142 = vadd.f32 %v3036, %v3118
      %v3143 = vadd.f32 %v3037, %v3119
      %v3144 = vadd.f32 %v3038, %v3120
      %v3145 = vadd.f32 %v3039, %v3121
      %v3146 = vadd.f32 %v3040, %v3122
      %v3147 = vadd.f32 %v3041, %v3123
      %v3148 = vadd.f32 %v3042, %v3124
      %v3149 = vadd.f32 %v3043, %v3125
      %v3150 = vadd.f32 %v3044, %v3126
      %v3151 = vadd.f32 %v3045, %v3127
      %v3152 = vmul.f32 %v2578, %v2427
      %v3153 = vmul.f32 %v2583, %v2427
      %v3154 = vmul.f32 %v2588, %v2427
      %v3155 = vmul.f32 %v2593, %v2427
      %v3156 = vmul.f32 %v2598, %v2427
      %v3157 = vmul.f32 %v2603, %v2427
      %v3158 = vmul.f32 %v2608, %v2427
      %v3159 = vmul.f32 %v2613, %v2427
      %v3160 = vmul.f32 %v2618, %v2427
      %v3161 = vmul.f32 %v2623, %v2427
      %v3162 = vmul.f32 %v2628, %v2427
      %v3163 = vmul.f32 %v2633, %v2427
      %v3164 = vmul.f32 %v2638, %v2427
      %v3165 = vmul.f32 %v2643, %v2427
      %v3166 = vmul.f32 %v2648, %v2427
      %v3167 = vmul.f32 %v2653, %v2427
      %v3168 = vmul.f32 %v2658, %v2427
      %v3169 = vmul.f32 %v2663, %v2427
      %v3170 = vmul.f32 %v2668, %v2427
      %v3171 = vmul.f32 %v2673, %v2427
      %v3172 = vmul.f32 %v2779, %v2427
      %v3173 = vmul.f32 %v2885, %v2427
      %v3174 = vmul.f32 %v2991, %v2427
      %v3175 = vmul.f32 %v3097, %v2427
      %v3176 = vadd.f32 %v3070, %v3152
      %v3177 = vadd.f32 %v3071, %v3153
      %v3178 = vadd.f32 %v3072, %v3154
      %v3179 = vadd.f32 %v3073, %v3155
      %v3180 = vadd.f32 %v3074, %v3156
      %v3181 = vadd.f32 %v3075, %v3157
      %v3182 = vadd.f32 %v3076, %v3158
      %v3183 = vadd.f32 %v3077, %v3159
      %v3184 = vadd.f32 %v3078, %v3160
      %v3185 = vadd.f32 %v3079, %v3161
      %v3186 = vadd.f32 %v3080, %v3162
      %v3187 = vadd.f32 %v3081, %v3163
      %v3188 = vadd.f32 %v3082, %v3164
      %v3189 = vadd.f32 %v3083, %v3165
      %v3190 = vadd.f32 %v3084, %v3166
      %v3191 = vadd.f32 %v3085, %v3167
      %v3192 = vadd.f32 %v3086, %v3168
      %v3193 = vadd.f32 %v3087, %v3169
      %v3194 = vadd.f32 %v3088, %v3170
      %v3195 = vadd.f32 %v3089, %v3171
      %v3196 = vadd.f32 %v3090, %v3172
      %v3197 = vadd.f32 %v3091, %v3173
      %v3198 = vadd.f32 %v3092, %v3174
      %v3199 = vadd.f32 %v3093, %v3175
      %s3200 = sadd.s32 %s60, 5
      %s3201 = smul.u32 %s3200, 224
      %s3202 = scalar_lea.vmem %s0, %s3201
      %v3203 = vld [vmem:[%s3202] sm:$0xff]
      %v3204 = vld [vmem:[%s3202 + $0x8] sm:$0xff]
      %v3205 = vld [vmem:[%s3202 + $0x10] sm:$0xff]
      %v3206 = vld [vmem:[%s3202 + $0x18] sm:$0xff]
      %v3207 = vld [vmem:[%s3202 + $0x20] sm:$0xff]
      %v3208 = vld [vmem:[%s3202 + $0x28] sm:$0xff]
      %v3209 = vld [vmem:[%s3202 + $0x30] sm:$0xff]
      %v3210 = vld [vmem:[%s3202 + $0x38] sm:$0xff]
      %v3211 = vld [vmem:[%s3202 + $0x40] sm:$0xff]
      %v3212 = vld [vmem:[%s3202 + $0x48] sm:$0xff]
      %v3213 = vld [vmem:[%s3202 + $0x50] sm:$0xff]
      %v3214 = vld [vmem:[%s3202 + $0x58] sm:$0xff]
      %v3215 = vld [vmem:[%s3202 + $0x60] sm:$0xff]
      %v3216 = vld [vmem:[%s3202 + $0x68] sm:$0xff]
      %v3217 = vld [vmem:[%s3202 + $0x70] sm:$0xff]
      %v3218 = vld [vmem:[%s3202 + $0x78] sm:$0xff]
      %v3219 = vld [vmem:[%s3202 + $0x80] sm:$0xff]
      %v3220 = vld [vmem:[%s3202 + $0x88] sm:$0xff]
      %v3221 = vld [vmem:[%s3202 + $0x90] sm:$0xff]
      %v3222 = vld [vmem:[%s3202 + $0x98] sm:$0xff]
      %v3223 = vld [vmem:[%s3202 + $0xa0] sm:$0xff]
      %v3224 = vld [vmem:[%s3202 + $0xa8] sm:$0xff]
      %v3225 = vld [vmem:[%s3202 + $0xb0] sm:$0xff]
      %v3226 = vld [vmem:[%s3202 + $0xb8] sm:$0xff]
      %v3227 = vld [vmem:[%s3202 + $0xc0] sm:$0xff]
      %v3228 = vld [vmem:[%s3202 + $0xc8] sm:$0xff]
      %v3229 = vld [vmem:[%s3202 + $0xd0] sm:$0xff]
      %v3230 = vld [vmem:[%s3202 + $0xd8] sm:$0xff]
      %3232 = vset.pattern.permute.xlu0 0
      %3233 = vperm.xlu0 %3232, %v3203
      %v3234 = vpop.permute.xlu0 %3233
      %3237 = vset.pattern.permute.xlu0 0
      %3238 = vperm.xlu0 %3237, %v3204
      %v3239 = vpop.permute.xlu0 %3238
      %3242 = vset.pattern.permute.xlu0 0
      %3243 = vperm.xlu0 %3242, %v3205
      %v3244 = vpop.permute.xlu0 %3243
      %3247 = vset.pattern.permute.xlu0 0
      %3248 = vperm.xlu0 %3247, %v3206
      %v3249 = vpop.permute.xlu0 %3248
      %3252 = vset.pattern.permute.xlu0 0
      %3253 = vperm.xlu0 %3252, %v3207
      %v3254 = vpop.permute.xlu0 %3253
      %3257 = vset.pattern.permute.xlu0 0
      %3258 = vperm.xlu0 %3257, %v3208
      %v3259 = vpop.permute.xlu0 %3258
      %3262 = vset.pattern.permute.xlu0 0
      %3263 = vperm.xlu0 %3262, %v3209
      %v3264 = vpop.permute.xlu0 %3263
      %3267 = vset.pattern.permute.xlu0 0
      %3268 = vperm.xlu0 %3267, %v3210
      %v3269 = vpop.permute.xlu0 %3268
      %3272 = vset.pattern.permute.xlu0 0
      %3273 = vperm.xlu0 %3272, %v3211
      %v3274 = vpop.permute.xlu0 %3273
      %3277 = vset.pattern.permute.xlu0 0
      %3278 = vperm.xlu0 %3277, %v3212
      %v3279 = vpop.permute.xlu0 %3278
      %3282 = vset.pattern.permute.xlu0 0
      %3283 = vperm.xlu0 %3282, %v3213
      %v3284 = vpop.permute.xlu0 %3283
      %3287 = vset.pattern.permute.xlu0 0
      %3288 = vperm.xlu0 %3287, %v3214
      %v3289 = vpop.permute.xlu0 %3288
      %3292 = vset.pattern.permute.xlu0 0
      %3293 = vperm.xlu0 %3292, %v3215
      %v3294 = vpop.permute.xlu0 %3293
      %3297 = vset.pattern.permute.xlu0 0
      %3298 = vperm.xlu0 %3297, %v3216
      %v3299 = vpop.permute.xlu0 %3298
      %3302 = vset.pattern.permute.xlu0 0
      %3303 = vperm.xlu0 %3302, %v3217
      %v3304 = vpop.permute.xlu0 %3303
      %3307 = vset.pattern.permute.xlu0 0
      %3308 = vperm.xlu0 %3307, %v3218
      %v3309 = vpop.permute.xlu0 %3308
      %3312 = vset.pattern.permute.xlu0 0
      %3313 = vperm.xlu0 %3312, %v3219
      %v3314 = vpop.permute.xlu0 %3313
      %3317 = vset.pattern.permute.xlu0 0
      %3318 = vperm.xlu0 %3317, %v3220
      %v3319 = vpop.permute.xlu0 %3318
      %3322 = vset.pattern.permute.xlu0 0
      %3323 = vperm.xlu0 %3322, %v3221
      %v3324 = vpop.permute.xlu0 %3323
      %3327 = vset.pattern.permute.xlu0 0
      %3328 = vperm.xlu0 %3327, %v3222
      %v3329 = vpop.permute.xlu0 %3328
      %3332 = vset.pattern.permute.xlu0 0
      %3333 = vperm.xlu0 %3332, %v3223
      %v3334 = vpop.permute.xlu0 %3333
      %3337 = vset.pattern.permute.xlu0 0
      %3338 = vperm.xlu0 %3337, %v3224
      %v3339 = vpop.permute.xlu0 %3338
      %3342 = vset.pattern.permute.xlu0 0
      %3343 = vperm.xlu0 %3342, %v3225
      %v3344 = vpop.permute.xlu0 %3343
      %3347 = vset.pattern.permute.xlu0 0
      %3348 = vperm.xlu0 %3347, %v3226
      %v3349 = vpop.permute.xlu0 %3348
      %v3351 = vmul.f32 %v3234, %v2679
      %v3352 = vmul.f32 %v3239, %v2679
      %v3353 = vmul.f32 %v3244, %v2679
      %v3354 = vmul.f32 %v3249, %v2679
      %v3355 = vmul.f32 %v3254, %v2679
      %v3356 = vmul.f32 %v3259, %v2679
      %v3357 = vmul.f32 %v3264, %v2679
      %v3358 = vmul.f32 %v3269, %v2679
      %v3359 = vmul.f32 %v3274, %v2679
      %v3360 = vmul.f32 %v3279, %v2679
      %v3361 = vmul.f32 %v3284, %v2679
      %v3362 = vmul.f32 %v3289, %v2679
      %v3363 = vmul.f32 %v3294, %v2679
      %v3364 = vmul.f32 %v3299, %v2679
      %v3365 = vmul.f32 %v3304, %v2679
      %v3366 = vmul.f32 %v3309, %v2679
      %v3367 = vmul.f32 %v3314, %v2679
      %v3368 = vmul.f32 %v3319, %v2679
      %v3369 = vmul.f32 %v3324, %v2679
      %v3370 = vmul.f32 %v3329, %v2679
      %v3371 = vmul.f32 %v3334, %v2679
      %v3372 = vmul.f32 %v3339, %v2679
      %v3373 = vmul.f32 %v3344, %v2679
      %v3374 = vmul.f32 %v3349, %v2679
      %v3375 = vadd.f32 %v3176, %v3351
      %v3376 = vadd.f32 %v3177, %v3352
      %v3377 = vadd.f32 %v3178, %v3353
      %v3378 = vadd.f32 %v3179, %v3354
      %v3379 = vadd.f32 %v3180, %v3355
      %v3380 = vadd.f32 %v3181, %v3356
      %v3381 = vadd.f32 %v3182, %v3357
      %v3382 = vadd.f32 %v3183, %v3358
      %v3383 = vadd.f32 %v3184, %v3359
      %v3384 = vadd.f32 %v3185, %v3360
      %v3385 = vadd.f32 %v3186, %v3361
      %v3386 = vadd.f32 %v3187, %v3362
      %v3387 = vadd.f32 %v3188, %v3363
      %v3388 = vadd.f32 %v3189, %v3364
      %v3389 = vadd.f32 %v3190, %v3365
      %v3390 = vadd.f32 %v3191, %v3366
      %v3391 = vadd.f32 %v3192, %v3367
      %v3392 = vadd.f32 %v3193, %v3368
      %v3393 = vadd.f32 %v3194, %v3369
      %v3394 = vadd.f32 %v3195, %v3370
      %v3395 = vadd.f32 %v3196, %v3371
      %v3396 = vadd.f32 %v3197, %v3372
      %v3397 = vadd.f32 %v3198, %v3373
      %v3398 = vadd.f32 %v3199, %v3374
      %3400 = vset.pattern.permute.xlu0 0
      %3401 = vperm.xlu0 %3400, %v3227
      %v3402 = vpop.permute.xlu0 %3401
      %v3404 = vmul.f32 %v3239, %v2785
      %v3405 = vmul.f32 %v3244, %v2785
      %v3406 = vmul.f32 %v3249, %v2785
      %v3407 = vmul.f32 %v3254, %v2785
      %v3408 = vmul.f32 %v3259, %v2785
      %v3409 = vmul.f32 %v3264, %v2785
      %v3410 = vmul.f32 %v3269, %v2785
      %v3411 = vmul.f32 %v3274, %v2785
      %v3412 = vmul.f32 %v3279, %v2785
      %v3413 = vmul.f32 %v3284, %v2785
      %v3414 = vmul.f32 %v3289, %v2785
      %v3415 = vmul.f32 %v3294, %v2785
      %v3416 = vmul.f32 %v3299, %v2785
      %v3417 = vmul.f32 %v3304, %v2785
      %v3418 = vmul.f32 %v3309, %v2785
      %v3419 = vmul.f32 %v3314, %v2785
      %v3420 = vmul.f32 %v3319, %v2785
      %v3421 = vmul.f32 %v3324, %v2785
      %v3422 = vmul.f32 %v3329, %v2785
      %v3423 = vmul.f32 %v3334, %v2785
      %v3424 = vmul.f32 %v3339, %v2785
      %v3425 = vmul.f32 %v3344, %v2785
      %v3426 = vmul.f32 %v3349, %v2785
      %v3427 = vmul.f32 %v3402, %v2785
      %v3428 = vadd.f32 %v3375, %v3404
      %v3429 = vadd.f32 %v3376, %v3405
      %v3430 = vadd.f32 %v3377, %v3406
      %v3431 = vadd.f32 %v3378, %v3407
      %v3432 = vadd.f32 %v3379, %v3408
      %v3433 = vadd.f32 %v3380, %v3409
      %v3434 = vadd.f32 %v3381, %v3410
      %v3435 = vadd.f32 %v3382, %v3411
      %v3436 = vadd.f32 %v3383, %v3412
      %v3437 = vadd.f32 %v3384, %v3413
      %v3438 = vadd.f32 %v3385, %v3414
      %v3439 = vadd.f32 %v3386, %v3415
      %v3440 = vadd.f32 %v3387, %v3416
      %v3441 = vadd.f32 %v3388, %v3417
      %v3442 = vadd.f32 %v3389, %v3418
      %v3443 = vadd.f32 %v3390, %v3419
      %v3444 = vadd.f32 %v3391, %v3420
      %v3445 = vadd.f32 %v3392, %v3421
      %v3446 = vadd.f32 %v3393, %v3422
      %v3447 = vadd.f32 %v3394, %v3423
      %v3448 = vadd.f32 %v3395, %v3424
      %v3449 = vadd.f32 %v3396, %v3425
      %v3450 = vadd.f32 %v3397, %v3426
      %v3451 = vadd.f32 %v3398, %v3427
      %3453 = vset.pattern.permute.xlu0 0
      %3454 = vperm.xlu0 %3453, %v3228
      %v3455 = vpop.permute.xlu0 %3454
      %v3457 = vmul.f32 %v3244, %v2891
      %v3458 = vmul.f32 %v3249, %v2891
      %v3459 = vmul.f32 %v3254, %v2891
      %v3460 = vmul.f32 %v3259, %v2891
      %v3461 = vmul.f32 %v3264, %v2891
      %v3462 = vmul.f32 %v3269, %v2891
      %v3463 = vmul.f32 %v3274, %v2891
      %v3464 = vmul.f32 %v3279, %v2891
      %v3465 = vmul.f32 %v3284, %v2891
      %v3466 = vmul.f32 %v3289, %v2891
      %v3467 = vmul.f32 %v3294, %v2891
      %v3468 = vmul.f32 %v3299, %v2891
      %v3469 = vmul.f32 %v3304, %v2891
      %v3470 = vmul.f32 %v3309, %v2891
      %v3471 = vmul.f32 %v3314, %v2891
      %v3472 = vmul.f32 %v3319, %v2891
      %v3473 = vmul.f32 %v3324, %v2891
      %v3474 = vmul.f32 %v3329, %v2891
      %v3475 = vmul.f32 %v3334, %v2891
      %v3476 = vmul.f32 %v3339, %v2891
      %v3477 = vmul.f32 %v3344, %v2891
      %v3478 = vmul.f32 %v3349, %v2891
      %v3479 = vmul.f32 %v3402, %v2891
      %v3480 = vmul.f32 %v3455, %v2891
      %v3481 = vadd.f32 %v3428, %v3457
      %v3482 = vadd.f32 %v3429, %v3458
      %v3483 = vadd.f32 %v3430, %v3459
      %v3484 = vadd.f32 %v3431, %v3460
      %v3485 = vadd.f32 %v3432, %v3461
      %v3486 = vadd.f32 %v3433, %v3462
      %v3487 = vadd.f32 %v3434, %v3463
      %v3488 = vadd.f32 %v3435, %v3464
      %v3489 = vadd.f32 %v3436, %v3465
      %v3490 = vadd.f32 %v3437, %v3466
      %v3491 = vadd.f32 %v3438, %v3467
      %v3492 = vadd.f32 %v3439, %v3468
      %v3493 = vadd.f32 %v3440, %v3469
      %v3494 = vadd.f32 %v3441, %v3470
      %v3495 = vadd.f32 %v3442, %v3471
      %v3496 = vadd.f32 %v3443, %v3472
      %v3497 = vadd.f32 %v3444, %v3473
      %v3498 = vadd.f32 %v3445, %v3474
      %v3499 = vadd.f32 %v3446, %v3475
      %v3500 = vadd.f32 %v3447, %v3476
      %v3501 = vadd.f32 %v3448, %v3477
      %v3502 = vadd.f32 %v3449, %v3478
      %v3503 = vadd.f32 %v3450, %v3479
      %v3504 = vadd.f32 %v3451, %v3480
      %3506 = vset.pattern.permute.xlu0 0
      %3507 = vperm.xlu0 %3506, %v3229
      %v3508 = vpop.permute.xlu0 %3507
      %v3510 = vmul.f32 %v3249, %v2997
      %v3511 = vmul.f32 %v3254, %v2997
      %v3512 = vmul.f32 %v3259, %v2997
      %v3513 = vmul.f32 %v3264, %v2997
      %v3514 = vmul.f32 %v3269, %v2997
      %v3515 = vmul.f32 %v3274, %v2997
      %v3516 = vmul.f32 %v3279, %v2997
      %v3517 = vmul.f32 %v3284, %v2997
      %v3518 = vmul.f32 %v3289, %v2997
      %v3519 = vmul.f32 %v3294, %v2997
      %v3520 = vmul.f32 %v3299, %v2997
      %v3521 = vmul.f32 %v3304, %v2997
      %v3522 = vmul.f32 %v3309, %v2997
      %v3523 = vmul.f32 %v3314, %v2997
      %v3524 = vmul.f32 %v3319, %v2997
      %v3525 = vmul.f32 %v3324, %v2997
      %v3526 = vmul.f32 %v3329, %v2997
      %v3527 = vmul.f32 %v3334, %v2997
      %v3528 = vmul.f32 %v3339, %v2997
      %v3529 = vmul.f32 %v3344, %v2997
      %v3530 = vmul.f32 %v3349, %v2997
      %v3531 = vmul.f32 %v3402, %v2997
      %v3532 = vmul.f32 %v3455, %v2997
      %v3533 = vmul.f32 %v3508, %v2997
      %v3534 = vadd.f32 %v3481, %v3510
      %v3535 = vadd.f32 %v3482, %v3511
      %v3536 = vadd.f32 %v3483, %v3512
      %v3537 = vadd.f32 %v3484, %v3513
      %v3538 = vadd.f32 %v3485, %v3514
      %v3539 = vadd.f32 %v3486, %v3515
      %v3540 = vadd.f32 %v3487, %v3516
      %v3541 = vadd.f32 %v3488, %v3517
      %v3542 = vadd.f32 %v3489, %v3518
      %v3543 = vadd.f32 %v3490, %v3519
      %v3544 = vadd.f32 %v3491, %v3520
      %v3545 = vadd.f32 %v3492, %v3521
      %v3546 = vadd.f32 %v3493, %v3522
      %v3547 = vadd.f32 %v3494, %v3523
      %v3548 = vadd.f32 %v3495, %v3524
      %v3549 = vadd.f32 %v3496, %v3525
      %v3550 = vadd.f32 %v3497, %v3526
      %v3551 = vadd.f32 %v3498, %v3527
      %v3552 = vadd.f32 %v3499, %v3528
      %v3553 = vadd.f32 %v3500, %v3529
      %v3554 = vadd.f32 %v3501, %v3530
      %v3555 = vadd.f32 %v3502, %v3531
      %v3556 = vadd.f32 %v3503, %v3532
      %v3557 = vadd.f32 %v3504, %v3533
      %3559 = vset.pattern.permute.xlu0 0
      %3560 = vperm.xlu0 %3559, %v3230
      %v3561 = vpop.permute.xlu0 %3560
      %v3563 = vmul.f32 %v3254, %v3103
      %v3564 = vmul.f32 %v3259, %v3103
      %v3565 = vmul.f32 %v3264, %v3103
      %v3566 = vmul.f32 %v3269, %v3103
      %v3567 = vmul.f32 %v3274, %v3103
      %v3568 = vmul.f32 %v3279, %v3103
      %v3569 = vmul.f32 %v3284, %v3103
      %v3570 = vmul.f32 %v3289, %v3103
      %v3571 = vmul.f32 %v3294, %v3103
      %v3572 = vmul.f32 %v3299, %v3103
      %v3573 = vmul.f32 %v3304, %v3103
      %v3574 = vmul.f32 %v3309, %v3103
      %v3575 = vmul.f32 %v3314, %v3103
      %v3576 = vmul.f32 %v3319, %v3103
      %v3577 = vmul.f32 %v3324, %v3103
      %v3578 = vmul.f32 %v3329, %v3103
      %v3579 = vmul.f32 %v3334, %v3103
      %v3580 = vmul.f32 %v3339, %v3103
      %v3581 = vmul.f32 %v3344, %v3103
      %v3582 = vmul.f32 %v3349, %v3103
      %v3583 = vmul.f32 %v3402, %v3103
      %v3584 = vmul.f32 %v3455, %v3103
      %v3585 = vmul.f32 %v3508, %v3103
      %v3586 = vmul.f32 %v3561, %v3103
      %v3587 = vadd.f32 %v3534, %v3563
      %v3588 = vadd.f32 %v3535, %v3564
      %v3589 = vadd.f32 %v3536, %v3565
      %v3590 = vadd.f32 %v3537, %v3566
      %v3591 = vadd.f32 %v3538, %v3567
      %v3592 = vadd.f32 %v3539, %v3568
      %v3593 = vadd.f32 %v3540, %v3569
      %v3594 = vadd.f32 %v3541, %v3570
      %v3595 = vadd.f32 %v3542, %v3571
      %v3596 = vadd.f32 %v3543, %v3572
      %v3597 = vadd.f32 %v3544, %v3573
      %v3598 = vadd.f32 %v3545, %v3574
      %v3599 = vadd.f32 %v3546, %v3575
      %v3600 = vadd.f32 %v3547, %v3576
      %v3601 = vadd.f32 %v3548, %v3577
      %v3602 = vadd.f32 %v3549, %v3578
      %v3603 = vadd.f32 %v3550, %v3579
      %v3604 = vadd.f32 %v3551, %v3580
      %v3605 = vadd.f32 %v3552, %v3581
      %v3606 = vadd.f32 %v3553, %v3582
      %v3607 = vadd.f32 %v3554, %v3583
      %v3608 = vadd.f32 %v3555, %v3584
      %v3609 = vadd.f32 %v3556, %v3585
      %v3610 = vadd.f32 %v3557, %v3586
      %v3611 = vmax.f32 %v3128, 0.0
      %v3612 = vmax.f32 %v3129, 0.0
      %v3613 = vmax.f32 %v3130, 0.0
      %v3614 = vmax.f32 %v3131, 0.0
      %v3615 = vmax.f32 %v3132, 0.0
      %v3616 = vmax.f32 %v3133, 0.0
      %v3617 = vmax.f32 %v3134, 0.0
      %v3618 = vmax.f32 %v3135, 0.0
      %v3619 = vmax.f32 %v3136, 0.0
      %v3620 = vmax.f32 %v3137, 0.0
      %v3621 = vmax.f32 %v3138, 0.0
      %v3622 = vmax.f32 %v3139, 0.0
      %v3623 = vmax.f32 %v3140, 0.0
      %v3624 = vmax.f32 %v3141, 0.0
      %v3625 = vmax.f32 %v3142, 0.0
      %v3626 = vmax.f32 %v3143, 0.0
      %v3627 = vmax.f32 %v3144, 0.0
      %v3628 = vmax.f32 %v3145, 0.0
      %v3629 = vmax.f32 %v3146, 0.0
      %v3630 = vmax.f32 %v3147, 0.0
      %v3631 = vmax.f32 %v3148, 0.0
      %v3632 = vmax.f32 %v3149, 0.0
      %v3633 = vmax.f32 %v3150, 0.0
      %v3634 = vmax.f32 %v3151, 0.0
      %v3635 = vmax.f32 %v3587, 0.0
      %v3636 = vmax.f32 %v3588, 0.0
      %v3637 = vmax.f32 %v3589, 0.0
      %v3638 = vmax.f32 %v3590, 0.0
      %v3639 = vmax.f32 %v3591, 0.0
      %v3640 = vmax.f32 %v3592, 0.0
      %v3641 = vmax.f32 %v3593, 0.0
      %v3642 = vmax.f32 %v3594, 0.0
      %v3643 = vmax.f32 %v3595, 0.0
      %v3644 = vmax.f32 %v3596, 0.0
      %v3645 = vmax.f32 %v3597, 0.0
      %v3646 = vmax.f32 %v3598, 0.0
      %v3647 = vmax.f32 %v3599, 0.0
      %v3648 = vmax.f32 %v3600, 0.0
      %v3649 = vmax.f32 %v3601, 0.0
      %v3650 = vmax.f32 %v3602, 0.0
      %v3651 = vmax.f32 %v3603, 0.0
      %v3652 = vmax.f32 %v3604, 0.0
      %v3653 = vmax.f32 %v3605, 0.0
      %v3654 = vmax.f32 %v3606, 0.0
      %v3655 = vmax.f32 %v3607, 0.0
      %v3656 = vmax.f32 %v3608, 0.0
      %v3657 = vmax.f32 %v3609, 0.0
      %v3658 = vmax.f32 %v3610, 0.0
      %v3659 = vmax.f32 %v3611, %v3635
      %v3660 = vmax.f32 %v3612, %v3636
      %v3661 = vmax.f32 %v3613, %v3637
      %v3662 = vmax.f32 %v3614, %v3638
      %v3663 = vmax.f32 %v3615, %v3639
      %v3664 = vmax.f32 %v3616, %v3640
      %v3665 = vmax.f32 %v3617, %v3641
      %v3666 = vmax.f32 %v3618, %v3642
      %v3667 = vmax.f32 %v3619, %v3643
      %v3668 = vmax.f32 %v3620, %v3644
      %v3669 = vmax.f32 %v3621, %v3645
      %v3670 = vmax.f32 %v3622, %v3646
      %v3671 = vmax.f32 %v3623, %v3647
      %v3672 = vmax.f32 %v3624, %v3648
      %v3673 = vmax.f32 %v3625, %v3649
      %v3674 = vmax.f32 %v3626, %v3650
      %v3675 = vmax.f32 %v3627, %v3651
      %v3676 = vmax.f32 %v3628, %v3652
      %v3677 = vmax.f32 %v3629, %v3653
      %v3678 = vmax.f32 %v3630, %v3654
      %v3679 = vmax.f32 %v3631, %v3655
      %v3680 = vmax.f32 %v3632, %v3656
      %v3681 = vmax.f32 %v3633, %v3657
      %v3682 = vmax.f32 %v3634, %v3658
      %v3683 = vmax.f32 %v3659, %v3660
      %v3684 = vmax.f32 %v3661, %v3662
      %v3685 = vmax.f32 %v3663, %v3664
      %v3686 = vmax.f32 %v3665, %v3666
      %v3687 = vmax.f32 %v3667, %v3668
      %v3688 = vmax.f32 %v3669, %v3670
      %v3689 = vmax.f32 %v3671, %v3672
      %v3690 = vmax.f32 %v3673, %v3674
      %v3691 = vmax.f32 %v3675, %v3676
      %v3692 = vmax.f32 %v3677, %v3678
      %v3693 = vmax.f32 %v3679, %v3680
      %v3694 = vmax.f32 %v3681, %v3682
      %s3695 = smul.u32 %s47, 96
      %s3696 = scalar_lea.vmem [#allocation2], %s3695
      %3697 = vst [vmem:[%s3696] sm:$0xff] %v3683
      %3698 = vst [vmem:[%s3696 + $0x8] sm:$0xff] %v3684
      %3699 = vst [vmem:[%s3696 + $0x10] sm:$0xff] %v3685
      %3700 = vst [vmem:[%s3696 + $0x18] sm:$0xff] %v3686
      %3701 = vst [vmem:[%s3696 + $0x20] sm:$0xff] %v3687
      %3702 = vst [vmem:[%s3696 + $0x28] sm:$0xff] %v3688
      %3703 = vst [vmem:[%s3696 + $0x30] sm:$0xff] %v3689
      %3704 = vst [vmem:[%s3696 + $0x38] sm:$0xff] %v3690
      %3705 = vst [vmem:[%s3696 + $0x40] sm:$0xff] %v3691
      %3706 = vst [vmem:[%s3696 + $0x48] sm:$0xff] %v3692
      %3707 = vst [vmem:[%s3696 + $0x50] sm:$0xff] %v3693
      %3708 = vst [vmem:[%s3696 + $0x58] sm:$0xff] %v3694
    $region46: #{mnist_forward.1} parent=1 // loop_footer
      %s51 = sadd.s32 1, %s47
    $region47: #{mnist_forward.1} parent=1 // loop_footer_branch
      %46 = sbr.rel target = $region43
    $region48: #{mnist_forward.1} parent=1 // loop_exit
      _
    %v3709 = vld [vmem:[%s4] sm:$0x1]
    %v3711 = vlaneseq
    %v3712 = vshrl.u32 %v3711, 7
    %v3713 = vsub.s32 0, %v3712
    %v3714 = vrot.slane %v3709, %v3713
    %3716 = vst [vmem:[#allocation3] sm:$0xff] %v3714
    %3717 = vst [vmem:[#allocation3 + $0x8] sm:$0xff] %v3714
    %3718 = vst [vmem:[#allocation3 + $0x10] sm:$0xff] %v3714
    %3719 = vst [vmem:[#allocation3 + $0x18] sm:$0xff] %v3714
    %3720 = vst [vmem:[#allocation3 + $0x20] sm:$0xff] %v3714
    %3721 = vst [vmem:[#allocation3 + $0x28] sm:$0xff] %v3714
    %3722 = vst [vmem:[#allocation3 + $0x30] sm:$0xff] %v3714
    %3723 = vst [vmem:[#allocation3 + $0x38] sm:$0xff] %v3714
    %3724 = vst [vmem:[#allocation3 + $0x40] sm:$0xff] %v3714
    %3725 = vst [vmem:[#allocation3 + $0x48] sm:$0xff] %v3714
    %3726 = vst [vmem:[#allocation3 + $0x50] sm:$0xff] %v3714
    %3727 = vst [vmem:[#allocation3 + $0x58] sm:$0xff] %v3714
    %3728 = vst [vmem:[#allocation3 + $0x60] sm:$0xff] %v3714
    %3729 = vst [vmem:[#allocation3 + $0x68] sm:$0xff] %v3714
    %3730 = vst [vmem:[#allocation3 + $0x70] sm:$0xff] %v3714
    %3731 = vst [vmem:[#allocation3 + $0x78] sm:$0xff] %v3714
    %3732 = vst [vmem:[#allocation3 + $0x80] sm:$0xff] %v3714
    %3733 = vst [vmem:[#allocation3 + $0x88] sm:$0xff] %v3714
    %3734 = vst [vmem:[#allocation3 + $0x90] sm:$0xff] %v3714
    %3735 = vst [vmem:[#allocation3 + $0x98] sm:$0xff] %v3714
    %3736 = vst [vmem:[#allocation3 + $0xa0] sm:$0xff] %v3714
    %3737 = vst [vmem:[#allocation3 + $0xa8] sm:$0xff] %v3714
    %3738 = vst [vmem:[#allocation3 + $0xb0] sm:$0xff] %v3714
    %3739 = vst [vmem:[#allocation3 + $0xb8] sm:$0xff] %v3714
    %3740 = vst [vmem:[#allocation3 + $0xc0] sm:$0xff] %v3714
    %3741 = vst [vmem:[#allocation3 + $0xc8] sm:$0xff] %v3714
    %3742 = vst [vmem:[#allocation3 + $0xd0] sm:$0xff] %v3714
    %3743 = vst [vmem:[#allocation3 + $0xd8] sm:$0xff] %v3714
    %3744 = vst [vmem:[#allocation3 + $0xe0] sm:$0xff] %v3714
    %3745 = vst [vmem:[#allocation3 + $0xe8] sm:$0xff] %v3714
    %3746 = vst [vmem:[#allocation3 + $0xf0] sm:$0xff] %v3714
    %3747 = vst [vmem:[#allocation3 + $0xf8] sm:$0xff] %v3714
    %3748 = vst [vmem:[#allocation3 + $0x100] sm:$0xff] %v3714
    %3749 = vst [vmem:[#allocation3 + $0x108] sm:$0xff] %v3714
    %3750 = vst [vmem:[#allocation3 + $0x110] sm:$0xff] %v3714
    %3751 = vst [vmem:[#allocation3 + $0x118] sm:$0xff] %v3714
    %3752 = vst [vmem:[#allocation3 + $0x120] sm:$0xff] %v3714
    %3753 = vst [vmem:[#allocation3 + $0x128] sm:$0xff] %v3714
    %3754 = vst [vmem:[#allocation3 + $0x130] sm:$0xff] %v3714
    %3755 = vst [vmem:[#allocation3 + $0x138] sm:$0xff] %v3714
    %3756 = vst [vmem:[#allocation3 + $0x140] sm:$0xff] %v3714
    %3757 = vst [vmem:[#allocation3 + $0x148] sm:$0xff] %v3714
    %3758 = vst [vmem:[#allocation3 + $0x150] sm:$0xff] %v3714
    %3759 = vst [vmem:[#allocation3 + $0x158] sm:$0xff] %v3714
    %3760 = vst [vmem:[#allocation3 + $0x160] sm:$0xff] %v3714
    %3761 = vst [vmem:[#allocation3 + $0x168] sm:$0xff] %v3714
    %3762 = vst [vmem:[#allocation3 + $0x170] sm:$0xff] %v3714
    %3763 = vst [vmem:[#allocation3 + $0x178] sm:$0xff] %v3714
    %3764 = vst [vmem:[#allocation3 + $0x180] sm:$0xff] %v3714
    %3765 = vst [vmem:[#allocation3 + $0x188] sm:$0xff] %v3714
    %3766 = vst [vmem:[#allocation3 + $0x190] sm:$0xff] %v3714
    %3767 = vst [vmem:[#allocation3 + $0x198] sm:$0xff] %v3714
    %3768 = vst [vmem:[#allocation3 + $0x1a0] sm:$0xff] %v3714
    %3769 = vst [vmem:[#allocation3 + $0x1a8] sm:$0xff] %v3714
    %3770 = vst [vmem:[#allocation3 + $0x1b0] sm:$0xff] %v3714
    %3771 = vst [vmem:[#allocation3 + $0x1b8] sm:$0xff] %v3714
    %3772 = vst [vmem:[#allocation3 + $0x1c0] sm:$0xff] %v3714
    %3773 = vst [vmem:[#allocation3 + $0x1c8] sm:$0xff] %v3714
    %3774 = vst [vmem:[#allocation3 + $0x1d0] sm:$0xff] %v3714
    %3775 = vst [vmem:[#allocation3 + $0x1d8] sm:$0xff] %v3714
    %3776 = vst [vmem:[#allocation3 + $0x1e0] sm:$0xff] %v3714
    %3777 = vst [vmem:[#allocation3 + $0x1e8] sm:$0xff] %v3714
    %3778 = vst [vmem:[#allocation3 + $0x1f0] sm:$0xff] %v3714
    %3779 = vst [vmem:[#allocation3 + $0x1f8] sm:$0xff] %v3714
    loop: start=0, step=1, limit=5
    $region49: #{mnist_forward.1} parent=1 // loop_pre_header
      _
    $region50: #{mnist_forward.1} parent=1 // loop_header
      %s3781 = sphi 0, %s3785
      %p3782 = scmp.ge.s32.totalorder %s3781, 5
    $region51: #{mnist_forward.1} parent=1 // loop_header_branch
      %3784 = sbr.rel (%p3782) target = $region55
    $region52: #{mnist_forward.1} parent=1 // loop_body
      loop: start=0, step=1, limit=5
      $region56: #{mnist_forward.1} parent=52 // loop_pre_header
        _
      $region57: #{mnist_forward.1} parent=52 // loop_header
        %s3787 = sphi 0, %s3791
        %p3788 = scmp.ge.s32.totalorder %s3787, 5
      $region58: #{mnist_forward.1} parent=52 // loop_header_branch
        %3790 = sbr.rel (%p3788) target = $region62
      $region59: #{mnist_forward.1} parent=52 // loop_body
        %s3792 = smul.u32 %s3787, 8
        %s3793 = smul.u32 %s3781, 96
        %s3794 = sadd.s32 %s3792, %s3793
        %s3795 = scalar_lea.vmem [#allocation2], %s3794
        %v3796 = vld [vmem:[%s3795] sm:$0xff]
        %v3797 = vld [vmem:[%s3795 + $0x8] sm:$0xff]
        %v3798 = vld [vmem:[%s3795 + $0x10] sm:$0xff]
        %v3799 = vld [vmem:[%s3795 + $0x18] sm:$0xff]
        %v3800 = vld [vmem:[%s3795 + $0x20] sm:$0xff]
        %v3801 = vld [vmem:[%s3795 + $0x28] sm:$0xff]
        %v3802 = vld [vmem:[%s3795 + $0x30] sm:$0xff]
        %v3803 = vld [vmem:[%s3795 + $0x38] sm:$0xff]
        %v3804 = vld [vmem:[%s3795 + $0x60] sm:$0xff]
        %v3805 = vld [vmem:[%s3795 + $0x68] sm:$0xff]
        %v3806 = vld [vmem:[%s3795 + $0x70] sm:$0xff]
        %v3807 = vld [vmem:[%s3795 + $0x78] sm:$0xff]
        %v3808 = vld [vmem:[%s3795 + $0x80] sm:$0xff]
        %v3809 = vld [vmem:[%s3795 + $0x88] sm:$0xff]
        %v3810 = vld [vmem:[%s3795 + $0x90] sm:$0xff]
        %v3811 = vld [vmem:[%s3795 + $0x98] sm:$0xff]
        %v3812 = vld [vmem:[%s3795 + $0xc0] sm:$0xff]
        %v3813 = vld [vmem:[%s3795 + $0xc8] sm:$0xff]
        %v3814 = vld [vmem:[%s3795 + $0xd0] sm:$0xff]
        %v3815 = vld [vmem:[%s3795 + $0xd8] sm:$0xff]
        %v3816 = vld [vmem:[%s3795 + $0xe0] sm:$0xff]
        %v3817 = vld [vmem:[%s3795 + $0xe8] sm:$0xff]
        %v3818 = vld [vmem:[%s3795 + $0xf0] sm:$0xff]
        %v3819 = vld [vmem:[%s3795 + $0xf8] sm:$0xff]
        %v3820 = vld [vmem:[%s3795 + $0x120] sm:$0xff]
        %v3821 = vld [vmem:[%s3795 + $0x128] sm:$0xff]
        %v3822 = vld [vmem:[%s3795 + $0x130] sm:$0xff]
        %v3823 = vld [vmem:[%s3795 + $0x138] sm:$0xff]
        %v3824 = vld [vmem:[%s3795 + $0x140] sm:$0xff]
        %v3825 = vld [vmem:[%s3795 + $0x148] sm:$0xff]
        %v3826 = vld [vmem:[%s3795 + $0x150] sm:$0xff]
        %v3827 = vld [vmem:[%s3795 + $0x158] sm:$0xff]
        %v3828 = vld [vmem:[%s3795 + $0x180] sm:$0xff]
        %v3829 = vld [vmem:[%s3795 + $0x188] sm:$0xff]
        %v3830 = vld [vmem:[%s3795 + $0x190] sm:$0xff]
        %v3831 = vld [vmem:[%s3795 + $0x198] sm:$0xff]
        %v3832 = vld [vmem:[%s3795 + $0x1a0] sm:$0xff]
        %v3833 = vld [vmem:[%s3795 + $0x1a8] sm:$0xff]
        %v3834 = vld [vmem:[%s3795 + $0x1b0] sm:$0xff]
        %v3835 = vld [vmem:[%s3795 + $0x1b8] sm:$0xff]
        %v3836 = vld [vmem:[%s3795 + $0x1e0] sm:$0xff]
        %v3837 = vld [vmem:[%s3795 + $0x1e8] sm:$0xff]
        %v3838 = vld [vmem:[%s3795 + $0x1f0] sm:$0xff]
        %v3839 = vld [vmem:[%s3795 + $0x1f8] sm:$0xff]
        %v3840 = vld [vmem:[%s3795 + $0x200] sm:$0xff]
        %v3841 = vld [vmem:[%s3795 + $0x208] sm:$0xff]
        %v3842 = vld [vmem:[%s3795 + $0x210] sm:$0xff]
        %v3843 = vld [vmem:[%s3795 + $0x218] sm:$0xff]
        %v3844 = vld [vmem:[%s3795 + $0x240] sm:$0xff]
        %v3845 = vld [vmem:[%s3795 + $0x248] sm:$0xff]
        %v3846 = vld [vmem:[%s3795 + $0x250] sm:$0xff]
        %v3847 = vld [vmem:[%s3795 + $0x258] sm:$0xff]
        %v3848 = vld [vmem:[%s3795 + $0x260] sm:$0xff]
        %v3849 = vld [vmem:[%s3795 + $0x268] sm:$0xff]
        %v3850 = vld [vmem:[%s3795 + $0x270] sm:$0xff]
        %v3851 = vld [vmem:[%s3795 + $0x278] sm:$0xff]
        %v3852 = vld [vmem:[%s3795 + $0x2a0] sm:$0xff]
        %v3853 = vld [vmem:[%s3795 + $0x2a8] sm:$0xff]
        %v3854 = vld [vmem:[%s3795 + $0x2b0] sm:$0xff]
        %v3855 = vld [vmem:[%s3795 + $0x2b8] sm:$0xff]
        %v3856 = vld [vmem:[%s3795 + $0x2c0] sm:$0xff]
        %v3857 = vld [vmem:[%s3795 + $0x2c8] sm:$0xff]
        %v3858 = vld [vmem:[%s3795 + $0x2d0] sm:$0xff]
        %v3859 = vld [vmem:[%s3795 + $0x2d8] sm:$0xff]
        %v3860 = vld [vmem:[#allocation3] sm:$0xff]
        %v3861 = vld [vmem:[#allocation3 + $0x8] sm:$0xff]
        %v3862 = vld [vmem:[#allocation3 + $0x10] sm:$0xff]
        %v3863 = vld [vmem:[#allocation3 + $0x18] sm:$0xff]
        %v3864 = vld [vmem:[#allocation3 + $0x20] sm:$0xff]
        %v3865 = vld [vmem:[#allocation3 + $0x28] sm:$0xff]
        %v3866 = vld [vmem:[#allocation3 + $0x30] sm:$0xff]
        %v3867 = vld [vmem:[#allocation3 + $0x38] sm:$0xff]
        %v3868 = vld [vmem:[#allocation3 + $0x40] sm:$0xff]
        %v3869 = vld [vmem:[#allocation3 + $0x48] sm:$0xff]
        %v3870 = vld [vmem:[#allocation3 + $0x50] sm:$0xff]
        %v3871 = vld [vmem:[#allocation3 + $0x58] sm:$0xff]
        %v3872 = vld [vmem:[#allocation3 + $0x60] sm:$0xff]
        %v3873 = vld [vmem:[#allocation3 + $0x68] sm:$0xff]
        %v3874 = vld [vmem:[#allocation3 + $0x70] sm:$0xff]
        %v3875 = vld [vmem:[#allocation3 + $0x78] sm:$0xff]
        %v3876 = vld [vmem:[#allocation3 + $0x80] sm:$0xff]
        %v3877 = vld [vmem:[#allocation3 + $0x88] sm:$0xff]
        %v3878 = vld [vmem:[#allocation3 + $0x90] sm:$0xff]
        %v3879 = vld [vmem:[#allocation3 + $0x98] sm:$0xff]
        %v3880 = vld [vmem:[#allocation3 + $0xa0] sm:$0xff]
        %v3881 = vld [vmem:[#allocation3 + $0xa8] sm:$0xff]
        %v3882 = vld [vmem:[#allocation3 + $0xb0] sm:$0xff]
        %v3883 = vld [vmem:[#allocation3 + $0xb8] sm:$0xff]
        %v3884 = vld [vmem:[#allocation3 + $0xc0] sm:$0xff]
        %v3885 = vld [vmem:[#allocation3 + $0xc8] sm:$0xff]
        %v3886 = vld [vmem:[#allocation3 + $0xd0] sm:$0xff]
        %v3887 = vld [vmem:[#allocation3 + $0xd8] sm:$0xff]
        %v3888 = vld [vmem:[#allocation3 + $0xe0] sm:$0xff]
        %v3889 = vld [vmem:[#allocation3 + $0xe8] sm:$0xff]
        %v3890 = vld [vmem:[#allocation3 + $0xf0] sm:$0xff]
        %v3891 = vld [vmem:[#allocation3 + $0xf8] sm:$0xff]
        %v3892 = vld [vmem:[#allocation3 + $0x100] sm:$0xff]
        %v3893 = vld [vmem:[#allocation3 + $0x108] sm:$0xff]
        %v3894 = vld [vmem:[#allocation3 + $0x110] sm:$0xff]
        %v3895 = vld [vmem:[#allocation3 + $0x118] sm:$0xff]
        %v3896 = vld [vmem:[#allocation3 + $0x120] sm:$0xff]
        %v3897 = vld [vmem:[#allocation3 + $0x128] sm:$0xff]
        %v3898 = vld [vmem:[#allocation3 + $0x130] sm:$0xff]
        %v3899 = vld [vmem:[#allocation3 + $0x138] sm:$0xff]
        %v3900 = vld [vmem:[#allocation3 + $0x140] sm:$0xff]
        %v3901 = vld [vmem:[#allocation3 + $0x148] sm:$0xff]
        %v3902 = vld [vmem:[#allocation3 + $0x150] sm:$0xff]
        %v3903 = vld [vmem:[#allocation3 + $0x158] sm:$0xff]
        %v3904 = vld [vmem:[#allocation3 + $0x160] sm:$0xff]
        %v3905 = vld [vmem:[#allocation3 + $0x168] sm:$0xff]
        %v3906 = vld [vmem:[#allocation3 + $0x170] sm:$0xff]
        %v3907 = vld [vmem:[#allocation3 + $0x178] sm:$0xff]
        %v3908 = vld [vmem:[#allocation3 + $0x180] sm:$0xff]
        %v3909 = vld [vmem:[#allocation3 + $0x188] sm:$0xff]
        %v3910 = vld [vmem:[#allocation3 + $0x190] sm:$0xff]
        %v3911 = vld [vmem:[#allocation3 + $0x198] sm:$0xff]
        %v3912 = vld [vmem:[#allocation3 + $0x1a0] sm:$0xff]
        %v3913 = vld [vmem:[#allocation3 + $0x1a8] sm:$0xff]
        %v3914 = vld [vmem:[#allocation3 + $0x1b0] sm:$0xff]
        %v3915 = vld [vmem:[#allocation3 + $0x1b8] sm:$0xff]
        %v3916 = vld [vmem:[#allocation3 + $0x1c0] sm:$0xff]
        %v3917 = vld [vmem:[#allocation3 + $0x1c8] sm:$0xff]
        %v3918 = vld [vmem:[#allocation3 + $0x1d0] sm:$0xff]
        %v3919 = vld [vmem:[#allocation3 + $0x1d8] sm:$0xff]
        %v3920 = vld [vmem:[#allocation3 + $0x1e0] sm:$0xff]
        %v3921 = vld [vmem:[#allocation3 + $0x1e8] sm:$0xff]
        %v3922 = vld [vmem:[#allocation3 + $0x1f0] sm:$0xff]
        %v3923 = vld [vmem:[#allocation3 + $0x1f8] sm:$0xff]
        %s3924 = smul.u32 %s3781, 5
        %s3925 = sadd.s32 %s3924, %s3787
        %s3926 = smul.u32 %s3925, 128
        %s3927 = scalar_lea.vmem %s3, %s3926
        %v3928 = vld [vmem:[%s3927] sm:$0xff]
        %v3929 = vld [vmem:[%s3927 + $0x8] sm:$0xff]
        %v3930 = vld [vmem:[%s3927 + $0x10] sm:$0xff]
        %v3931 = vld [vmem:[%s3927 + $0x18] sm:$0xff]
        %v3932 = vld [vmem:[%s3927 + $0x20] sm:$0xff]
        %v3933 = vld [vmem:[%s3927 + $0x28] sm:$0xff]
        %v3934 = vld [vmem:[%s3927 + $0x30] sm:$0xff]
        %v3935 = vld [vmem:[%s3927 + $0x38] sm:$0xff]
        %v3936 = vld [vmem:[%s3927 + $0x40] sm:$0xff]
        %v3937 = vld [vmem:[%s3927 + $0x48] sm:$0xff]
        %v3938 = vld [vmem:[%s3927 + $0x50] sm:$0xff]
        %v3939 = vld [vmem:[%s3927 + $0x58] sm:$0xff]
        %v3940 = vld [vmem:[%s3927 + $0x60] sm:$0xff]
        %v3941 = vld [vmem:[%s3927 + $0x68] sm:$0xff]
        %v3942 = vld [vmem:[%s3927 + $0x70] sm:$0xff]
        %v3943 = vld [vmem:[%s3927 + $0x78] sm:$0xff]
        %3944 = vmatprep.subr.mxu0 0.0
        %3945 = vmatpush1.msra.mxu0 %v3943
        %3946 = vmatprep.subr.mxu0 0.0
        %3947 = vmatpush1.msra.mxu0 %v3942
        %3948 = vmatprep.subr.mxu0 0.0
        %3949 = vmatpush1.msra.mxu0 %v3941
        %3950 = vmatprep.subr.mxu0 0.0
        %3951 = vmatpush1.msra.mxu0 %v3940
        %3952 = vmatprep.subr.mxu0 0.0
        %3953 = vmatpush1.msra.mxu0 %v3939
        %3954 = vmatprep.subr.mxu0 0.0
        %3955 = vmatpush1.msra.mxu0 %v3938
        %3956 = vmatprep.subr.mxu0 0.0
        %3957 = vmatpush1.msra.mxu0 %v3937
        %3958 = vmatprep.subr.mxu0 0.0
        %3959 = vmatpush1.msra.mxu0 %v3936
        %3960 = vmatprep.subr.mxu0 0.0
        %3961 = vmatpush1.msra.mxu0 %v3935
        %3962 = vmatprep.subr.mxu0 0.0
        %3963 = vmatpush1.msra.mxu0 %v3934
        %3964 = vmatprep.subr.mxu0 0.0
        %3965 = vmatpush1.msra.mxu0 %v3933
        %3966 = vmatprep.subr.mxu0 0.0
        %3967 = vmatpush1.msra.mxu0 %v3932
        %3968 = vmatprep.subr.mxu0 0.0
        %3969 = vmatpush1.msra.mxu0 %v3931
        %3970 = vmatprep.subr.mxu0 0.0
        %3971 = vmatpush1.msra.mxu0 %v3930
        %3972 = vmatprep.subr.mxu0 0.0
        %3973 = vmatpush1.msra.mxu0 %v3929
        %3974 = vmatprep.subr.mxu0 0.0
        %3975 = vmatpush1.msra.mxu0 %v3928
        %3976 = vmatprep.subr.mxu0 0.0
        %3977 = vmatpush2.msra.mxu0 0.0
        %3978 = vmatprep.subr.mxu0 0.0
        %3979 = vmatpush2.msra.mxu0 0.0
        %3980 = vmatprep.subr.mxu0 0.0
        %3981 = vmatpush2.msra.mxu0 0.0
        %3982 = vmatprep.subr.mxu0 0.0
        %3983 = vmatpush2.msra.mxu0 0.0
        %3984 = vmatprep.subr.mxu0 0.0
        %3985 = vmatpush2.msra.mxu0 0.0
        %3986 = vmatprep.subr.mxu0 0.0
        %3987 = vmatpush2.msra.mxu0 0.0
        %3988 = vmatprep.subr.mxu0 0.0
        %3989 = vmatpush2.msra.mxu0 0.0
        %3990 = vmatprep.subr.mxu0 0.0
        %3991 = vmatpush2.msra.mxu0 0.0
        %3992 = vmatprep.subr.mxu0 0.0
        %3993 = vmatpush2.msra.mxu0 0.0
        %3994 = vmatprep.subr.mxu0 0.0
        %3995 = vmatpush2.msra.mxu0 0.0
        %3996 = vmatprep.subr.mxu0 0.0
        %3997 = vmatpush2.msra.mxu0 0.0
        %3998 = vmatprep.subr.mxu0 0.0
        %3999 = vmatpush2.msra.mxu0 0.0
        %4000 = vmatprep.subr.mxu0 0.0
        %4001 = vmatpush2.msra.mxu0 0.0
        %4002 = vmatprep.subr.mxu0 0.0
        %4003 = vmatpush2.msra.mxu0 0.0
        %4004 = vmatprep.subr.mxu0 0.0
        %4005 = vmatpush2.msra.mxu0 0.0
        %4006 = vmatprep.subr.mxu0 0.0
        %4007 = vmatpush2.msra.mxu0 0.0
        %4008 = vmatprep.mubr.f32.mxu0 0.0
        %4009 = vmatmul.mubr.f32.gmra.mxu0 %v3796
        %v4010 = vpop.f32.mrf.mxu0
        %v4011 = vadd.f32 0.0, %v4010
        %v4012 = vpop.f32.mrf.mxu0
        %4013 = vmatprep.mubr.f32.mxu0 0.0
        %4014 = vmatmul.mubr.f32.gmra.mxu0 %v3797
        %v4015 = vpop.f32.mrf.mxu0
        %v4016 = vadd.f32 0.0, %v4015
        %v4017 = vpop.f32.mrf.mxu0
        %4018 = vmatprep.mubr.f32.mxu0 0.0
        %4019 = vmatmul.mubr.f32.gmra.mxu0 %v3798
        %v4020 = vpop.f32.mrf.mxu0
        %v4021 = vadd.f32 0.0, %v4020
        %v4022 = vpop.f32.mrf.mxu0
        %4023 = vmatprep.mubr.f32.mxu0 0.0
        %4024 = vmatmul.mubr.f32.gmra.mxu0 %v3799
        %v4025 = vpop.f32.mrf.mxu0
        %v4026 = vadd.f32 0.0, %v4025
        %v4027 = vpop.f32.mrf.mxu0
        %4028 = vmatprep.mubr.f32.mxu0 0.0
        %4029 = vmatmul.mubr.f32.gmra.mxu0 %v3800
        %v4030 = vpop.f32.mrf.mxu0
        %v4031 = vadd.f32 0.0, %v4030
        %v4032 = vpop.f32.mrf.mxu0
        %4033 = vmatprep.mubr.f32.mxu0 0.0
        %4034 = vmatmul.mubr.f32.gmra.mxu0 %v3801
        %v4035 = vpop.f32.mrf.mxu0
        %v4036 = vadd.f32 0.0, %v4035
        %v4037 = vpop.f32.mrf.mxu0
        %4038 = vmatprep.mubr.f32.mxu0 0.0
        %4039 = vmatmul.mubr.f32.gmra.mxu0 %v3802
        %v4040 = vpop.f32.mrf.mxu0
        %v4041 = vadd.f32 0.0, %v4040
        %v4042 = vpop.f32.mrf.mxu0
        %4043 = vmatprep.mubr.f32.mxu0 0.0
        %4044 = vmatmul.mubr.f32.gmra.mxu0 %v3803
        %v4045 = vpop.f32.mrf.mxu0
        %v4046 = vadd.f32 0.0, %v4045
        %v4047 = vpop.f32.mrf.mxu0
        %4048 = vmatprep.mubr.f32.mxu0 0.0
        %4049 = vmatmul.mubr.f32.gmra.mxu0 %v3804
        %v4050 = vpop.f32.mrf.mxu0
        %v4051 = vadd.f32 0.0, %v4050
        %v4052 = vpop.f32.mrf.mxu0
        %4053 = vmatprep.mubr.f32.mxu0 0.0
        %4054 = vmatmul.mubr.f32.gmra.mxu0 %v3805
        %v4055 = vpop.f32.mrf.mxu0
        %v4056 = vadd.f32 0.0, %v4055
        %v4057 = vpop.f32.mrf.mxu0
        %4058 = vmatprep.mubr.f32.mxu0 0.0
        %4059 = vmatmul.mubr.f32.gmra.mxu0 %v3806
        %v4060 = vpop.f32.mrf.mxu0
        %v4061 = vadd.f32 0.0, %v4060
        %v4062 = vpop.f32.mrf.mxu0
        %4063 = vmatprep.mubr.f32.mxu0 0.0
        %4064 = vmatmul.mubr.f32.gmra.mxu0 %v3807
        %v4065 = vpop.f32.mrf.mxu0
        %v4066 = vadd.f32 0.0, %v4065
        %v4067 = vpop.f32.mrf.mxu0
        %4068 = vmatprep.mubr.f32.mxu0 0.0
        %4069 = vmatmul.mubr.f32.gmra.mxu0 %v3808
        %v4070 = vpop.f32.mrf.mxu0
        %v4071 = vadd.f32 0.0, %v4070
        %v4072 = vpop.f32.mrf.mxu0
        %4073 = vmatprep.mubr.f32.mxu0 0.0
        %4074 = vmatmul.mubr.f32.gmra.mxu0 %v3809
        %v4075 = vpop.f32.mrf.mxu0
        %v4076 = vadd.f32 0.0, %v4075
        %v4077 = vpop.f32.mrf.mxu0
        %4078 = vmatprep.mubr.f32.mxu0 0.0
        %4079 = vmatmul.mubr.f32.gmra.mxu0 %v3810
        %v4080 = vpop.f32.mrf.mxu0
        %v4081 = vadd.f32 0.0, %v4080
        %v4082 = vpop.f32.mrf.mxu0
        %4083 = vmatprep.mubr.f32.mxu0 0.0
        %4084 = vmatmul.mubr.f32.gmra.mxu0 %v3811
        %v4085 = vpop.f32.mrf.mxu0
        %v4086 = vadd.f32 0.0, %v4085
        %v4087 = vpop.f32.mrf.mxu0
        %4088 = vmatprep.mubr.f32.mxu0 0.0
        %4089 = vmatmul.mubr.f32.gmra.mxu0 %v3812
        %v4090 = vpop.f32.mrf.mxu0
        %v4091 = vadd.f32 0.0, %v4090
        %v4092 = vpop.f32.mrf.mxu0
        %4093 = vmatprep.mubr.f32.mxu0 0.0
        %4094 = vmatmul.mubr.f32.gmra.mxu0 %v3813
        %v4095 = vpop.f32.mrf.mxu0
        %v4096 = vadd.f32 0.0, %v4095
        %v4097 = vpop.f32.mrf.mxu0
        %4098 = vmatprep.mubr.f32.mxu0 0.0
        %4099 = vmatmul.mubr.f32.gmra.mxu0 %v3814
        %v4100 = vpop.f32.mrf.mxu0
        %v4101 = vadd.f32 0.0, %v4100
        %v4102 = vpop.f32.mrf.mxu0
        %4103 = vmatprep.mubr.f32.mxu0 0.0
        %4104 = vmatmul.mubr.f32.gmra.mxu0 %v3815
        %v4105 = vpop.f32.mrf.mxu0
        %v4106 = vadd.f32 0.0, %v4105
        %v4107 = vpop.f32.mrf.mxu0
        %4108 = vmatprep.mubr.f32.mxu0 0.0
        %4109 = vmatmul.mubr.f32.gmra.mxu0 %v3816
        %v4110 = vpop.f32.mrf.mxu0
        %v4111 = vadd.f32 0.0, %v4110
        %v4112 = vpop.f32.mrf.mxu0
        %4113 = vmatprep.mubr.f32.mxu0 0.0
        %4114 = vmatmul.mubr.f32.gmra.mxu0 %v3817
        %v4115 = vpop.f32.mrf.mxu0
        %v4116 = vadd.f32 0.0, %v4115
        %v4117 = vpop.f32.mrf.mxu0
        %4118 = vmatprep.mubr.f32.mxu0 0.0
        %4119 = vmatmul.mubr.f32.gmra.mxu0 %v3818
        %v4120 = vpop.f32.mrf.mxu0
        %v4121 = vadd.f32 0.0, %v4120
        %v4122 = vpop.f32.mrf.mxu0
        %4123 = vmatprep.mubr.f32.mxu0 0.0
        %4124 = vmatmul.mubr.f32.gmra.mxu0 %v3819
        %v4125 = vpop.f32.mrf.mxu0
        %v4126 = vadd.f32 0.0, %v4125
        %v4127 = vpop.f32.mrf.mxu0
        %4128 = vmatprep.mubr.f32.mxu0 0.0
        %4129 = vmatmul.mubr.f32.gmra.mxu0 %v3820
        %v4130 = vpop.f32.mrf.mxu0
        %v4131 = vadd.f32 0.0, %v4130
        %v4132 = vpop.f32.mrf.mxu0
        %4133 = vmatprep.mubr.f32.mxu0 0.0
        %4134 = vmatmul.mubr.f32.gmra.mxu0 %v3821
        %v4135 = vpop.f32.mrf.mxu0
        %v4136 = vadd.f32 0.0, %v4135
        %v4137 = vpop.f32.mrf.mxu0
        %4138 = vmatprep.mubr.f32.mxu0 0.0
        %4139 = vmatmul.mubr.f32.gmra.mxu0 %v3822
        %v4140 = vpop.f32.mrf.mxu0
        %v4141 = vadd.f32 0.0, %v4140
        %v4142 = vpop.f32.mrf.mxu0
        %4143 = vmatprep.mubr.f32.mxu0 0.0
        %4144 = vmatmul.mubr.f32.gmra.mxu0 %v3823
        %v4145 = vpop.f32.mrf.mxu0
        %v4146 = vadd.f32 0.0, %v4145
        %v4147 = vpop.f32.mrf.mxu0
        %4148 = vmatprep.mubr.f32.mxu0 0.0
        %4149 = vmatmul.mubr.f32.gmra.mxu0 %v3824
        %v4150 = vpop.f32.mrf.mxu0
        %v4151 = vadd.f32 0.0, %v4150
        %v4152 = vpop.f32.mrf.mxu0
        %4153 = vmatprep.mubr.f32.mxu0 0.0
        %4154 = vmatmul.mubr.f32.gmra.mxu0 %v3825
        %v4155 = vpop.f32.mrf.mxu0
        %v4156 = vadd.f32 0.0, %v4155
        %v4157 = vpop.f32.mrf.mxu0
        %4158 = vmatprep.mubr.f32.mxu0 0.0
        %4159 = vmatmul.mubr.f32.gmra.mxu0 %v3826
        %v4160 = vpop.f32.mrf.mxu0
        %v4161 = vadd.f32 0.0, %v4160
        %v4162 = vpop.f32.mrf.mxu0
        %4163 = vmatprep.mubr.f32.mxu0 0.0
        %4164 = vmatmul.mubr.f32.gmra.mxu0 %v3827
        %v4165 = vpop.f32.mrf.mxu0
        %v4166 = vadd.f32 0.0, %v4165
        %v4167 = vpop.f32.mrf.mxu0
        %4168 = vmatprep.mubr.f32.mxu0 0.0
        %4169 = vmatmul.mubr.f32.gmra.mxu0 %v3828
        %v4170 = vpop.f32.mrf.mxu0
        %v4171 = vadd.f32 0.0, %v4170
        %v4172 = vpop.f32.mrf.mxu0
        %4173 = vmatprep.mubr.f32.mxu0 0.0
        %4174 = vmatmul.mubr.f32.gmra.mxu0 %v3829
        %v4175 = vpop.f32.mrf.mxu0
        %v4176 = vadd.f32 0.0, %v4175
        %v4177 = vpop.f32.mrf.mxu0
        %4178 = vmatprep.mubr.f32.mxu0 0.0
        %4179 = vmatmul.mubr.f32.gmra.mxu0 %v3830
        %v4180 = vpop.f32.mrf.mxu0
        %v4181 = vadd.f32 0.0, %v4180
        %v4182 = vpop.f32.mrf.mxu0
        %4183 = vmatprep.mubr.f32.mxu0 0.0
        %4184 = vmatmul.mubr.f32.gmra.mxu0 %v3831
        %v4185 = vpop.f32.mrf.mxu0
        %v4186 = vadd.f32 0.0, %v4185
        %v4187 = vpop.f32.mrf.mxu0
        %4188 = vmatprep.mubr.f32.mxu0 0.0
        %4189 = vmatmul.mubr.f32.gmra.mxu0 %v3832
        %v4190 = vpop.f32.mrf.mxu0
        %v4191 = vadd.f32 0.0, %v4190
        %v4192 = vpop.f32.mrf.mxu0
        %4193 = vmatprep.mubr.f32.mxu0 0.0
        %4194 = vmatmul.mubr.f32.gmra.mxu0 %v3833
        %v4195 = vpop.f32.mrf.mxu0
        %v4196 = vadd.f32 0.0, %v4195
        %v4197 = vpop.f32.mrf.mxu0
        %4198 = vmatprep.mubr.f32.mxu0 0.0
        %4199 = vmatmul.mubr.f32.gmra.mxu0 %v3834
        %v4200 = vpop.f32.mrf.mxu0
        %v4201 = vadd.f32 0.0, %v4200
        %v4202 = vpop.f32.mrf.mxu0
        %4203 = vmatprep.mubr.f32.mxu0 0.0
        %4204 = vmatmul.mubr.f32.gmra.mxu0 %v3835
        %v4205 = vpop.f32.mrf.mxu0
        %v4206 = vadd.f32 0.0, %v4205
        %v4207 = vpop.f32.mrf.mxu0
        %4208 = vmatprep.mubr.f32.mxu0 0.0
        %4209 = vmatmul.mubr.f32.gmra.mxu0 %v3836
        %v4210 = vpop.f32.mrf.mxu0
        %v4211 = vadd.f32 0.0, %v4210
        %v4212 = vpop.f32.mrf.mxu0
        %4213 = vmatprep.mubr.f32.mxu0 0.0
        %4214 = vmatmul.mubr.f32.gmra.mxu0 %v3837
        %v4215 = vpop.f32.mrf.mxu0
        %v4216 = vadd.f32 0.0, %v4215
        %v4217 = vpop.f32.mrf.mxu0
        %4218 = vmatprep.mubr.f32.mxu0 0.0
        %4219 = vmatmul.mubr.f32.gmra.mxu0 %v3838
        %v4220 = vpop.f32.mrf.mxu0
        %v4221 = vadd.f32 0.0, %v4220
        %v4222 = vpop.f32.mrf.mxu0
        %4223 = vmatprep.mubr.f32.mxu0 0.0
        %4224 = vmatmul.mubr.f32.gmra.mxu0 %v3839
        %v4225 = vpop.f32.mrf.mxu0
        %v4226 = vadd.f32 0.0, %v4225
        %v4227 = vpop.f32.mrf.mxu0
        %4228 = vmatprep.mubr.f32.mxu0 0.0
        %4229 = vmatmul.mubr.f32.gmra.mxu0 %v3840
        %v4230 = vpop.f32.mrf.mxu0
        %v4231 = vadd.f32 0.0, %v4230
        %v4232 = vpop.f32.mrf.mxu0
        %4233 = vmatprep.mubr.f32.mxu0 0.0
        %4234 = vmatmul.mubr.f32.gmra.mxu0 %v3841
        %v4235 = vpop.f32.mrf.mxu0
        %v4236 = vadd.f32 0.0, %v4235
        %v4237 = vpop.f32.mrf.mxu0
        %4238 = vmatprep.mubr.f32.mxu0 0.0
        %4239 = vmatmul.mubr.f32.gmra.mxu0 %v3842
        %v4240 = vpop.f32.mrf.mxu0
        %v4241 = vadd.f32 0.0, %v4240
        %v4242 = vpop.f32.mrf.mxu0
        %4243 = vmatprep.mubr.f32.mxu0 0.0
        %4244 = vmatmul.mubr.f32.gmra.mxu0 %v3843
        %v4245 = vpop.f32.mrf.mxu0
        %v4246 = vadd.f32 0.0, %v4245
        %v4247 = vpop.f32.mrf.mxu0
        %4248 = vmatprep.mubr.f32.mxu0 0.0
        %4249 = vmatmul.mubr.f32.gmra.mxu0 %v3844
        %v4250 = vpop.f32.mrf.mxu0
        %v4251 = vadd.f32 0.0, %v4250
        %v4252 = vpop.f32.mrf.mxu0
        %4253 = vmatprep.mubr.f32.mxu0 0.0
        %4254 = vmatmul.mubr.f32.gmra.mxu0 %v3845
        %v4255 = vpop.f32.mrf.mxu0
        %v4256 = vadd.f32 0.0, %v4255
        %v4257 = vpop.f32.mrf.mxu0
        %4258 = vmatprep.mubr.f32.mxu0 0.0
        %4259 = vmatmul.mubr.f32.gmra.mxu0 %v3846
        %v4260 = vpop.f32.mrf.mxu0
        %v4261 = vadd.f32 0.0, %v4260
        %v4262 = vpop.f32.mrf.mxu0
        %4263 = vmatprep.mubr.f32.mxu0 0.0
        %4264 = vmatmul.mubr.f32.gmra.mxu0 %v3847
        %v4265 = vpop.f32.mrf.mxu0
        %v4266 = vadd.f32 0.0, %v4265
        %v4267 = vpop.f32.mrf.mxu0
        %4268 = vmatprep.mubr.f32.mxu0 0.0
        %4269 = vmatmul.mubr.f32.gmra.mxu0 %v3848
        %v4270 = vpop.f32.mrf.mxu0
        %v4271 = vadd.f32 0.0, %v4270
        %v4272 = vpop.f32.mrf.mxu0
        %4273 = vmatprep.mubr.f32.mxu0 0.0
        %4274 = vmatmul.mubr.f32.gmra.mxu0 %v3849
        %v4275 = vpop.f32.mrf.mxu0
        %v4276 = vadd.f32 0.0, %v4275
        %v4277 = vpop.f32.mrf.mxu0
        %4278 = vmatprep.mubr.f32.mxu0 0.0
        %4279 = vmatmul.mubr.f32.gmra.mxu0 %v3850
        %v4280 = vpop.f32.mrf.mxu0
        %v4281 = vadd.f32 0.0, %v4280
        %v4282 = vpop.f32.mrf.mxu0
        %4283 = vmatprep.mubr.f32.mxu0 0.0
        %4284 = vmatmul.mubr.f32.gmra.mxu0 %v3851
        %v4285 = vpop.f32.mrf.mxu0
        %v4286 = vadd.f32 0.0, %v4285
        %v4287 = vpop.f32.mrf.mxu0
        %4288 = vmatprep.mubr.f32.mxu0 0.0
        %4289 = vmatmul.mubr.f32.gmra.mxu0 %v3852
        %v4290 = vpop.f32.mrf.mxu0
        %v4291 = vadd.f32 0.0, %v4290
        %v4292 = vpop.f32.mrf.mxu0
        %4293 = vmatprep.mubr.f32.mxu0 0.0
        %4294 = vmatmul.mubr.f32.gmra.mxu0 %v3853
        %v4295 = vpop.f32.mrf.mxu0
        %v4296 = vadd.f32 0.0, %v4295
        %v4297 = vpop.f32.mrf.mxu0
        %4298 = vmatprep.mubr.f32.mxu0 0.0
        %4299 = vmatmul.mubr.f32.gmra.mxu0 %v3854
        %v4300 = vpop.f32.mrf.mxu0
        %v4301 = vadd.f32 0.0, %v4300
        %v4302 = vpop.f32.mrf.mxu0
        %4303 = vmatprep.mubr.f32.mxu0 0.0
        %4304 = vmatmul.mubr.f32.gmra.mxu0 %v3855
        %v4305 = vpop.f32.mrf.mxu0
        %v4306 = vadd.f32 0.0, %v4305
        %v4307 = vpop.f32.mrf.mxu0
        %4308 = vmatprep.mubr.f32.mxu0 0.0
        %4309 = vmatmul.mubr.f32.gmra.mxu0 %v3856
        %v4310 = vpop.f32.mrf.mxu0
        %v4311 = vadd.f32 0.0, %v4310
        %v4312 = vpop.f32.mrf.mxu0
        %4313 = vmatprep.mubr.f32.mxu0 0.0
        %4314 = vmatmul.mubr.f32.gmra.mxu0 %v3857
        %v4315 = vpop.f32.mrf.mxu0
        %v4316 = vadd.f32 0.0, %v4315
        %v4317 = vpop.f32.mrf.mxu0
        %4318 = vmatprep.mubr.f32.mxu0 0.0
        %4319 = vmatmul.mubr.f32.gmra.mxu0 %v3858
        %v4320 = vpop.f32.mrf.mxu0
        %v4321 = vadd.f32 0.0, %v4320
        %v4322 = vpop.f32.mrf.mxu0
        %4323 = vmatprep.mubr.f32.mxu0 0.0
        %4324 = vmatmul.mubr.f32.gmra.mxu0 %v3859
        %v4325 = vpop.f32.mrf.mxu0
        %v4326 = vadd.f32 0.0, %v4325
        %v4327 = vpop.f32.mrf.mxu0
        %4328 = vdwg.mxu0
        %v4329 = vadd.f32 %v3860, %v4011
        %v4330 = vadd.f32 %v3861, %v4016
        %v4331 = vadd.f32 %v3862, %v4021
        %v4332 = vadd.f32 %v3863, %v4026
        %v4333 = vadd.f32 %v3864, %v4031
        %v4334 = vadd.f32 %v3865, %v4036
        %v4335 = vadd.f32 %v3866, %v4041
        %v4336 = vadd.f32 %v3867, %v4046
        %v4337 = vadd.f32 %v3868, %v4051
        %v4338 = vadd.f32 %v3869, %v4056
        %v4339 = vadd.f32 %v3870, %v4061
        %v4340 = vadd.f32 %v3871, %v4066
        %v4341 = vadd.f32 %v3872, %v4071
        %v4342 = vadd.f32 %v3873, %v4076
        %v4343 = vadd.f32 %v3874, %v4081
        %v4344 = vadd.f32 %v3875, %v4086
        %v4345 = vadd.f32 %v3876, %v4091
        %v4346 = vadd.f32 %v3877, %v4096
        %v4347 = vadd.f32 %v3878, %v4101
        %v4348 = vadd.f32 %v3879, %v4106
        %v4349 = vadd.f32 %v3880, %v4111
        %v4350 = vadd.f32 %v3881, %v4116
        %v4351 = vadd.f32 %v3882, %v4121
        %v4352 = vadd.f32 %v3883, %v4126
        %v4353 = vadd.f32 %v3884, %v4131
        %v4354 = vadd.f32 %v3885, %v4136
        %v4355 = vadd.f32 %v3886, %v4141
        %v4356 = vadd.f32 %v3887, %v4146
        %v4357 = vadd.f32 %v3888, %v4151
        %v4358 = vadd.f32 %v3889, %v4156
        %v4359 = vadd.f32 %v3890, %v4161
        %v4360 = vadd.f32 %v3891, %v4166
        %v4361 = vadd.f32 %v3892, %v4171
        %v4362 = vadd.f32 %v3893, %v4176
        %v4363 = vadd.f32 %v3894, %v4181
        %v4364 = vadd.f32 %v3895, %v4186
        %v4365 = vadd.f32 %v3896, %v4191
        %v4366 = vadd.f32 %v3897, %v4196
        %v4367 = vadd.f32 %v3898, %v4201
        %v4368 = vadd.f32 %v3899, %v4206
        %v4369 = vadd.f32 %v3900, %v4211
        %v4370 = vadd.f32 %v3901, %v4216
        %v4371 = vadd.f32 %v3902, %v4221
        %v4372 = vadd.f32 %v3903, %v4226
        %v4373 = vadd.f32 %v3904, %v4231
        %v4374 = vadd.f32 %v3905, %v4236
        %v4375 = vadd.f32 %v3906, %v4241
        %v4376 = vadd.f32 %v3907, %v4246
        %v4377 = vadd.f32 %v3908, %v4251
        %v4378 = vadd.f32 %v3909, %v4256
        %v4379 = vadd.f32 %v3910, %v4261
        %v4380 = vadd.f32 %v3911, %v4266
        %v4381 = vadd.f32 %v3912, %v4271
        %v4382 = vadd.f32 %v3913, %v4276
        %v4383 = vadd.f32 %v3914, %v4281
        %v4384 = vadd.f32 %v3915, %v4286
        %v4385 = vadd.f32 %v3916, %v4291
        %v4386 = vadd.f32 %v3917, %v4296
        %v4387 = vadd.f32 %v3918, %v4301
        %v4388 = vadd.f32 %v3919, %v4306
        %v4389 = vadd.f32 %v3920, %v4311
        %v4390 = vadd.f32 %v3921, %v4316
        %v4391 = vadd.f32 %v3922, %v4321
        %v4392 = vadd.f32 %v3923, %v4326
        %4393 = vst [vmem:[#allocation3] sm:$0xff] %v4329
        %4394 = vst [vmem:[#allocation3 + $0x8] sm:$0xff] %v4330
        %4395 = vst [vmem:[#allocation3 + $0x10] sm:$0xff] %v4331
        %4396 = vst [vmem:[#allocation3 + $0x18] sm:$0xff] %v4332
        %4397 = vst [vmem:[#allocation3 + $0x20] sm:$0xff] %v4333
        %4398 = vst [vmem:[#allocation3 + $0x28] sm:$0xff] %v4334
        %4399 = vst [vmem:[#allocation3 + $0x30] sm:$0xff] %v4335
        %4400 = vst [vmem:[#allocation3 + $0x38] sm:$0xff] %v4336
        %4401 = vst [vmem:[#allocation3 + $0x40] sm:$0xff] %v4337
        %4402 = vst [vmem:[#allocation3 + $0x48] sm:$0xff] %v4338
        %4403 = vst [vmem:[#allocation3 + $0x50] sm:$0xff] %v4339
        %4404 = vst [vmem:[#allocation3 + $0x58] sm:$0xff] %v4340
        %4405 = vst [vmem:[#allocation3 + $0x60] sm:$0xff] %v4341
        %4406 = vst [vmem:[#allocation3 + $0x68] sm:$0xff] %v4342
        %4407 = vst [vmem:[#allocation3 + $0x70] sm:$0xff] %v4343
        %4408 = vst [vmem:[#allocation3 + $0x78] sm:$0xff] %v4344
        %4409 = vst [vmem:[#allocation3 + $0x80] sm:$0xff] %v4345
        %4410 = vst [vmem:[#allocation3 + $0x88] sm:$0xff] %v4346
        %4411 = vst [vmem:[#allocation3 + $0x90] sm:$0xff] %v4347
        %4412 = vst [vmem:[#allocation3 + $0x98] sm:$0xff] %v4348
        %4413 = vst [vmem:[#allocation3 + $0xa0] sm:$0xff] %v4349
        %4414 = vst [vmem:[#allocation3 + $0xa8] sm:$0xff] %v4350
        %4415 = vst [vmem:[#allocation3 + $0xb0] sm:$0xff] %v4351
        %4416 = vst [vmem:[#allocation3 + $0xb8] sm:$0xff] %v4352
        %4417 = vst [vmem:[#allocation3 + $0xc0] sm:$0xff] %v4353
        %4418 = vst [vmem:[#allocation3 + $0xc8] sm:$0xff] %v4354
        %4419 = vst [vmem:[#allocation3 + $0xd0] sm:$0xff] %v4355
        %4420 = vst [vmem:[#allocation3 + $0xd8] sm:$0xff] %v4356
        %4421 = vst [vmem:[#allocation3 + $0xe0] sm:$0xff] %v4357
        %4422 = vst [vmem:[#allocation3 + $0xe8] sm:$0xff] %v4358
        %4423 = vst [vmem:[#allocation3 + $0xf0] sm:$0xff] %v4359
        %4424 = vst [vmem:[#allocation3 + $0xf8] sm:$0xff] %v4360
        %4425 = vst [vmem:[#allocation3 + $0x100] sm:$0xff] %v4361
        %4426 = vst [vmem:[#allocation3 + $0x108] sm:$0xff] %v4362
        %4427 = vst [vmem:[#allocation3 + $0x110] sm:$0xff] %v4363
        %4428 = vst [vmem:[#allocation3 + $0x118] sm:$0xff] %v4364
        %4429 = vst [vmem:[#allocation3 + $0x120] sm:$0xff] %v4365
        %4430 = vst [vmem:[#allocation3 + $0x128] sm:$0xff] %v4366
        %4431 = vst [vmem:[#allocation3 + $0x130] sm:$0xff] %v4367
        %4432 = vst [vmem:[#allocation3 + $0x138] sm:$0xff] %v4368
        %4433 = vst [vmem:[#allocation3 + $0x140] sm:$0xff] %v4369
        %4434 = vst [vmem:[#allocation3 + $0x148] sm:$0xff] %v4370
        %4435 = vst [vmem:[#allocation3 + $0x150] sm:$0xff] %v4371
        %4436 = vst [vmem:[#allocation3 + $0x158] sm:$0xff] %v4372
        %4437 = vst [vmem:[#allocation3 + $0x160] sm:$0xff] %v4373
        %4438 = vst [vmem:[#allocation3 + $0x168] sm:$0xff] %v4374
        %4439 = vst [vmem:[#allocation3 + $0x170] sm:$0xff] %v4375
        %4440 = vst [vmem:[#allocation3 + $0x178] sm:$0xff] %v4376
        %4441 = vst [vmem:[#allocation3 + $0x180] sm:$0xff] %v4377
        %4442 = vst [vmem:[#allocation3 + $0x188] sm:$0xff] %v4378
        %4443 = vst [vmem:[#allocation3 + $0x190] sm:$0xff] %v4379
        %4444 = vst [vmem:[#allocation3 + $0x198] sm:$0xff] %v4380
        %4445 = vst [vmem:[#allocation3 + $0x1a0] sm:$0xff] %v4381
        %4446 = vst [vmem:[#allocation3 + $0x1a8] sm:$0xff] %v4382
        %4447 = vst [vmem:[#allocation3 + $0x1b0] sm:$0xff] %v4383
        %4448 = vst [vmem:[#allocation3 + $0x1b8] sm:$0xff] %v4384
        %4449 = vst [vmem:[#allocation3 + $0x1c0] sm:$0xff] %v4385
        %4450 = vst [vmem:[#allocation3 + $0x1c8] sm:$0xff] %v4386
        %4451 = vst [vmem:[#allocation3 + $0x1d0] sm:$0xff] %v4387
        %4452 = vst [vmem:[#allocation3 + $0x1d8] sm:$0xff] %v4388
        %4453 = vst [vmem:[#allocation3 + $0x1e0] sm:$0xff] %v4389
        %4454 = vst [vmem:[#allocation3 + $0x1e8] sm:$0xff] %v4390
        %4455 = vst [vmem:[#allocation3 + $0x1f0] sm:$0xff] %v4391
        %4456 = vst [vmem:[#allocation3 + $0x1f8] sm:$0xff] %v4392
      $region60: #{mnist_forward.1} parent=52 // loop_footer
        %s3791 = sadd.s32 1, %s3787
      $region61: #{mnist_forward.1} parent=52 // loop_footer_branch
        %3786 = sbr.rel target = $region57
      $region62: #{mnist_forward.1} parent=52 // loop_exit
        _
    $region53: #{mnist_forward.1} parent=1 // loop_footer
      %s3785 = sadd.s32 1, %s3781
    $region54: #{mnist_forward.1} parent=1 // loop_footer_branch
      %3780 = sbr.rel target = $region50
    $region55: #{mnist_forward.1} parent=1 // loop_exit
      _
    %v4457 = vld [vmem:[#allocation3] sm:$0xff]
    %v4458 = vld [vmem:[#allocation3 + $0x8] sm:$0xff]
    %v4459 = vld [vmem:[#allocation3 + $0x10] sm:$0xff]
    %v4460 = vld [vmem:[#allocation3 + $0x18] sm:$0xff]
    %v4461 = vld [vmem:[#allocation3 + $0x20] sm:$0xff]
    %v4462 = vld [vmem:[#allocation3 + $0x28] sm:$0xff]
    %v4463 = vld [vmem:[#allocation3 + $0x30] sm:$0xff]
    %v4464 = vld [vmem:[#allocation3 + $0x38] sm:$0xff]
    %v4465 = vld [vmem:[#allocation3 + $0x40] sm:$0xff]
    %v4466 = vld [vmem:[#allocation3 + $0x48] sm:$0xff]
    %v4467 = vld [vmem:[#allocation3 + $0x50] sm:$0xff]
    %v4468 = vld [vmem:[#allocation3 + $0x58] sm:$0xff]
    %v4469 = vld [vmem:[#allocation3 + $0x60] sm:$0xff]
    %v4470 = vld [vmem:[#allocation3 + $0x68] sm:$0xff]
    %v4471 = vld [vmem:[#allocation3 + $0x70] sm:$0xff]
    %v4472 = vld [vmem:[#allocation3 + $0x78] sm:$0xff]
    %v4473 = vld [vmem:[#allocation3 + $0x80] sm:$0xff]
    %v4474 = vld [vmem:[#allocation3 + $0x88] sm:$0xff]
    %v4475 = vld [vmem:[#allocation3 + $0x90] sm:$0xff]
    %v4476 = vld [vmem:[#allocation3 + $0x98] sm:$0xff]
    %v4477 = vld [vmem:[#allocation3 + $0xa0] sm:$0xff]
    %v4478 = vld [vmem:[#allocation3 + $0xa8] sm:$0xff]
    %v4479 = vld [vmem:[#allocation3 + $0xb0] sm:$0xff]
    %v4480 = vld [vmem:[#allocation3 + $0xb8] sm:$0xff]
    %v4481 = vld [vmem:[#allocation3 + $0xc0] sm:$0xff]
    %v4482 = vld [vmem:[#allocation3 + $0xc8] sm:$0xff]
    %v4483 = vld [vmem:[#allocation3 + $0xd0] sm:$0xff]
    %v4484 = vld [vmem:[#allocation3 + $0xd8] sm:$0xff]
    %v4485 = vld [vmem:[#allocation3 + $0xe0] sm:$0xff]
    %v4486 = vld [vmem:[#allocation3 + $0xe8] sm:$0xff]
    %v4487 = vld [vmem:[#allocation3 + $0xf0] sm:$0xff]
    %v4488 = vld [vmem:[#allocation3 + $0xf8] sm:$0xff]
    %v4489 = vld [vmem:[#allocation3 + $0x100] sm:$0xff]
    %v4490 = vld [vmem:[#allocation3 + $0x108] sm:$0xff]
    %v4491 = vld [vmem:[#allocation3 + $0x110] sm:$0xff]
    %v4492 = vld [vmem:[#allocation3 + $0x118] sm:$0xff]
    %v4493 = vld [vmem:[#allocation3 + $0x120] sm:$0xff]
    %v4494 = vld [vmem:[#allocation3 + $0x128] sm:$0xff]
    %v4495 = vld [vmem:[#allocation3 + $0x130] sm:$0xff]
    %v4496 = vld [vmem:[#allocation3 + $0x138] sm:$0xff]
    %v4497 = vld [vmem:[#allocation3 + $0x140] sm:$0xff]
    %v4498 = vld [vmem:[#allocation3 + $0x148] sm:$0xff]
    %v4499 = vld [vmem:[#allocation3 + $0x150] sm:$0xff]
    %v4500 = vld [vmem:[#allocation3 + $0x158] sm:$0xff]
    %v4501 = vld [vmem:[#allocation3 + $0x160] sm:$0xff]
    %v4502 = vld [vmem:[#allocation3 + $0x168] sm:$0xff]
    %v4503 = vld [vmem:[#allocation3 + $0x170] sm:$0xff]
    %v4504 = vld [vmem:[#allocation3 + $0x178] sm:$0xff]
    %v4505 = vld [vmem:[#allocation3 + $0x180] sm:$0xff]
    %v4506 = vld [vmem:[#allocation3 + $0x188] sm:$0xff]
    %v4507 = vld [vmem:[#allocation3 + $0x190] sm:$0xff]
    %v4508 = vld [vmem:[#allocation3 + $0x198] sm:$0xff]
    %v4509 = vld [vmem:[#allocation3 + $0x1a0] sm:$0xff]
    %v4510 = vld [vmem:[#allocation3 + $0x1a8] sm:$0xff]
    %v4511 = vld [vmem:[#allocation3 + $0x1b0] sm:$0xff]
    %v4512 = vld [vmem:[#allocation3 + $0x1b8] sm:$0xff]
    %v4513 = vld [vmem:[#allocation3 + $0x1c0] sm:$0xff]
    %v4514 = vld [vmem:[#allocation3 + $0x1c8] sm:$0xff]
    %v4515 = vld [vmem:[#allocation3 + $0x1d0] sm:$0xff]
    %v4516 = vld [vmem:[#allocation3 + $0x1d8] sm:$0xff]
    %v4517 = vld [vmem:[#allocation3 + $0x1e0] sm:$0xff]
    %v4518 = vld [vmem:[#allocation3 + $0x1e8] sm:$0xff]
    %v4519 = vld [vmem:[#allocation3 + $0x1f0] sm:$0xff]
    %v4520 = vld [vmem:[#allocation3 + $0x1f8] sm:$0xff]
    %v4521 = vmax.f32 %v4457, 0.0
    %v4522 = vmax.f32 %v4458, 0.0
    %v4523 = vmax.f32 %v4459, 0.0
    %v4524 = vmax.f32 %v4460, 0.0
    %v4525 = vmax.f32 %v4461, 0.0
    %v4526 = vmax.f32 %v4462, 0.0
    %v4527 = vmax.f32 %v4463, 0.0
    %v4528 = vmax.f32 %v4464, 0.0
    %v4529 = vmax.f32 %v4465, 0.0
    %v4530 = vmax.f32 %v4466, 0.0
    %v4531 = vmax.f32 %v4467, 0.0
    %v4532 = vmax.f32 %v4468, 0.0
    %v4533 = vmax.f32 %v4469, 0.0
    %v4534 = vmax.f32 %v4470, 0.0
    %v4535 = vmax.f32 %v4471, 0.0
    %v4536 = vmax.f32 %v4472, 0.0
    %v4537 = vmax.f32 %v4473, 0.0
    %v4538 = vmax.f32 %v4474, 0.0
    %v4539 = vmax.f32 %v4475, 0.0
    %v4540 = vmax.f32 %v4476, 0.0
    %v4541 = vmax.f32 %v4477, 0.0
    %v4542 = vmax.f32 %v4478, 0.0
    %v4543 = vmax.f32 %v4479, 0.0
    %v4544 = vmax.f32 %v4480, 0.0
    %v4545 = vmax.f32 %v4481, 0.0
    %v4546 = vmax.f32 %v4482, 0.0
    %v4547 = vmax.f32 %v4483, 0.0
    %v4548 = vmax.f32 %v4484, 0.0
    %v4549 = vmax.f32 %v4485, 0.0
    %v4550 = vmax.f32 %v4486, 0.0
    %v4551 = vmax.f32 %v4487, 0.0
    %v4552 = vmax.f32 %v4488, 0.0
    %v4553 = vmax.f32 %v4489, 0.0
    %v4554 = vmax.f32 %v4490, 0.0
    %v4555 = vmax.f32 %v4491, 0.0
    %v4556 = vmax.f32 %v4492, 0.0
    %v4557 = vmax.f32 %v4493, 0.0
    %v4558 = vmax.f32 %v4494, 0.0
    %v4559 = vmax.f32 %v4495, 0.0
    %v4560 = vmax.f32 %v4496, 0.0
    %v4561 = vmax.f32 %v4497, 0.0
    %v4562 = vmax.f32 %v4498, 0.0
    %v4563 = vmax.f32 %v4499, 0.0
    %v4564 = vmax.f32 %v4500, 0.0
    %v4565 = vmax.f32 %v4501, 0.0
    %v4566 = vmax.f32 %v4502, 0.0
    %v4567 = vmax.f32 %v4503, 0.0
    %v4568 = vmax.f32 %v4504, 0.0
    %v4569 = vmax.f32 %v4505, 0.0
    %v4570 = vmax.f32 %v4506, 0.0
    %v4571 = vmax.f32 %v4507, 0.0
    %v4572 = vmax.f32 %v4508, 0.0
    %v4573 = vmax.f32 %v4509, 0.0
    %v4574 = vmax.f32 %v4510, 0.0
    %v4575 = vmax.f32 %v4511, 0.0
    %v4576 = vmax.f32 %v4512, 0.0
    %v4577 = vmax.f32 %v4513, 0.0
    %v4578 = vmax.f32 %v4514, 0.0
    %v4579 = vmax.f32 %v4515, 0.0
    %v4580 = vmax.f32 %v4516, 0.0
    %v4581 = vmax.f32 %v4517, 0.0
    %v4582 = vmax.f32 %v4518, 0.0
    %v4583 = vmax.f32 %v4519, 0.0
    %v4584 = vmax.f32 %v4520, 0.0
    %v4585 = vmax.f32 %v4521, %v4529
    %v4586 = vmax.f32 %v4522, %v4530
    %v4587 = vmax.f32 %v4523, %v4531
    %v4588 = vmax.f32 %v4524, %v4532
    %v4589 = vmax.f32 %v4525, %v4533
    %v4590 = vmax.f32 %v4526, %v4534
    %v4591 = vmax.f32 %v4527, %v4535
    %v4592 = vmax.f32 %v4528, %v4536
    %v4593 = vmax.f32 %v4537, %v4545
    %v4594 = vmax.f32 %v4538, %v4546
    %v4595 = vmax.f32 %v4539, %v4547
    %v4596 = vmax.f32 %v4540, %v4548
    %v4597 = vmax.f32 %v4541, %v4549
    %v4598 = vmax.f32 %v4542, %v4550
    %v4599 = vmax.f32 %v4543, %v4551
    %v4600 = vmax.f32 %v4544, %v4552
    %v4601 = vmax.f32 %v4553, %v4561
    %v4602 = vmax.f32 %v4554, %v4562
    %v4603 = vmax.f32 %v4555, %v4563
    %v4604 = vmax.f32 %v4556, %v4564
    %v4605 = vmax.f32 %v4557, %v4565
    %v4606 = vmax.f32 %v4558, %v4566
    %v4607 = vmax.f32 %v4559, %v4567
    %v4608 = vmax.f32 %v4560, %v4568
    %v4609 = vmax.f32 %v4569, %v4577
    %v4610 = vmax.f32 %v4570, %v4578
    %v4611 = vmax.f32 %v4571, %v4579
    %v4612 = vmax.f32 %v4572, %v4580
    %v4613 = vmax.f32 %v4573, %v4581
    %v4614 = vmax.f32 %v4574, %v4582
    %v4615 = vmax.f32 %v4575, %v4583
    %v4616 = vmax.f32 %v4576, %v4584
    %v4617 = vmax.f32 %v4585, %v4586
    %v4618 = vmax.f32 %v4587, %v4588
    %v4619 = vmax.f32 %v4589, %v4590
    %v4620 = vmax.f32 %v4591, %v4592
    %v4621 = vmax.f32 %v4593, %v4594
    %v4622 = vmax.f32 %v4595, %v4596
    %v4623 = vmax.f32 %v4597, %v4598
    %v4624 = vmax.f32 %v4599, %v4600
    %v4625 = vmax.f32 %v4601, %v4602
    %v4626 = vmax.f32 %v4603, %v4604
    %v4627 = vmax.f32 %v4605, %v4606
    %v4628 = vmax.f32 %v4607, %v4608
    %v4629 = vmax.f32 %v4609, %v4610
    %v4630 = vmax.f32 %v4611, %v4612
    %v4631 = vmax.f32 %v4613, %v4614
    %v4632 = vmax.f32 %v4615, %v4616
    %v4633 = vld [vmem:[%s6] sm:$0xf]
    %v4635 = vlaneseq
    %v4636 = vshrl.u32 %v4635, 7
    %v4637 = vsub.s32 0, %v4636
    %v4638 = vrot.slane %v4633, %v4637
    %v4639 = vlaneseq
    %v4640 = vshrl.u32 %v4639, 7
    %v4641 = vsub.s32 1, %v4640
    %v4642 = vrot.slane %v4633, %v4641
    %v4643 = vlaneseq
    %v4644 = vshrl.u32 %v4643, 7
    %v4645 = vsub.s32 2, %v4644
    %v4646 = vrot.slane %v4633, %v4645
    %v4647 = vlaneseq
    %v4648 = vshrl.u32 %v4647, 7
    %v4649 = vsub.s32 3, %v4648
    %v4650 = vrot.slane %v4633, %v4649
    %v4655 = vadd.f32 %v4638, 0.0
    %v4656 = vadd.f32 %v4642, 0.0
    %v4657 = vadd.f32 %v4646, 0.0
    %v4658 = vadd.f32 %v4650, 0.0
    %v4659 = vld [vmem:[#allocation4] sm:$0xff]
    %v4660 = vld [vmem:[#allocation4 + $0x8] sm:$0xff]
    %v4661 = vld [vmem:[#allocation4 + $0x10] sm:$0xff]
    %v4662 = vld [vmem:[#allocation4 + $0x18] sm:$0xff]
    %v4663 = vld [vmem:[#allocation4 + $0x20] sm:$0xff]
    %v4664 = vld [vmem:[#allocation4 + $0x28] sm:$0xff]
    %v4665 = vld [vmem:[#allocation4 + $0x30] sm:$0xff]
    %v4666 = vld [vmem:[#allocation4 + $0x38] sm:$0xff]
    %v4667 = vld [vmem:[#allocation4 + $0x40] sm:$0xff]
    %v4668 = vld [vmem:[#allocation4 + $0x48] sm:$0xff]
    %v4669 = vld [vmem:[#allocation4 + $0x50] sm:$0xff]
    %v4670 = vld [vmem:[#allocation4 + $0x58] sm:$0xff]
    %v4671 = vld [vmem:[#allocation4 + $0x60] sm:$0xff]
    %v4672 = vld [vmem:[#allocation4 + $0x68] sm:$0xff]
    %v4673 = vld [vmem:[#allocation4 + $0x70] sm:$0xff]
    %v4674 = vld [vmem:[#allocation4 + $0x78] sm:$0xff]
    %v4675 = vld [vmem:[#allocation4 + $0x80] sm:$0xff]
    %v4676 = vld [vmem:[#allocation4 + $0x88] sm:$0xff]
    %v4677 = vld [vmem:[#allocation4 + $0x90] sm:$0xff]
    %v4678 = vld [vmem:[#allocation4 + $0x98] sm:$0xff]
    %v4679 = vld [vmem:[#allocation4 + $0xa0] sm:$0xff]
    %v4680 = vld [vmem:[#allocation4 + $0xa8] sm:$0xff]
    %v4681 = vld [vmem:[#allocation4 + $0xb0] sm:$0xff]
    %v4682 = vld [vmem:[#allocation4 + $0xb8] sm:$0xff]
    %v4683 = vld [vmem:[#allocation4 + $0xc0] sm:$0xff]
    %v4684 = vld [vmem:[#allocation4 + $0xc8] sm:$0xff]
    %v4685 = vld [vmem:[#allocation4 + $0xd0] sm:$0xff]
    %v4686 = vld [vmem:[#allocation4 + $0xd8] sm:$0xff]
    %v4687 = vld [vmem:[#allocation4 + $0xe0] sm:$0xff]
    %v4688 = vld [vmem:[#allocation4 + $0xe8] sm:$0xff]
    %v4689 = vld [vmem:[#allocation4 + $0xf0] sm:$0xff]
    %v4690 = vld [vmem:[#allocation4 + $0xf8] sm:$0xff]
    %v4691 = vld [vmem:[#allocation4 + $0x100] sm:$0xff]
    %v4692 = vld [vmem:[#allocation4 + $0x108] sm:$0xff]
    %v4693 = vld [vmem:[#allocation4 + $0x110] sm:$0xff]
    %v4694 = vld [vmem:[#allocation4 + $0x118] sm:$0xff]
    %v4695 = vld [vmem:[#allocation4 + $0x120] sm:$0xff]
    %v4696 = vld [vmem:[#allocation4 + $0x128] sm:$0xff]
    %v4697 = vld [vmem:[#allocation4 + $0x130] sm:$0xff]
    %v4698 = vld [vmem:[#allocation4 + $0x138] sm:$0xff]
    %v4699 = vld [vmem:[#allocation4 + $0x140] sm:$0xff]
    %v4700 = vld [vmem:[#allocation4 + $0x148] sm:$0xff]
    %v4701 = vld [vmem:[#allocation4 + $0x150] sm:$0xff]
    %v4702 = vld [vmem:[#allocation4 + $0x158] sm:$0xff]
    %v4703 = vld [vmem:[#allocation4 + $0x160] sm:$0xff]
    %v4704 = vld [vmem:[#allocation4 + $0x168] sm:$0xff]
    %v4705 = vld [vmem:[#allocation4 + $0x170] sm:$0xff]
    %v4706 = vld [vmem:[#allocation4 + $0x178] sm:$0xff]
    %v4707 = vld [vmem:[#allocation4 + $0x180] sm:$0xff]
    %v4708 = vld [vmem:[#allocation4 + $0x188] sm:$0xff]
    %v4709 = vld [vmem:[#allocation4 + $0x190] sm:$0xff]
    %v4710 = vld [vmem:[#allocation4 + $0x198] sm:$0xff]
    %v4711 = vld [vmem:[#allocation4 + $0x1a0] sm:$0xff]
    %v4712 = vld [vmem:[#allocation4 + $0x1a8] sm:$0xff]
    %v4713 = vld [vmem:[#allocation4 + $0x1b0] sm:$0xff]
    %v4714 = vld [vmem:[#allocation4 + $0x1b8] sm:$0xff]
    %v4715 = vld [vmem:[#allocation4 + $0x1c0] sm:$0xff]
    %v4716 = vld [vmem:[#allocation4 + $0x1c8] sm:$0xff]
    %v4717 = vld [vmem:[#allocation4 + $0x1d0] sm:$0xff]
    %v4718 = vld [vmem:[#allocation4 + $0x1d8] sm:$0xff]
    %v4719 = vld [vmem:[#allocation4 + $0x1e0] sm:$0xff]
    %v4720 = vld [vmem:[#allocation4 + $0x1e8] sm:$0xff]
    %v4721 = vld [vmem:[#allocation4 + $0x1f0] sm:$0xff]
    %v4722 = vld [vmem:[#allocation4 + $0x1f8] sm:$0xff]
    %4723 = vmatprep.subr.mxu0 %v4720
    %4724 = vmatpush1.msra.mxu0 %v4719
    %4725 = vmatprep.subr.mxu0 %v4716
    %4726 = vmatpush1.msra.mxu0 %v4715
    %4727 = vmatprep.subr.mxu0 %v4712
    %4728 = vmatpush1.msra.mxu0 %v4711
    %4729 = vmatprep.subr.mxu0 %v4708
    %4730 = vmatpush1.msra.mxu0 %v4707
    %4731 = vmatprep.subr.mxu0 %v4704
    %4732 = vmatpush1.msra.mxu0 %v4703
    %4733 = vmatprep.subr.mxu0 %v4700
    %4734 = vmatpush1.msra.mxu0 %v4699
    %4735 = vmatprep.subr.mxu0 %v4696
    %4736 = vmatpush1.msra.mxu0 %v4695
    %4737 = vmatprep.subr.mxu0 %v4692
    %4738 = vmatpush1.msra.mxu0 %v4691
    %4739 = vmatprep.subr.mxu0 %v4688
    %4740 = vmatpush1.msra.mxu0 %v4687
    %4741 = vmatprep.subr.mxu0 %v4684
    %4742 = vmatpush1.msra.mxu0 %v4683
    %4743 = vmatprep.subr.mxu0 %v4680
    %4744 = vmatpush1.msra.mxu0 %v4679
    %4745 = vmatprep.subr.mxu0 %v4676
    %4746 = vmatpush1.msra.mxu0 %v4675
    %4747 = vmatprep.subr.mxu0 %v4672
    %4748 = vmatpush1.msra.mxu0 %v4671
    %4749 = vmatprep.subr.mxu0 %v4668
    %4750 = vmatpush1.msra.mxu0 %v4667
    %4751 = vmatprep.subr.mxu0 %v4664
    %4752 = vmatpush1.msra.mxu0 %v4663
    %4753 = vmatprep.subr.mxu0 %v4660
    %4754 = vmatpush1.msra.mxu0 %v4659
    %4755 = vmatprep.subr.mxu0 0.0
    %4756 = vmatpush2.msra.mxu0 0.0
    %4757 = vmatprep.subr.mxu0 0.0
    %4758 = vmatpush2.msra.mxu0 0.0
    %4759 = vmatprep.subr.mxu0 0.0
    %4760 = vmatpush2.msra.mxu0 0.0
    %4761 = vmatprep.subr.mxu0 0.0
    %4762 = vmatpush2.msra.mxu0 0.0
    %4763 = vmatprep.subr.mxu0 0.0
    %4764 = vmatpush2.msra.mxu0 0.0
    %4765 = vmatprep.subr.mxu0 0.0
    %4766 = vmatpush2.msra.mxu0 0.0
    %4767 = vmatprep.subr.mxu0 0.0
    %4768 = vmatpush2.msra.mxu0 0.0
    %4769 = vmatprep.subr.mxu0 0.0
    %4770 = vmatpush2.msra.mxu0 0.0
    %4771 = vmatprep.subr.mxu0 0.0
    %4772 = vmatpush2.msra.mxu0 0.0
    %4773 = vmatprep.subr.mxu0 0.0
    %4774 = vmatpush2.msra.mxu0 0.0
    %4775 = vmatprep.subr.mxu0 0.0
    %4776 = vmatpush2.msra.mxu0 0.0
    %4777 = vmatprep.subr.mxu0 0.0
    %4778 = vmatpush2.msra.mxu0 0.0
    %4779 = vmatprep.subr.mxu0 0.0
    %4780 = vmatpush2.msra.mxu0 0.0
    %4781 = vmatprep.subr.mxu0 0.0
    %4782 = vmatpush2.msra.mxu0 0.0
    %4783 = vmatprep.subr.mxu0 0.0
    %4784 = vmatpush2.msra.mxu0 0.0
    %4785 = vmatprep.subr.mxu0 0.0
    %4786 = vmatpush2.msra.mxu0 0.0
    %4787 = vmatprep.mubr.f32.mxu0 0.0
    %4788 = vmatmul.mubr.f32.gmra.mxu0 %v4617
    %v4789 = vpop.f32.mrf.mxu0
    %v4790 = vadd.f32 0.0, %v4789
    %v4791 = vpop.f32.mrf.mxu0
    %v4792 = vadd.f32 0.0, %v4791
    %4793 = vdwg.mxu0
    %4794 = vmatprep.subr.mxu0 %v4722
    %4795 = vmatpush1.msra.mxu0 %v4721
    %4796 = vmatprep.subr.mxu0 %v4718
    %4797 = vmatpush1.msra.mxu0 %v4717
    %4798 = vmatprep.subr.mxu0 %v4714
    %4799 = vmatpush1.msra.mxu0 %v4713
    %4800 = vmatprep.subr.mxu0 %v4710
    %4801 = vmatpush1.msra.mxu0 %v4709
    %4802 = vmatprep.subr.mxu0 %v4706
    %4803 = vmatpush1.msra.mxu0 %v4705
    %4804 = vmatprep.subr.mxu0 %v4702
    %4805 = vmatpush1.msra.mxu0 %v4701
    %4806 = vmatprep.subr.mxu0 %v4698
    %4807 = vmatpush1.msra.mxu0 %v4697
    %4808 = vmatprep.subr.mxu0 %v4694
    %4809 = vmatpush1.msra.mxu0 %v4693
    %4810 = vmatprep.subr.mxu0 %v4690
    %4811 = vmatpush1.msra.mxu0 %v4689
    %4812 = vmatprep.subr.mxu0 %v4686
    %4813 = vmatpush1.msra.mxu0 %v4685
    %4814 = vmatprep.subr.mxu0 %v4682
    %4815 = vmatpush1.msra.mxu0 %v4681
    %4816 = vmatprep.subr.mxu0 %v4678
    %4817 = vmatpush1.msra.mxu0 %v4677
    %4818 = vmatprep.subr.mxu0 %v4674
    %4819 = vmatpush1.msra.mxu0 %v4673
    %4820 = vmatprep.subr.mxu0 %v4670
    %4821 = vmatpush1.msra.mxu0 %v4669
    %4822 = vmatprep.subr.mxu0 %v4666
    %4823 = vmatpush1.msra.mxu0 %v4665
    %4824 = vmatprep.subr.mxu0 %v4662
    %4825 = vmatpush1.msra.mxu0 %v4661
    %4826 = vmatprep.subr.mxu0 0.0
    %4827 = vmatpush2.msra.mxu0 0.0
    %4828 = vmatprep.subr.mxu0 0.0
    %4829 = vmatpush2.msra.mxu0 0.0
    %4830 = vmatprep.subr.mxu0 0.0
    %4831 = vmatpush2.msra.mxu0 0.0
    %4832 = vmatprep.subr.mxu0 0.0
    %4833 = vmatpush2.msra.mxu0 0.0
    %4834 = vmatprep.subr.mxu0 0.0
    %4835 = vmatpush2.msra.mxu0 0.0
    %4836 = vmatprep.subr.mxu0 0.0
    %4837 = vmatpush2.msra.mxu0 0.0
    %4838 = vmatprep.subr.mxu0 0.0
    %4839 = vmatpush2.msra.mxu0 0.0
    %4840 = vmatprep.subr.mxu0 0.0
    %4841 = vmatpush2.msra.mxu0 0.0
    %4842 = vmatprep.subr.mxu0 0.0
    %4843 = vmatpush2.msra.mxu0 0.0
    %4844 = vmatprep.subr.mxu0 0.0
    %4845 = vmatpush2.msra.mxu0 0.0
    %4846 = vmatprep.subr.mxu0 0.0
    %4847 = vmatpush2.msra.mxu0 0.0
    %4848 = vmatprep.subr.mxu0 0.0
    %4849 = vmatpush2.msra.mxu0 0.0
    %4850 = vmatprep.subr.mxu0 0.0
    %4851 = vmatpush2.msra.mxu0 0.0
    %4852 = vmatprep.subr.mxu0 0.0
    %4853 = vmatpush2.msra.mxu0 0.0
    %4854 = vmatprep.subr.mxu0 0.0
    %4855 = vmatpush2.msra.mxu0 0.0
    %4856 = vmatprep.subr.mxu0 0.0
    %4857 = vmatpush2.msra.mxu0 0.0
    %4858 = vmatprep.mubr.f32.mxu0 0.0
    %4859 = vmatmul.mubr.f32.gmra.mxu0 %v4617
    %v4860 = vpop.f32.mrf.mxu0
    %v4861 = vadd.f32 0.0, %v4860
    %v4862 = vpop.f32.mrf.mxu0
    %v4863 = vadd.f32 0.0, %v4862
    %4864 = vdwg.mxu0
    %v4865 = vadd.f32 %v4655, %v4790
    %v4866 = vadd.f32 %v4656, %v4792
    %v4867 = vadd.f32 %v4657, %v4861
    %v4868 = vadd.f32 %v4658, %v4863
    %s4869 = scalar_lea.vmem [#allocation4], 512
    %v4870 = vld [vmem:[%s4869] sm:$0xff]
    %v4871 = vld [vmem:[%s4869 + $0x8] sm:$0xff]
    %v4872 = vld [vmem:[%s4869 + $0x10] sm:$0xff]
    %v4873 = vld [vmem:[%s4869 + $0x18] sm:$0xff]
    %v4874 = vld [vmem:[%s4869 + $0x20] sm:$0xff]
    %v4875 = vld [vmem:[%s4869 + $0x28] sm:$0xff]
    %v4876 = vld [vmem:[%s4869 + $0x30] sm:$0xff]
    %v4877 = vld [vmem:[%s4869 + $0x38] sm:$0xff]
    %v4878 = vld [vmem:[%s4869 + $0x40] sm:$0xff]
    %v4879 = vld [vmem:[%s4869 + $0x48] sm:$0xff]
    %v4880 = vld [vmem:[%s4869 + $0x50] sm:$0xff]
    %v4881 = vld [vmem:[%s4869 + $0x58] sm:$0xff]
    %v4882 = vld [vmem:[%s4869 + $0x60] sm:$0xff]
    %v4883 = vld [vmem:[%s4869 + $0x68] sm:$0xff]
    %v4884 = vld [vmem:[%s4869 + $0x70] sm:$0xff]
    %v4885 = vld [vmem:[%s4869 + $0x78] sm:$0xff]
    %v4886 = vld [vmem:[%s4869 + $0x80] sm:$0xff]
    %v4887 = vld [vmem:[%s4869 + $0x88] sm:$0xff]
    %v4888 = vld [vmem:[%s4869 + $0x90] sm:$0xff]
    %v4889 = vld [vmem:[%s4869 + $0x98] sm:$0xff]
    %v4890 = vld [vmem:[%s4869 + $0xa0] sm:$0xff]
    %v4891 = vld [vmem:[%s4869 + $0xa8] sm:$0xff]
    %v4892 = vld [vmem:[%s4869 + $0xb0] sm:$0xff]
    %v4893 = vld [vmem:[%s4869 + $0xb8] sm:$0xff]
    %v4894 = vld [vmem:[%s4869 + $0xc0] sm:$0xff]
    %v4895 = vld [vmem:[%s4869 + $0xc8] sm:$0xff]
    %v4896 = vld [vmem:[%s4869 + $0xd0] sm:$0xff]
    %v4897 = vld [vmem:[%s4869 + $0xd8] sm:$0xff]
    %v4898 = vld [vmem:[%s4869 + $0xe0] sm:$0xff]
    %v4899 = vld [vmem:[%s4869 + $0xe8] sm:$0xff]
    %v4900 = vld [vmem:[%s4869 + $0xf0] sm:$0xff]
    %v4901 = vld [vmem:[%s4869 + $0xf8] sm:$0xff]
    %v4902 = vld [vmem:[%s4869 + $0x100] sm:$0xff]
    %v4903 = vld [vmem:[%s4869 + $0x108] sm:$0xff]
    %v4904 = vld [vmem:[%s4869 + $0x110] sm:$0xff]
    %v4905 = vld [vmem:[%s4869 + $0x118] sm:$0xff]
    %v4906 = vld [vmem:[%s4869 + $0x120] sm:$0xff]
    %v4907 = vld [vmem:[%s4869 + $0x128] sm:$0xff]
    %v4908 = vld [vmem:[%s4869 + $0x130] sm:$0xff]
    %v4909 = vld [vmem:[%s4869 + $0x138] sm:$0xff]
    %v4910 = vld [vmem:[%s4869 + $0x140] sm:$0xff]
    %v4911 = vld [vmem:[%s4869 + $0x148] sm:$0xff]
    %v4912 = vld [vmem:[%s4869 + $0x150] sm:$0xff]
    %v4913 = vld [vmem:[%s4869 + $0x158] sm:$0xff]
    %v4914 = vld [vmem:[%s4869 + $0x160] sm:$0xff]
    %v4915 = vld [vmem:[%s4869 + $0x168] sm:$0xff]
    %v4916 = vld [vmem:[%s4869 + $0x170] sm:$0xff]
    %v4917 = vld [vmem:[%s4869 + $0x178] sm:$0xff]
    %v4918 = vld [vmem:[%s4869 + $0x180] sm:$0xff]
    %v4919 = vld [vmem:[%s4869 + $0x188] sm:$0xff]
    %v4920 = vld [vmem:[%s4869 + $0x190] sm:$0xff]
    %v4921 = vld [vmem:[%s4869 + $0x198] sm:$0xff]
    %v4922 = vld [vmem:[%s4869 + $0x1a0] sm:$0xff]
    %v4923 = vld [vmem:[%s4869 + $0x1a8] sm:$0xff]
    %v4924 = vld [vmem:[%s4869 + $0x1b0] sm:$0xff]
    %v4925 = vld [vmem:[%s4869 + $0x1b8] sm:$0xff]
    %v4926 = vld [vmem:[%s4869 + $0x1c0] sm:$0xff]
    %v4927 = vld [vmem:[%s4869 + $0x1c8] sm:$0xff]
    %v4928 = vld [vmem:[%s4869 + $0x1d0] sm:$0xff]
    %v4929 = vld [vmem:[%s4869 + $0x1d8] sm:$0xff]
    %v4930 = vld [vmem:[%s4869 + $0x1e0] sm:$0xff]
    %v4931 = vld [vmem:[%s4869 + $0x1e8] sm:$0xff]
    %v4932 = vld [vmem:[%s4869 + $0x1f0] sm:$0xff]
    %v4933 = vld [vmem:[%s4869 + $0x1f8] sm:$0xff]
    %4934 = vmatprep.subr.mxu0 %v4931
    %4935 = vmatpush1.msra.mxu0 %v4930
    %4936 = vmatprep.subr.mxu0 %v4927
    %4937 = vmatpush1.msra.mxu0 %v4926
    %4938 = vmatprep.subr.mxu0 %v4923
    %4939 = vmatpush1.msra.mxu0 %v4922
    %4940 = vmatprep.subr.mxu0 %v4919
    %4941 = vmatpush1.msra.mxu0 %v4918
    %4942 = vmatprep.subr.mxu0 %v4915
    %4943 = vmatpush1.msra.mxu0 %v4914
    %4944 = vmatprep.subr.mxu0 %v4911
    %4945 = vmatpush1.msra.mxu0 %v4910
    %4946 = vmatprep.subr.mxu0 %v4907
    %4947 = vmatpush1.msra.mxu0 %v4906
    %4948 = vmatprep.subr.mxu0 %v4903
    %4949 = vmatpush1.msra.mxu0 %v4902
    %4950 = vmatprep.subr.mxu0 %v4899
    %4951 = vmatpush1.msra.mxu0 %v4898
    %4952 = vmatprep.subr.mxu0 %v4895
    %4953 = vmatpush1.msra.mxu0 %v4894
    %4954 = vmatprep.subr.mxu0 %v4891
    %4955 = vmatpush1.msra.mxu0 %v4890
    %4956 = vmatprep.subr.mxu0 %v4887
    %4957 = vmatpush1.msra.mxu0 %v4886
    %4958 = vmatprep.subr.mxu0 %v4883
    %4959 = vmatpush1.msra.mxu0 %v4882
    %4960 = vmatprep.subr.mxu0 %v4879
    %4961 = vmatpush1.msra.mxu0 %v4878
    %4962 = vmatprep.subr.mxu0 %v4875
    %4963 = vmatpush1.msra.mxu0 %v4874
    %4964 = vmatprep.subr.mxu0 %v4871
    %4965 = vmatpush1.msra.mxu0 %v4870
    %4966 = vmatprep.subr.mxu0 0.0
    %4967 = vmatpush2.msra.mxu0 0.0
    %4968 = vmatprep.subr.mxu0 0.0
    %4969 = vmatpush2.msra.mxu0 0.0
    %4970 = vmatprep.subr.mxu0 0.0
    %4971 = vmatpush2.msra.mxu0 0.0
    %4972 = vmatprep.subr.mxu0 0.0
    %4973 = vmatpush2.msra.mxu0 0.0
    %4974 = vmatprep.subr.mxu0 0.0
    %4975 = vmatpush2.msra.mxu0 0.0
    %4976 = vmatprep.subr.mxu0 0.0
    %4977 = vmatpush2.msra.mxu0 0.0
    %4978 = vmatprep.subr.mxu0 0.0
    %4979 = vmatpush2.msra.mxu0 0.0
    %4980 = vmatprep.subr.mxu0 0.0
    %4981 = vmatpush2.msra.mxu0 0.0
    %4982 = vmatprep.subr.mxu0 0.0
    %4983 = vmatpush2.msra.mxu0 0.0
    %4984 = vmatprep.subr.mxu0 0.0
    %4985 = vmatpush2.msra.mxu0 0.0
    %4986 = vmatprep.subr.mxu0 0.0
    %4987 = vmatpush2.msra.mxu0 0.0
    %4988 = vmatprep.subr.mxu0 0.0
    %4989 = vmatpush2.msra.mxu0 0.0
    %4990 = vmatprep.subr.mxu0 0.0
    %4991 = vmatpush2.msra.mxu0 0.0
    %4992 = vmatprep.subr.mxu0 0.0
    %4993 = vmatpush2.msra.mxu0 0.0
    %4994 = vmatprep.subr.mxu0 0.0
    %4995 = vmatpush2.msra.mxu0 0.0
    %4996 = vmatprep.subr.mxu0 0.0
    %4997 = vmatpush2.msra.mxu0 0.0
    %4998 = vmatprep.mubr.f32.mxu0 0.0
    %4999 = vmatmul.mubr.f32.gmra.mxu0 %v4618
    %v5000 = vpop.f32.mrf.mxu0
    %v5001 = vadd.f32 0.0, %v5000
    %v5002 = vpop.f32.mrf.mxu0
    %v5003 = vadd.f32 0.0, %v5002
    %5004 = vdwg.mxu0
    %5005 = vmatprep.subr.mxu0 %v4933
    %5006 = vmatpush1.msra.mxu0 %v4932
    %5007 = vmatprep.subr.mxu0 %v4929
    %5008 = vmatpush1.msra.mxu0 %v4928
    %5009 = vmatprep.subr.mxu0 %v4925
    %5010 = vmatpush1.msra.mxu0 %v4924
    %5011 = vmatprep.subr.mxu0 %v4921
    %5012 = vmatpush1.msra.mxu0 %v4920
    %5013 = vmatprep.subr.mxu0 %v4917
    %5014 = vmatpush1.msra.mxu0 %v4916
    %5015 = vmatprep.subr.mxu0 %v4913
    %5016 = vmatpush1.msra.mxu0 %v4912
    %5017 = vmatprep.subr.mxu0 %v4909
    %5018 = vmatpush1.msra.mxu0 %v4908
    %5019 = vmatprep.subr.mxu0 %v4905
    %5020 = vmatpush1.msra.mxu0 %v4904
    %5021 = vmatprep.subr.mxu0 %v4901
    %5022 = vmatpush1.msra.mxu0 %v4900
    %5023 = vmatprep.subr.mxu0 %v4897
    %5024 = vmatpush1.msra.mxu0 %v4896
    %5025 = vmatprep.subr.mxu0 %v4893
    %5026 = vmatpush1.msra.mxu0 %v4892
    %5027 = vmatprep.subr.mxu0 %v4889
    %5028 = vmatpush1.msra.mxu0 %v4888
    %5029 = vmatprep.subr.mxu0 %v4885
    %5030 = vmatpush1.msra.mxu0 %v4884
    %5031 = vmatprep.subr.mxu0 %v4881
    %5032 = vmatpush1.msra.mxu0 %v4880
    %5033 = vmatprep.subr.mxu0 %v4877
    %5034 = vmatpush1.msra.mxu0 %v4876
    %5035 = vmatprep.subr.mxu0 %v4873
    %5036 = vmatpush1.msra.mxu0 %v4872
    %5037 = vmatprep.subr.mxu0 0.0
    %5038 = vmatpush2.msra.mxu0 0.0
    %5039 = vmatprep.subr.mxu0 0.0
    %5040 = vmatpush2.msra.mxu0 0.0
    %5041 = vmatprep.subr.mxu0 0.0
    %5042 = vmatpush2.msra.mxu0 0.0
    %5043 = vmatprep.subr.mxu0 0.0
    %5044 = vmatpush2.msra.mxu0 0.0
    %5045 = vmatprep.subr.mxu0 0.0
    %5046 = vmatpush2.msra.mxu0 0.0
    %5047 = vmatprep.subr.mxu0 0.0
    %5048 = vmatpush2.msra.mxu0 0.0
    %5049 = vmatprep.subr.mxu0 0.0
    %5050 = vmatpush2.msra.mxu0 0.0
    %5051 = vmatprep.subr.mxu0 0.0
    %5052 = vmatpush2.msra.mxu0 0.0
    %5053 = vmatprep.subr.mxu0 0.0
    %5054 = vmatpush2.msra.mxu0 0.0
    %5055 = vmatprep.subr.mxu0 0.0
    %5056 = vmatpush2.msra.mxu0 0.0
    %5057 = vmatprep.subr.mxu0 0.0
    %5058 = vmatpush2.msra.mxu0 0.0
    %5059 = vmatprep.subr.mxu0 0.0
    %5060 = vmatpush2.msra.mxu0 0.0
    %5061 = vmatprep.subr.mxu0 0.0
    %5062 = vmatpush2.msra.mxu0 0.0
    %5063 = vmatprep.subr.mxu0 0.0
    %5064 = vmatpush2.msra.mxu0 0.0
    %5065 = vmatprep.subr.mxu0 0.0
    %5066 = vmatpush2.msra.mxu0 0.0
    %5067 = vmatprep.subr.mxu0 0.0
    %5068 = vmatpush2.msra.mxu0 0.0
    %5069 = vmatprep.mubr.f32.mxu0 0.0
    %5070 = vmatmul.mubr.f32.gmra.mxu0 %v4618
    %v5071 = vpop.f32.mrf.mxu0
    %v5072 = vadd.f32 0.0, %v5071
    %v5073 = vpop.f32.mrf.mxu0
    %v5074 = vadd.f32 0.0, %v5073
    %5075 = vdwg.mxu0
    %v5076 = vadd.f32 %v4865, %v5001
    %v5077 = vadd.f32 %v4866, %v5003
    %v5078 = vadd.f32 %v4867, %v5072
    %v5079 = vadd.f32 %v4868, %v5074
    %s5080 = scalar_lea.vmem [#allocation4], 1024
    %v5081 = vld [vmem:[%s5080] sm:$0xff]
    %v5082 = vld [vmem:[%s5080 + $0x8] sm:$0xff]
    %v5083 = vld [vmem:[%s5080 + $0x10] sm:$0xff]
    %v5084 = vld [vmem:[%s5080 + $0x18] sm:$0xff]
    %v5085 = vld [vmem:[%s5080 + $0x20] sm:$0xff]
    %v5086 = vld [vmem:[%s5080 + $0x28] sm:$0xff]
    %v5087 = vld [vmem:[%s5080 + $0x30] sm:$0xff]
    %v5088 = vld [vmem:[%s5080 + $0x38] sm:$0xff]
    %v5089 = vld [vmem:[%s5080 + $0x40] sm:$0xff]
    %v5090 = vld [vmem:[%s5080 + $0x48] sm:$0xff]
    %v5091 = vld [vmem:[%s5080 + $0x50] sm:$0xff]
    %v5092 = vld [vmem:[%s5080 + $0x58] sm:$0xff]
    %v5093 = vld [vmem:[%s5080 + $0x60] sm:$0xff]
    %v5094 = vld [vmem:[%s5080 + $0x68] sm:$0xff]
    %v5095 = vld [vmem:[%s5080 + $0x70] sm:$0xff]
    %v5096 = vld [vmem:[%s5080 + $0x78] sm:$0xff]
    %v5097 = vld [vmem:[%s5080 + $0x80] sm:$0xff]
    %v5098 = vld [vmem:[%s5080 + $0x88] sm:$0xff]
    %v5099 = vld [vmem:[%s5080 + $0x90] sm:$0xff]
    %v5100 = vld [vmem:[%s5080 + $0x98] sm:$0xff]
    %v5101 = vld [vmem:[%s5080 + $0xa0] sm:$0xff]
    %v5102 = vld [vmem:[%s5080 + $0xa8] sm:$0xff]
    %v5103 = vld [vmem:[%s5080 + $0xb0] sm:$0xff]
    %v5104 = vld [vmem:[%s5080 + $0xb8] sm:$0xff]
    %v5105 = vld [vmem:[%s5080 + $0xc0] sm:$0xff]
    %v5106 = vld [vmem:[%s5080 + $0xc8] sm:$0xff]
    %v5107 = vld [vmem:[%s5080 + $0xd0] sm:$0xff]
    %v5108 = vld [vmem:[%s5080 + $0xd8] sm:$0xff]
    %v5109 = vld [vmem:[%s5080 + $0xe0] sm:$0xff]
    %v5110 = vld [vmem:[%s5080 + $0xe8] sm:$0xff]
    %v5111 = vld [vmem:[%s5080 + $0xf0] sm:$0xff]
    %v5112 = vld [vmem:[%s5080 + $0xf8] sm:$0xff]
    %v5113 = vld [vmem:[%s5080 + $0x100] sm:$0xff]
    %v5114 = vld [vmem:[%s5080 + $0x108] sm:$0xff]
    %v5115 = vld [vmem:[%s5080 + $0x110] sm:$0xff]
    %v5116 = vld [vmem:[%s5080 + $0x118] sm:$0xff]
    %v5117 = vld [vmem:[%s5080 + $0x120] sm:$0xff]
    %v5118 = vld [vmem:[%s5080 + $0x128] sm:$0xff]
    %v5119 = vld [vmem:[%s5080 + $0x130] sm:$0xff]
    %v5120 = vld [vmem:[%s5080 + $0x138] sm:$0xff]
    %v5121 = vld [vmem:[%s5080 + $0x140] sm:$0xff]
    %v5122 = vld [vmem:[%s5080 + $0x148] sm:$0xff]
    %v5123 = vld [vmem:[%s5080 + $0x150] sm:$0xff]
    %v5124 = vld [vmem:[%s5080 + $0x158] sm:$0xff]
    %v5125 = vld [vmem:[%s5080 + $0x160] sm:$0xff]
    %v5126 = vld [vmem:[%s5080 + $0x168] sm:$0xff]
    %v5127 = vld [vmem:[%s5080 + $0x170] sm:$0xff]
    %v5128 = vld [vmem:[%s5080 + $0x178] sm:$0xff]
    %v5129 = vld [vmem:[%s5080 + $0x180] sm:$0xff]
    %v5130 = vld [vmem:[%s5080 + $0x188] sm:$0xff]
    %v5131 = vld [vmem:[%s5080 + $0x190] sm:$0xff]
    %v5132 = vld [vmem:[%s5080 + $0x198] sm:$0xff]
    %v5133 = vld [vmem:[%s5080 + $0x1a0] sm:$0xff]
    %v5134 = vld [vmem:[%s5080 + $0x1a8] sm:$0xff]
    %v5135 = vld [vmem:[%s5080 + $0x1b0] sm:$0xff]
    %v5136 = vld [vmem:[%s5080 + $0x1b8] sm:$0xff]
    %v5137 = vld [vmem:[%s5080 + $0x1c0] sm:$0xff]
    %v5138 = vld [vmem:[%s5080 + $0x1c8] sm:$0xff]
    %v5139 = vld [vmem:[%s5080 + $0x1d0] sm:$0xff]
    %v5140 = vld [vmem:[%s5080 + $0x1d8] sm:$0xff]
    %v5141 = vld [vmem:[%s5080 + $0x1e0] sm:$0xff]
    %v5142 = vld [vmem:[%s5080 + $0x1e8] sm:$0xff]
    %v5143 = vld [vmem:[%s5080 + $0x1f0] sm:$0xff]
    %v5144 = vld [vmem:[%s5080 + $0x1f8] sm:$0xff]
    %5145 = vmatprep.subr.mxu0 %v5142
    %5146 = vmatpush1.msra.mxu0 %v5141
    %5147 = vmatprep.subr.mxu0 %v5138
    %5148 = vmatpush1.msra.mxu0 %v5137
    %5149 = vmatprep.subr.mxu0 %v5134
    %5150 = vmatpush1.msra.mxu0 %v5133
    %5151 = vmatprep.subr.mxu0 %v5130
    %5152 = vmatpush1.msra.mxu0 %v5129
    %5153 = vmatprep.subr.mxu0 %v5126
    %5154 = vmatpush1.msra.mxu0 %v5125
    %5155 = vmatprep.subr.mxu0 %v5122
    %5156 = vmatpush1.msra.mxu0 %v5121
    %5157 = vmatprep.subr.mxu0 %v5118
    %5158 = vmatpush1.msra.mxu0 %v5117
    %5159 = vmatprep.subr.mxu0 %v5114
    %5160 = vmatpush1.msra.mxu0 %v5113
    %5161 = vmatprep.subr.mxu0 %v5110
    %5162 = vmatpush1.msra.mxu0 %v5109
    %5163 = vmatprep.subr.mxu0 %v5106
    %5164 = vmatpush1.msra.mxu0 %v5105
    %5165 = vmatprep.subr.mxu0 %v5102
    %5166 = vmatpush1.msra.mxu0 %v5101
    %5167 = vmatprep.subr.mxu0 %v5098
    %5168 = vmatpush1.msra.mxu0 %v5097
    %5169 = vmatprep.subr.mxu0 %v5094
    %5170 = vmatpush1.msra.mxu0 %v5093
    %5171 = vmatprep.subr.mxu0 %v5090
    %5172 = vmatpush1.msra.mxu0 %v5089
    %5173 = vmatprep.subr.mxu0 %v5086
    %5174 = vmatpush1.msra.mxu0 %v5085
    %5175 = vmatprep.subr.mxu0 %v5082
    %5176 = vmatpush1.msra.mxu0 %v5081
    %5177 = vmatprep.subr.mxu0 0.0
    %5178 = vmatpush2.msra.mxu0 0.0
    %5179 = vmatprep.subr.mxu0 0.0
    %5180 = vmatpush2.msra.mxu0 0.0
    %5181 = vmatprep.subr.mxu0 0.0
    %5182 = vmatpush2.msra.mxu0 0.0
    %5183 = vmatprep.subr.mxu0 0.0
    %5184 = vmatpush2.msra.mxu0 0.0
    %5185 = vmatprep.subr.mxu0 0.0
    %5186 = vmatpush2.msra.mxu0 0.0
    %5187 = vmatprep.subr.mxu0 0.0
    %5188 = vmatpush2.msra.mxu0 0.0
    %5189 = vmatprep.subr.mxu0 0.0
    %5190 = vmatpush2.msra.mxu0 0.0
    %5191 = vmatprep.subr.mxu0 0.0
    %5192 = vmatpush2.msra.mxu0 0.0
    %5193 = vmatprep.subr.mxu0 0.0
    %5194 = vmatpush2.msra.mxu0 0.0
    %5195 = vmatprep.subr.mxu0 0.0
    %5196 = vmatpush2.msra.mxu0 0.0
    %5197 = vmatprep.subr.mxu0 0.0
    %5198 = vmatpush2.msra.mxu0 0.0
    %5199 = vmatprep.subr.mxu0 0.0
    %5200 = vmatpush2.msra.mxu0 0.0
    %5201 = vmatprep.subr.mxu0 0.0
    %5202 = vmatpush2.msra.mxu0 0.0
    %5203 = vmatprep.subr.mxu0 0.0
    %5204 = vmatpush2.msra.mxu0 0.0
    %5205 = vmatprep.subr.mxu0 0.0
    %5206 = vmatpush2.msra.mxu0 0.0
    %5207 = vmatprep.subr.mxu0 0.0
    %5208 = vmatpush2.msra.mxu0 0.0
    %5209 = vmatprep.mubr.f32.mxu0 0.0
    %5210 = vmatmul.mubr.f32.gmra.mxu0 %v4619
    %v5211 = vpop.f32.mrf.mxu0
    %v5212 = vadd.f32 0.0, %v5211
    %v5213 = vpop.f32.mrf.mxu0
    %v5214 = vadd.f32 0.0, %v5213
    %5215 = vdwg.mxu0
    %5216 = vmatprep.subr.mxu0 %v5144
    %5217 = vmatpush1.msra.mxu0 %v5143
    %5218 = vmatprep.subr.mxu0 %v5140
    %5219 = vmatpush1.msra.mxu0 %v5139
    %5220 = vmatprep.subr.mxu0 %v5136
    %5221 = vmatpush1.msra.mxu0 %v5135
    %5222 = vmatprep.subr.mxu0 %v5132
    %5223 = vmatpush1.msra.mxu0 %v5131
    %5224 = vmatprep.subr.mxu0 %v5128
    %5225 = vmatpush1.msra.mxu0 %v5127
    %5226 = vmatprep.subr.mxu0 %v5124
    %5227 = vmatpush1.msra.mxu0 %v5123
    %5228 = vmatprep.subr.mxu0 %v5120
    %5229 = vmatpush1.msra.mxu0 %v5119
    %5230 = vmatprep.subr.mxu0 %v5116
    %5231 = vmatpush1.msra.mxu0 %v5115
    %5232 = vmatprep.subr.mxu0 %v5112
    %5233 = vmatpush1.msra.mxu0 %v5111
    %5234 = vmatprep.subr.mxu0 %v5108
    %5235 = vmatpush1.msra.mxu0 %v5107
    %5236 = vmatprep.subr.mxu0 %v5104
    %5237 = vmatpush1.msra.mxu0 %v5103
    %5238 = vmatprep.subr.mxu0 %v5100
    %5239 = vmatpush1.msra.mxu0 %v5099
    %5240 = vmatprep.subr.mxu0 %v5096
    %5241 = vmatpush1.msra.mxu0 %v5095
    %5242 = vmatprep.subr.mxu0 %v5092
    %5243 = vmatpush1.msra.mxu0 %v5091
    %5244 = vmatprep.subr.mxu0 %v5088
    %5245 = vmatpush1.msra.mxu0 %v5087
    %5246 = vmatprep.subr.mxu0 %v5084
    %5247 = vmatpush1.msra.mxu0 %v5083
    %5248 = vmatprep.subr.mxu0 0.0
    %5249 = vmatpush2.msra.mxu0 0.0
    %5250 = vmatprep.subr.mxu0 0.0
    %5251 = vmatpush2.msra.mxu0 0.0
    %5252 = vmatprep.subr.mxu0 0.0
    %5253 = vmatpush2.msra.mxu0 0.0
    %5254 = vmatprep.subr.mxu0 0.0
    %5255 = vmatpush2.msra.mxu0 0.0
    %5256 = vmatprep.subr.mxu0 0.0
    %5257 = vmatpush2.msra.mxu0 0.0
    %5258 = vmatprep.subr.mxu0 0.0
    %5259 = vmatpush2.msra.mxu0 0.0
    %5260 = vmatprep.subr.mxu0 0.0
    %5261 = vmatpush2.msra.mxu0 0.0
    %5262 = vmatprep.subr.mxu0 0.0
    %5263 = vmatpush2.msra.mxu0 0.0
    %5264 = vmatprep.subr.mxu0 0.0
    %5265 = vmatpush2.msra.mxu0 0.0
    %5266 = vmatprep.subr.mxu0 0.0
    %5267 = vmatpush2.msra.mxu0 0.0
    %5268 = vmatprep.subr.mxu0 0.0
    %5269 = vmatpush2.msra.mxu0 0.0
    %5270 = vmatprep.subr.mxu0 0.0
    %5271 = vmatpush2.msra.mxu0 0.0
    %5272 = vmatprep.subr.mxu0 0.0
    %5273 = vmatpush2.msra.mxu0 0.0
    %5274 = vmatprep.subr.mxu0 0.0
    %5275 = vmatpush2.msra.mxu0 0.0
    %5276 = vmatprep.subr.mxu0 0.0
    %5277 = vmatpush2.msra.mxu0 0.0
    %5278 = vmatprep.subr.mxu0 0.0
    %5279 = vmatpush2.msra.mxu0 0.0
    %5280 = vmatprep.mubr.f32.mxu0 0.0
    %5281 = vmatmul.mubr.f32.gmra.mxu0 %v4619
    %v5282 = vpop.f32.mrf.mxu0
    %v5283 = vadd.f32 0.0, %v5282
    %v5284 = vpop.f32.mrf.mxu0
    %v5285 = vadd.f32 0.0, %v5284
    %5286 = vdwg.mxu0
    %v5287 = vadd.f32 %v5076, %v5212
    %v5288 = vadd.f32 %v5077, %v5214
    %v5289 = vadd.f32 %v5078, %v5283
    %v5290 = vadd.f32 %v5079, %v5285
    %s5291 = scalar_lea.vmem [#allocation4], 1536
    %v5292 = vld [vmem:[%s5291] sm:$0xff]
    %v5293 = vld [vmem:[%s5291 + $0x8] sm:$0xff]
    %v5294 = vld [vmem:[%s5291 + $0x10] sm:$0xff]
    %v5295 = vld [vmem:[%s5291 + $0x18] sm:$0xff]
    %v5296 = vld [vmem:[%s5291 + $0x20] sm:$0xff]
    %v5297 = vld [vmem:[%s5291 + $0x28] sm:$0xff]
    %v5298 = vld [vmem:[%s5291 + $0x30] sm:$0xff]
    %v5299 = vld [vmem:[%s5291 + $0x38] sm:$0xff]
    %v5300 = vld [vmem:[%s5291 + $0x40] sm:$0xff]
    %v5301 = vld [vmem:[%s5291 + $0x48] sm:$0xff]
    %v5302 = vld [vmem:[%s5291 + $0x50] sm:$0xff]
    %v5303 = vld [vmem:[%s5291 + $0x58] sm:$0xff]
    %v5304 = vld [vmem:[%s5291 + $0x60] sm:$0xff]
    %v5305 = vld [vmem:[%s5291 + $0x68] sm:$0xff]
    %v5306 = vld [vmem:[%s5291 + $0x70] sm:$0xff]
    %v5307 = vld [vmem:[%s5291 + $0x78] sm:$0xff]
    %v5308 = vld [vmem:[%s5291 + $0x80] sm:$0xff]
    %v5309 = vld [vmem:[%s5291 + $0x88] sm:$0xff]
    %v5310 = vld [vmem:[%s5291 + $0x90] sm:$0xff]
    %v5311 = vld [vmem:[%s5291 + $0x98] sm:$0xff]
    %v5312 = vld [vmem:[%s5291 + $0xa0] sm:$0xff]
    %v5313 = vld [vmem:[%s5291 + $0xa8] sm:$0xff]
    %v5314 = vld [vmem:[%s5291 + $0xb0] sm:$0xff]
    %v5315 = vld [vmem:[%s5291 + $0xb8] sm:$0xff]
    %v5316 = vld [vmem:[%s5291 + $0xc0] sm:$0xff]
    %v5317 = vld [vmem:[%s5291 + $0xc8] sm:$0xff]
    %v5318 = vld [vmem:[%s5291 + $0xd0] sm:$0xff]
    %v5319 = vld [vmem:[%s5291 + $0xd8] sm:$0xff]
    %v5320 = vld [vmem:[%s5291 + $0xe0] sm:$0xff]
    %v5321 = vld [vmem:[%s5291 + $0xe8] sm:$0xff]
    %v5322 = vld [vmem:[%s5291 + $0xf0] sm:$0xff]
    %v5323 = vld [vmem:[%s5291 + $0xf8] sm:$0xff]
    %v5324 = vld [vmem:[%s5291 + $0x100] sm:$0xff]
    %v5325 = vld [vmem:[%s5291 + $0x108] sm:$0xff]
    %v5326 = vld [vmem:[%s5291 + $0x110] sm:$0xff]
    %v5327 = vld [vmem:[%s5291 + $0x118] sm:$0xff]
    %v5328 = vld [vmem:[%s5291 + $0x120] sm:$0xff]
    %v5329 = vld [vmem:[%s5291 + $0x128] sm:$0xff]
    %v5330 = vld [vmem:[%s5291 + $0x130] sm:$0xff]
    %v5331 = vld [vmem:[%s5291 + $0x138] sm:$0xff]
    %v5332 = vld [vmem:[%s5291 + $0x140] sm:$0xff]
    %v5333 = vld [vmem:[%s5291 + $0x148] sm:$0xff]
    %v5334 = vld [vmem:[%s5291 + $0x150] sm:$0xff]
    %v5335 = vld [vmem:[%s5291 + $0x158] sm:$0xff]
    %v5336 = vld [vmem:[%s5291 + $0x160] sm:$0xff]
    %v5337 = vld [vmem:[%s5291 + $0x168] sm:$0xff]
    %v5338 = vld [vmem:[%s5291 + $0x170] sm:$0xff]
    %v5339 = vld [vmem:[%s5291 + $0x178] sm:$0xff]
    %v5340 = vld [vmem:[%s5291 + $0x180] sm:$0xff]
    %v5341 = vld [vmem:[%s5291 + $0x188] sm:$0xff]
    %v5342 = vld [vmem:[%s5291 + $0x190] sm:$0xff]
    %v5343 = vld [vmem:[%s5291 + $0x198] sm:$0xff]
    %v5344 = vld [vmem:[%s5291 + $0x1a0] sm:$0xff]
    %v5345 = vld [vmem:[%s5291 + $0x1a8] sm:$0xff]
    %v5346 = vld [vmem:[%s5291 + $0x1b0] sm:$0xff]
    %v5347 = vld [vmem:[%s5291 + $0x1b8] sm:$0xff]
    %v5348 = vld [vmem:[%s5291 + $0x1c0] sm:$0xff]
    %v5349 = vld [vmem:[%s5291 + $0x1c8] sm:$0xff]
    %v5350 = vld [vmem:[%s5291 + $0x1d0] sm:$0xff]
    %v5351 = vld [vmem:[%s5291 + $0x1d8] sm:$0xff]
    %v5352 = vld [vmem:[%s5291 + $0x1e0] sm:$0xff]
    %v5353 = vld [vmem:[%s5291 + $0x1e8] sm:$0xff]
    %v5354 = vld [vmem:[%s5291 + $0x1f0] sm:$0xff]
    %v5355 = vld [vmem:[%s5291 + $0x1f8] sm:$0xff]
    %5356 = vmatprep.subr.mxu0 %v5353
    %5357 = vmatpush1.msra.mxu0 %v5352
    %5358 = vmatprep.subr.mxu0 %v5349
    %5359 = vmatpush1.msra.mxu0 %v5348
    %5360 = vmatprep.subr.mxu0 %v5345
    %5361 = vmatpush1.msra.mxu0 %v5344
    %5362 = vmatprep.subr.mxu0 %v5341
    %5363 = vmatpush1.msra.mxu0 %v5340
    %5364 = vmatprep.subr.mxu0 %v5337
    %5365 = vmatpush1.msra.mxu0 %v5336
    %5366 = vmatprep.subr.mxu0 %v5333
    %5367 = vmatpush1.msra.mxu0 %v5332
    %5368 = vmatprep.subr.mxu0 %v5329
    %5369 = vmatpush1.msra.mxu0 %v5328
    %5370 = vmatprep.subr.mxu0 %v5325
    %5371 = vmatpush1.msra.mxu0 %v5324
    %5372 = vmatprep.subr.mxu0 %v5321
    %5373 = vmatpush1.msra.mxu0 %v5320
    %5374 = vmatprep.subr.mxu0 %v5317
    %5375 = vmatpush1.msra.mxu0 %v5316
    %5376 = vmatprep.subr.mxu0 %v5313
    %5377 = vmatpush1.msra.mxu0 %v5312
    %5378 = vmatprep.subr.mxu0 %v5309
    %5379 = vmatpush1.msra.mxu0 %v5308
    %5380 = vmatprep.subr.mxu0 %v5305
    %5381 = vmatpush1.msra.mxu0 %v5304
    %5382 = vmatprep.subr.mxu0 %v5301
    %5383 = vmatpush1.msra.mxu0 %v5300
    %5384 = vmatprep.subr.mxu0 %v5297
    %5385 = vmatpush1.msra.mxu0 %v5296
    %5386 = vmatprep.subr.mxu0 %v5293
    %5387 = vmatpush1.msra.mxu0 %v5292
    %5388 = vmatprep.subr.mxu0 0.0
    %5389 = vmatpush2.msra.mxu0 0.0
    %5390 = vmatprep.subr.mxu0 0.0
    %5391 = vmatpush2.msra.mxu0 0.0
    %5392 = vmatprep.subr.mxu0 0.0
    %5393 = vmatpush2.msra.mxu0 0.0
    %5394 = vmatprep.subr.mxu0 0.0
    %5395 = vmatpush2.msra.mxu0 0.0
    %5396 = vmatprep.subr.mxu0 0.0
    %5397 = vmatpush2.msra.mxu0 0.0
    %5398 = vmatprep.subr.mxu0 0.0
    %5399 = vmatpush2.msra.mxu0 0.0
    %5400 = vmatprep.subr.mxu0 0.0
    %5401 = vmatpush2.msra.mxu0 0.0
    %5402 = vmatprep.subr.mxu0 0.0
    %5403 = vmatpush2.msra.mxu0 0.0
    %5404 = vmatprep.subr.mxu0 0.0
    %5405 = vmatpush2.msra.mxu0 0.0
    %5406 = vmatprep.subr.mxu0 0.0
    %5407 = vmatpush2.msra.mxu0 0.0
    %5408 = vmatprep.subr.mxu0 0.0
    %5409 = vmatpush2.msra.mxu0 0.0
    %5410 = vmatprep.subr.mxu0 0.0
    %5411 = vmatpush2.msra.mxu0 0.0
    %5412 = vmatprep.subr.mxu0 0.0
    %5413 = vmatpush2.msra.mxu0 0.0
    %5414 = vmatprep.subr.mxu0 0.0
    %5415 = vmatpush2.msra.mxu0 0.0
    %5416 = vmatprep.subr.mxu0 0.0
    %5417 = vmatpush2.msra.mxu0 0.0
    %5418 = vmatprep.subr.mxu0 0.0
    %5419 = vmatpush2.msra.mxu0 0.0
    %5420 = vmatprep.mubr.f32.mxu0 0.0
    %5421 = vmatmul.mubr.f32.gmra.mxu0 %v4620
    %v5422 = vpop.f32.mrf.mxu0
    %v5423 = vadd.f32 0.0, %v5422
    %v5424 = vpop.f32.mrf.mxu0
    %v5425 = vadd.f32 0.0, %v5424
    %5426 = vdwg.mxu0
    %5427 = vmatprep.subr.mxu0 %v5355
    %5428 = vmatpush1.msra.mxu0 %v5354
    %5429 = vmatprep.subr.mxu0 %v5351
    %5430 = vmatpush1.msra.mxu0 %v5350
    %5431 = vmatprep.subr.mxu0 %v5347
    %5432 = vmatpush1.msra.mxu0 %v5346
    %5433 = vmatprep.subr.mxu0 %v5343
    %5434 = vmatpush1.msra.mxu0 %v5342
    %5435 = vmatprep.subr.mxu0 %v5339
    %5436 = vmatpush1.msra.mxu0 %v5338
    %5437 = vmatprep.subr.mxu0 %v5335
    %5438 = vmatpush1.msra.mxu0 %v5334
    %5439 = vmatprep.subr.mxu0 %v5331
    %5440 = vmatpush1.msra.mxu0 %v5330
    %5441 = vmatprep.subr.mxu0 %v5327
    %5442 = vmatpush1.msra.mxu0 %v5326
    %5443 = vmatprep.subr.mxu0 %v5323
    %5444 = vmatpush1.msra.mxu0 %v5322
    %5445 = vmatprep.subr.mxu0 %v5319
    %5446 = vmatpush1.msra.mxu0 %v5318
    %5447 = vmatprep.subr.mxu0 %v5315
    %5448 = vmatpush1.msra.mxu0 %v5314
    %5449 = vmatprep.subr.mxu0 %v5311
    %5450 = vmatpush1.msra.mxu0 %v5310
    %5451 = vmatprep.subr.mxu0 %v5307
    %5452 = vmatpush1.msra.mxu0 %v5306
    %5453 = vmatprep.subr.mxu0 %v5303
    %5454 = vmatpush1.msra.mxu0 %v5302
    %5455 = vmatprep.subr.mxu0 %v5299
    %5456 = vmatpush1.msra.mxu0 %v5298
    %5457 = vmatprep.subr.mxu0 %v5295
    %5458 = vmatpush1.msra.mxu0 %v5294
    %5459 = vmatprep.subr.mxu0 0.0
    %5460 = vmatpush2.msra.mxu0 0.0
    %5461 = vmatprep.subr.mxu0 0.0
    %5462 = vmatpush2.msra.mxu0 0.0
    %5463 = vmatprep.subr.mxu0 0.0
    %5464 = vmatpush2.msra.mxu0 0.0
    %5465 = vmatprep.subr.mxu0 0.0
    %5466 = vmatpush2.msra.mxu0 0.0
    %5467 = vmatprep.subr.mxu0 0.0
    %5468 = vmatpush2.msra.mxu0 0.0
    %5469 = vmatprep.subr.mxu0 0.0
    %5470 = vmatpush2.msra.mxu0 0.0
    %5471 = vmatprep.subr.mxu0 0.0
    %5472 = vmatpush2.msra.mxu0 0.0
    %5473 = vmatprep.subr.mxu0 0.0
    %5474 = vmatpush2.msra.mxu0 0.0
    %5475 = vmatprep.subr.mxu0 0.0
    %5476 = vmatpush2.msra.mxu0 0.0
    %5477 = vmatprep.subr.mxu0 0.0
    %5478 = vmatpush2.msra.mxu0 0.0
    %5479 = vmatprep.subr.mxu0 0.0
    %5480 = vmatpush2.msra.mxu0 0.0
    %5481 = vmatprep.subr.mxu0 0.0
    %5482 = vmatpush2.msra.mxu0 0.0
    %5483 = vmatprep.subr.mxu0 0.0
    %5484 = vmatpush2.msra.mxu0 0.0
    %5485 = vmatprep.subr.mxu0 0.0
    %5486 = vmatpush2.msra.mxu0 0.0
    %5487 = vmatprep.subr.mxu0 0.0
    %5488 = vmatpush2.msra.mxu0 0.0
    %5489 = vmatprep.subr.mxu0 0.0
    %5490 = vmatpush2.msra.mxu0 0.0
    %5491 = vmatprep.mubr.f32.mxu0 0.0
    %5492 = vmatmul.mubr.f32.gmra.mxu0 %v4620
    %v5493 = vpop.f32.mrf.mxu0
    %v5494 = vadd.f32 0.0, %v5493
    %v5495 = vpop.f32.mrf.mxu0
    %v5496 = vadd.f32 0.0, %v5495
    %5497 = vdwg.mxu0
    %v5498 = vadd.f32 %v5287, %v5423
    %v5499 = vadd.f32 %v5288, %v5425
    %v5500 = vadd.f32 %v5289, %v5494
    %v5501 = vadd.f32 %v5290, %v5496
    %s5502 = scalar_lea.vmem [#allocation4], 2048
    %v5503 = vld [vmem:[%s5502] sm:$0xff]
    %v5504 = vld [vmem:[%s5502 + $0x8] sm:$0xff]
    %v5505 = vld [vmem:[%s5502 + $0x10] sm:$0xff]
    %v5506 = vld [vmem:[%s5502 + $0x18] sm:$0xff]
    %v5507 = vld [vmem:[%s5502 + $0x20] sm:$0xff]
    %v5508 = vld [vmem:[%s5502 + $0x28] sm:$0xff]
    %v5509 = vld [vmem:[%s5502 + $0x30] sm:$0xff]
    %v5510 = vld [vmem:[%s5502 + $0x38] sm:$0xff]
    %v5511 = vld [vmem:[%s5502 + $0x40] sm:$0xff]
    %v5512 = vld [vmem:[%s5502 + $0x48] sm:$0xff]
    %v5513 = vld [vmem:[%s5502 + $0x50] sm:$0xff]
    %v5514 = vld [vmem:[%s5502 + $0x58] sm:$0xff]
    %v5515 = vld [vmem:[%s5502 + $0x60] sm:$0xff]
    %v5516 = vld [vmem:[%s5502 + $0x68] sm:$0xff]
    %v5517 = vld [vmem:[%s5502 + $0x70] sm:$0xff]
    %v5518 = vld [vmem:[%s5502 + $0x78] sm:$0xff]
    %v5519 = vld [vmem:[%s5502 + $0x80] sm:$0xff]
    %v5520 = vld [vmem:[%s5502 + $0x88] sm:$0xff]
    %v5521 = vld [vmem:[%s5502 + $0x90] sm:$0xff]
    %v5522 = vld [vmem:[%s5502 + $0x98] sm:$0xff]
    %v5523 = vld [vmem:[%s5502 + $0xa0] sm:$0xff]
    %v5524 = vld [vmem:[%s5502 + $0xa8] sm:$0xff]
    %v5525 = vld [vmem:[%s5502 + $0xb0] sm:$0xff]
    %v5526 = vld [vmem:[%s5502 + $0xb8] sm:$0xff]
    %v5527 = vld [vmem:[%s5502 + $0xc0] sm:$0xff]
    %v5528 = vld [vmem:[%s5502 + $0xc8] sm:$0xff]
    %v5529 = vld [vmem:[%s5502 + $0xd0] sm:$0xff]
    %v5530 = vld [vmem:[%s5502 + $0xd8] sm:$0xff]
    %v5531 = vld [vmem:[%s5502 + $0xe0] sm:$0xff]
    %v5532 = vld [vmem:[%s5502 + $0xe8] sm:$0xff]
    %v5533 = vld [vmem:[%s5502 + $0xf0] sm:$0xff]
    %v5534 = vld [vmem:[%s5502 + $0xf8] sm:$0xff]
    %v5535 = vld [vmem:[%s5502 + $0x100] sm:$0xff]
    %v5536 = vld [vmem:[%s5502 + $0x108] sm:$0xff]
    %v5537 = vld [vmem:[%s5502 + $0x110] sm:$0xff]
    %v5538 = vld [vmem:[%s5502 + $0x118] sm:$0xff]
    %v5539 = vld [vmem:[%s5502 + $0x120] sm:$0xff]
    %v5540 = vld [vmem:[%s5502 + $0x128] sm:$0xff]
    %v5541 = vld [vmem:[%s5502 + $0x130] sm:$0xff]
    %v5542 = vld [vmem:[%s5502 + $0x138] sm:$0xff]
    %v5543 = vld [vmem:[%s5502 + $0x140] sm:$0xff]
    %v5544 = vld [vmem:[%s5502 + $0x148] sm:$0xff]
    %v5545 = vld [vmem:[%s5502 + $0x150] sm:$0xff]
    %v5546 = vld [vmem:[%s5502 + $0x158] sm:$0xff]
    %v5547 = vld [vmem:[%s5502 + $0x160] sm:$0xff]
    %v5548 = vld [vmem:[%s5502 + $0x168] sm:$0xff]
    %v5549 = vld [vmem:[%s5502 + $0x170] sm:$0xff]
    %v5550 = vld [vmem:[%s5502 + $0x178] sm:$0xff]
    %v5551 = vld [vmem:[%s5502 + $0x180] sm:$0xff]
    %v5552 = vld [vmem:[%s5502 + $0x188] sm:$0xff]
    %v5553 = vld [vmem:[%s5502 + $0x190] sm:$0xff]
    %v5554 = vld [vmem:[%s5502 + $0x198] sm:$0xff]
    %v5555 = vld [vmem:[%s5502 + $0x1a0] sm:$0xff]
    %v5556 = vld [vmem:[%s5502 + $0x1a8] sm:$0xff]
    %v5557 = vld [vmem:[%s5502 + $0x1b0] sm:$0xff]
    %v5558 = vld [vmem:[%s5502 + $0x1b8] sm:$0xff]
    %v5559 = vld [vmem:[%s5502 + $0x1c0] sm:$0xff]
    %v5560 = vld [vmem:[%s5502 + $0x1c8] sm:$0xff]
    %v5561 = vld [vmem:[%s5502 + $0x1d0] sm:$0xff]
    %v5562 = vld [vmem:[%s5502 + $0x1d8] sm:$0xff]
    %v5563 = vld [vmem:[%s5502 + $0x1e0] sm:$0xff]
    %v5564 = vld [vmem:[%s5502 + $0x1e8] sm:$0xff]
    %v5565 = vld [vmem:[%s5502 + $0x1f0] sm:$0xff]
    %v5566 = vld [vmem:[%s5502 + $0x1f8] sm:$0xff]
    %5567 = vmatprep.subr.mxu0 %v5564
    %5568 = vmatpush1.msra.mxu0 %v5563
    %5569 = vmatprep.subr.mxu0 %v5560
    %5570 = vmatpush1.msra.mxu0 %v5559
    %5571 = vmatprep.subr.mxu0 %v5556
    %5572 = vmatpush1.msra.mxu0 %v5555
    %5573 = vmatprep.subr.mxu0 %v5552
    %5574 = vmatpush1.msra.mxu0 %v5551
    %5575 = vmatprep.subr.mxu0 %v5548
    %5576 = vmatpush1.msra.mxu0 %v5547
    %5577 = vmatprep.subr.mxu0 %v5544
    %5578 = vmatpush1.msra.mxu0 %v5543
    %5579 = vmatprep.subr.mxu0 %v5540
    %5580 = vmatpush1.msra.mxu0 %v5539
    %5581 = vmatprep.subr.mxu0 %v5536
    %5582 = vmatpush1.msra.mxu0 %v5535
    %5583 = vmatprep.subr.mxu0 %v5532
    %5584 = vmatpush1.msra.mxu0 %v5531
    %5585 = vmatprep.subr.mxu0 %v5528
    %5586 = vmatpush1.msra.mxu0 %v5527
    %5587 = vmatprep.subr.mxu0 %v5524
    %5588 = vmatpush1.msra.mxu0 %v5523
    %5589 = vmatprep.subr.mxu0 %v5520
    %5590 = vmatpush1.msra.mxu0 %v5519
    %5591 = vmatprep.subr.mxu0 %v5516
    %5592 = vmatpush1.msra.mxu0 %v5515
    %5593 = vmatprep.subr.mxu0 %v5512
    %5594 = vmatpush1.msra.mxu0 %v5511
    %5595 = vmatprep.subr.mxu0 %v5508
    %5596 = vmatpush1.msra.mxu0 %v5507
    %5597 = vmatprep.subr.mxu0 %v5504
    %5598 = vmatpush1.msra.mxu0 %v5503
    %5599 = vmatprep.subr.mxu0 0.0
    %5600 = vmatpush2.msra.mxu0 0.0
    %5601 = vmatprep.subr.mxu0 0.0
    %5602 = vmatpush2.msra.mxu0 0.0
    %5603 = vmatprep.subr.mxu0 0.0
    %5604 = vmatpush2.msra.mxu0 0.0
    %5605 = vmatprep.subr.mxu0 0.0
    %5606 = vmatpush2.msra.mxu0 0.0
    %5607 = vmatprep.subr.mxu0 0.0
    %5608 = vmatpush2.msra.mxu0 0.0
    %5609 = vmatprep.subr.mxu0 0.0
    %5610 = vmatpush2.msra.mxu0 0.0
    %5611 = vmatprep.subr.mxu0 0.0
    %5612 = vmatpush2.msra.mxu0 0.0
    %5613 = vmatprep.subr.mxu0 0.0
    %5614 = vmatpush2.msra.mxu0 0.0
    %5615 = vmatprep.subr.mxu0 0.0
    %5616 = vmatpush2.msra.mxu0 0.0
    %5617 = vmatprep.subr.mxu0 0.0
    %5618 = vmatpush2.msra.mxu0 0.0
    %5619 = vmatprep.subr.mxu0 0.0
    %5620 = vmatpush2.msra.mxu0 0.0
    %5621 = vmatprep.subr.mxu0 0.0
    %5622 = vmatpush2.msra.mxu0 0.0
    %5623 = vmatprep.subr.mxu0 0.0
    %5624 = vmatpush2.msra.mxu0 0.0
    %5625 = vmatprep.subr.mxu0 0.0
    %5626 = vmatpush2.msra.mxu0 0.0
    %5627 = vmatprep.subr.mxu0 0.0
    %5628 = vmatpush2.msra.mxu0 0.0
    %5629 = vmatprep.subr.mxu0 0.0
    %5630 = vmatpush2.msra.mxu0 0.0
    %5631 = vmatprep.mubr.f32.mxu0 0.0
    %5632 = vmatmul.mubr.f32.gmra.mxu0 %v4621
    %v5633 = vpop.f32.mrf.mxu0
    %v5634 = vadd.f32 0.0, %v5633
    %v5635 = vpop.f32.mrf.mxu0
    %v5636 = vadd.f32 0.0, %v5635
    %5637 = vdwg.mxu0
    %5638 = vmatprep.subr.mxu0 %v5566
    %5639 = vmatpush1.msra.mxu0 %v5565
    %5640 = vmatprep.subr.mxu0 %v5562
    %5641 = vmatpush1.msra.mxu0 %v5561
    %5642 = vmatprep.subr.mxu0 %v5558
    %5643 = vmatpush1.msra.mxu0 %v5557
    %5644 = vmatprep.subr.mxu0 %v5554
    %5645 = vmatpush1.msra.mxu0 %v5553
    %5646 = vmatprep.subr.mxu0 %v5550
    %5647 = vmatpush1.msra.mxu0 %v5549
    %5648 = vmatprep.subr.mxu0 %v5546
    %5649 = vmatpush1.msra.mxu0 %v5545
    %5650 = vmatprep.subr.mxu0 %v5542
    %5651 = vmatpush1.msra.mxu0 %v5541
    %5652 = vmatprep.subr.mxu0 %v5538
    %5653 = vmatpush1.msra.mxu0 %v5537
    %5654 = vmatprep.subr.mxu0 %v5534
    %5655 = vmatpush1.msra.mxu0 %v5533
    %5656 = vmatprep.subr.mxu0 %v5530
    %5657 = vmatpush1.msra.mxu0 %v5529
    %5658 = vmatprep.subr.mxu0 %v5526
    %5659 = vmatpush1.msra.mxu0 %v5525
    %5660 = vmatprep.subr.mxu0 %v5522
    %5661 = vmatpush1.msra.mxu0 %v5521
    %5662 = vmatprep.subr.mxu0 %v5518
    %5663 = vmatpush1.msra.mxu0 %v5517
    %5664 = vmatprep.subr.mxu0 %v5514
    %5665 = vmatpush1.msra.mxu0 %v5513
    %5666 = vmatprep.subr.mxu0 %v5510
    %5667 = vmatpush1.msra.mxu0 %v5509
    %5668 = vmatprep.subr.mxu0 %v5506
    %5669 = vmatpush1.msra.mxu0 %v5505
    %5670 = vmatprep.subr.mxu0 0.0
    %5671 = vmatpush2.msra.mxu0 0.0
    %5672 = vmatprep.subr.mxu0 0.0
    %5673 = vmatpush2.msra.mxu0 0.0
    %5674 = vmatprep.subr.mxu0 0.0
    %5675 = vmatpush2.msra.mxu0 0.0
    %5676 = vmatprep.subr.mxu0 0.0
    %5677 = vmatpush2.msra.mxu0 0.0
    %5678 = vmatprep.subr.mxu0 0.0
    %5679 = vmatpush2.msra.mxu0 0.0
    %5680 = vmatprep.subr.mxu0 0.0
    %5681 = vmatpush2.msra.mxu0 0.0
    %5682 = vmatprep.subr.mxu0 0.0
    %5683 = vmatpush2.msra.mxu0 0.0
    %5684 = vmatprep.subr.mxu0 0.0
    %5685 = vmatpush2.msra.mxu0 0.0
    %5686 = vmatprep.subr.mxu0 0.0
    %5687 = vmatpush2.msra.mxu0 0.0
    %5688 = vmatprep.subr.mxu0 0.0
    %5689 = vmatpush2.msra.mxu0 0.0
    %5690 = vmatprep.subr.mxu0 0.0
    %5691 = vmatpush2.msra.mxu0 0.0
    %5692 = vmatprep.subr.mxu0 0.0
    %5693 = vmatpush2.msra.mxu0 0.0
    %5694 = vmatprep.subr.mxu0 0.0
    %5695 = vmatpush2.msra.mxu0 0.0
    %5696 = vmatprep.subr.mxu0 0.0
    %5697 = vmatpush2.msra.mxu0 0.0
    %5698 = vmatprep.subr.mxu0 0.0
    %5699 = vmatpush2.msra.mxu0 0.0
    %5700 = vmatprep.subr.mxu0 0.0
    %5701 = vmatpush2.msra.mxu0 0.0
    %5702 = vmatprep.mubr.f32.mxu0 0.0
    %5703 = vmatmul.mubr.f32.gmra.mxu0 %v4621
    %v5704 = vpop.f32.mrf.mxu0
    %v5705 = vadd.f32 0.0, %v5704
    %v5706 = vpop.f32.mrf.mxu0
    %v5707 = vadd.f32 0.0, %v5706
    %5708 = vdwg.mxu0
    %v5709 = vadd.f32 %v5498, %v5634
    %v5710 = vadd.f32 %v5499, %v5636
    %v5711 = vadd.f32 %v5500, %v5705
    %v5712 = vadd.f32 %v5501, %v5707
    %s5713 = scalar_lea.vmem [#allocation4], 2560
    %v5714 = vld [vmem:[%s5713] sm:$0xff]
    %v5715 = vld [vmem:[%s5713 + $0x8] sm:$0xff]
    %v5716 = vld [vmem:[%s5713 + $0x10] sm:$0xff]
    %v5717 = vld [vmem:[%s5713 + $0x18] sm:$0xff]
    %v5718 = vld [vmem:[%s5713 + $0x20] sm:$0xff]
    %v5719 = vld [vmem:[%s5713 + $0x28] sm:$0xff]
    %v5720 = vld [vmem:[%s5713 + $0x30] sm:$0xff]
    %v5721 = vld [vmem:[%s5713 + $0x38] sm:$0xff]
    %v5722 = vld [vmem:[%s5713 + $0x40] sm:$0xff]
    %v5723 = vld [vmem:[%s5713 + $0x48] sm:$0xff]
    %v5724 = vld [vmem:[%s5713 + $0x50] sm:$0xff]
    %v5725 = vld [vmem:[%s5713 + $0x58] sm:$0xff]
    %v5726 = vld [vmem:[%s5713 + $0x60] sm:$0xff]
    %v5727 = vld [vmem:[%s5713 + $0x68] sm:$0xff]
    %v5728 = vld [vmem:[%s5713 + $0x70] sm:$0xff]
    %v5729 = vld [vmem:[%s5713 + $0x78] sm:$0xff]
    %v5730 = vld [vmem:[%s5713 + $0x80] sm:$0xff]
    %v5731 = vld [vmem:[%s5713 + $0x88] sm:$0xff]
    %v5732 = vld [vmem:[%s5713 + $0x90] sm:$0xff]
    %v5733 = vld [vmem:[%s5713 + $0x98] sm:$0xff]
    %v5734 = vld [vmem:[%s5713 + $0xa0] sm:$0xff]
    %v5735 = vld [vmem:[%s5713 + $0xa8] sm:$0xff]
    %v5736 = vld [vmem:[%s5713 + $0xb0] sm:$0xff]
    %v5737 = vld [vmem:[%s5713 + $0xb8] sm:$0xff]
    %v5738 = vld [vmem:[%s5713 + $0xc0] sm:$0xff]
    %v5739 = vld [vmem:[%s5713 + $0xc8] sm:$0xff]
    %v5740 = vld [vmem:[%s5713 + $0xd0] sm:$0xff]
    %v5741 = vld [vmem:[%s5713 + $0xd8] sm:$0xff]
    %v5742 = vld [vmem:[%s5713 + $0xe0] sm:$0xff]
    %v5743 = vld [vmem:[%s5713 + $0xe8] sm:$0xff]
    %v5744 = vld [vmem:[%s5713 + $0xf0] sm:$0xff]
    %v5745 = vld [vmem:[%s5713 + $0xf8] sm:$0xff]
    %v5746 = vld [vmem:[%s5713 + $0x100] sm:$0xff]
    %v5747 = vld [vmem:[%s5713 + $0x108] sm:$0xff]
    %v5748 = vld [vmem:[%s5713 + $0x110] sm:$0xff]
    %v5749 = vld [vmem:[%s5713 + $0x118] sm:$0xff]
    %v5750 = vld [vmem:[%s5713 + $0x120] sm:$0xff]
    %v5751 = vld [vmem:[%s5713 + $0x128] sm:$0xff]
    %v5752 = vld [vmem:[%s5713 + $0x130] sm:$0xff]
    %v5753 = vld [vmem:[%s5713 + $0x138] sm:$0xff]
    %v5754 = vld [vmem:[%s5713 + $0x140] sm:$0xff]
    %v5755 = vld [vmem:[%s5713 + $0x148] sm:$0xff]
    %v5756 = vld [vmem:[%s5713 + $0x150] sm:$0xff]
    %v5757 = vld [vmem:[%s5713 + $0x158] sm:$0xff]
    %v5758 = vld [vmem:[%s5713 + $0x160] sm:$0xff]
    %v5759 = vld [vmem:[%s5713 + $0x168] sm:$0xff]
    %v5760 = vld [vmem:[%s5713 + $0x170] sm:$0xff]
    %v5761 = vld [vmem:[%s5713 + $0x178] sm:$0xff]
    %v5762 = vld [vmem:[%s5713 + $0x180] sm:$0xff]
    %v5763 = vld [vmem:[%s5713 + $0x188] sm:$0xff]
    %v5764 = vld [vmem:[%s5713 + $0x190] sm:$0xff]
    %v5765 = vld [vmem:[%s5713 + $0x198] sm:$0xff]
    %v5766 = vld [vmem:[%s5713 + $0x1a0] sm:$0xff]
    %v5767 = vld [vmem:[%s5713 + $0x1a8] sm:$0xff]
    %v5768 = vld [vmem:[%s5713 + $0x1b0] sm:$0xff]
    %v5769 = vld [vmem:[%s5713 + $0x1b8] sm:$0xff]
    %v5770 = vld [vmem:[%s5713 + $0x1c0] sm:$0xff]
    %v5771 = vld [vmem:[%s5713 + $0x1c8] sm:$0xff]
    %v5772 = vld [vmem:[%s5713 + $0x1d0] sm:$0xff]
    %v5773 = vld [vmem:[%s5713 + $0x1d8] sm:$0xff]
    %v5774 = vld [vmem:[%s5713 + $0x1e0] sm:$0xff]
    %v5775 = vld [vmem:[%s5713 + $0x1e8] sm:$0xff]
    %v5776 = vld [vmem:[%s5713 + $0x1f0] sm:$0xff]
    %v5777 = vld [vmem:[%s5713 + $0x1f8] sm:$0xff]
    %5778 = vmatprep.subr.mxu0 %v5775
    %5779 = vmatpush1.msra.mxu0 %v5774
    %5780 = vmatprep.subr.mxu0 %v5771
    %5781 = vmatpush1.msra.mxu0 %v5770
    %5782 = vmatprep.subr.mxu0 %v5767
    %5783 = vmatpush1.msra.mxu0 %v5766
    %5784 = vmatprep.subr.mxu0 %v5763
    %5785 = vmatpush1.msra.mxu0 %v5762
    %5786 = vmatprep.subr.mxu0 %v5759
    %5787 = vmatpush1.msra.mxu0 %v5758
    %5788 = vmatprep.subr.mxu0 %v5755
    %5789 = vmatpush1.msra.mxu0 %v5754
    %5790 = vmatprep.subr.mxu0 %v5751
    %5791 = vmatpush1.msra.mxu0 %v5750
    %5792 = vmatprep.subr.mxu0 %v5747
    %5793 = vmatpush1.msra.mxu0 %v5746
    %5794 = vmatprep.subr.mxu0 %v5743
    %5795 = vmatpush1.msra.mxu0 %v5742
    %5796 = vmatprep.subr.mxu0 %v5739
    %5797 = vmatpush1.msra.mxu0 %v5738
    %5798 = vmatprep.subr.mxu0 %v5735
    %5799 = vmatpush1.msra.mxu0 %v5734
    %5800 = vmatprep.subr.mxu0 %v5731
    %5801 = vmatpush1.msra.mxu0 %v5730
    %5802 = vmatprep.subr.mxu0 %v5727
    %5803 = vmatpush1.msra.mxu0 %v5726
    %5804 = vmatprep.subr.mxu0 %v5723
    %5805 = vmatpush1.msra.mxu0 %v5722
    %5806 = vmatprep.subr.mxu0 %v5719
    %5807 = vmatpush1.msra.mxu0 %v5718
    %5808 = vmatprep.subr.mxu0 %v5715
    %5809 = vmatpush1.msra.mxu0 %v5714
    %5810 = vmatprep.subr.mxu0 0.0
    %5811 = vmatpush2.msra.mxu0 0.0
    %5812 = vmatprep.subr.mxu0 0.0
    %5813 = vmatpush2.msra.mxu0 0.0
    %5814 = vmatprep.subr.mxu0 0.0
    %5815 = vmatpush2.msra.mxu0 0.0
    %5816 = vmatprep.subr.mxu0 0.0
    %5817 = vmatpush2.msra.mxu0 0.0
    %5818 = vmatprep.subr.mxu0 0.0
    %5819 = vmatpush2.msra.mxu0 0.0
    %5820 = vmatprep.subr.mxu0 0.0
    %5821 = vmatpush2.msra.mxu0 0.0
    %5822 = vmatprep.subr.mxu0 0.0
    %5823 = vmatpush2.msra.mxu0 0.0
    %5824 = vmatprep.subr.mxu0 0.0
    %5825 = vmatpush2.msra.mxu0 0.0
    %5826 = vmatprep.subr.mxu0 0.0
    %5827 = vmatpush2.msra.mxu0 0.0
    %5828 = vmatprep.subr.mxu0 0.0
    %5829 = vmatpush2.msra.mxu0 0.0
    %5830 = vmatprep.subr.mxu0 0.0
    %5831 = vmatpush2.msra.mxu0 0.0
    %5832 = vmatprep.subr.mxu0 0.0
    %5833 = vmatpush2.msra.mxu0 0.0
    %5834 = vmatprep.subr.mxu0 0.0
    %5835 = vmatpush2.msra.mxu0 0.0
    %5836 = vmatprep.subr.mxu0 0.0
    %5837 = vmatpush2.msra.mxu0 0.0
    %5838 = vmatprep.subr.mxu0 0.0
    %5839 = vmatpush2.msra.mxu0 0.0
    %5840 = vmatprep.subr.mxu0 0.0
    %5841 = vmatpush2.msra.mxu0 0.0
    %5842 = vmatprep.mubr.f32.mxu0 0.0
    %5843 = vmatmul.mubr.f32.gmra.mxu0 %v4622
    %v5844 = vpop.f32.mrf.mxu0
    %v5845 = vadd.f32 0.0, %v5844
    %v5846 = vpop.f32.mrf.mxu0
    %v5847 = vadd.f32 0.0, %v5846
    %5848 = vdwg.mxu0
    %5849 = vmatprep.subr.mxu0 %v5777
    %5850 = vmatpush1.msra.mxu0 %v5776
    %5851 = vmatprep.subr.mxu0 %v5773
    %5852 = vmatpush1.msra.mxu0 %v5772
    %5853 = vmatprep.subr.mxu0 %v5769
    %5854 = vmatpush1.msra.mxu0 %v5768
    %5855 = vmatprep.subr.mxu0 %v5765
    %5856 = vmatpush1.msra.mxu0 %v5764
    %5857 = vmatprep.subr.mxu0 %v5761
    %5858 = vmatpush1.msra.mxu0 %v5760
    %5859 = vmatprep.subr.mxu0 %v5757
    %5860 = vmatpush1.msra.mxu0 %v5756
    %5861 = vmatprep.subr.mxu0 %v5753
    %5862 = vmatpush1.msra.mxu0 %v5752
    %5863 = vmatprep.subr.mxu0 %v5749
    %5864 = vmatpush1.msra.mxu0 %v5748
    %5865 = vmatprep.subr.mxu0 %v5745
    %5866 = vmatpush1.msra.mxu0 %v5744
    %5867 = vmatprep.subr.mxu0 %v5741
    %5868 = vmatpush1.msra.mxu0 %v5740
    %5869 = vmatprep.subr.mxu0 %v5737
    %5870 = vmatpush1.msra.mxu0 %v5736
    %5871 = vmatprep.subr.mxu0 %v5733
    %5872 = vmatpush1.msra.mxu0 %v5732
    %5873 = vmatprep.subr.mxu0 %v5729
    %5874 = vmatpush1.msra.mxu0 %v5728
    %5875 = vmatprep.subr.mxu0 %v5725
    %5876 = vmatpush1.msra.mxu0 %v5724
    %5877 = vmatprep.subr.mxu0 %v5721
    %5878 = vmatpush1.msra.mxu0 %v5720
    %5879 = vmatprep.subr.mxu0 %v5717
    %5880 = vmatpush1.msra.mxu0 %v5716
    %5881 = vmatprep.subr.mxu0 0.0
    %5882 = vmatpush2.msra.mxu0 0.0
    %5883 = vmatprep.subr.mxu0 0.0
    %5884 = vmatpush2.msra.mxu0 0.0
    %5885 = vmatprep.subr.mxu0 0.0
    %5886 = vmatpush2.msra.mxu0 0.0
    %5887 = vmatprep.subr.mxu0 0.0
    %5888 = vmatpush2.msra.mxu0 0.0
    %5889 = vmatprep.subr.mxu0 0.0
    %5890 = vmatpush2.msra.mxu0 0.0
    %5891 = vmatprep.subr.mxu0 0.0
    %5892 = vmatpush2.msra.mxu0 0.0
    %5893 = vmatprep.subr.mxu0 0.0
    %5894 = vmatpush2.msra.mxu0 0.0
    %5895 = vmatprep.subr.mxu0 0.0
    %5896 = vmatpush2.msra.mxu0 0.0
    %5897 = vmatprep.subr.mxu0 0.0
    %5898 = vmatpush2.msra.mxu0 0.0
    %5899 = vmatprep.subr.mxu0 0.0
    %5900 = vmatpush2.msra.mxu0 0.0
    %5901 = vmatprep.subr.mxu0 0.0
    %5902 = vmatpush2.msra.mxu0 0.0
    %5903 = vmatprep.subr.mxu0 0.0
    %5904 = vmatpush2.msra.mxu0 0.0
    %5905 = vmatprep.subr.mxu0 0.0
    %5906 = vmatpush2.msra.mxu0 0.0
    %5907 = vmatprep.subr.mxu0 0.0
    %5908 = vmatpush2.msra.mxu0 0.0
    %5909 = vmatprep.subr.mxu0 0.0
    %5910 = vmatpush2.msra.mxu0 0.0
    %5911 = vmatprep.subr.mxu0 0.0
    %5912 = vmatpush2.msra.mxu0 0.0
    %5913 = vmatprep.mubr.f32.mxu0 0.0
    %5914 = vmatmul.mubr.f32.gmra.mxu0 %v4622
    %v5915 = vpop.f32.mrf.mxu0
    %v5916 = vadd.f32 0.0, %v5915
    %v5917 = vpop.f32.mrf.mxu0
    %v5918 = vadd.f32 0.0, %v5917
    %5919 = vdwg.mxu0
    %v5920 = vadd.f32 %v5709, %v5845
    %v5921 = vadd.f32 %v5710, %v5847
    %v5922 = vadd.f32 %v5711, %v5916
    %v5923 = vadd.f32 %v5712, %v5918
    %s5924 = scalar_lea.vmem [#allocation4], 3072
    %v5925 = vld [vmem:[%s5924] sm:$0xff]
    %v5926 = vld [vmem:[%s5924 + $0x8] sm:$0xff]
    %v5927 = vld [vmem:[%s5924 + $0x10] sm:$0xff]
    %v5928 = vld [vmem:[%s5924 + $0x18] sm:$0xff]
    %v5929 = vld [vmem:[%s5924 + $0x20] sm:$0xff]
    %v5930 = vld [vmem:[%s5924 + $0x28] sm:$0xff]
    %v5931 = vld [vmem:[%s5924 + $0x30] sm:$0xff]
    %v5932 = vld [vmem:[%s5924 + $0x38] sm:$0xff]
    %v5933 = vld [vmem:[%s5924 + $0x40] sm:$0xff]
    %v5934 = vld [vmem:[%s5924 + $0x48] sm:$0xff]
    %v5935 = vld [vmem:[%s5924 + $0x50] sm:$0xff]
    %v5936 = vld [vmem:[%s5924 + $0x58] sm:$0xff]
    %v5937 = vld [vmem:[%s5924 + $0x60] sm:$0xff]
    %v5938 = vld [vmem:[%s5924 + $0x68] sm:$0xff]
    %v5939 = vld [vmem:[%s5924 + $0x70] sm:$0xff]
    %v5940 = vld [vmem:[%s5924 + $0x78] sm:$0xff]
    %v5941 = vld [vmem:[%s5924 + $0x80] sm:$0xff]
    %v5942 = vld [vmem:[%s5924 + $0x88] sm:$0xff]
    %v5943 = vld [vmem:[%s5924 + $0x90] sm:$0xff]
    %v5944 = vld [vmem:[%s5924 + $0x98] sm:$0xff]
    %v5945 = vld [vmem:[%s5924 + $0xa0] sm:$0xff]
    %v5946 = vld [vmem:[%s5924 + $0xa8] sm:$0xff]
    %v5947 = vld [vmem:[%s5924 + $0xb0] sm:$0xff]
    %v5948 = vld [vmem:[%s5924 + $0xb8] sm:$0xff]
    %v5949 = vld [vmem:[%s5924 + $0xc0] sm:$0xff]
    %v5950 = vld [vmem:[%s5924 + $0xc8] sm:$0xff]
    %v5951 = vld [vmem:[%s5924 + $0xd0] sm:$0xff]
    %v5952 = vld [vmem:[%s5924 + $0xd8] sm:$0xff]
    %v5953 = vld [vmem:[%s5924 + $0xe0] sm:$0xff]
    %v5954 = vld [vmem:[%s5924 + $0xe8] sm:$0xff]
    %v5955 = vld [vmem:[%s5924 + $0xf0] sm:$0xff]
    %v5956 = vld [vmem:[%s5924 + $0xf8] sm:$0xff]
    %v5957 = vld [vmem:[%s5924 + $0x100] sm:$0xff]
    %v5958 = vld [vmem:[%s5924 + $0x108] sm:$0xff]
    %v5959 = vld [vmem:[%s5924 + $0x110] sm:$0xff]
    %v5960 = vld [vmem:[%s5924 + $0x118] sm:$0xff]
    %v5961 = vld [vmem:[%s5924 + $0x120] sm:$0xff]
    %v5962 = vld [vmem:[%s5924 + $0x128] sm:$0xff]
    %v5963 = vld [vmem:[%s5924 + $0x130] sm:$0xff]
    %v5964 = vld [vmem:[%s5924 + $0x138] sm:$0xff]
    %v5965 = vld [vmem:[%s5924 + $0x140] sm:$0xff]
    %v5966 = vld [vmem:[%s5924 + $0x148] sm:$0xff]
    %v5967 = vld [vmem:[%s5924 + $0x150] sm:$0xff]
    %v5968 = vld [vmem:[%s5924 + $0x158] sm:$0xff]
    %v5969 = vld [vmem:[%s5924 + $0x160] sm:$0xff]
    %v5970 = vld [vmem:[%s5924 + $0x168] sm:$0xff]
    %v5971 = vld [vmem:[%s5924 + $0x170] sm:$0xff]
    %v5972 = vld [vmem:[%s5924 + $0x178] sm:$0xff]
    %v5973 = vld [vmem:[%s5924 + $0x180] sm:$0xff]
    %v5974 = vld [vmem:[%s5924 + $0x188] sm:$0xff]
    %v5975 = vld [vmem:[%s5924 + $0x190] sm:$0xff]
    %v5976 = vld [vmem:[%s5924 + $0x198] sm:$0xff]
    %v5977 = vld [vmem:[%s5924 + $0x1a0] sm:$0xff]
    %v5978 = vld [vmem:[%s5924 + $0x1a8] sm:$0xff]
    %v5979 = vld [vmem:[%s5924 + $0x1b0] sm:$0xff]
    %v5980 = vld [vmem:[%s5924 + $0x1b8] sm:$0xff]
    %v5981 = vld [vmem:[%s5924 + $0x1c0] sm:$0xff]
    %v5982 = vld [vmem:[%s5924 + $0x1c8] sm:$0xff]
    %v5983 = vld [vmem:[%s5924 + $0x1d0] sm:$0xff]
    %v5984 = vld [vmem:[%s5924 + $0x1d8] sm:$0xff]
    %v5985 = vld [vmem:[%s5924 + $0x1e0] sm:$0xff]
    %v5986 = vld [vmem:[%s5924 + $0x1e8] sm:$0xff]
    %v5987 = vld [vmem:[%s5924 + $0x1f0] sm:$0xff]
    %v5988 = vld [vmem:[%s5924 + $0x1f8] sm:$0xff]
    %5989 = vmatprep.subr.mxu0 %v5986
    %5990 = vmatpush1.msra.mxu0 %v5985
    %5991 = vmatprep.subr.mxu0 %v5982
    %5992 = vmatpush1.msra.mxu0 %v5981
    %5993 = vmatprep.subr.mxu0 %v5978
    %5994 = vmatpush1.msra.mxu0 %v5977
    %5995 = vmatprep.subr.mxu0 %v5974
    %5996 = vmatpush1.msra.mxu0 %v5973
    %5997 = vmatprep.subr.mxu0 %v5970
    %5998 = vmatpush1.msra.mxu0 %v5969
    %5999 = vmatprep.subr.mxu0 %v5966
    %6000 = vmatpush1.msra.mxu0 %v5965
    %6001 = vmatprep.subr.mxu0 %v5962
    %6002 = vmatpush1.msra.mxu0 %v5961
    %6003 = vmatprep.subr.mxu0 %v5958
    %6004 = vmatpush1.msra.mxu0 %v5957
    %6005 = vmatprep.subr.mxu0 %v5954
    %6006 = vmatpush1.msra.mxu0 %v5953
    %6007 = vmatprep.subr.mxu0 %v5950
    %6008 = vmatpush1.msra.mxu0 %v5949
    %6009 = vmatprep.subr.mxu0 %v5946
    %6010 = vmatpush1.msra.mxu0 %v5945
    %6011 = vmatprep.subr.mxu0 %v5942
    %6012 = vmatpush1.msra.mxu0 %v5941
    %6013 = vmatprep.subr.mxu0 %v5938
    %6014 = vmatpush1.msra.mxu0 %v5937
    %6015 = vmatprep.subr.mxu0 %v5934
    %6016 = vmatpush1.msra.mxu0 %v5933
    %6017 = vmatprep.subr.mxu0 %v5930
    %6018 = vmatpush1.msra.mxu0 %v5929
    %6019 = vmatprep.subr.mxu0 %v5926
    %6020 = vmatpush1.msra.mxu0 %v5925
    %6021 = vmatprep.subr.mxu0 0.0
    %6022 = vmatpush2.msra.mxu0 0.0
    %6023 = vmatprep.subr.mxu0 0.0
    %6024 = vmatpush2.msra.mxu0 0.0
    %6025 = vmatprep.subr.mxu0 0.0
    %6026 = vmatpush2.msra.mxu0 0.0
    %6027 = vmatprep.subr.mxu0 0.0
    %6028 = vmatpush2.msra.mxu0 0.0
    %6029 = vmatprep.subr.mxu0 0.0
    %6030 = vmatpush2.msra.mxu0 0.0
    %6031 = vmatprep.subr.mxu0 0.0
    %6032 = vmatpush2.msra.mxu0 0.0
    %6033 = vmatprep.subr.mxu0 0.0
    %6034 = vmatpush2.msra.mxu0 0.0
    %6035 = vmatprep.subr.mxu0 0.0
    %6036 = vmatpush2.msra.mxu0 0.0
    %6037 = vmatprep.subr.mxu0 0.0
    %6038 = vmatpush2.msra.mxu0 0.0
    %6039 = vmatprep.subr.mxu0 0.0
    %6040 = vmatpush2.msra.mxu0 0.0
    %6041 = vmatprep.subr.mxu0 0.0
    %6042 = vmatpush2.msra.mxu0 0.0
    %6043 = vmatprep.subr.mxu0 0.0
    %6044 = vmatpush2.msra.mxu0 0.0
    %6045 = vmatprep.subr.mxu0 0.0
    %6046 = vmatpush2.msra.mxu0 0.0
    %6047 = vmatprep.subr.mxu0 0.0
    %6048 = vmatpush2.msra.mxu0 0.0
    %6049 = vmatprep.subr.mxu0 0.0
    %6050 = vmatpush2.msra.mxu0 0.0
    %6051 = vmatprep.subr.mxu0 0.0
    %6052 = vmatpush2.msra.mxu0 0.0
    %6053 = vmatprep.mubr.f32.mxu0 0.0
    %6054 = vmatmul.mubr.f32.gmra.mxu0 %v4623
    %v6055 = vpop.f32.mrf.mxu0
    %v6056 = vadd.f32 0.0, %v6055
    %v6057 = vpop.f32.mrf.mxu0
    %v6058 = vadd.f32 0.0, %v6057
    %6059 = vdwg.mxu0
    %6060 = vmatprep.subr.mxu0 %v5988
    %6061 = vmatpush1.msra.mxu0 %v5987
    %6062 = vmatprep.subr.mxu0 %v5984
    %6063 = vmatpush1.msra.mxu0 %v5983
    %6064 = vmatprep.subr.mxu0 %v5980
    %6065 = vmatpush1.msra.mxu0 %v5979
    %6066 = vmatprep.subr.mxu0 %v5976
    %6067 = vmatpush1.msra.mxu0 %v5975
    %6068 = vmatprep.subr.mxu0 %v5972
    %6069 = vmatpush1.msra.mxu0 %v5971
    %6070 = vmatprep.subr.mxu0 %v5968
    %6071 = vmatpush1.msra.mxu0 %v5967
    %6072 = vmatprep.subr.mxu0 %v5964
    %6073 = vmatpush1.msra.mxu0 %v5963
    %6074 = vmatprep.subr.mxu0 %v5960
    %6075 = vmatpush1.msra.mxu0 %v5959
    %6076 = vmatprep.subr.mxu0 %v5956
    %6077 = vmatpush1.msra.mxu0 %v5955
    %6078 = vmatprep.subr.mxu0 %v5952
    %6079 = vmatpush1.msra.mxu0 %v5951
    %6080 = vmatprep.subr.mxu0 %v5948
    %6081 = vmatpush1.msra.mxu0 %v5947
    %6082 = vmatprep.subr.mxu0 %v5944
    %6083 = vmatpush1.msra.mxu0 %v5943
    %6084 = vmatprep.subr.mxu0 %v5940
    %6085 = vmatpush1.msra.mxu0 %v5939
    %6086 = vmatprep.subr.mxu0 %v5936
    %6087 = vmatpush1.msra.mxu0 %v5935
    %6088 = vmatprep.subr.mxu0 %v5932
    %6089 = vmatpush1.msra.mxu0 %v5931
    %6090 = vmatprep.subr.mxu0 %v5928
    %6091 = vmatpush1.msra.mxu0 %v5927
    %6092 = vmatprep.subr.mxu0 0.0
    %6093 = vmatpush2.msra.mxu0 0.0
    %6094 = vmatprep.subr.mxu0 0.0
    %6095 = vmatpush2.msra.mxu0 0.0
    %6096 = vmatprep.subr.mxu0 0.0
    %6097 = vmatpush2.msra.mxu0 0.0
    %6098 = vmatprep.subr.mxu0 0.0
    %6099 = vmatpush2.msra.mxu0 0.0
    %6100 = vmatprep.subr.mxu0 0.0
    %6101 = vmatpush2.msra.mxu0 0.0
    %6102 = vmatprep.subr.mxu0 0.0
    %6103 = vmatpush2.msra.mxu0 0.0
    %6104 = vmatprep.subr.mxu0 0.0
    %6105 = vmatpush2.msra.mxu0 0.0
    %6106 = vmatprep.subr.mxu0 0.0
    %6107 = vmatpush2.msra.mxu0 0.0
    %6108 = vmatprep.subr.mxu0 0.0
    %6109 = vmatpush2.msra.mxu0 0.0
    %6110 = vmatprep.subr.mxu0 0.0
    %6111 = vmatpush2.msra.mxu0 0.0
    %6112 = vmatprep.subr.mxu0 0.0
    %6113 = vmatpush2.msra.mxu0 0.0
    %6114 = vmatprep.subr.mxu0 0.0
    %6115 = vmatpush2.msra.mxu0 0.0
    %6116 = vmatprep.subr.mxu0 0.0
    %6117 = vmatpush2.msra.mxu0 0.0
    %6118 = vmatprep.subr.mxu0 0.0
    %6119 = vmatpush2.msra.mxu0 0.0
    %6120 = vmatprep.subr.mxu0 0.0
    %6121 = vmatpush2.msra.mxu0 0.0
    %6122 = vmatprep.subr.mxu0 0.0
    %6123 = vmatpush2.msra.mxu0 0.0
    %6124 = vmatprep.mubr.f32.mxu0 0.0
    %6125 = vmatmul.mubr.f32.gmra.mxu0 %v4623
    %v6126 = vpop.f32.mrf.mxu0
    %v6127 = vadd.f32 0.0, %v6126
    %v6128 = vpop.f32.mrf.mxu0
    %v6129 = vadd.f32 0.0, %v6128
    %6130 = vdwg.mxu0
    %v6131 = vadd.f32 %v5920, %v6056
    %v6132 = vadd.f32 %v5921, %v6058
    %v6133 = vadd.f32 %v5922, %v6127
    %v6134 = vadd.f32 %v5923, %v6129
    %s6135 = scalar_lea.vmem [#allocation4], 3584
    %v6136 = vld [vmem:[%s6135] sm:$0xff]
    %v6137 = vld [vmem:[%s6135 + $0x8] sm:$0xff]
    %v6138 = vld [vmem:[%s6135 + $0x10] sm:$0xff]
    %v6139 = vld [vmem:[%s6135 + $0x18] sm:$0xff]
    %v6140 = vld [vmem:[%s6135 + $0x20] sm:$0xff]
    %v6141 = vld [vmem:[%s6135 + $0x28] sm:$0xff]
    %v6142 = vld [vmem:[%s6135 + $0x30] sm:$0xff]
    %v6143 = vld [vmem:[%s6135 + $0x38] sm:$0xff]
    %v6144 = vld [vmem:[%s6135 + $0x40] sm:$0xff]
    %v6145 = vld [vmem:[%s6135 + $0x48] sm:$0xff]
    %v6146 = vld [vmem:[%s6135 + $0x50] sm:$0xff]
    %v6147 = vld [vmem:[%s6135 + $0x58] sm:$0xff]
    %v6148 = vld [vmem:[%s6135 + $0x60] sm:$0xff]
    %v6149 = vld [vmem:[%s6135 + $0x68] sm:$0xff]
    %v6150 = vld [vmem:[%s6135 + $0x70] sm:$0xff]
    %v6151 = vld [vmem:[%s6135 + $0x78] sm:$0xff]
    %v6152 = vld [vmem:[%s6135 + $0x80] sm:$0xff]
    %v6153 = vld [vmem:[%s6135 + $0x88] sm:$0xff]
    %v6154 = vld [vmem:[%s6135 + $0x90] sm:$0xff]
    %v6155 = vld [vmem:[%s6135 + $0x98] sm:$0xff]
    %v6156 = vld [vmem:[%s6135 + $0xa0] sm:$0xff]
    %v6157 = vld [vmem:[%s6135 + $0xa8] sm:$0xff]
    %v6158 = vld [vmem:[%s6135 + $0xb0] sm:$0xff]
    %v6159 = vld [vmem:[%s6135 + $0xb8] sm:$0xff]
    %v6160 = vld [vmem:[%s6135 + $0xc0] sm:$0xff]
    %v6161 = vld [vmem:[%s6135 + $0xc8] sm:$0xff]
    %v6162 = vld [vmem:[%s6135 + $0xd0] sm:$0xff]
    %v6163 = vld [vmem:[%s6135 + $0xd8] sm:$0xff]
    %v6164 = vld [vmem:[%s6135 + $0xe0] sm:$0xff]
    %v6165 = vld [vmem:[%s6135 + $0xe8] sm:$0xff]
    %v6166 = vld [vmem:[%s6135 + $0xf0] sm:$0xff]
    %v6167 = vld [vmem:[%s6135 + $0xf8] sm:$0xff]
    %v6168 = vld [vmem:[%s6135 + $0x100] sm:$0xff]
    %v6169 = vld [vmem:[%s6135 + $0x108] sm:$0xff]
    %v6170 = vld [vmem:[%s6135 + $0x110] sm:$0xff]
    %v6171 = vld [vmem:[%s6135 + $0x118] sm:$0xff]
    %v6172 = vld [vmem:[%s6135 + $0x120] sm:$0xff]
    %v6173 = vld [vmem:[%s6135 + $0x128] sm:$0xff]
    %v6174 = vld [vmem:[%s6135 + $0x130] sm:$0xff]
    %v6175 = vld [vmem:[%s6135 + $0x138] sm:$0xff]
    %v6176 = vld [vmem:[%s6135 + $0x140] sm:$0xff]
    %v6177 = vld [vmem:[%s6135 + $0x148] sm:$0xff]
    %v6178 = vld [vmem:[%s6135 + $0x150] sm:$0xff]
    %v6179 = vld [vmem:[%s6135 + $0x158] sm:$0xff]
    %v6180 = vld [vmem:[%s6135 + $0x160] sm:$0xff]
    %v6181 = vld [vmem:[%s6135 + $0x168] sm:$0xff]
    %v6182 = vld [vmem:[%s6135 + $0x170] sm:$0xff]
    %v6183 = vld [vmem:[%s6135 + $0x178] sm:$0xff]
    %v6184 = vld [vmem:[%s6135 + $0x180] sm:$0xff]
    %v6185 = vld [vmem:[%s6135 + $0x188] sm:$0xff]
    %v6186 = vld [vmem:[%s6135 + $0x190] sm:$0xff]
    %v6187 = vld [vmem:[%s6135 + $0x198] sm:$0xff]
    %v6188 = vld [vmem:[%s6135 + $0x1a0] sm:$0xff]
    %v6189 = vld [vmem:[%s6135 + $0x1a8] sm:$0xff]
    %v6190 = vld [vmem:[%s6135 + $0x1b0] sm:$0xff]
    %v6191 = vld [vmem:[%s6135 + $0x1b8] sm:$0xff]
    %v6192 = vld [vmem:[%s6135 + $0x1c0] sm:$0xff]
    %v6193 = vld [vmem:[%s6135 + $0x1c8] sm:$0xff]
    %v6194 = vld [vmem:[%s6135 + $0x1d0] sm:$0xff]
    %v6195 = vld [vmem:[%s6135 + $0x1d8] sm:$0xff]
    %v6196 = vld [vmem:[%s6135 + $0x1e0] sm:$0xff]
    %v6197 = vld [vmem:[%s6135 + $0x1e8] sm:$0xff]
    %v6198 = vld [vmem:[%s6135 + $0x1f0] sm:$0xff]
    %v6199 = vld [vmem:[%s6135 + $0x1f8] sm:$0xff]
    %6200 = vmatprep.subr.mxu0 %v6197
    %6201 = vmatpush1.msra.mxu0 %v6196
    %6202 = vmatprep.subr.mxu0 %v6193
    %6203 = vmatpush1.msra.mxu0 %v6192
    %6204 = vmatprep.subr.mxu0 %v6189
    %6205 = vmatpush1.msra.mxu0 %v6188
    %6206 = vmatprep.subr.mxu0 %v6185
    %6207 = vmatpush1.msra.mxu0 %v6184
    %6208 = vmatprep.subr.mxu0 %v6181
    %6209 = vmatpush1.msra.mxu0 %v6180
    %6210 = vmatprep.subr.mxu0 %v6177
    %6211 = vmatpush1.msra.mxu0 %v6176
    %6212 = vmatprep.subr.mxu0 %v6173
    %6213 = vmatpush1.msra.mxu0 %v6172
    %6214 = vmatprep.subr.mxu0 %v6169
    %6215 = vmatpush1.msra.mxu0 %v6168
    %6216 = vmatprep.subr.mxu0 %v6165
    %6217 = vmatpush1.msra.mxu0 %v6164
    %6218 = vmatprep.subr.mxu0 %v6161
    %6219 = vmatpush1.msra.mxu0 %v6160
    %6220 = vmatprep.subr.mxu0 %v6157
    %6221 = vmatpush1.msra.mxu0 %v6156
    %6222 = vmatprep.subr.mxu0 %v6153
    %6223 = vmatpush1.msra.mxu0 %v6152
    %6224 = vmatprep.subr.mxu0 %v6149
    %6225 = vmatpush1.msra.mxu0 %v6148
    %6226 = vmatprep.subr.mxu0 %v6145
    %6227 = vmatpush1.msra.mxu0 %v6144
    %6228 = vmatprep.subr.mxu0 %v6141
    %6229 = vmatpush1.msra.mxu0 %v6140
    %6230 = vmatprep.subr.mxu0 %v6137
    %6231 = vmatpush1.msra.mxu0 %v6136
    %6232 = vmatprep.subr.mxu0 0.0
    %6233 = vmatpush2.msra.mxu0 0.0
    %6234 = vmatprep.subr.mxu0 0.0
    %6235 = vmatpush2.msra.mxu0 0.0
    %6236 = vmatprep.subr.mxu0 0.0
    %6237 = vmatpush2.msra.mxu0 0.0
    %6238 = vmatprep.subr.mxu0 0.0
    %6239 = vmatpush2.msra.mxu0 0.0
    %6240 = vmatprep.subr.mxu0 0.0
    %6241 = vmatpush2.msra.mxu0 0.0
    %6242 = vmatprep.subr.mxu0 0.0
    %6243 = vmatpush2.msra.mxu0 0.0
    %6244 = vmatprep.subr.mxu0 0.0
    %6245 = vmatpush2.msra.mxu0 0.0
    %6246 = vmatprep.subr.mxu0 0.0
    %6247 = vmatpush2.msra.mxu0 0.0
    %6248 = vmatprep.subr.mxu0 0.0
    %6249 = vmatpush2.msra.mxu0 0.0
    %6250 = vmatprep.subr.mxu0 0.0
    %6251 = vmatpush2.msra.mxu0 0.0
    %6252 = vmatprep.subr.mxu0 0.0
    %6253 = vmatpush2.msra.mxu0 0.0
    %6254 = vmatprep.subr.mxu0 0.0
    %6255 = vmatpush2.msra.mxu0 0.0
    %6256 = vmatprep.subr.mxu0 0.0
    %6257 = vmatpush2.msra.mxu0 0.0
    %6258 = vmatprep.subr.mxu0 0.0
    %6259 = vmatpush2.msra.mxu0 0.0
    %6260 = vmatprep.subr.mxu0 0.0
    %6261 = vmatpush2.msra.mxu0 0.0
    %6262 = vmatprep.subr.mxu0 0.0
    %6263 = vmatpush2.msra.mxu0 0.0
    %6264 = vmatprep.mubr.f32.mxu0 0.0
    %6265 = vmatmul.mubr.f32.gmra.mxu0 %v4624
    %v6266 = vpop.f32.mrf.mxu0
    %v6267 = vadd.f32 0.0, %v6266
    %v6268 = vpop.f32.mrf.mxu0
    %v6269 = vadd.f32 0.0, %v6268
    %6270 = vdwg.mxu0
    %6271 = vmatprep.subr.mxu0 %v6199
    %6272 = vmatpush1.msra.mxu0 %v6198
    %6273 = vmatprep.subr.mxu0 %v6195
    %6274 = vmatpush1.msra.mxu0 %v6194
    %6275 = vmatprep.subr.mxu0 %v6191
    %6276 = vmatpush1.msra.mxu0 %v6190
    %6277 = vmatprep.subr.mxu0 %v6187
    %6278 = vmatpush1.msra.mxu0 %v6186
    %6279 = vmatprep.subr.mxu0 %v6183
    %6280 = vmatpush1.msra.mxu0 %v6182
    %6281 = vmatprep.subr.mxu0 %v6179
    %6282 = vmatpush1.msra.mxu0 %v6178
    %6283 = vmatprep.subr.mxu0 %v6175
    %6284 = vmatpush1.msra.mxu0 %v6174
    %6285 = vmatprep.subr.mxu0 %v6171
    %6286 = vmatpush1.msra.mxu0 %v6170
    %6287 = vmatprep.subr.mxu0 %v6167
    %6288 = vmatpush1.msra.mxu0 %v6166
    %6289 = vmatprep.subr.mxu0 %v6163
    %6290 = vmatpush1.msra.mxu0 %v6162
    %6291 = vmatprep.subr.mxu0 %v6159
    %6292 = vmatpush1.msra.mxu0 %v6158
    %6293 = vmatprep.subr.mxu0 %v6155
    %6294 = vmatpush1.msra.mxu0 %v6154
    %6295 = vmatprep.subr.mxu0 %v6151
    %6296 = vmatpush1.msra.mxu0 %v6150
    %6297 = vmatprep.subr.mxu0 %v6147
    %6298 = vmatpush1.msra.mxu0 %v6146
    %6299 = vmatprep.subr.mxu0 %v6143
    %6300 = vmatpush1.msra.mxu0 %v6142
    %6301 = vmatprep.subr.mxu0 %v6139
    %6302 = vmatpush1.msra.mxu0 %v6138
    %6303 = vmatprep.subr.mxu0 0.0
    %6304 = vmatpush2.msra.mxu0 0.0
    %6305 = vmatprep.subr.mxu0 0.0
    %6306 = vmatpush2.msra.mxu0 0.0
    %6307 = vmatprep.subr.mxu0 0.0
    %6308 = vmatpush2.msra.mxu0 0.0
    %6309 = vmatprep.subr.mxu0 0.0
    %6310 = vmatpush2.msra.mxu0 0.0
    %6311 = vmatprep.subr.mxu0 0.0
    %6312 = vmatpush2.msra.mxu0 0.0
    %6313 = vmatprep.subr.mxu0 0.0
    %6314 = vmatpush2.msra.mxu0 0.0
    %6315 = vmatprep.subr.mxu0 0.0
    %6316 = vmatpush2.msra.mxu0 0.0
    %6317 = vmatprep.subr.mxu0 0.0
    %6318 = vmatpush2.msra.mxu0 0.0
    %6319 = vmatprep.subr.mxu0 0.0
    %6320 = vmatpush2.msra.mxu0 0.0
    %6321 = vmatprep.subr.mxu0 0.0
    %6322 = vmatpush2.msra.mxu0 0.0
    %6323 = vmatprep.subr.mxu0 0.0
    %6324 = vmatpush2.msra.mxu0 0.0
    %6325 = vmatprep.subr.mxu0 0.0
    %6326 = vmatpush2.msra.mxu0 0.0
    %6327 = vmatprep.subr.mxu0 0.0
    %6328 = vmatpush2.msra.mxu0 0.0
    %6329 = vmatprep.subr.mxu0 0.0
    %6330 = vmatpush2.msra.mxu0 0.0
    %6331 = vmatprep.subr.mxu0 0.0
    %6332 = vmatpush2.msra.mxu0 0.0
    %6333 = vmatprep.subr.mxu0 0.0
    %6334 = vmatpush2.msra.mxu0 0.0
    %6335 = vmatprep.mubr.f32.mxu0 0.0
    %6336 = vmatmul.mubr.f32.gmra.mxu0 %v4624
    %v6337 = vpop.f32.mrf.mxu0
    %v6338 = vadd.f32 0.0, %v6337
    %v6339 = vpop.f32.mrf.mxu0
    %v6340 = vadd.f32 0.0, %v6339
    %6341 = vdwg.mxu0
    %v6342 = vadd.f32 %v6131, %v6267
    %v6343 = vadd.f32 %v6132, %v6269
    %v6344 = vadd.f32 %v6133, %v6338
    %v6345 = vadd.f32 %v6134, %v6340
    %s6346 = scalar_lea.vmem [#allocation4], 4096
    %v6347 = vld [vmem:[%s6346] sm:$0xff]
    %v6348 = vld [vmem:[%s6346 + $0x8] sm:$0xff]
    %v6349 = vld [vmem:[%s6346 + $0x10] sm:$0xff]
    %v6350 = vld [vmem:[%s6346 + $0x18] sm:$0xff]
    %v6351 = vld [vmem:[%s6346 + $0x20] sm:$0xff]
    %v6352 = vld [vmem:[%s6346 + $0x28] sm:$0xff]
    %v6353 = vld [vmem:[%s6346 + $0x30] sm:$0xff]
    %v6354 = vld [vmem:[%s6346 + $0x38] sm:$0xff]
    %v6355 = vld [vmem:[%s6346 + $0x40] sm:$0xff]
    %v6356 = vld [vmem:[%s6346 + $0x48] sm:$0xff]
    %v6357 = vld [vmem:[%s6346 + $0x50] sm:$0xff]
    %v6358 = vld [vmem:[%s6346 + $0x58] sm:$0xff]
    %v6359 = vld [vmem:[%s6346 + $0x60] sm:$0xff]
    %v6360 = vld [vmem:[%s6346 + $0x68] sm:$0xff]
    %v6361 = vld [vmem:[%s6346 + $0x70] sm:$0xff]
    %v6362 = vld [vmem:[%s6346 + $0x78] sm:$0xff]
    %v6363 = vld [vmem:[%s6346 + $0x80] sm:$0xff]
    %v6364 = vld [vmem:[%s6346 + $0x88] sm:$0xff]
    %v6365 = vld [vmem:[%s6346 + $0x90] sm:$0xff]
    %v6366 = vld [vmem:[%s6346 + $0x98] sm:$0xff]
    %v6367 = vld [vmem:[%s6346 + $0xa0] sm:$0xff]
    %v6368 = vld [vmem:[%s6346 + $0xa8] sm:$0xff]
    %v6369 = vld [vmem:[%s6346 + $0xb0] sm:$0xff]
    %v6370 = vld [vmem:[%s6346 + $0xb8] sm:$0xff]
    %v6371 = vld [vmem:[%s6346 + $0xc0] sm:$0xff]
    %v6372 = vld [vmem:[%s6346 + $0xc8] sm:$0xff]
    %v6373 = vld [vmem:[%s6346 + $0xd0] sm:$0xff]
    %v6374 = vld [vmem:[%s6346 + $0xd8] sm:$0xff]
    %v6375 = vld [vmem:[%s6346 + $0xe0] sm:$0xff]
    %v6376 = vld [vmem:[%s6346 + $0xe8] sm:$0xff]
    %v6377 = vld [vmem:[%s6346 + $0xf0] sm:$0xff]
    %v6378 = vld [vmem:[%s6346 + $0xf8] sm:$0xff]
    %v6379 = vld [vmem:[%s6346 + $0x100] sm:$0xff]
    %v6380 = vld [vmem:[%s6346 + $0x108] sm:$0xff]
    %v6381 = vld [vmem:[%s6346 + $0x110] sm:$0xff]
    %v6382 = vld [vmem:[%s6346 + $0x118] sm:$0xff]
    %v6383 = vld [vmem:[%s6346 + $0x120] sm:$0xff]
    %v6384 = vld [vmem:[%s6346 + $0x128] sm:$0xff]
    %v6385 = vld [vmem:[%s6346 + $0x130] sm:$0xff]
    %v6386 = vld [vmem:[%s6346 + $0x138] sm:$0xff]
    %v6387 = vld [vmem:[%s6346 + $0x140] sm:$0xff]
    %v6388 = vld [vmem:[%s6346 + $0x148] sm:$0xff]
    %v6389 = vld [vmem:[%s6346 + $0x150] sm:$0xff]
    %v6390 = vld [vmem:[%s6346 + $0x158] sm:$0xff]
    %v6391 = vld [vmem:[%s6346 + $0x160] sm:$0xff]
    %v6392 = vld [vmem:[%s6346 + $0x168] sm:$0xff]
    %v6393 = vld [vmem:[%s6346 + $0x170] sm:$0xff]
    %v6394 = vld [vmem:[%s6346 + $0x178] sm:$0xff]
    %v6395 = vld [vmem:[%s6346 + $0x180] sm:$0xff]
    %v6396 = vld [vmem:[%s6346 + $0x188] sm:$0xff]
    %v6397 = vld [vmem:[%s6346 + $0x190] sm:$0xff]
    %v6398 = vld [vmem:[%s6346 + $0x198] sm:$0xff]
    %v6399 = vld [vmem:[%s6346 + $0x1a0] sm:$0xff]
    %v6400 = vld [vmem:[%s6346 + $0x1a8] sm:$0xff]
    %v6401 = vld [vmem:[%s6346 + $0x1b0] sm:$0xff]
    %v6402 = vld [vmem:[%s6346 + $0x1b8] sm:$0xff]
    %v6403 = vld [vmem:[%s6346 + $0x1c0] sm:$0xff]
    %v6404 = vld [vmem:[%s6346 + $0x1c8] sm:$0xff]
    %v6405 = vld [vmem:[%s6346 + $0x1d0] sm:$0xff]
    %v6406 = vld [vmem:[%s6346 + $0x1d8] sm:$0xff]
    %v6407 = vld [vmem:[%s6346 + $0x1e0] sm:$0xff]
    %v6408 = vld [vmem:[%s6346 + $0x1e8] sm:$0xff]
    %v6409 = vld [vmem:[%s6346 + $0x1f0] sm:$0xff]
    %v6410 = vld [vmem:[%s6346 + $0x1f8] sm:$0xff]
    %6411 = vmatprep.subr.mxu0 %v6408
    %6412 = vmatpush1.msra.mxu0 %v6407
    %6413 = vmatprep.subr.mxu0 %v6404
    %6414 = vmatpush1.msra.mxu0 %v6403
    %6415 = vmatprep.subr.mxu0 %v6400
    %6416 = vmatpush1.msra.mxu0 %v6399
    %6417 = vmatprep.subr.mxu0 %v6396
    %6418 = vmatpush1.msra.mxu0 %v6395
    %6419 = vmatprep.subr.mxu0 %v6392
    %6420 = vmatpush1.msra.mxu0 %v6391
    %6421 = vmatprep.subr.mxu0 %v6388
    %6422 = vmatpush1.msra.mxu0 %v6387
    %6423 = vmatprep.subr.mxu0 %v6384
    %6424 = vmatpush1.msra.mxu0 %v6383
    %6425 = vmatprep.subr.mxu0 %v6380
    %6426 = vmatpush1.msra.mxu0 %v6379
    %6427 = vmatprep.subr.mxu0 %v6376
    %6428 = vmatpush1.msra.mxu0 %v6375
    %6429 = vmatprep.subr.mxu0 %v6372
    %6430 = vmatpush1.msra.mxu0 %v6371
    %6431 = vmatprep.subr.mxu0 %v6368
    %6432 = vmatpush1.msra.mxu0 %v6367
    %6433 = vmatprep.subr.mxu0 %v6364
    %6434 = vmatpush1.msra.mxu0 %v6363
    %6435 = vmatprep.subr.mxu0 %v6360
    %6436 = vmatpush1.msra.mxu0 %v6359
    %6437 = vmatprep.subr.mxu0 %v6356
    %6438 = vmatpush1.msra.mxu0 %v6355
    %6439 = vmatprep.subr.mxu0 %v6352
    %6440 = vmatpush1.msra.mxu0 %v6351
    %6441 = vmatprep.subr.mxu0 %v6348
    %6442 = vmatpush1.msra.mxu0 %v6347
    %6443 = vmatprep.subr.mxu0 0.0
    %6444 = vmatpush2.msra.mxu0 0.0
    %6445 = vmatprep.subr.mxu0 0.0
    %6446 = vmatpush2.msra.mxu0 0.0
    %6447 = vmatprep.subr.mxu0 0.0
    %6448 = vmatpush2.msra.mxu0 0.0
    %6449 = vmatprep.subr.mxu0 0.0
    %6450 = vmatpush2.msra.mxu0 0.0
    %6451 = vmatprep.subr.mxu0 0.0
    %6452 = vmatpush2.msra.mxu0 0.0
    %6453 = vmatprep.subr.mxu0 0.0
    %6454 = vmatpush2.msra.mxu0 0.0
    %6455 = vmatprep.subr.mxu0 0.0
    %6456 = vmatpush2.msra.mxu0 0.0
    %6457 = vmatprep.subr.mxu0 0.0
    %6458 = vmatpush2.msra.mxu0 0.0
    %6459 = vmatprep.subr.mxu0 0.0
    %6460 = vmatpush2.msra.mxu0 0.0
    %6461 = vmatprep.subr.mxu0 0.0
    %6462 = vmatpush2.msra.mxu0 0.0
    %6463 = vmatprep.subr.mxu0 0.0
    %6464 = vmatpush2.msra.mxu0 0.0
    %6465 = vmatprep.subr.mxu0 0.0
    %6466 = vmatpush2.msra.mxu0 0.0
    %6467 = vmatprep.subr.mxu0 0.0
    %6468 = vmatpush2.msra.mxu0 0.0
    %6469 = vmatprep.subr.mxu0 0.0
    %6470 = vmatpush2.msra.mxu0 0.0
    %6471 = vmatprep.subr.mxu0 0.0
    %6472 = vmatpush2.msra.mxu0 0.0
    %6473 = vmatprep.subr.mxu0 0.0
    %6474 = vmatpush2.msra.mxu0 0.0
    %6475 = vmatprep.mubr.f32.mxu0 0.0
    %6476 = vmatmul.mubr.f32.gmra.mxu0 %v4625
    %v6477 = vpop.f32.mrf.mxu0
    %v6478 = vadd.f32 0.0, %v6477
    %v6479 = vpop.f32.mrf.mxu0
    %v6480 = vadd.f32 0.0, %v6479
    %6481 = vdwg.mxu0
    %6482 = vmatprep.subr.mxu0 %v6410
    %6483 = vmatpush1.msra.mxu0 %v6409
    %6484 = vmatprep.subr.mxu0 %v6406
    %6485 = vmatpush1.msra.mxu0 %v6405
    %6486 = vmatprep.subr.mxu0 %v6402
    %6487 = vmatpush1.msra.mxu0 %v6401
    %6488 = vmatprep.subr.mxu0 %v6398
    %6489 = vmatpush1.msra.mxu0 %v6397
    %6490 = vmatprep.subr.mxu0 %v6394
    %6491 = vmatpush1.msra.mxu0 %v6393
    %6492 = vmatprep.subr.mxu0 %v6390
    %6493 = vmatpush1.msra.mxu0 %v6389
    %6494 = vmatprep.subr.mxu0 %v6386
    %6495 = vmatpush1.msra.mxu0 %v6385
    %6496 = vmatprep.subr.mxu0 %v6382
    %6497 = vmatpush1.msra.mxu0 %v6381
    %6498 = vmatprep.subr.mxu0 %v6378
    %6499 = vmatpush1.msra.mxu0 %v6377
    %6500 = vmatprep.subr.mxu0 %v6374
    %6501 = vmatpush1.msra.mxu0 %v6373
    %6502 = vmatprep.subr.mxu0 %v6370
    %6503 = vmatpush1.msra.mxu0 %v6369
    %6504 = vmatprep.subr.mxu0 %v6366
    %6505 = vmatpush1.msra.mxu0 %v6365
    %6506 = vmatprep.subr.mxu0 %v6362
    %6507 = vmatpush1.msra.mxu0 %v6361
    %6508 = vmatprep.subr.mxu0 %v6358
    %6509 = vmatpush1.msra.mxu0 %v6357
    %6510 = vmatprep.subr.mxu0 %v6354
    %6511 = vmatpush1.msra.mxu0 %v6353
    %6512 = vmatprep.subr.mxu0 %v6350
    %6513 = vmatpush1.msra.mxu0 %v6349
    %6514 = vmatprep.subr.mxu0 0.0
    %6515 = vmatpush2.msra.mxu0 0.0
    %6516 = vmatprep.subr.mxu0 0.0
    %6517 = vmatpush2.msra.mxu0 0.0
    %6518 = vmatprep.subr.mxu0 0.0
    %6519 = vmatpush2.msra.mxu0 0.0
    %6520 = vmatprep.subr.mxu0 0.0
    %6521 = vmatpush2.msra.mxu0 0.0
    %6522 = vmatprep.subr.mxu0 0.0
    %6523 = vmatpush2.msra.mxu0 0.0
    %6524 = vmatprep.subr.mxu0 0.0
    %6525 = vmatpush2.msra.mxu0 0.0
    %6526 = vmatprep.subr.mxu0 0.0
    %6527 = vmatpush2.msra.mxu0 0.0
    %6528 = vmatprep.subr.mxu0 0.0
    %6529 = vmatpush2.msra.mxu0 0.0
    %6530 = vmatprep.subr.mxu0 0.0
    %6531 = vmatpush2.msra.mxu0 0.0
    %6532 = vmatprep.subr.mxu0 0.0
    %6533 = vmatpush2.msra.mxu0 0.0
    %6534 = vmatprep.subr.mxu0 0.0
    %6535 = vmatpush2.msra.mxu0 0.0
    %6536 = vmatprep.subr.mxu0 0.0
    %6537 = vmatpush2.msra.mxu0 0.0
    %6538 = vmatprep.subr.mxu0 0.0
    %6539 = vmatpush2.msra.mxu0 0.0
    %6540 = vmatprep.subr.mxu0 0.0
    %6541 = vmatpush2.msra.mxu0 0.0
    %6542 = vmatprep.subr.mxu0 0.0
    %6543 = vmatpush2.msra.mxu0 0.0
    %6544 = vmatprep.subr.mxu0 0.0
    %6545 = vmatpush2.msra.mxu0 0.0
    %6546 = vmatprep.mubr.f32.mxu0 0.0
    %6547 = vmatmul.mubr.f32.gmra.mxu0 %v4625
    %v6548 = vpop.f32.mrf.mxu0
    %v6549 = vadd.f32 0.0, %v6548
    %v6550 = vpop.f32.mrf.mxu0
    %v6551 = vadd.f32 0.0, %v6550
    %6552 = vdwg.mxu0
    %v6553 = vadd.f32 %v6342, %v6478
    %v6554 = vadd.f32 %v6343, %v6480
    %v6555 = vadd.f32 %v6344, %v6549
    %v6556 = vadd.f32 %v6345, %v6551
    %s6557 = scalar_lea.vmem [#allocation4], 4608
    %v6558 = vld [vmem:[%s6557] sm:$0xff]
    %v6559 = vld [vmem:[%s6557 + $0x8] sm:$0xff]
    %v6560 = vld [vmem:[%s6557 + $0x10] sm:$0xff]
    %v6561 = vld [vmem:[%s6557 + $0x18] sm:$0xff]
    %v6562 = vld [vmem:[%s6557 + $0x20] sm:$0xff]
    %v6563 = vld [vmem:[%s6557 + $0x28] sm:$0xff]
    %v6564 = vld [vmem:[%s6557 + $0x30] sm:$0xff]
    %v6565 = vld [vmem:[%s6557 + $0x38] sm:$0xff]
    %v6566 = vld [vmem:[%s6557 + $0x40] sm:$0xff]
    %v6567 = vld [vmem:[%s6557 + $0x48] sm:$0xff]
    %v6568 = vld [vmem:[%s6557 + $0x50] sm:$0xff]
    %v6569 = vld [vmem:[%s6557 + $0x58] sm:$0xff]
    %v6570 = vld [vmem:[%s6557 + $0x60] sm:$0xff]
    %v6571 = vld [vmem:[%s6557 + $0x68] sm:$0xff]
    %v6572 = vld [vmem:[%s6557 + $0x70] sm:$0xff]
    %v6573 = vld [vmem:[%s6557 + $0x78] sm:$0xff]
    %v6574 = vld [vmem:[%s6557 + $0x80] sm:$0xff]
    %v6575 = vld [vmem:[%s6557 + $0x88] sm:$0xff]
    %v6576 = vld [vmem:[%s6557 + $0x90] sm:$0xff]
    %v6577 = vld [vmem:[%s6557 + $0x98] sm:$0xff]
    %v6578 = vld [vmem:[%s6557 + $0xa0] sm:$0xff]
    %v6579 = vld [vmem:[%s6557 + $0xa8] sm:$0xff]
    %v6580 = vld [vmem:[%s6557 + $0xb0] sm:$0xff]
    %v6581 = vld [vmem:[%s6557 + $0xb8] sm:$0xff]
    %v6582 = vld [vmem:[%s6557 + $0xc0] sm:$0xff]
    %v6583 = vld [vmem:[%s6557 + $0xc8] sm:$0xff]
    %v6584 = vld [vmem:[%s6557 + $0xd0] sm:$0xff]
    %v6585 = vld [vmem:[%s6557 + $0xd8] sm:$0xff]
    %v6586 = vld [vmem:[%s6557 + $0xe0] sm:$0xff]
    %v6587 = vld [vmem:[%s6557 + $0xe8] sm:$0xff]
    %v6588 = vld [vmem:[%s6557 + $0xf0] sm:$0xff]
    %v6589 = vld [vmem:[%s6557 + $0xf8] sm:$0xff]
    %v6590 = vld [vmem:[%s6557 + $0x100] sm:$0xff]
    %v6591 = vld [vmem:[%s6557 + $0x108] sm:$0xff]
    %v6592 = vld [vmem:[%s6557 + $0x110] sm:$0xff]
    %v6593 = vld [vmem:[%s6557 + $0x118] sm:$0xff]
    %v6594 = vld [vmem:[%s6557 + $0x120] sm:$0xff]
    %v6595 = vld [vmem:[%s6557 + $0x128] sm:$0xff]
    %v6596 = vld [vmem:[%s6557 + $0x130] sm:$0xff]
    %v6597 = vld [vmem:[%s6557 + $0x138] sm:$0xff]
    %v6598 = vld [vmem:[%s6557 + $0x140] sm:$0xff]
    %v6599 = vld [vmem:[%s6557 + $0x148] sm:$0xff]
    %v6600 = vld [vmem:[%s6557 + $0x150] sm:$0xff]
    %v6601 = vld [vmem:[%s6557 + $0x158] sm:$0xff]
    %v6602 = vld [vmem:[%s6557 + $0x160] sm:$0xff]
    %v6603 = vld [vmem:[%s6557 + $0x168] sm:$0xff]
    %v6604 = vld [vmem:[%s6557 + $0x170] sm:$0xff]
    %v6605 = vld [vmem:[%s6557 + $0x178] sm:$0xff]
    %v6606 = vld [vmem:[%s6557 + $0x180] sm:$0xff]
    %v6607 = vld [vmem:[%s6557 + $0x188] sm:$0xff]
    %v6608 = vld [vmem:[%s6557 + $0x190] sm:$0xff]
    %v6609 = vld [vmem:[%s6557 + $0x198] sm:$0xff]
    %v6610 = vld [vmem:[%s6557 + $0x1a0] sm:$0xff]
    %v6611 = vld [vmem:[%s6557 + $0x1a8] sm:$0xff]
    %v6612 = vld [vmem:[%s6557 + $0x1b0] sm:$0xff]
    %v6613 = vld [vmem:[%s6557 + $0x1b8] sm:$0xff]
    %v6614 = vld [vmem:[%s6557 + $0x1c0] sm:$0xff]
    %v6615 = vld [vmem:[%s6557 + $0x1c8] sm:$0xff]
    %v6616 = vld [vmem:[%s6557 + $0x1d0] sm:$0xff]
    %v6617 = vld [vmem:[%s6557 + $0x1d8] sm:$0xff]
    %v6618 = vld [vmem:[%s6557 + $0x1e0] sm:$0xff]
    %v6619 = vld [vmem:[%s6557 + $0x1e8] sm:$0xff]
    %v6620 = vld [vmem:[%s6557 + $0x1f0] sm:$0xff]
    %v6621 = vld [vmem:[%s6557 + $0x1f8] sm:$0xff]
    %6622 = vmatprep.subr.mxu0 %v6619
    %6623 = vmatpush1.msra.mxu0 %v6618
    %6624 = vmatprep.subr.mxu0 %v6615
    %6625 = vmatpush1.msra.mxu0 %v6614
    %6626 = vmatprep.subr.mxu0 %v6611
    %6627 = vmatpush1.msra.mxu0 %v6610
    %6628 = vmatprep.subr.mxu0 %v6607
    %6629 = vmatpush1.msra.mxu0 %v6606
    %6630 = vmatprep.subr.mxu0 %v6603
    %6631 = vmatpush1.msra.mxu0 %v6602
    %6632 = vmatprep.subr.mxu0 %v6599
    %6633 = vmatpush1.msra.mxu0 %v6598
    %6634 = vmatprep.subr.mxu0 %v6595
    %6635 = vmatpush1.msra.mxu0 %v6594
    %6636 = vmatprep.subr.mxu0 %v6591
    %6637 = vmatpush1.msra.mxu0 %v6590
    %6638 = vmatprep.subr.mxu0 %v6587
    %6639 = vmatpush1.msra.mxu0 %v6586
    %6640 = vmatprep.subr.mxu0 %v6583
    %6641 = vmatpush1.msra.mxu0 %v6582
    %6642 = vmatprep.subr.mxu0 %v6579
    %6643 = vmatpush1.msra.mxu0 %v6578
    %6644 = vmatprep.subr.mxu0 %v6575
    %6645 = vmatpush1.msra.mxu0 %v6574
    %6646 = vmatprep.subr.mxu0 %v6571
    %6647 = vmatpush1.msra.mxu0 %v6570
    %6648 = vmatprep.subr.mxu0 %v6567
    %6649 = vmatpush1.msra.mxu0 %v6566
    %6650 = vmatprep.subr.mxu0 %v6563
    %6651 = vmatpush1.msra.mxu0 %v6562
    %6652 = vmatprep.subr.mxu0 %v6559
    %6653 = vmatpush1.msra.mxu0 %v6558
    %6654 = vmatprep.subr.mxu0 0.0
    %6655 = vmatpush2.msra.mxu0 0.0
    %6656 = vmatprep.subr.mxu0 0.0
    %6657 = vmatpush2.msra.mxu0 0.0
    %6658 = vmatprep.subr.mxu0 0.0
    %6659 = vmatpush2.msra.mxu0 0.0
    %6660 = vmatprep.subr.mxu0 0.0
    %6661 = vmatpush2.msra.mxu0 0.0
    %6662 = vmatprep.subr.mxu0 0.0
    %6663 = vmatpush2.msra.mxu0 0.0
    %6664 = vmatprep.subr.mxu0 0.0
    %6665 = vmatpush2.msra.mxu0 0.0
    %6666 = vmatprep.subr.mxu0 0.0
    %6667 = vmatpush2.msra.mxu0 0.0
    %6668 = vmatprep.subr.mxu0 0.0
    %6669 = vmatpush2.msra.mxu0 0.0
    %6670 = vmatprep.subr.mxu0 0.0
    %6671 = vmatpush2.msra.mxu0 0.0
    %6672 = vmatprep.subr.mxu0 0.0
    %6673 = vmatpush2.msra.mxu0 0.0
    %6674 = vmatprep.subr.mxu0 0.0
    %6675 = vmatpush2.msra.mxu0 0.0
    %6676 = vmatprep.subr.mxu0 0.0
    %6677 = vmatpush2.msra.mxu0 0.0
    %6678 = vmatprep.subr.mxu0 0.0
    %6679 = vmatpush2.msra.mxu0 0.0
    %6680 = vmatprep.subr.mxu0 0.0
    %6681 = vmatpush2.msra.mxu0 0.0
    %6682 = vmatprep.subr.mxu0 0.0
    %6683 = vmatpush2.msra.mxu0 0.0
    %6684 = vmatprep.subr.mxu0 0.0
    %6685 = vmatpush2.msra.mxu0 0.0
    %6686 = vmatprep.mubr.f32.mxu0 0.0
    %6687 = vmatmul.mubr.f32.gmra.mxu0 %v4626
    %v6688 = vpop.f32.mrf.mxu0
    %v6689 = vadd.f32 0.0, %v6688
    %v6690 = vpop.f32.mrf.mxu0
    %v6691 = vadd.f32 0.0, %v6690
    %6692 = vdwg.mxu0
    %6693 = vmatprep.subr.mxu0 %v6621
    %6694 = vmatpush1.msra.mxu0 %v6620
    %6695 = vmatprep.subr.mxu0 %v6617
    %6696 = vmatpush1.msra.mxu0 %v6616
    %6697 = vmatprep.subr.mxu0 %v6613
    %6698 = vmatpush1.msra.mxu0 %v6612
    %6699 = vmatprep.subr.mxu0 %v6609
    %6700 = vmatpush1.msra.mxu0 %v6608
    %6701 = vmatprep.subr.mxu0 %v6605
    %6702 = vmatpush1.msra.mxu0 %v6604
    %6703 = vmatprep.subr.mxu0 %v6601
    %6704 = vmatpush1.msra.mxu0 %v6600
    %6705 = vmatprep.subr.mxu0 %v6597
    %6706 = vmatpush1.msra.mxu0 %v6596
    %6707 = vmatprep.subr.mxu0 %v6593
    %6708 = vmatpush1.msra.mxu0 %v6592
    %6709 = vmatprep.subr.mxu0 %v6589
    %6710 = vmatpush1.msra.mxu0 %v6588
    %6711 = vmatprep.subr.mxu0 %v6585
    %6712 = vmatpush1.msra.mxu0 %v6584
    %6713 = vmatprep.subr.mxu0 %v6581
    %6714 = vmatpush1.msra.mxu0 %v6580
    %6715 = vmatprep.subr.mxu0 %v6577
    %6716 = vmatpush1.msra.mxu0 %v6576
    %6717 = vmatprep.subr.mxu0 %v6573
    %6718 = vmatpush1.msra.mxu0 %v6572
    %6719 = vmatprep.subr.mxu0 %v6569
    %6720 = vmatpush1.msra.mxu0 %v6568
    %6721 = vmatprep.subr.mxu0 %v6565
    %6722 = vmatpush1.msra.mxu0 %v6564
    %6723 = vmatprep.subr.mxu0 %v6561
    %6724 = vmatpush1.msra.mxu0 %v6560
    %6725 = vmatprep.subr.mxu0 0.0
    %6726 = vmatpush2.msra.mxu0 0.0
    %6727 = vmatprep.subr.mxu0 0.0
    %6728 = vmatpush2.msra.mxu0 0.0
    %6729 = vmatprep.subr.mxu0 0.0
    %6730 = vmatpush2.msra.mxu0 0.0
    %6731 = vmatprep.subr.mxu0 0.0
    %6732 = vmatpush2.msra.mxu0 0.0
    %6733 = vmatprep.subr.mxu0 0.0
    %6734 = vmatpush2.msra.mxu0 0.0
    %6735 = vmatprep.subr.mxu0 0.0
    %6736 = vmatpush2.msra.mxu0 0.0
    %6737 = vmatprep.subr.mxu0 0.0
    %6738 = vmatpush2.msra.mxu0 0.0
    %6739 = vmatprep.subr.mxu0 0.0
    %6740 = vmatpush2.msra.mxu0 0.0
    %6741 = vmatprep.subr.mxu0 0.0
    %6742 = vmatpush2.msra.mxu0 0.0
    %6743 = vmatprep.subr.mxu0 0.0
    %6744 = vmatpush2.msra.mxu0 0.0
    %6745 = vmatprep.subr.mxu0 0.0
    %6746 = vmatpush2.msra.mxu0 0.0
    %6747 = vmatprep.subr.mxu0 0.0
    %6748 = vmatpush2.msra.mxu0 0.0
    %6749 = vmatprep.subr.mxu0 0.0
    %6750 = vmatpush2.msra.mxu0 0.0
    %6751 = vmatprep.subr.mxu0 0.0
    %6752 = vmatpush2.msra.mxu0 0.0
    %6753 = vmatprep.subr.mxu0 0.0
    %6754 = vmatpush2.msra.mxu0 0.0
    %6755 = vmatprep.subr.mxu0 0.0
    %6756 = vmatpush2.msra.mxu0 0.0
    %6757 = vmatprep.mubr.f32.mxu0 0.0
    %6758 = vmatmul.mubr.f32.gmra.mxu0 %v4626
    %v6759 = vpop.f32.mrf.mxu0
    %v6760 = vadd.f32 0.0, %v6759
    %v6761 = vpop.f32.mrf.mxu0
    %v6762 = vadd.f32 0.0, %v6761
    %6763 = vdwg.mxu0
    %v6764 = vadd.f32 %v6553, %v6689
    %v6765 = vadd.f32 %v6554, %v6691
    %v6766 = vadd.f32 %v6555, %v6760
    %v6767 = vadd.f32 %v6556, %v6762
    %s6768 = scalar_lea.vmem [#allocation4], 5120
    %v6769 = vld [vmem:[%s6768] sm:$0xff]
    %v6770 = vld [vmem:[%s6768 + $0x8] sm:$0xff]
    %v6771 = vld [vmem:[%s6768 + $0x10] sm:$0xff]
    %v6772 = vld [vmem:[%s6768 + $0x18] sm:$0xff]
    %v6773 = vld [vmem:[%s6768 + $0x20] sm:$0xff]
    %v6774 = vld [vmem:[%s6768 + $0x28] sm:$0xff]
    %v6775 = vld [vmem:[%s6768 + $0x30] sm:$0xff]
    %v6776 = vld [vmem:[%s6768 + $0x38] sm:$0xff]
    %v6777 = vld [vmem:[%s6768 + $0x40] sm:$0xff]
    %v6778 = vld [vmem:[%s6768 + $0x48] sm:$0xff]
    %v6779 = vld [vmem:[%s6768 + $0x50] sm:$0xff]
    %v6780 = vld [vmem:[%s6768 + $0x58] sm:$0xff]
    %v6781 = vld [vmem:[%s6768 + $0x60] sm:$0xff]
    %v6782 = vld [vmem:[%s6768 + $0x68] sm:$0xff]
    %v6783 = vld [vmem:[%s6768 + $0x70] sm:$0xff]
    %v6784 = vld [vmem:[%s6768 + $0x78] sm:$0xff]
    %v6785 = vld [vmem:[%s6768 + $0x80] sm:$0xff]
    %v6786 = vld [vmem:[%s6768 + $0x88] sm:$0xff]
    %v6787 = vld [vmem:[%s6768 + $0x90] sm:$0xff]
    %v6788 = vld [vmem:[%s6768 + $0x98] sm:$0xff]
    %v6789 = vld [vmem:[%s6768 + $0xa0] sm:$0xff]
    %v6790 = vld [vmem:[%s6768 + $0xa8] sm:$0xff]
    %v6791 = vld [vmem:[%s6768 + $0xb0] sm:$0xff]
    %v6792 = vld [vmem:[%s6768 + $0xb8] sm:$0xff]
    %v6793 = vld [vmem:[%s6768 + $0xc0] sm:$0xff]
    %v6794 = vld [vmem:[%s6768 + $0xc8] sm:$0xff]
    %v6795 = vld [vmem:[%s6768 + $0xd0] sm:$0xff]
    %v6796 = vld [vmem:[%s6768 + $0xd8] sm:$0xff]
    %v6797 = vld [vmem:[%s6768 + $0xe0] sm:$0xff]
    %v6798 = vld [vmem:[%s6768 + $0xe8] sm:$0xff]
    %v6799 = vld [vmem:[%s6768 + $0xf0] sm:$0xff]
    %v6800 = vld [vmem:[%s6768 + $0xf8] sm:$0xff]
    %v6801 = vld [vmem:[%s6768 + $0x100] sm:$0xff]
    %v6802 = vld [vmem:[%s6768 + $0x108] sm:$0xff]
    %v6803 = vld [vmem:[%s6768 + $0x110] sm:$0xff]
    %v6804 = vld [vmem:[%s6768 + $0x118] sm:$0xff]
    %v6805 = vld [vmem:[%s6768 + $0x120] sm:$0xff]
    %v6806 = vld [vmem:[%s6768 + $0x128] sm:$0xff]
    %v6807 = vld [vmem:[%s6768 + $0x130] sm:$0xff]
    %v6808 = vld [vmem:[%s6768 + $0x138] sm:$0xff]
    %v6809 = vld [vmem:[%s6768 + $0x140] sm:$0xff]
    %v6810 = vld [vmem:[%s6768 + $0x148] sm:$0xff]
    %v6811 = vld [vmem:[%s6768 + $0x150] sm:$0xff]
    %v6812 = vld [vmem:[%s6768 + $0x158] sm:$0xff]
    %v6813 = vld [vmem:[%s6768 + $0x160] sm:$0xff]
    %v6814 = vld [vmem:[%s6768 + $0x168] sm:$0xff]
    %v6815 = vld [vmem:[%s6768 + $0x170] sm:$0xff]
    %v6816 = vld [vmem:[%s6768 + $0x178] sm:$0xff]
    %v6817 = vld [vmem:[%s6768 + $0x180] sm:$0xff]
    %v6818 = vld [vmem:[%s6768 + $0x188] sm:$0xff]
    %v6819 = vld [vmem:[%s6768 + $0x190] sm:$0xff]
    %v6820 = vld [vmem:[%s6768 + $0x198] sm:$0xff]
    %v6821 = vld [vmem:[%s6768 + $0x1a0] sm:$0xff]
    %v6822 = vld [vmem:[%s6768 + $0x1a8] sm:$0xff]
    %v6823 = vld [vmem:[%s6768 + $0x1b0] sm:$0xff]
    %v6824 = vld [vmem:[%s6768 + $0x1b8] sm:$0xff]
    %v6825 = vld [vmem:[%s6768 + $0x1c0] sm:$0xff]
    %v6826 = vld [vmem:[%s6768 + $0x1c8] sm:$0xff]
    %v6827 = vld [vmem:[%s6768 + $0x1d0] sm:$0xff]
    %v6828 = vld [vmem:[%s6768 + $0x1d8] sm:$0xff]
    %v6829 = vld [vmem:[%s6768 + $0x1e0] sm:$0xff]
    %v6830 = vld [vmem:[%s6768 + $0x1e8] sm:$0xff]
    %v6831 = vld [vmem:[%s6768 + $0x1f0] sm:$0xff]
    %v6832 = vld [vmem:[%s6768 + $0x1f8] sm:$0xff]
    %6833 = vmatprep.subr.mxu0 %v6830
    %6834 = vmatpush1.msra.mxu0 %v6829
    %6835 = vmatprep.subr.mxu0 %v6826
    %6836 = vmatpush1.msra.mxu0 %v6825
    %6837 = vmatprep.subr.mxu0 %v6822
    %6838 = vmatpush1.msra.mxu0 %v6821
    %6839 = vmatprep.subr.mxu0 %v6818
    %6840 = vmatpush1.msra.mxu0 %v6817
    %6841 = vmatprep.subr.mxu0 %v6814
    %6842 = vmatpush1.msra.mxu0 %v6813
    %6843 = vmatprep.subr.mxu0 %v6810
    %6844 = vmatpush1.msra.mxu0 %v6809
    %6845 = vmatprep.subr.mxu0 %v6806
    %6846 = vmatpush1.msra.mxu0 %v6805
    %6847 = vmatprep.subr.mxu0 %v6802
    %6848 = vmatpush1.msra.mxu0 %v6801
    %6849 = vmatprep.subr.mxu0 %v6798
    %6850 = vmatpush1.msra.mxu0 %v6797
    %6851 = vmatprep.subr.mxu0 %v6794
    %6852 = vmatpush1.msra.mxu0 %v6793
    %6853 = vmatprep.subr.mxu0 %v6790
    %6854 = vmatpush1.msra.mxu0 %v6789
    %6855 = vmatprep.subr.mxu0 %v6786
    %6856 = vmatpush1.msra.mxu0 %v6785
    %6857 = vmatprep.subr.mxu0 %v6782
    %6858 = vmatpush1.msra.mxu0 %v6781
    %6859 = vmatprep.subr.mxu0 %v6778
    %6860 = vmatpush1.msra.mxu0 %v6777
    %6861 = vmatprep.subr.mxu0 %v6774
    %6862 = vmatpush1.msra.mxu0 %v6773
    %6863 = vmatprep.subr.mxu0 %v6770
    %6864 = vmatpush1.msra.mxu0 %v6769
    %6865 = vmatprep.subr.mxu0 0.0
    %6866 = vmatpush2.msra.mxu0 0.0
    %6867 = vmatprep.subr.mxu0 0.0
    %6868 = vmatpush2.msra.mxu0 0.0
    %6869 = vmatprep.subr.mxu0 0.0
    %6870 = vmatpush2.msra.mxu0 0.0
    %6871 = vmatprep.subr.mxu0 0.0
    %6872 = vmatpush2.msra.mxu0 0.0
    %6873 = vmatprep.subr.mxu0 0.0
    %6874 = vmatpush2.msra.mxu0 0.0
    %6875 = vmatprep.subr.mxu0 0.0
    %6876 = vmatpush2.msra.mxu0 0.0
    %6877 = vmatprep.subr.mxu0 0.0
    %6878 = vmatpush2.msra.mxu0 0.0
    %6879 = vmatprep.subr.mxu0 0.0
    %6880 = vmatpush2.msra.mxu0 0.0
    %6881 = vmatprep.subr.mxu0 0.0
    %6882 = vmatpush2.msra.mxu0 0.0
    %6883 = vmatprep.subr.mxu0 0.0
    %6884 = vmatpush2.msra.mxu0 0.0
    %6885 = vmatprep.subr.mxu0 0.0
    %6886 = vmatpush2.msra.mxu0 0.0
    %6887 = vmatprep.subr.mxu0 0.0
    %6888 = vmatpush2.msra.mxu0 0.0
    %6889 = vmatprep.subr.mxu0 0.0
    %6890 = vmatpush2.msra.mxu0 0.0
    %6891 = vmatprep.subr.mxu0 0.0
    %6892 = vmatpush2.msra.mxu0 0.0
    %6893 = vmatprep.subr.mxu0 0.0
    %6894 = vmatpush2.msra.mxu0 0.0
    %6895 = vmatprep.subr.mxu0 0.0
    %6896 = vmatpush2.msra.mxu0 0.0
    %6897 = vmatprep.mubr.f32.mxu0 0.0
    %6898 = vmatmul.mubr.f32.gmra.mxu0 %v4627
    %v6899 = vpop.f32.mrf.mxu0
    %v6900 = vadd.f32 0.0, %v6899
    %v6901 = vpop.f32.mrf.mxu0
    %v6902 = vadd.f32 0.0, %v6901
    %6903 = vdwg.mxu0
    %6904 = vmatprep.subr.mxu0 %v6832
    %6905 = vmatpush1.msra.mxu0 %v6831
    %6906 = vmatprep.subr.mxu0 %v6828
    %6907 = vmatpush1.msra.mxu0 %v6827
    %6908 = vmatprep.subr.mxu0 %v6824
    %6909 = vmatpush1.msra.mxu0 %v6823
    %6910 = vmatprep.subr.mxu0 %v6820
    %6911 = vmatpush1.msra.mxu0 %v6819
    %6912 = vmatprep.subr.mxu0 %v6816
    %6913 = vmatpush1.msra.mxu0 %v6815
    %6914 = vmatprep.subr.mxu0 %v6812
    %6915 = vmatpush1.msra.mxu0 %v6811
    %6916 = vmatprep.subr.mxu0 %v6808
    %6917 = vmatpush1.msra.mxu0 %v6807
    %6918 = vmatprep.subr.mxu0 %v6804
    %6919 = vmatpush1.msra.mxu0 %v6803
    %6920 = vmatprep.subr.mxu0 %v6800
    %6921 = vmatpush1.msra.mxu0 %v6799
    %6922 = vmatprep.subr.mxu0 %v6796
    %6923 = vmatpush1.msra.mxu0 %v6795
    %6924 = vmatprep.subr.mxu0 %v6792
    %6925 = vmatpush1.msra.mxu0 %v6791
    %6926 = vmatprep.subr.mxu0 %v6788
    %6927 = vmatpush1.msra.mxu0 %v6787
    %6928 = vmatprep.subr.mxu0 %v6784
    %6929 = vmatpush1.msra.mxu0 %v6783
    %6930 = vmatprep.subr.mxu0 %v6780
    %6931 = vmatpush1.msra.mxu0 %v6779
    %6932 = vmatprep.subr.mxu0 %v6776
    %6933 = vmatpush1.msra.mxu0 %v6775
    %6934 = vmatprep.subr.mxu0 %v6772
    %6935 = vmatpush1.msra.mxu0 %v6771
    %6936 = vmatprep.subr.mxu0 0.0
    %6937 = vmatpush2.msra.mxu0 0.0
    %6938 = vmatprep.subr.mxu0 0.0
    %6939 = vmatpush2.msra.mxu0 0.0
    %6940 = vmatprep.subr.mxu0 0.0
    %6941 = vmatpush2.msra.mxu0 0.0
    %6942 = vmatprep.subr.mxu0 0.0
    %6943 = vmatpush2.msra.mxu0 0.0
    %6944 = vmatprep.subr.mxu0 0.0
    %6945 = vmatpush2.msra.mxu0 0.0
    %6946 = vmatprep.subr.mxu0 0.0
    %6947 = vmatpush2.msra.mxu0 0.0
    %6948 = vmatprep.subr.mxu0 0.0
    %6949 = vmatpush2.msra.mxu0 0.0
    %6950 = vmatprep.subr.mxu0 0.0
    %6951 = vmatpush2.msra.mxu0 0.0
    %6952 = vmatprep.subr.mxu0 0.0
    %6953 = vmatpush2.msra.mxu0 0.0
    %6954 = vmatprep.subr.mxu0 0.0
    %6955 = vmatpush2.msra.mxu0 0.0
    %6956 = vmatprep.subr.mxu0 0.0
    %6957 = vmatpush2.msra.mxu0 0.0
    %6958 = vmatprep.subr.mxu0 0.0
    %6959 = vmatpush2.msra.mxu0 0.0
    %6960 = vmatprep.subr.mxu0 0.0
    %6961 = vmatpush2.msra.mxu0 0.0
    %6962 = vmatprep.subr.mxu0 0.0
    %6963 = vmatpush2.msra.mxu0 0.0
    %6964 = vmatprep.subr.mxu0 0.0
    %6965 = vmatpush2.msra.mxu0 0.0
    %6966 = vmatprep.subr.mxu0 0.0
    %6967 = vmatpush2.msra.mxu0 0.0
    %6968 = vmatprep.mubr.f32.mxu0 0.0
    %6969 = vmatmul.mubr.f32.gmra.mxu0 %v4627
    %v6970 = vpop.f32.mrf.mxu0
    %v6971 = vadd.f32 0.0, %v6970
    %v6972 = vpop.f32.mrf.mxu0
    %v6973 = vadd.f32 0.0, %v6972
    %6974 = vdwg.mxu0
    %v6975 = vadd.f32 %v6764, %v6900
    %v6976 = vadd.f32 %v6765, %v6902
    %v6977 = vadd.f32 %v6766, %v6971
    %v6978 = vadd.f32 %v6767, %v6973
    %s6979 = scalar_lea.vmem [#allocation4], 5632
    %v6980 = vld [vmem:[%s6979] sm:$0xff]
    %v6981 = vld [vmem:[%s6979 + $0x8] sm:$0xff]
    %v6982 = vld [vmem:[%s6979 + $0x10] sm:$0xff]
    %v6983 = vld [vmem:[%s6979 + $0x18] sm:$0xff]
    %v6984 = vld [vmem:[%s6979 + $0x20] sm:$0xff]
    %v6985 = vld [vmem:[%s6979 + $0x28] sm:$0xff]
    %v6986 = vld [vmem:[%s6979 + $0x30] sm:$0xff]
    %v6987 = vld [vmem:[%s6979 + $0x38] sm:$0xff]
    %v6988 = vld [vmem:[%s6979 + $0x40] sm:$0xff]
    %v6989 = vld [vmem:[%s6979 + $0x48] sm:$0xff]
    %v6990 = vld [vmem:[%s6979 + $0x50] sm:$0xff]
    %v6991 = vld [vmem:[%s6979 + $0x58] sm:$0xff]
    %v6992 = vld [vmem:[%s6979 + $0x60] sm:$0xff]
    %v6993 = vld [vmem:[%s6979 + $0x68] sm:$0xff]
    %v6994 = vld [vmem:[%s6979 + $0x70] sm:$0xff]
    %v6995 = vld [vmem:[%s6979 + $0x78] sm:$0xff]
    %v6996 = vld [vmem:[%s6979 + $0x80] sm:$0xff]
    %v6997 = vld [vmem:[%s6979 + $0x88] sm:$0xff]
    %v6998 = vld [vmem:[%s6979 + $0x90] sm:$0xff]
    %v6999 = vld [vmem:[%s6979 + $0x98] sm:$0xff]
    %v7000 = vld [vmem:[%s6979 + $0xa0] sm:$0xff]
    %v7001 = vld [vmem:[%s6979 + $0xa8] sm:$0xff]
    %v7002 = vld [vmem:[%s6979 + $0xb0] sm:$0xff]
    %v7003 = vld [vmem:[%s6979 + $0xb8] sm:$0xff]
    %v7004 = vld [vmem:[%s6979 + $0xc0] sm:$0xff]
    %v7005 = vld [vmem:[%s6979 + $0xc8] sm:$0xff]
    %v7006 = vld [vmem:[%s6979 + $0xd0] sm:$0xff]
    %v7007 = vld [vmem:[%s6979 + $0xd8] sm:$0xff]
    %v7008 = vld [vmem:[%s6979 + $0xe0] sm:$0xff]
    %v7009 = vld [vmem:[%s6979 + $0xe8] sm:$0xff]
    %v7010 = vld [vmem:[%s6979 + $0xf0] sm:$0xff]
    %v7011 = vld [vmem:[%s6979 + $0xf8] sm:$0xff]
    %v7012 = vld [vmem:[%s6979 + $0x100] sm:$0xff]
    %v7013 = vld [vmem:[%s6979 + $0x108] sm:$0xff]
    %v7014 = vld [vmem:[%s6979 + $0x110] sm:$0xff]
    %v7015 = vld [vmem:[%s6979 + $0x118] sm:$0xff]
    %v7016 = vld [vmem:[%s6979 + $0x120] sm:$0xff]
    %v7017 = vld [vmem:[%s6979 + $0x128] sm:$0xff]
    %v7018 = vld [vmem:[%s6979 + $0x130] sm:$0xff]
    %v7019 = vld [vmem:[%s6979 + $0x138] sm:$0xff]
    %v7020 = vld [vmem:[%s6979 + $0x140] sm:$0xff]
    %v7021 = vld [vmem:[%s6979 + $0x148] sm:$0xff]
    %v7022 = vld [vmem:[%s6979 + $0x150] sm:$0xff]
    %v7023 = vld [vmem:[%s6979 + $0x158] sm:$0xff]
    %v7024 = vld [vmem:[%s6979 + $0x160] sm:$0xff]
    %v7025 = vld [vmem:[%s6979 + $0x168] sm:$0xff]
    %v7026 = vld [vmem:[%s6979 + $0x170] sm:$0xff]
    %v7027 = vld [vmem:[%s6979 + $0x178] sm:$0xff]
    %v7028 = vld [vmem:[%s6979 + $0x180] sm:$0xff]
    %v7029 = vld [vmem:[%s6979 + $0x188] sm:$0xff]
    %v7030 = vld [vmem:[%s6979 + $0x190] sm:$0xff]
    %v7031 = vld [vmem:[%s6979 + $0x198] sm:$0xff]
    %v7032 = vld [vmem:[%s6979 + $0x1a0] sm:$0xff]
    %v7033 = vld [vmem:[%s6979 + $0x1a8] sm:$0xff]
    %v7034 = vld [vmem:[%s6979 + $0x1b0] sm:$0xff]
    %v7035 = vld [vmem:[%s6979 + $0x1b8] sm:$0xff]
    %v7036 = vld [vmem:[%s6979 + $0x1c0] sm:$0xff]
    %v7037 = vld [vmem:[%s6979 + $0x1c8] sm:$0xff]
    %v7038 = vld [vmem:[%s6979 + $0x1d0] sm:$0xff]
    %v7039 = vld [vmem:[%s6979 + $0x1d8] sm:$0xff]
    %v7040 = vld [vmem:[%s6979 + $0x1e0] sm:$0xff]
    %v7041 = vld [vmem:[%s6979 + $0x1e8] sm:$0xff]
    %v7042 = vld [vmem:[%s6979 + $0x1f0] sm:$0xff]
    %v7043 = vld [vmem:[%s6979 + $0x1f8] sm:$0xff]
    %7044 = vmatprep.subr.mxu0 %v7041
    %7045 = vmatpush1.msra.mxu0 %v7040
    %7046 = vmatprep.subr.mxu0 %v7037
    %7047 = vmatpush1.msra.mxu0 %v7036
    %7048 = vmatprep.subr.mxu0 %v7033
    %7049 = vmatpush1.msra.mxu0 %v7032
    %7050 = vmatprep.subr.mxu0 %v7029
    %7051 = vmatpush1.msra.mxu0 %v7028
    %7052 = vmatprep.subr.mxu0 %v7025
    %7053 = vmatpush1.msra.mxu0 %v7024
    %7054 = vmatprep.subr.mxu0 %v7021
    %7055 = vmatpush1.msra.mxu0 %v7020
    %7056 = vmatprep.subr.mxu0 %v7017
    %7057 = vmatpush1.msra.mxu0 %v7016
    %7058 = vmatprep.subr.mxu0 %v7013
    %7059 = vmatpush1.msra.mxu0 %v7012
    %7060 = vmatprep.subr.mxu0 %v7009
    %7061 = vmatpush1.msra.mxu0 %v7008
    %7062 = vmatprep.subr.mxu0 %v7005
    %7063 = vmatpush1.msra.mxu0 %v7004
    %7064 = vmatprep.subr.mxu0 %v7001
    %7065 = vmatpush1.msra.mxu0 %v7000
    %7066 = vmatprep.subr.mxu0 %v6997
    %7067 = vmatpush1.msra.mxu0 %v6996
    %7068 = vmatprep.subr.mxu0 %v6993
    %7069 = vmatpush1.msra.mxu0 %v6992
    %7070 = vmatprep.subr.mxu0 %v6989
    %7071 = vmatpush1.msra.mxu0 %v6988
    %7072 = vmatprep.subr.mxu0 %v6985
    %7073 = vmatpush1.msra.mxu0 %v6984
    %7074 = vmatprep.subr.mxu0 %v6981
    %7075 = vmatpush1.msra.mxu0 %v6980
    %7076 = vmatprep.subr.mxu0 0.0
    %7077 = vmatpush2.msra.mxu0 0.0
    %7078 = vmatprep.subr.mxu0 0.0
    %7079 = vmatpush2.msra.mxu0 0.0
    %7080 = vmatprep.subr.mxu0 0.0
    %7081 = vmatpush2.msra.mxu0 0.0
    %7082 = vmatprep.subr.mxu0 0.0
    %7083 = vmatpush2.msra.mxu0 0.0
    %7084 = vmatprep.subr.mxu0 0.0
    %7085 = vmatpush2.msra.mxu0 0.0
    %7086 = vmatprep.subr.mxu0 0.0
    %7087 = vmatpush2.msra.mxu0 0.0
    %7088 = vmatprep.subr.mxu0 0.0
    %7089 = vmatpush2.msra.mxu0 0.0
    %7090 = vmatprep.subr.mxu0 0.0
    %7091 = vmatpush2.msra.mxu0 0.0
    %7092 = vmatprep.subr.mxu0 0.0
    %7093 = vmatpush2.msra.mxu0 0.0
    %7094 = vmatprep.subr.mxu0 0.0
    %7095 = vmatpush2.msra.mxu0 0.0
    %7096 = vmatprep.subr.mxu0 0.0
    %7097 = vmatpush2.msra.mxu0 0.0
    %7098 = vmatprep.subr.mxu0 0.0
    %7099 = vmatpush2.msra.mxu0 0.0
    %7100 = vmatprep.subr.mxu0 0.0
    %7101 = vmatpush2.msra.mxu0 0.0
    %7102 = vmatprep.subr.mxu0 0.0
    %7103 = vmatpush2.msra.mxu0 0.0
    %7104 = vmatprep.subr.mxu0 0.0
    %7105 = vmatpush2.msra.mxu0 0.0
    %7106 = vmatprep.subr.mxu0 0.0
    %7107 = vmatpush2.msra.mxu0 0.0
    %7108 = vmatprep.mubr.f32.mxu0 0.0
    %7109 = vmatmul.mubr.f32.gmra.mxu0 %v4628
    %v7110 = vpop.f32.mrf.mxu0
    %v7111 = vadd.f32 0.0, %v7110
    %v7112 = vpop.f32.mrf.mxu0
    %v7113 = vadd.f32 0.0, %v7112
    %7114 = vdwg.mxu0
    %7115 = vmatprep.subr.mxu0 %v7043
    %7116 = vmatpush1.msra.mxu0 %v7042
    %7117 = vmatprep.subr.mxu0 %v7039
    %7118 = vmatpush1.msra.mxu0 %v7038
    %7119 = vmatprep.subr.mxu0 %v7035
    %7120 = vmatpush1.msra.mxu0 %v7034
    %7121 = vmatprep.subr.mxu0 %v7031
    %7122 = vmatpush1.msra.mxu0 %v7030
    %7123 = vmatprep.subr.mxu0 %v7027
    %7124 = vmatpush1.msra.mxu0 %v7026
    %7125 = vmatprep.subr.mxu0 %v7023
    %7126 = vmatpush1.msra.mxu0 %v7022
    %7127 = vmatprep.subr.mxu0 %v7019
    %7128 = vmatpush1.msra.mxu0 %v7018
    %7129 = vmatprep.subr.mxu0 %v7015
    %7130 = vmatpush1.msra.mxu0 %v7014
    %7131 = vmatprep.subr.mxu0 %v7011
    %7132 = vmatpush1.msra.mxu0 %v7010
    %7133 = vmatprep.subr.mxu0 %v7007
    %7134 = vmatpush1.msra.mxu0 %v7006
    %7135 = vmatprep.subr.mxu0 %v7003
    %7136 = vmatpush1.msra.mxu0 %v7002
    %7137 = vmatprep.subr.mxu0 %v6999
    %7138 = vmatpush1.msra.mxu0 %v6998
    %7139 = vmatprep.subr.mxu0 %v6995
    %7140 = vmatpush1.msra.mxu0 %v6994
    %7141 = vmatprep.subr.mxu0 %v6991
    %7142 = vmatpush1.msra.mxu0 %v6990
    %7143 = vmatprep.subr.mxu0 %v6987
    %7144 = vmatpush1.msra.mxu0 %v6986
    %7145 = vmatprep.subr.mxu0 %v6983
    %7146 = vmatpush1.msra.mxu0 %v6982
    %7147 = vmatprep.subr.mxu0 0.0
    %7148 = vmatpush2.msra.mxu0 0.0
    %7149 = vmatprep.subr.mxu0 0.0
    %7150 = vmatpush2.msra.mxu0 0.0
    %7151 = vmatprep.subr.mxu0 0.0
    %7152 = vmatpush2.msra.mxu0 0.0
    %7153 = vmatprep.subr.mxu0 0.0
    %7154 = vmatpush2.msra.mxu0 0.0
    %7155 = vmatprep.subr.mxu0 0.0
    %7156 = vmatpush2.msra.mxu0 0.0
    %7157 = vmatprep.subr.mxu0 0.0
    %7158 = vmatpush2.msra.mxu0 0.0
    %7159 = vmatprep.subr.mxu0 0.0
    %7160 = vmatpush2.msra.mxu0 0.0
    %7161 = vmatprep.subr.mxu0 0.0
    %7162 = vmatpush2.msra.mxu0 0.0
    %7163 = vmatprep.subr.mxu0 0.0
    %7164 = vmatpush2.msra.mxu0 0.0
    %7165 = vmatprep.subr.mxu0 0.0
    %7166 = vmatpush2.msra.mxu0 0.0
    %7167 = vmatprep.subr.mxu0 0.0
    %7168 = vmatpush2.msra.mxu0 0.0
    %7169 = vmatprep.subr.mxu0 0.0
    %7170 = vmatpush2.msra.mxu0 0.0
    %7171 = vmatprep.subr.mxu0 0.0
    %7172 = vmatpush2.msra.mxu0 0.0
    %7173 = vmatprep.subr.mxu0 0.0
    %7174 = vmatpush2.msra.mxu0 0.0
    %7175 = vmatprep.subr.mxu0 0.0
    %7176 = vmatpush2.msra.mxu0 0.0
    %7177 = vmatprep.subr.mxu0 0.0
    %7178 = vmatpush2.msra.mxu0 0.0
    %7179 = vmatprep.mubr.f32.mxu0 0.0
    %7180 = vmatmul.mubr.f32.gmra.mxu0 %v4628
    %v7181 = vpop.f32.mrf.mxu0
    %v7182 = vadd.f32 0.0, %v7181
    %v7183 = vpop.f32.mrf.mxu0
    %v7184 = vadd.f32 0.0, %v7183
    %7185 = vdwg.mxu0
    %v7186 = vadd.f32 %v6975, %v7111
    %v7187 = vadd.f32 %v6976, %v7113
    %v7188 = vadd.f32 %v6977, %v7182
    %v7189 = vadd.f32 %v6978, %v7184
    %s7190 = scalar_lea.vmem [#allocation4], 6144
    %v7191 = vld [vmem:[%s7190] sm:$0xff]
    %v7192 = vld [vmem:[%s7190 + $0x8] sm:$0xff]
    %v7193 = vld [vmem:[%s7190 + $0x10] sm:$0xff]
    %v7194 = vld [vmem:[%s7190 + $0x18] sm:$0xff]
    %v7195 = vld [vmem:[%s7190 + $0x20] sm:$0xff]
    %v7196 = vld [vmem:[%s7190 + $0x28] sm:$0xff]
    %v7197 = vld [vmem:[%s7190 + $0x30] sm:$0xff]
    %v7198 = vld [vmem:[%s7190 + $0x38] sm:$0xff]
    %v7199 = vld [vmem:[%s7190 + $0x40] sm:$0xff]
    %v7200 = vld [vmem:[%s7190 + $0x48] sm:$0xff]
    %v7201 = vld [vmem:[%s7190 + $0x50] sm:$0xff]
    %v7202 = vld [vmem:[%s7190 + $0x58] sm:$0xff]
    %v7203 = vld [vmem:[%s7190 + $0x60] sm:$0xff]
    %v7204 = vld [vmem:[%s7190 + $0x68] sm:$0xff]
    %v7205 = vld [vmem:[%s7190 + $0x70] sm:$0xff]
    %v7206 = vld [vmem:[%s7190 + $0x78] sm:$0xff]
    %v7207 = vld [vmem:[%s7190 + $0x80] sm:$0xff]
    %v7208 = vld [vmem:[%s7190 + $0x88] sm:$0xff]
    %v7209 = vld [vmem:[%s7190 + $0x90] sm:$0xff]
    %v7210 = vld [vmem:[%s7190 + $0x98] sm:$0xff]
    %v7211 = vld [vmem:[%s7190 + $0xa0] sm:$0xff]
    %v7212 = vld [vmem:[%s7190 + $0xa8] sm:$0xff]
    %v7213 = vld [vmem:[%s7190 + $0xb0] sm:$0xff]
    %v7214 = vld [vmem:[%s7190 + $0xb8] sm:$0xff]
    %v7215 = vld [vmem:[%s7190 + $0xc0] sm:$0xff]
    %v7216 = vld [vmem:[%s7190 + $0xc8] sm:$0xff]
    %v7217 = vld [vmem:[%s7190 + $0xd0] sm:$0xff]
    %v7218 = vld [vmem:[%s7190 + $0xd8] sm:$0xff]
    %v7219 = vld [vmem:[%s7190 + $0xe0] sm:$0xff]
    %v7220 = vld [vmem:[%s7190 + $0xe8] sm:$0xff]
    %v7221 = vld [vmem:[%s7190 + $0xf0] sm:$0xff]
    %v7222 = vld [vmem:[%s7190 + $0xf8] sm:$0xff]
    %v7223 = vld [vmem:[%s7190 + $0x100] sm:$0xff]
    %v7224 = vld [vmem:[%s7190 + $0x108] sm:$0xff]
    %v7225 = vld [vmem:[%s7190 + $0x110] sm:$0xff]
    %v7226 = vld [vmem:[%s7190 + $0x118] sm:$0xff]
    %v7227 = vld [vmem:[%s7190 + $0x120] sm:$0xff]
    %v7228 = vld [vmem:[%s7190 + $0x128] sm:$0xff]
    %v7229 = vld [vmem:[%s7190 + $0x130] sm:$0xff]
    %v7230 = vld [vmem:[%s7190 + $0x138] sm:$0xff]
    %v7231 = vld [vmem:[%s7190 + $0x140] sm:$0xff]
    %v7232 = vld [vmem:[%s7190 + $0x148] sm:$0xff]
    %v7233 = vld [vmem:[%s7190 + $0x150] sm:$0xff]
    %v7234 = vld [vmem:[%s7190 + $0x158] sm:$0xff]
    %v7235 = vld [vmem:[%s7190 + $0x160] sm:$0xff]
    %v7236 = vld [vmem:[%s7190 + $0x168] sm:$0xff]
    %v7237 = vld [vmem:[%s7190 + $0x170] sm:$0xff]
    %v7238 = vld [vmem:[%s7190 + $0x178] sm:$0xff]
    %v7239 = vld [vmem:[%s7190 + $0x180] sm:$0xff]
    %v7240 = vld [vmem:[%s7190 + $0x188] sm:$0xff]
    %v7241 = vld [vmem:[%s7190 + $0x190] sm:$0xff]
    %v7242 = vld [vmem:[%s7190 + $0x198] sm:$0xff]
    %v7243 = vld [vmem:[%s7190 + $0x1a0] sm:$0xff]
    %v7244 = vld [vmem:[%s7190 + $0x1a8] sm:$0xff]
    %v7245 = vld [vmem:[%s7190 + $0x1b0] sm:$0xff]
    %v7246 = vld [vmem:[%s7190 + $0x1b8] sm:$0xff]
    %v7247 = vld [vmem:[%s7190 + $0x1c0] sm:$0xff]
    %v7248 = vld [vmem:[%s7190 + $0x1c8] sm:$0xff]
    %v7249 = vld [vmem:[%s7190 + $0x1d0] sm:$0xff]
    %v7250 = vld [vmem:[%s7190 + $0x1d8] sm:$0xff]
    %v7251 = vld [vmem:[%s7190 + $0x1e0] sm:$0xff]
    %v7252 = vld [vmem:[%s7190 + $0x1e8] sm:$0xff]
    %v7253 = vld [vmem:[%s7190 + $0x1f0] sm:$0xff]
    %v7254 = vld [vmem:[%s7190 + $0x1f8] sm:$0xff]
    %7255 = vmatprep.subr.mxu0 %v7252
    %7256 = vmatpush1.msra.mxu0 %v7251
    %7257 = vmatprep.subr.mxu0 %v7248
    %7258 = vmatpush1.msra.mxu0 %v7247
    %7259 = vmatprep.subr.mxu0 %v7244
    %7260 = vmatpush1.msra.mxu0 %v7243
    %7261 = vmatprep.subr.mxu0 %v7240
    %7262 = vmatpush1.msra.mxu0 %v7239
    %7263 = vmatprep.subr.mxu0 %v7236
    %7264 = vmatpush1.msra.mxu0 %v7235
    %7265 = vmatprep.subr.mxu0 %v7232
    %7266 = vmatpush1.msra.mxu0 %v7231
    %7267 = vmatprep.subr.mxu0 %v7228
    %7268 = vmatpush1.msra.mxu0 %v7227
    %7269 = vmatprep.subr.mxu0 %v7224
    %7270 = vmatpush1.msra.mxu0 %v7223
    %7271 = vmatprep.subr.mxu0 %v7220
    %7272 = vmatpush1.msra.mxu0 %v7219
    %7273 = vmatprep.subr.mxu0 %v7216
    %7274 = vmatpush1.msra.mxu0 %v7215
    %7275 = vmatprep.subr.mxu0 %v7212
    %7276 = vmatpush1.msra.mxu0 %v7211
    %7277 = vmatprep.subr.mxu0 %v7208
    %7278 = vmatpush1.msra.mxu0 %v7207
    %7279 = vmatprep.subr.mxu0 %v7204
    %7280 = vmatpush1.msra.mxu0 %v7203
    %7281 = vmatprep.subr.mxu0 %v7200
    %7282 = vmatpush1.msra.mxu0 %v7199
    %7283 = vmatprep.subr.mxu0 %v7196
    %7284 = vmatpush1.msra.mxu0 %v7195
    %7285 = vmatprep.subr.mxu0 %v7192
    %7286 = vmatpush1.msra.mxu0 %v7191
    %7287 = vmatprep.subr.mxu0 0.0
    %7288 = vmatpush2.msra.mxu0 0.0
    %7289 = vmatprep.subr.mxu0 0.0
    %7290 = vmatpush2.msra.mxu0 0.0
    %7291 = vmatprep.subr.mxu0 0.0
    %7292 = vmatpush2.msra.mxu0 0.0
    %7293 = vmatprep.subr.mxu0 0.0
    %7294 = vmatpush2.msra.mxu0 0.0
    %7295 = vmatprep.subr.mxu0 0.0
    %7296 = vmatpush2.msra.mxu0 0.0
    %7297 = vmatprep.subr.mxu0 0.0
    %7298 = vmatpush2.msra.mxu0 0.0
    %7299 = vmatprep.subr.mxu0 0.0
    %7300 = vmatpush2.msra.mxu0 0.0
    %7301 = vmatprep.subr.mxu0 0.0
    %7302 = vmatpush2.msra.mxu0 0.0
    %7303 = vmatprep.subr.mxu0 0.0
    %7304 = vmatpush2.msra.mxu0 0.0
    %7305 = vmatprep.subr.mxu0 0.0
    %7306 = vmatpush2.msra.mxu0 0.0
    %7307 = vmatprep.subr.mxu0 0.0
    %7308 = vmatpush2.msra.mxu0 0.0
    %7309 = vmatprep.subr.mxu0 0.0
    %7310 = vmatpush2.msra.mxu0 0.0
    %7311 = vmatprep.subr.mxu0 0.0
    %7312 = vmatpush2.msra.mxu0 0.0
    %7313 = vmatprep.subr.mxu0 0.0
    %7314 = vmatpush2.msra.mxu0 0.0
    %7315 = vmatprep.subr.mxu0 0.0
    %7316 = vmatpush2.msra.mxu0 0.0
    %7317 = vmatprep.subr.mxu0 0.0
    %7318 = vmatpush2.msra.mxu0 0.0
    %7319 = vmatprep.mubr.f32.mxu0 0.0
    %7320 = vmatmul.mubr.f32.gmra.mxu0 %v4629
    %v7321 = vpop.f32.mrf.mxu0
    %v7322 = vadd.f32 0.0, %v7321
    %v7323 = vpop.f32.mrf.mxu0
    %v7324 = vadd.f32 0.0, %v7323
    %7325 = vdwg.mxu0
    %7326 = vmatprep.subr.mxu0 %v7254
    %7327 = vmatpush1.msra.mxu0 %v7253
    %7328 = vmatprep.subr.mxu0 %v7250
    %7329 = vmatpush1.msra.mxu0 %v7249
    %7330 = vmatprep.subr.mxu0 %v7246
    %7331 = vmatpush1.msra.mxu0 %v7245
    %7332 = vmatprep.subr.mxu0 %v7242
    %7333 = vmatpush1.msra.mxu0 %v7241
    %7334 = vmatprep.subr.mxu0 %v7238
    %7335 = vmatpush1.msra.mxu0 %v7237
    %7336 = vmatprep.subr.mxu0 %v7234
    %7337 = vmatpush1.msra.mxu0 %v7233
    %7338 = vmatprep.subr.mxu0 %v7230
    %7339 = vmatpush1.msra.mxu0 %v7229
    %7340 = vmatprep.subr.mxu0 %v7226
    %7341 = vmatpush1.msra.mxu0 %v7225
    %7342 = vmatprep.subr.mxu0 %v7222
    %7343 = vmatpush1.msra.mxu0 %v7221
    %7344 = vmatprep.subr.mxu0 %v7218
    %7345 = vmatpush1.msra.mxu0 %v7217
    %7346 = vmatprep.subr.mxu0 %v7214
    %7347 = vmatpush1.msra.mxu0 %v7213
    %7348 = vmatprep.subr.mxu0 %v7210
    %7349 = vmatpush1.msra.mxu0 %v7209
    %7350 = vmatprep.subr.mxu0 %v7206
    %7351 = vmatpush1.msra.mxu0 %v7205
    %7352 = vmatprep.subr.mxu0 %v7202
    %7353 = vmatpush1.msra.mxu0 %v7201
    %7354 = vmatprep.subr.mxu0 %v7198
    %7355 = vmatpush1.msra.mxu0 %v7197
    %7356 = vmatprep.subr.mxu0 %v7194
    %7357 = vmatpush1.msra.mxu0 %v7193
    %7358 = vmatprep.subr.mxu0 0.0
    %7359 = vmatpush2.msra.mxu0 0.0
    %7360 = vmatprep.subr.mxu0 0.0
    %7361 = vmatpush2.msra.mxu0 0.0
    %7362 = vmatprep.subr.mxu0 0.0
    %7363 = vmatpush2.msra.mxu0 0.0
    %7364 = vmatprep.subr.mxu0 0.0
    %7365 = vmatpush2.msra.mxu0 0.0
    %7366 = vmatprep.subr.mxu0 0.0
    %7367 = vmatpush2.msra.mxu0 0.0
    %7368 = vmatprep.subr.mxu0 0.0
    %7369 = vmatpush2.msra.mxu0 0.0
    %7370 = vmatprep.subr.mxu0 0.0
    %7371 = vmatpush2.msra.mxu0 0.0
    %7372 = vmatprep.subr.mxu0 0.0
    %7373 = vmatpush2.msra.mxu0 0.0
    %7374 = vmatprep.subr.mxu0 0.0
    %7375 = vmatpush2.msra.mxu0 0.0
    %7376 = vmatprep.subr.mxu0 0.0
    %7377 = vmatpush2.msra.mxu0 0.0
    %7378 = vmatprep.subr.mxu0 0.0
    %7379 = vmatpush2.msra.mxu0 0.0
    %7380 = vmatprep.subr.mxu0 0.0
    %7381 = vmatpush2.msra.mxu0 0.0
    %7382 = vmatprep.subr.mxu0 0.0
    %7383 = vmatpush2.msra.mxu0 0.0
    %7384 = vmatprep.subr.mxu0 0.0
    %7385 = vmatpush2.msra.mxu0 0.0
    %7386 = vmatprep.subr.mxu0 0.0
    %7387 = vmatpush2.msra.mxu0 0.0
    %7388 = vmatprep.subr.mxu0 0.0
    %7389 = vmatpush2.msra.mxu0 0.0
    %7390 = vmatprep.mubr.f32.mxu0 0.0
    %7391 = vmatmul.mubr.f32.gmra.mxu0 %v4629
    %v7392 = vpop.f32.mrf.mxu0
    %v7393 = vadd.f32 0.0, %v7392
    %v7394 = vpop.f32.mrf.mxu0
    %v7395 = vadd.f32 0.0, %v7394
    %7396 = vdwg.mxu0
    %v7397 = vadd.f32 %v7186, %v7322
    %v7398 = vadd.f32 %v7187, %v7324
    %v7399 = vadd.f32 %v7188, %v7393
    %v7400 = vadd.f32 %v7189, %v7395
    %s7401 = scalar_lea.vmem [#allocation4], 6656
    %v7402 = vld [vmem:[%s7401] sm:$0xff]
    %v7403 = vld [vmem:[%s7401 + $0x8] sm:$0xff]
    %v7404 = vld [vmem:[%s7401 + $0x10] sm:$0xff]
    %v7405 = vld [vmem:[%s7401 + $0x18] sm:$0xff]
    %v7406 = vld [vmem:[%s7401 + $0x20] sm:$0xff]
    %v7407 = vld [vmem:[%s7401 + $0x28] sm:$0xff]
    %v7408 = vld [vmem:[%s7401 + $0x30] sm:$0xff]
    %v7409 = vld [vmem:[%s7401 + $0x38] sm:$0xff]
    %v7410 = vld [vmem:[%s7401 + $0x40] sm:$0xff]
    %v7411 = vld [vmem:[%s7401 + $0x48] sm:$0xff]
    %v7412 = vld [vmem:[%s7401 + $0x50] sm:$0xff]
    %v7413 = vld [vmem:[%s7401 + $0x58] sm:$0xff]
    %v7414 = vld [vmem:[%s7401 + $0x60] sm:$0xff]
    %v7415 = vld [vmem:[%s7401 + $0x68] sm:$0xff]
    %v7416 = vld [vmem:[%s7401 + $0x70] sm:$0xff]
    %v7417 = vld [vmem:[%s7401 + $0x78] sm:$0xff]
    %v7418 = vld [vmem:[%s7401 + $0x80] sm:$0xff]
    %v7419 = vld [vmem:[%s7401 + $0x88] sm:$0xff]
    %v7420 = vld [vmem:[%s7401 + $0x90] sm:$0xff]
    %v7421 = vld [vmem:[%s7401 + $0x98] sm:$0xff]
    %v7422 = vld [vmem:[%s7401 + $0xa0] sm:$0xff]
    %v7423 = vld [vmem:[%s7401 + $0xa8] sm:$0xff]
    %v7424 = vld [vmem:[%s7401 + $0xb0] sm:$0xff]
    %v7425 = vld [vmem:[%s7401 + $0xb8] sm:$0xff]
    %v7426 = vld [vmem:[%s7401 + $0xc0] sm:$0xff]
    %v7427 = vld [vmem:[%s7401 + $0xc8] sm:$0xff]
    %v7428 = vld [vmem:[%s7401 + $0xd0] sm:$0xff]
    %v7429 = vld [vmem:[%s7401 + $0xd8] sm:$0xff]
    %v7430 = vld [vmem:[%s7401 + $0xe0] sm:$0xff]
    %v7431 = vld [vmem:[%s7401 + $0xe8] sm:$0xff]
    %v7432 = vld [vmem:[%s7401 + $0xf0] sm:$0xff]
    %v7433 = vld [vmem:[%s7401 + $0xf8] sm:$0xff]
    %v7434 = vld [vmem:[%s7401 + $0x100] sm:$0xff]
    %v7435 = vld [vmem:[%s7401 + $0x108] sm:$0xff]
    %v7436 = vld [vmem:[%s7401 + $0x110] sm:$0xff]
    %v7437 = vld [vmem:[%s7401 + $0x118] sm:$0xff]
    %v7438 = vld [vmem:[%s7401 + $0x120] sm:$0xff]
    %v7439 = vld [vmem:[%s7401 + $0x128] sm:$0xff]
    %v7440 = vld [vmem:[%s7401 + $0x130] sm:$0xff]
    %v7441 = vld [vmem:[%s7401 + $0x138] sm:$0xff]
    %v7442 = vld [vmem:[%s7401 + $0x140] sm:$0xff]
    %v7443 = vld [vmem:[%s7401 + $0x148] sm:$0xff]
    %v7444 = vld [vmem:[%s7401 + $0x150] sm:$0xff]
    %v7445 = vld [vmem:[%s7401 + $0x158] sm:$0xff]
    %v7446 = vld [vmem:[%s7401 + $0x160] sm:$0xff]
    %v7447 = vld [vmem:[%s7401 + $0x168] sm:$0xff]
    %v7448 = vld [vmem:[%s7401 + $0x170] sm:$0xff]
    %v7449 = vld [vmem:[%s7401 + $0x178] sm:$0xff]
    %v7450 = vld [vmem:[%s7401 + $0x180] sm:$0xff]
    %v7451 = vld [vmem:[%s7401 + $0x188] sm:$0xff]
    %v7452 = vld [vmem:[%s7401 + $0x190] sm:$0xff]
    %v7453 = vld [vmem:[%s7401 + $0x198] sm:$0xff]
    %v7454 = vld [vmem:[%s7401 + $0x1a0] sm:$0xff]
    %v7455 = vld [vmem:[%s7401 + $0x1a8] sm:$0xff]
    %v7456 = vld [vmem:[%s7401 + $0x1b0] sm:$0xff]
    %v7457 = vld [vmem:[%s7401 + $0x1b8] sm:$0xff]
    %v7458 = vld [vmem:[%s7401 + $0x1c0] sm:$0xff]
    %v7459 = vld [vmem:[%s7401 + $0x1c8] sm:$0xff]
    %v7460 = vld [vmem:[%s7401 + $0x1d0] sm:$0xff]
    %v7461 = vld [vmem:[%s7401 + $0x1d8] sm:$0xff]
    %v7462 = vld [vmem:[%s7401 + $0x1e0] sm:$0xff]
    %v7463 = vld [vmem:[%s7401 + $0x1e8] sm:$0xff]
    %v7464 = vld [vmem:[%s7401 + $0x1f0] sm:$0xff]
    %v7465 = vld [vmem:[%s7401 + $0x1f8] sm:$0xff]
    %7466 = vmatprep.subr.mxu0 %v7463
    %7467 = vmatpush1.msra.mxu0 %v7462
    %7468 = vmatprep.subr.mxu0 %v7459
    %7469 = vmatpush1.msra.mxu0 %v7458
    %7470 = vmatprep.subr.mxu0 %v7455
    %7471 = vmatpush1.msra.mxu0 %v7454
    %7472 = vmatprep.subr.mxu0 %v7451
    %7473 = vmatpush1.msra.mxu0 %v7450
    %7474 = vmatprep.subr.mxu0 %v7447
    %7475 = vmatpush1.msra.mxu0 %v7446
    %7476 = vmatprep.subr.mxu0 %v7443
    %7477 = vmatpush1.msra.mxu0 %v7442
    %7478 = vmatprep.subr.mxu0 %v7439
    %7479 = vmatpush1.msra.mxu0 %v7438
    %7480 = vmatprep.subr.mxu0 %v7435
    %7481 = vmatpush1.msra.mxu0 %v7434
    %7482 = vmatprep.subr.mxu0 %v7431
    %7483 = vmatpush1.msra.mxu0 %v7430
    %7484 = vmatprep.subr.mxu0 %v7427
    %7485 = vmatpush1.msra.mxu0 %v7426
    %7486 = vmatprep.subr.mxu0 %v7423
    %7487 = vmatpush1.msra.mxu0 %v7422
    %7488 = vmatprep.subr.mxu0 %v7419
    %7489 = vmatpush1.msra.mxu0 %v7418
    %7490 = vmatprep.subr.mxu0 %v7415
    %7491 = vmatpush1.msra.mxu0 %v7414
    %7492 = vmatprep.subr.mxu0 %v7411
    %7493 = vmatpush1.msra.mxu0 %v7410
    %7494 = vmatprep.subr.mxu0 %v7407
    %7495 = vmatpush1.msra.mxu0 %v7406
    %7496 = vmatprep.subr.mxu0 %v7403
    %7497 = vmatpush1.msra.mxu0 %v7402
    %7498 = vmatprep.subr.mxu0 0.0
    %7499 = vmatpush2.msra.mxu0 0.0
    %7500 = vmatprep.subr.mxu0 0.0
    %7501 = vmatpush2.msra.mxu0 0.0
    %7502 = vmatprep.subr.mxu0 0.0
    %7503 = vmatpush2.msra.mxu0 0.0
    %7504 = vmatprep.subr.mxu0 0.0
    %7505 = vmatpush2.msra.mxu0 0.0
    %7506 = vmatprep.subr.mxu0 0.0
    %7507 = vmatpush2.msra.mxu0 0.0
    %7508 = vmatprep.subr.mxu0 0.0
    %7509 = vmatpush2.msra.mxu0 0.0
    %7510 = vmatprep.subr.mxu0 0.0
    %7511 = vmatpush2.msra.mxu0 0.0
    %7512 = vmatprep.subr.mxu0 0.0
    %7513 = vmatpush2.msra.mxu0 0.0
    %7514 = vmatprep.subr.mxu0 0.0
    %7515 = vmatpush2.msra.mxu0 0.0
    %7516 = vmatprep.subr.mxu0 0.0
    %7517 = vmatpush2.msra.mxu0 0.0
    %7518 = vmatprep.subr.mxu0 0.0
    %7519 = vmatpush2.msra.mxu0 0.0
    %7520 = vmatprep.subr.mxu0 0.0
    %7521 = vmatpush2.msra.mxu0 0.0
    %7522 = vmatprep.subr.mxu0 0.0
    %7523 = vmatpush2.msra.mxu0 0.0
    %7524 = vmatprep.subr.mxu0 0.0
    %7525 = vmatpush2.msra.mxu0 0.0
    %7526 = vmatprep.subr.mxu0 0.0
    %7527 = vmatpush2.msra.mxu0 0.0
    %7528 = vmatprep.subr.mxu0 0.0
    %7529 = vmatpush2.msra.mxu0 0.0
    %7530 = vmatprep.mubr.f32.mxu0 0.0
    %7531 = vmatmul.mubr.f32.gmra.mxu0 %v4630
    %v7532 = vpop.f32.mrf.mxu0
    %v7533 = vadd.f32 0.0, %v7532
    %v7534 = vpop.f32.mrf.mxu0
    %v7535 = vadd.f32 0.0, %v7534
    %7536 = vdwg.mxu0
    %7537 = vmatprep.subr.mxu0 %v7465
    %7538 = vmatpush1.msra.mxu0 %v7464
    %7539 = vmatprep.subr.mxu0 %v7461
    %7540 = vmatpush1.msra.mxu0 %v7460
    %7541 = vmatprep.subr.mxu0 %v7457
    %7542 = vmatpush1.msra.mxu0 %v7456
    %7543 = vmatprep.subr.mxu0 %v7453
    %7544 = vmatpush1.msra.mxu0 %v7452
    %7545 = vmatprep.subr.mxu0 %v7449
    %7546 = vmatpush1.msra.mxu0 %v7448
    %7547 = vmatprep.subr.mxu0 %v7445
    %7548 = vmatpush1.msra.mxu0 %v7444
    %7549 = vmatprep.subr.mxu0 %v7441
    %7550 = vmatpush1.msra.mxu0 %v7440
    %7551 = vmatprep.subr.mxu0 %v7437
    %7552 = vmatpush1.msra.mxu0 %v7436
    %7553 = vmatprep.subr.mxu0 %v7433
    %7554 = vmatpush1.msra.mxu0 %v7432
    %7555 = vmatprep.subr.mxu0 %v7429
    %7556 = vmatpush1.msra.mxu0 %v7428
    %7557 = vmatprep.subr.mxu0 %v7425
    %7558 = vmatpush1.msra.mxu0 %v7424
    %7559 = vmatprep.subr.mxu0 %v7421
    %7560 = vmatpush1.msra.mxu0 %v7420
    %7561 = vmatprep.subr.mxu0 %v7417
    %7562 = vmatpush1.msra.mxu0 %v7416
    %7563 = vmatprep.subr.mxu0 %v7413
    %7564 = vmatpush1.msra.mxu0 %v7412
    %7565 = vmatprep.subr.mxu0 %v7409
    %7566 = vmatpush1.msra.mxu0 %v7408
    %7567 = vmatprep.subr.mxu0 %v7405
    %7568 = vmatpush1.msra.mxu0 %v7404
    %7569 = vmatprep.subr.mxu0 0.0
    %7570 = vmatpush2.msra.mxu0 0.0
    %7571 = vmatprep.subr.mxu0 0.0
    %7572 = vmatpush2.msra.mxu0 0.0
    %7573 = vmatprep.subr.mxu0 0.0
    %7574 = vmatpush2.msra.mxu0 0.0
    %7575 = vmatprep.subr.mxu0 0.0
    %7576 = vmatpush2.msra.mxu0 0.0
    %7577 = vmatprep.subr.mxu0 0.0
    %7578 = vmatpush2.msra.mxu0 0.0
    %7579 = vmatprep.subr.mxu0 0.0
    %7580 = vmatpush2.msra.mxu0 0.0
    %7581 = vmatprep.subr.mxu0 0.0
    %7582 = vmatpush2.msra.mxu0 0.0
    %7583 = vmatprep.subr.mxu0 0.0
    %7584 = vmatpush2.msra.mxu0 0.0
    %7585 = vmatprep.subr.mxu0 0.0
    %7586 = vmatpush2.msra.mxu0 0.0
    %7587 = vmatprep.subr.mxu0 0.0
    %7588 = vmatpush2.msra.mxu0 0.0
    %7589 = vmatprep.subr.mxu0 0.0
    %7590 = vmatpush2.msra.mxu0 0.0
    %7591 = vmatprep.subr.mxu0 0.0
    %7592 = vmatpush2.msra.mxu0 0.0
    %7593 = vmatprep.subr.mxu0 0.0
    %7594 = vmatpush2.msra.mxu0 0.0
    %7595 = vmatprep.subr.mxu0 0.0
    %7596 = vmatpush2.msra.mxu0 0.0
    %7597 = vmatprep.subr.mxu0 0.0
    %7598 = vmatpush2.msra.mxu0 0.0
    %7599 = vmatprep.subr.mxu0 0.0
    %7600 = vmatpush2.msra.mxu0 0.0
    %7601 = vmatprep.mubr.f32.mxu0 0.0
    %7602 = vmatmul.mubr.f32.gmra.mxu0 %v4630
    %v7603 = vpop.f32.mrf.mxu0
    %v7604 = vadd.f32 0.0, %v7603
    %v7605 = vpop.f32.mrf.mxu0
    %v7606 = vadd.f32 0.0, %v7605
    %7607 = vdwg.mxu0
    %v7608 = vadd.f32 %v7397, %v7533
    %v7609 = vadd.f32 %v7398, %v7535
    %v7610 = vadd.f32 %v7399, %v7604
    %v7611 = vadd.f32 %v7400, %v7606
    %s7612 = scalar_lea.vmem [#allocation4], 7168
    %v7613 = vld [vmem:[%s7612] sm:$0xff]
    %v7614 = vld [vmem:[%s7612 + $0x8] sm:$0xff]
    %v7615 = vld [vmem:[%s7612 + $0x10] sm:$0xff]
    %v7616 = vld [vmem:[%s7612 + $0x18] sm:$0xff]
    %v7617 = vld [vmem:[%s7612 + $0x20] sm:$0xff]
    %v7618 = vld [vmem:[%s7612 + $0x28] sm:$0xff]
    %v7619 = vld [vmem:[%s7612 + $0x30] sm:$0xff]
    %v7620 = vld [vmem:[%s7612 + $0x38] sm:$0xff]
    %v7621 = vld [vmem:[%s7612 + $0x40] sm:$0xff]
    %v7622 = vld [vmem:[%s7612 + $0x48] sm:$0xff]
    %v7623 = vld [vmem:[%s7612 + $0x50] sm:$0xff]
    %v7624 = vld [vmem:[%s7612 + $0x58] sm:$0xff]
    %v7625 = vld [vmem:[%s7612 + $0x60] sm:$0xff]
    %v7626 = vld [vmem:[%s7612 + $0x68] sm:$0xff]
    %v7627 = vld [vmem:[%s7612 + $0x70] sm:$0xff]
    %v7628 = vld [vmem:[%s7612 + $0x78] sm:$0xff]
    %v7629 = vld [vmem:[%s7612 + $0x80] sm:$0xff]
    %v7630 = vld [vmem:[%s7612 + $0x88] sm:$0xff]
    %v7631 = vld [vmem:[%s7612 + $0x90] sm:$0xff]
    %v7632 = vld [vmem:[%s7612 + $0x98] sm:$0xff]
    %v7633 = vld [vmem:[%s7612 + $0xa0] sm:$0xff]
    %v7634 = vld [vmem:[%s7612 + $0xa8] sm:$0xff]
    %v7635 = vld [vmem:[%s7612 + $0xb0] sm:$0xff]
    %v7636 = vld [vmem:[%s7612 + $0xb8] sm:$0xff]
    %v7637 = vld [vmem:[%s7612 + $0xc0] sm:$0xff]
    %v7638 = vld [vmem:[%s7612 + $0xc8] sm:$0xff]
    %v7639 = vld [vmem:[%s7612 + $0xd0] sm:$0xff]
    %v7640 = vld [vmem:[%s7612 + $0xd8] sm:$0xff]
    %v7641 = vld [vmem:[%s7612 + $0xe0] sm:$0xff]
    %v7642 = vld [vmem:[%s7612 + $0xe8] sm:$0xff]
    %v7643 = vld [vmem:[%s7612 + $0xf0] sm:$0xff]
    %v7644 = vld [vmem:[%s7612 + $0xf8] sm:$0xff]
    %v7645 = vld [vmem:[%s7612 + $0x100] sm:$0xff]
    %v7646 = vld [vmem:[%s7612 + $0x108] sm:$0xff]
    %v7647 = vld [vmem:[%s7612 + $0x110] sm:$0xff]
    %v7648 = vld [vmem:[%s7612 + $0x118] sm:$0xff]
    %v7649 = vld [vmem:[%s7612 + $0x120] sm:$0xff]
    %v7650 = vld [vmem:[%s7612 + $0x128] sm:$0xff]
    %v7651 = vld [vmem:[%s7612 + $0x130] sm:$0xff]
    %v7652 = vld [vmem:[%s7612 + $0x138] sm:$0xff]
    %v7653 = vld [vmem:[%s7612 + $0x140] sm:$0xff]
    %v7654 = vld [vmem:[%s7612 + $0x148] sm:$0xff]
    %v7655 = vld [vmem:[%s7612 + $0x150] sm:$0xff]
    %v7656 = vld [vmem:[%s7612 + $0x158] sm:$0xff]
    %v7657 = vld [vmem:[%s7612 + $0x160] sm:$0xff]
    %v7658 = vld [vmem:[%s7612 + $0x168] sm:$0xff]
    %v7659 = vld [vmem:[%s7612 + $0x170] sm:$0xff]
    %v7660 = vld [vmem:[%s7612 + $0x178] sm:$0xff]
    %v7661 = vld [vmem:[%s7612 + $0x180] sm:$0xff]
    %v7662 = vld [vmem:[%s7612 + $0x188] sm:$0xff]
    %v7663 = vld [vmem:[%s7612 + $0x190] sm:$0xff]
    %v7664 = vld [vmem:[%s7612 + $0x198] sm:$0xff]
    %v7665 = vld [vmem:[%s7612 + $0x1a0] sm:$0xff]
    %v7666 = vld [vmem:[%s7612 + $0x1a8] sm:$0xff]
    %v7667 = vld [vmem:[%s7612 + $0x1b0] sm:$0xff]
    %v7668 = vld [vmem:[%s7612 + $0x1b8] sm:$0xff]
    %v7669 = vld [vmem:[%s7612 + $0x1c0] sm:$0xff]
    %v7670 = vld [vmem:[%s7612 + $0x1c8] sm:$0xff]
    %v7671 = vld [vmem:[%s7612 + $0x1d0] sm:$0xff]
    %v7672 = vld [vmem:[%s7612 + $0x1d8] sm:$0xff]
    %v7673 = vld [vmem:[%s7612 + $0x1e0] sm:$0xff]
    %v7674 = vld [vmem:[%s7612 + $0x1e8] sm:$0xff]
    %v7675 = vld [vmem:[%s7612 + $0x1f0] sm:$0xff]
    %v7676 = vld [vmem:[%s7612 + $0x1f8] sm:$0xff]
    %7677 = vmatprep.subr.mxu0 %v7674
    %7678 = vmatpush1.msra.mxu0 %v7673
    %7679 = vmatprep.subr.mxu0 %v7670
    %7680 = vmatpush1.msra.mxu0 %v7669
    %7681 = vmatprep.subr.mxu0 %v7666
    %7682 = vmatpush1.msra.mxu0 %v7665
    %7683 = vmatprep.subr.mxu0 %v7662
    %7684 = vmatpush1.msra.mxu0 %v7661
    %7685 = vmatprep.subr.mxu0 %v7658
    %7686 = vmatpush1.msra.mxu0 %v7657
    %7687 = vmatprep.subr.mxu0 %v7654
    %7688 = vmatpush1.msra.mxu0 %v7653
    %7689 = vmatprep.subr.mxu0 %v7650
    %7690 = vmatpush1.msra.mxu0 %v7649
    %7691 = vmatprep.subr.mxu0 %v7646
    %7692 = vmatpush1.msra.mxu0 %v7645
    %7693 = vmatprep.subr.mxu0 %v7642
    %7694 = vmatpush1.msra.mxu0 %v7641
    %7695 = vmatprep.subr.mxu0 %v7638
    %7696 = vmatpush1.msra.mxu0 %v7637
    %7697 = vmatprep.subr.mxu0 %v7634
    %7698 = vmatpush1.msra.mxu0 %v7633
    %7699 = vmatprep.subr.mxu0 %v7630
    %7700 = vmatpush1.msra.mxu0 %v7629
    %7701 = vmatprep.subr.mxu0 %v7626
    %7702 = vmatpush1.msra.mxu0 %v7625
    %7703 = vmatprep.subr.mxu0 %v7622
    %7704 = vmatpush1.msra.mxu0 %v7621
    %7705 = vmatprep.subr.mxu0 %v7618
    %7706 = vmatpush1.msra.mxu0 %v7617
    %7707 = vmatprep.subr.mxu0 %v7614
    %7708 = vmatpush1.msra.mxu0 %v7613
    %7709 = vmatprep.subr.mxu0 0.0
    %7710 = vmatpush2.msra.mxu0 0.0
    %7711 = vmatprep.subr.mxu0 0.0
    %7712 = vmatpush2.msra.mxu0 0.0
    %7713 = vmatprep.subr.mxu0 0.0
    %7714 = vmatpush2.msra.mxu0 0.0
    %7715 = vmatprep.subr.mxu0 0.0
    %7716 = vmatpush2.msra.mxu0 0.0
    %7717 = vmatprep.subr.mxu0 0.0
    %7718 = vmatpush2.msra.mxu0 0.0
    %7719 = vmatprep.subr.mxu0 0.0
    %7720 = vmatpush2.msra.mxu0 0.0
    %7721 = vmatprep.subr.mxu0 0.0
    %7722 = vmatpush2.msra.mxu0 0.0
    %7723 = vmatprep.subr.mxu0 0.0
    %7724 = vmatpush2.msra.mxu0 0.0
    %7725 = vmatprep.subr.mxu0 0.0
    %7726 = vmatpush2.msra.mxu0 0.0
    %7727 = vmatprep.subr.mxu0 0.0
    %7728 = vmatpush2.msra.mxu0 0.0
    %7729 = vmatprep.subr.mxu0 0.0
    %7730 = vmatpush2.msra.mxu0 0.0
    %7731 = vmatprep.subr.mxu0 0.0
    %7732 = vmatpush2.msra.mxu0 0.0
    %7733 = vmatprep.subr.mxu0 0.0
    %7734 = vmatpush2.msra.mxu0 0.0
    %7735 = vmatprep.subr.mxu0 0.0
    %7736 = vmatpush2.msra.mxu0 0.0
    %7737 = vmatprep.subr.mxu0 0.0
    %7738 = vmatpush2.msra.mxu0 0.0
    %7739 = vmatprep.subr.mxu0 0.0
    %7740 = vmatpush2.msra.mxu0 0.0
    %7741 = vmatprep.mubr.f32.mxu0 0.0
    %7742 = vmatmul.mubr.f32.gmra.mxu0 %v4631
    %v7743 = vpop.f32.mrf.mxu0
    %v7744 = vadd.f32 0.0, %v7743
    %v7745 = vpop.f32.mrf.mxu0
    %v7746 = vadd.f32 0.0, %v7745
    %7747 = vdwg.mxu0
    %7748 = vmatprep.subr.mxu0 %v7676
    %7749 = vmatpush1.msra.mxu0 %v7675
    %7750 = vmatprep.subr.mxu0 %v7672
    %7751 = vmatpush1.msra.mxu0 %v7671
    %7752 = vmatprep.subr.mxu0 %v7668
    %7753 = vmatpush1.msra.mxu0 %v7667
    %7754 = vmatprep.subr.mxu0 %v7664
    %7755 = vmatpush1.msra.mxu0 %v7663
    %7756 = vmatprep.subr.mxu0 %v7660
    %7757 = vmatpush1.msra.mxu0 %v7659
    %7758 = vmatprep.subr.mxu0 %v7656
    %7759 = vmatpush1.msra.mxu0 %v7655
    %7760 = vmatprep.subr.mxu0 %v7652
    %7761 = vmatpush1.msra.mxu0 %v7651
    %7762 = vmatprep.subr.mxu0 %v7648
    %7763 = vmatpush1.msra.mxu0 %v7647
    %7764 = vmatprep.subr.mxu0 %v7644
    %7765 = vmatpush1.msra.mxu0 %v7643
    %7766 = vmatprep.subr.mxu0 %v7640
    %7767 = vmatpush1.msra.mxu0 %v7639
    %7768 = vmatprep.subr.mxu0 %v7636
    %7769 = vmatpush1.msra.mxu0 %v7635
    %7770 = vmatprep.subr.mxu0 %v7632
    %7771 = vmatpush1.msra.mxu0 %v7631
    %7772 = vmatprep.subr.mxu0 %v7628
    %7773 = vmatpush1.msra.mxu0 %v7627
    %7774 = vmatprep.subr.mxu0 %v7624
    %7775 = vmatpush1.msra.mxu0 %v7623
    %7776 = vmatprep.subr.mxu0 %v7620
    %7777 = vmatpush1.msra.mxu0 %v7619
    %7778 = vmatprep.subr.mxu0 %v7616
    %7779 = vmatpush1.msra.mxu0 %v7615
    %7780 = vmatprep.subr.mxu0 0.0
    %7781 = vmatpush2.msra.mxu0 0.0
    %7782 = vmatprep.subr.mxu0 0.0
    %7783 = vmatpush2.msra.mxu0 0.0
    %7784 = vmatprep.subr.mxu0 0.0
    %7785 = vmatpush2.msra.mxu0 0.0
    %7786 = vmatprep.subr.mxu0 0.0
    %7787 = vmatpush2.msra.mxu0 0.0
    %7788 = vmatprep.subr.mxu0 0.0
    %7789 = vmatpush2.msra.mxu0 0.0
    %7790 = vmatprep.subr.mxu0 0.0
    %7791 = vmatpush2.msra.mxu0 0.0
    %7792 = vmatprep.subr.mxu0 0.0
    %7793 = vmatpush2.msra.mxu0 0.0
    %7794 = vmatprep.subr.mxu0 0.0
    %7795 = vmatpush2.msra.mxu0 0.0
    %7796 = vmatprep.subr.mxu0 0.0
    %7797 = vmatpush2.msra.mxu0 0.0
    %7798 = vmatprep.subr.mxu0 0.0
    %7799 = vmatpush2.msra.mxu0 0.0
    %7800 = vmatprep.subr.mxu0 0.0
    %7801 = vmatpush2.msra.mxu0 0.0
    %7802 = vmatprep.subr.mxu0 0.0
    %7803 = vmatpush2.msra.mxu0 0.0
    %7804 = vmatprep.subr.mxu0 0.0
    %7805 = vmatpush2.msra.mxu0 0.0
    %7806 = vmatprep.subr.mxu0 0.0
    %7807 = vmatpush2.msra.mxu0 0.0
    %7808 = vmatprep.subr.mxu0 0.0
    %7809 = vmatpush2.msra.mxu0 0.0
    %7810 = vmatprep.subr.mxu0 0.0
    %7811 = vmatpush2.msra.mxu0 0.0
    %7812 = vmatprep.mubr.f32.mxu0 0.0
    %7813 = vmatmul.mubr.f32.gmra.mxu0 %v4631
    %v7814 = vpop.f32.mrf.mxu0
    %v7815 = vadd.f32 0.0, %v7814
    %v7816 = vpop.f32.mrf.mxu0
    %v7817 = vadd.f32 0.0, %v7816
    %7818 = vdwg.mxu0
    %v7819 = vadd.f32 %v7608, %v7744
    %v7820 = vadd.f32 %v7609, %v7746
    %v7821 = vadd.f32 %v7610, %v7815
    %v7822 = vadd.f32 %v7611, %v7817
    %s7823 = scalar_lea.vmem [#allocation4], 7680
    %v7824 = vld [vmem:[%s7823] sm:$0xff]
    %v7825 = vld [vmem:[%s7823 + $0x8] sm:$0xff]
    %v7826 = vld [vmem:[%s7823 + $0x10] sm:$0xff]
    %v7827 = vld [vmem:[%s7823 + $0x18] sm:$0xff]
    %v7828 = vld [vmem:[%s7823 + $0x20] sm:$0xff]
    %v7829 = vld [vmem:[%s7823 + $0x28] sm:$0xff]
    %v7830 = vld [vmem:[%s7823 + $0x30] sm:$0xff]
    %v7831 = vld [vmem:[%s7823 + $0x38] sm:$0xff]
    %v7832 = vld [vmem:[%s7823 + $0x40] sm:$0xff]
    %v7833 = vld [vmem:[%s7823 + $0x48] sm:$0xff]
    %v7834 = vld [vmem:[%s7823 + $0x50] sm:$0xff]
    %v7835 = vld [vmem:[%s7823 + $0x58] sm:$0xff]
    %v7836 = vld [vmem:[%s7823 + $0x60] sm:$0xff]
    %v7837 = vld [vmem:[%s7823 + $0x68] sm:$0xff]
    %v7838 = vld [vmem:[%s7823 + $0x70] sm:$0xff]
    %v7839 = vld [vmem:[%s7823 + $0x78] sm:$0xff]
    %v7840 = vld [vmem:[%s7823 + $0x80] sm:$0xff]
    %v7841 = vld [vmem:[%s7823 + $0x88] sm:$0xff]
    %v7842 = vld [vmem:[%s7823 + $0x90] sm:$0xff]
    %v7843 = vld [vmem:[%s7823 + $0x98] sm:$0xff]
    %v7844 = vld [vmem:[%s7823 + $0xa0] sm:$0xff]
    %v7845 = vld [vmem:[%s7823 + $0xa8] sm:$0xff]
    %v7846 = vld [vmem:[%s7823 + $0xb0] sm:$0xff]
    %v7847 = vld [vmem:[%s7823 + $0xb8] sm:$0xff]
    %v7848 = vld [vmem:[%s7823 + $0xc0] sm:$0xff]
    %v7849 = vld [vmem:[%s7823 + $0xc8] sm:$0xff]
    %v7850 = vld [vmem:[%s7823 + $0xd0] sm:$0xff]
    %v7851 = vld [vmem:[%s7823 + $0xd8] sm:$0xff]
    %v7852 = vld [vmem:[%s7823 + $0xe0] sm:$0xff]
    %v7853 = vld [vmem:[%s7823 + $0xe8] sm:$0xff]
    %v7854 = vld [vmem:[%s7823 + $0xf0] sm:$0xff]
    %v7855 = vld [vmem:[%s7823 + $0xf8] sm:$0xff]
    %v7856 = vld [vmem:[%s7823 + $0x100] sm:$0xff]
    %v7857 = vld [vmem:[%s7823 + $0x108] sm:$0xff]
    %v7858 = vld [vmem:[%s7823 + $0x110] sm:$0xff]
    %v7859 = vld [vmem:[%s7823 + $0x118] sm:$0xff]
    %v7860 = vld [vmem:[%s7823 + $0x120] sm:$0xff]
    %v7861 = vld [vmem:[%s7823 + $0x128] sm:$0xff]
    %v7862 = vld [vmem:[%s7823 + $0x130] sm:$0xff]
    %v7863 = vld [vmem:[%s7823 + $0x138] sm:$0xff]
    %v7864 = vld [vmem:[%s7823 + $0x140] sm:$0xff]
    %v7865 = vld [vmem:[%s7823 + $0x148] sm:$0xff]
    %v7866 = vld [vmem:[%s7823 + $0x150] sm:$0xff]
    %v7867 = vld [vmem:[%s7823 + $0x158] sm:$0xff]
    %v7868 = vld [vmem:[%s7823 + $0x160] sm:$0xff]
    %v7869 = vld [vmem:[%s7823 + $0x168] sm:$0xff]
    %v7870 = vld [vmem:[%s7823 + $0x170] sm:$0xff]
    %v7871 = vld [vmem:[%s7823 + $0x178] sm:$0xff]
    %v7872 = vld [vmem:[%s7823 + $0x180] sm:$0xff]
    %v7873 = vld [vmem:[%s7823 + $0x188] sm:$0xff]
    %v7874 = vld [vmem:[%s7823 + $0x190] sm:$0xff]
    %v7875 = vld [vmem:[%s7823 + $0x198] sm:$0xff]
    %v7876 = vld [vmem:[%s7823 + $0x1a0] sm:$0xff]
    %v7877 = vld [vmem:[%s7823 + $0x1a8] sm:$0xff]
    %v7878 = vld [vmem:[%s7823 + $0x1b0] sm:$0xff]
    %v7879 = vld [vmem:[%s7823 + $0x1b8] sm:$0xff]
    %v7880 = vld [vmem:[%s7823 + $0x1c0] sm:$0xff]
    %v7881 = vld [vmem:[%s7823 + $0x1c8] sm:$0xff]
    %v7882 = vld [vmem:[%s7823 + $0x1d0] sm:$0xff]
    %v7883 = vld [vmem:[%s7823 + $0x1d8] sm:$0xff]
    %v7884 = vld [vmem:[%s7823 + $0x1e0] sm:$0xff]
    %v7885 = vld [vmem:[%s7823 + $0x1e8] sm:$0xff]
    %v7886 = vld [vmem:[%s7823 + $0x1f0] sm:$0xff]
    %v7887 = vld [vmem:[%s7823 + $0x1f8] sm:$0xff]
    %7888 = vmatprep.subr.mxu0 %v7885
    %7889 = vmatpush1.msra.mxu0 %v7884
    %7890 = vmatprep.subr.mxu0 %v7881
    %7891 = vmatpush1.msra.mxu0 %v7880
    %7892 = vmatprep.subr.mxu0 %v7877
    %7893 = vmatpush1.msra.mxu0 %v7876
    %7894 = vmatprep.subr.mxu0 %v7873
    %7895 = vmatpush1.msra.mxu0 %v7872
    %7896 = vmatprep.subr.mxu0 %v7869
    %7897 = vmatpush1.msra.mxu0 %v7868
    %7898 = vmatprep.subr.mxu0 %v7865
    %7899 = vmatpush1.msra.mxu0 %v7864
    %7900 = vmatprep.subr.mxu0 %v7861
    %7901 = vmatpush1.msra.mxu0 %v7860
    %7902 = vmatprep.subr.mxu0 %v7857
    %7903 = vmatpush1.msra.mxu0 %v7856
    %7904 = vmatprep.subr.mxu0 %v7853
    %7905 = vmatpush1.msra.mxu0 %v7852
    %7906 = vmatprep.subr.mxu0 %v7849
    %7907 = vmatpush1.msra.mxu0 %v7848
    %7908 = vmatprep.subr.mxu0 %v7845
    %7909 = vmatpush1.msra.mxu0 %v7844
    %7910 = vmatprep.subr.mxu0 %v7841
    %7911 = vmatpush1.msra.mxu0 %v7840
    %7912 = vmatprep.subr.mxu0 %v7837
    %7913 = vmatpush1.msra.mxu0 %v7836
    %7914 = vmatprep.subr.mxu0 %v7833
    %7915 = vmatpush1.msra.mxu0 %v7832
    %7916 = vmatprep.subr.mxu0 %v7829
    %7917 = vmatpush1.msra.mxu0 %v7828
    %7918 = vmatprep.subr.mxu0 %v7825
    %7919 = vmatpush1.msra.mxu0 %v7824
    %7920 = vmatprep.subr.mxu0 0.0
    %7921 = vmatpush2.msra.mxu0 0.0
    %7922 = vmatprep.subr.mxu0 0.0
    %7923 = vmatpush2.msra.mxu0 0.0
    %7924 = vmatprep.subr.mxu0 0.0
    %7925 = vmatpush2.msra.mxu0 0.0
    %7926 = vmatprep.subr.mxu0 0.0
    %7927 = vmatpush2.msra.mxu0 0.0
    %7928 = vmatprep.subr.mxu0 0.0
    %7929 = vmatpush2.msra.mxu0 0.0
    %7930 = vmatprep.subr.mxu0 0.0
    %7931 = vmatpush2.msra.mxu0 0.0
    %7932 = vmatprep.subr.mxu0 0.0
    %7933 = vmatpush2.msra.mxu0 0.0
    %7934 = vmatprep.subr.mxu0 0.0
    %7935 = vmatpush2.msra.mxu0 0.0
    %7936 = vmatprep.subr.mxu0 0.0
    %7937 = vmatpush2.msra.mxu0 0.0
    %7938 = vmatprep.subr.mxu0 0.0
    %7939 = vmatpush2.msra.mxu0 0.0
    %7940 = vmatprep.subr.mxu0 0.0
    %7941 = vmatpush2.msra.mxu0 0.0
    %7942 = vmatprep.subr.mxu0 0.0
    %7943 = vmatpush2.msra.mxu0 0.0
    %7944 = vmatprep.subr.mxu0 0.0
    %7945 = vmatpush2.msra.mxu0 0.0
    %7946 = vmatprep.subr.mxu0 0.0
    %7947 = vmatpush2.msra.mxu0 0.0
    %7948 = vmatprep.subr.mxu0 0.0
    %7949 = vmatpush2.msra.mxu0 0.0
    %7950 = vmatprep.subr.mxu0 0.0
    %7951 = vmatpush2.msra.mxu0 0.0
    %7952 = vmatprep.mubr.f32.mxu0 0.0
    %7953 = vmatmul.mubr.f32.gmra.mxu0 %v4632
    %v7954 = vpop.f32.mrf.mxu0
    %v7955 = vadd.f32 0.0, %v7954
    %v7956 = vpop.f32.mrf.mxu0
    %v7957 = vadd.f32 0.0, %v7956
    %7958 = vdwg.mxu0
    %7959 = vmatprep.subr.mxu0 %v7887
    %7960 = vmatpush1.msra.mxu0 %v7886
    %7961 = vmatprep.subr.mxu0 %v7883
    %7962 = vmatpush1.msra.mxu0 %v7882
    %7963 = vmatprep.subr.mxu0 %v7879
    %7964 = vmatpush1.msra.mxu0 %v7878
    %7965 = vmatprep.subr.mxu0 %v7875
    %7966 = vmatpush1.msra.mxu0 %v7874
    %7967 = vmatprep.subr.mxu0 %v7871
    %7968 = vmatpush1.msra.mxu0 %v7870
    %7969 = vmatprep.subr.mxu0 %v7867
    %7970 = vmatpush1.msra.mxu0 %v7866
    %7971 = vmatprep.subr.mxu0 %v7863
    %7972 = vmatpush1.msra.mxu0 %v7862
    %7973 = vmatprep.subr.mxu0 %v7859
    %7974 = vmatpush1.msra.mxu0 %v7858
    %7975 = vmatprep.subr.mxu0 %v7855
    %7976 = vmatpush1.msra.mxu0 %v7854
    %7977 = vmatprep.subr.mxu0 %v7851
    %7978 = vmatpush1.msra.mxu0 %v7850
    %7979 = vmatprep.subr.mxu0 %v7847
    %7980 = vmatpush1.msra.mxu0 %v7846
    %7981 = vmatprep.subr.mxu0 %v7843
    %7982 = vmatpush1.msra.mxu0 %v7842
    %7983 = vmatprep.subr.mxu0 %v7839
    %7984 = vmatpush1.msra.mxu0 %v7838
    %7985 = vmatprep.subr.mxu0 %v7835
    %7986 = vmatpush1.msra.mxu0 %v7834
    %7987 = vmatprep.subr.mxu0 %v7831
    %7988 = vmatpush1.msra.mxu0 %v7830
    %7989 = vmatprep.subr.mxu0 %v7827
    %7990 = vmatpush1.msra.mxu0 %v7826
    %7991 = vmatprep.subr.mxu0 0.0
    %7992 = vmatpush2.msra.mxu0 0.0
    %7993 = vmatprep.subr.mxu0 0.0
    %7994 = vmatpush2.msra.mxu0 0.0
    %7995 = vmatprep.subr.mxu0 0.0
    %7996 = vmatpush2.msra.mxu0 0.0
    %7997 = vmatprep.subr.mxu0 0.0
    %7998 = vmatpush2.msra.mxu0 0.0
    %7999 = vmatprep.subr.mxu0 0.0
    %8000 = vmatpush2.msra.mxu0 0.0
    %8001 = vmatprep.subr.mxu0 0.0
    %8002 = vmatpush2.msra.mxu0 0.0
    %8003 = vmatprep.subr.mxu0 0.0
    %8004 = vmatpush2.msra.mxu0 0.0
    %8005 = vmatprep.subr.mxu0 0.0
    %8006 = vmatpush2.msra.mxu0 0.0
    %8007 = vmatprep.subr.mxu0 0.0
    %8008 = vmatpush2.msra.mxu0 0.0
    %8009 = vmatprep.subr.mxu0 0.0
    %8010 = vmatpush2.msra.mxu0 0.0
    %8011 = vmatprep.subr.mxu0 0.0
    %8012 = vmatpush2.msra.mxu0 0.0
    %8013 = vmatprep.subr.mxu0 0.0
    %8014 = vmatpush2.msra.mxu0 0.0
    %8015 = vmatprep.subr.mxu0 0.0
    %8016 = vmatpush2.msra.mxu0 0.0
    %8017 = vmatprep.subr.mxu0 0.0
    %8018 = vmatpush2.msra.mxu0 0.0
    %8019 = vmatprep.subr.mxu0 0.0
    %8020 = vmatpush2.msra.mxu0 0.0
    %8021 = vmatprep.subr.mxu0 0.0
    %8022 = vmatpush2.msra.mxu0 0.0
    %8023 = vmatprep.mubr.f32.mxu0 0.0
    %8024 = vmatmul.mubr.f32.gmra.mxu0 %v4632
    %v8025 = vpop.f32.mrf.mxu0
    %v8026 = vadd.f32 0.0, %v8025
    %v8027 = vpop.f32.mrf.mxu0
    %v8028 = vadd.f32 0.0, %v8027
    %8029 = vdwg.mxu0
    %v8030 = vadd.f32 %v7819, %v7955
    %v8031 = vadd.f32 %v7820, %v7957
    %v8032 = vadd.f32 %v7821, %v8026
    %v8033 = vadd.f32 %v7822, %v8028
    %v8034 = vmax.f32 %v8030, 0.0
    %v8035 = vmax.f32 %v8031, 0.0
    %v8036 = vmax.f32 %v8032, 0.0
    %v8037 = vmax.f32 %v8033, 0.0
    %v8038 = vld [vmem:[%s7] sm:$0xff]
    %v8039 = vld [vmem:[%s7 + $0x8] sm:$0xff]
    %v8040 = vld [vmem:[%s7 + $0x10] sm:$0xff]
    %v8041 = vld [vmem:[%s7 + $0x18] sm:$0xff]
    %v8042 = vld [vmem:[%s7 + $0x20] sm:$0xff]
    %v8043 = vld [vmem:[%s7 + $0x28] sm:$0xff]
    %v8044 = vld [vmem:[%s7 + $0x30] sm:$0xff]
    %v8045 = vld [vmem:[%s7 + $0x38] sm:$0xff]
    %v8046 = vld [vmem:[%s7 + $0x40] sm:$0xff]
    %v8047 = vld [vmem:[%s7 + $0x48] sm:$0xff]
    %v8048 = vld [vmem:[%s7 + $0x50] sm:$0xff]
    %v8049 = vld [vmem:[%s7 + $0x58] sm:$0xff]
    %v8050 = vld [vmem:[%s7 + $0x60] sm:$0xff]
    %v8051 = vld [vmem:[%s7 + $0x68] sm:$0xff]
    %v8052 = vld [vmem:[%s7 + $0x70] sm:$0xff]
    %v8053 = vld [vmem:[%s7 + $0x78] sm:$0xff]
    %v8054 = vld [vmem:[%s7 + $0x80] sm:$0xff]
    %v8055 = vld [vmem:[%s7 + $0x88] sm:$0xff]
    %v8056 = vld [vmem:[%s7 + $0x90] sm:$0xff]
    %v8057 = vld [vmem:[%s7 + $0x98] sm:$0xff]
    %v8058 = vld [vmem:[%s7 + $0xa0] sm:$0xff]
    %v8059 = vld [vmem:[%s7 + $0xa8] sm:$0xff]
    %v8060 = vld [vmem:[%s7 + $0xb0] sm:$0xff]
    %v8061 = vld [vmem:[%s7 + $0xb8] sm:$0xff]
    %v8062 = vld [vmem:[%s7 + $0xc0] sm:$0xff]
    %v8063 = vld [vmem:[%s7 + $0xc8] sm:$0xff]
    %v8064 = vld [vmem:[%s7 + $0xd0] sm:$0xff]
    %v8065 = vld [vmem:[%s7 + $0xd8] sm:$0xff]
    %v8066 = vld [vmem:[%s7 + $0xe0] sm:$0xff]
    %v8067 = vld [vmem:[%s7 + $0xe8] sm:$0xff]
    %v8068 = vld [vmem:[%s7 + $0xf0] sm:$0xff]
    %v8069 = vld [vmem:[%s7 + $0xf8] sm:$0xff]
    %v8070 = vld [vmem:[%s7 + $0x100] sm:$0xff]
    %v8071 = vld [vmem:[%s7 + $0x108] sm:$0xff]
    %v8072 = vld [vmem:[%s7 + $0x110] sm:$0xff]
    %v8073 = vld [vmem:[%s7 + $0x118] sm:$0xff]
    %v8074 = vld [vmem:[%s7 + $0x120] sm:$0xff]
    %v8075 = vld [vmem:[%s7 + $0x128] sm:$0xff]
    %v8076 = vld [vmem:[%s7 + $0x130] sm:$0xff]
    %v8077 = vld [vmem:[%s7 + $0x138] sm:$0xff]
    %v8078 = vld [vmem:[%s7 + $0x140] sm:$0xff]
    %v8079 = vld [vmem:[%s7 + $0x148] sm:$0xff]
    %v8080 = vld [vmem:[%s7 + $0x150] sm:$0xff]
    %v8081 = vld [vmem:[%s7 + $0x158] sm:$0xff]
    %v8082 = vld [vmem:[%s7 + $0x160] sm:$0xff]
    %v8083 = vld [vmem:[%s7 + $0x168] sm:$0xff]
    %v8084 = vld [vmem:[%s7 + $0x170] sm:$0xff]
    %v8085 = vld [vmem:[%s7 + $0x178] sm:$0xff]
    %v8086 = vld [vmem:[%s7 + $0x180] sm:$0xff]
    %v8087 = vld [vmem:[%s7 + $0x188] sm:$0xff]
    %v8088 = vld [vmem:[%s7 + $0x190] sm:$0xff]
    %v8089 = vld [vmem:[%s7 + $0x198] sm:$0xff]
    %v8090 = vld [vmem:[%s7 + $0x1a0] sm:$0xff]
    %v8091 = vld [vmem:[%s7 + $0x1a8] sm:$0xff]
    %v8092 = vld [vmem:[%s7 + $0x1b0] sm:$0xff]
    %v8093 = vld [vmem:[%s7 + $0x1b8] sm:$0xff]
    %v8094 = vld [vmem:[%s7 + $0x1c0] sm:$0xff]
    %v8095 = vld [vmem:[%s7 + $0x1c8] sm:$0xff]
    %v8096 = vld [vmem:[%s7 + $0x1d0] sm:$0xff]
    %v8097 = vld [vmem:[%s7 + $0x1d8] sm:$0xff]
    %v8098 = vld [vmem:[%s7 + $0x1e0] sm:$0xff]
    %v8099 = vld [vmem:[%s7 + $0x1e8] sm:$0xff]
    %v8100 = vld [vmem:[%s7 + $0x1f0] sm:$0xff]
    %v8101 = vld [vmem:[%s7 + $0x1f8] sm:$0xff]
    %v8102 = vld [vmem:[%s8] sm:$0x1]
    %v8104 = vlaneseq
    %v8105 = vshrl.u32 %v8104, 7
    %v8106 = vsub.s32 0, %v8105
    %v8107 = vrot.slane %v8102, %v8106
    %8109 = vmatprep.subr.mxu0 0.0
    %8110 = vmatpush1.msra.mxu0 %v8053
    %8111 = vmatprep.subr.mxu0 0.0
    %8112 = vmatpush1.msra.mxu0 %v8052
    %8113 = vmatprep.subr.mxu0 0.0
    %8114 = vmatpush1.msra.mxu0 %v8051
    %8115 = vmatprep.subr.mxu0 0.0
    %8116 = vmatpush1.msra.mxu0 %v8050
    %8117 = vmatprep.subr.mxu0 0.0
    %8118 = vmatpush1.msra.mxu0 %v8049
    %8119 = vmatprep.subr.mxu0 0.0
    %8120 = vmatpush1.msra.mxu0 %v8048
    %8121 = vmatprep.subr.mxu0 0.0
    %8122 = vmatpush1.msra.mxu0 %v8047
    %8123 = vmatprep.subr.mxu0 0.0
    %8124 = vmatpush1.msra.mxu0 %v8046
    %8125 = vmatprep.subr.mxu0 0.0
    %8126 = vmatpush1.msra.mxu0 %v8045
    %8127 = vmatprep.subr.mxu0 0.0
    %8128 = vmatpush1.msra.mxu0 %v8044
    %8129 = vmatprep.subr.mxu0 0.0
    %8130 = vmatpush1.msra.mxu0 %v8043
    %8131 = vmatprep.subr.mxu0 0.0
    %8132 = vmatpush1.msra.mxu0 %v8042
    %8133 = vmatprep.subr.mxu0 0.0
    %8134 = vmatpush1.msra.mxu0 %v8041
    %8135 = vmatprep.subr.mxu0 0.0
    %8136 = vmatpush1.msra.mxu0 %v8040
    %8137 = vmatprep.subr.mxu0 0.0
    %8138 = vmatpush1.msra.mxu0 %v8039
    %8139 = vmatprep.subr.mxu0 0.0
    %8140 = vmatpush1.msra.mxu0 %v8038
    %8141 = vmatprep.subr.mxu0 0.0
    %8142 = vmatpush2.msra.mxu0 %v8069
    %8143 = vmatprep.subr.mxu0 0.0
    %8144 = vmatpush2.msra.mxu0 %v8068
    %8145 = vmatprep.subr.mxu0 0.0
    %8146 = vmatpush2.msra.mxu0 %v8067
    %8147 = vmatprep.subr.mxu0 0.0
    %8148 = vmatpush2.msra.mxu0 %v8066
    %8149 = vmatprep.subr.mxu0 0.0
    %8150 = vmatpush2.msra.mxu0 %v8065
    %8151 = vmatprep.subr.mxu0 0.0
    %8152 = vmatpush2.msra.mxu0 %v8064
    %8153 = vmatprep.subr.mxu0 0.0
    %8154 = vmatpush2.msra.mxu0 %v8063
    %8155 = vmatprep.subr.mxu0 0.0
    %8156 = vmatpush2.msra.mxu0 %v8062
    %8157 = vmatprep.subr.mxu0 0.0
    %8158 = vmatpush2.msra.mxu0 %v8061
    %8159 = vmatprep.subr.mxu0 0.0
    %8160 = vmatpush2.msra.mxu0 %v8060
    %8161 = vmatprep.subr.mxu0 0.0
    %8162 = vmatpush2.msra.mxu0 %v8059
    %8163 = vmatprep.subr.mxu0 0.0
    %8164 = vmatpush2.msra.mxu0 %v8058
    %8165 = vmatprep.subr.mxu0 0.0
    %8166 = vmatpush2.msra.mxu0 %v8057
    %8167 = vmatprep.subr.mxu0 0.0
    %8168 = vmatpush2.msra.mxu0 %v8056
    %8169 = vmatprep.subr.mxu0 0.0
    %8170 = vmatpush2.msra.mxu0 %v8055
    %8171 = vmatprep.subr.mxu0 0.0
    %8172 = vmatpush2.msra.mxu0 %v8054
    %8173 = vmatprep.mubr.f32.mxu0 %v8035
    %8174 = vmatmul.mubr.f32.gmra.mxu0 %v8034
    %v8175 = vpop.f32.mrf.mxu0
    %v8176 = vadd.f32 %v8107, %v8175
    %v8177 = vpop.f32.mrf.mxu0
    %8178 = vdwg.mxu0
    %8179 = vmatprep.subr.mxu0 0.0
    %8180 = vmatpush1.msra.mxu0 %v8085
    %8181 = vmatprep.subr.mxu0 0.0
    %8182 = vmatpush1.msra.mxu0 %v8084
    %8183 = vmatprep.subr.mxu0 0.0
    %8184 = vmatpush1.msra.mxu0 %v8083
    %8185 = vmatprep.subr.mxu0 0.0
    %8186 = vmatpush1.msra.mxu0 %v8082
    %8187 = vmatprep.subr.mxu0 0.0
    %8188 = vmatpush1.msra.mxu0 %v8081
    %8189 = vmatprep.subr.mxu0 0.0
    %8190 = vmatpush1.msra.mxu0 %v8080
    %8191 = vmatprep.subr.mxu0 0.0
    %8192 = vmatpush1.msra.mxu0 %v8079
    %8193 = vmatprep.subr.mxu0 0.0
    %8194 = vmatpush1.msra.mxu0 %v8078
    %8195 = vmatprep.subr.mxu0 0.0
    %8196 = vmatpush1.msra.mxu0 %v8077
    %8197 = vmatprep.subr.mxu0 0.0
    %8198 = vmatpush1.msra.mxu0 %v8076
    %8199 = vmatprep.subr.mxu0 0.0
    %8200 = vmatpush1.msra.mxu0 %v8075
    %8201 = vmatprep.subr.mxu0 0.0
    %8202 = vmatpush1.msra.mxu0 %v8074
    %8203 = vmatprep.subr.mxu0 0.0
    %8204 = vmatpush1.msra.mxu0 %v8073
    %8205 = vmatprep.subr.mxu0 0.0
    %8206 = vmatpush1.msra.mxu0 %v8072
    %8207 = vmatprep.subr.mxu0 0.0
    %8208 = vmatpush1.msra.mxu0 %v8071
    %8209 = vmatprep.subr.mxu0 0.0
    %8210 = vmatpush1.msra.mxu0 %v8070
    %8211 = vmatprep.subr.mxu0 0.0
    %8212 = vmatpush2.msra.mxu0 %v8101
    %8213 = vmatprep.subr.mxu0 0.0
    %8214 = vmatpush2.msra.mxu0 %v8100
    %8215 = vmatprep.subr.mxu0 0.0
    %8216 = vmatpush2.msra.mxu0 %v8099
    %8217 = vmatprep.subr.mxu0 0.0
    %8218 = vmatpush2.msra.mxu0 %v8098
    %8219 = vmatprep.subr.mxu0 0.0
    %8220 = vmatpush2.msra.mxu0 %v8097
    %8221 = vmatprep.subr.mxu0 0.0
    %8222 = vmatpush2.msra.mxu0 %v8096
    %8223 = vmatprep.subr.mxu0 0.0
    %8224 = vmatpush2.msra.mxu0 %v8095
    %8225 = vmatprep.subr.mxu0 0.0
    %8226 = vmatpush2.msra.mxu0 %v8094
    %8227 = vmatprep.subr.mxu0 0.0
    %8228 = vmatpush2.msra.mxu0 %v8093
    %8229 = vmatprep.subr.mxu0 0.0
    %8230 = vmatpush2.msra.mxu0 %v8092
    %8231 = vmatprep.subr.mxu0 0.0
    %8232 = vmatpush2.msra.mxu0 %v8091
    %8233 = vmatprep.subr.mxu0 0.0
    %8234 = vmatpush2.msra.mxu0 %v8090
    %8235 = vmatprep.subr.mxu0 0.0
    %8236 = vmatpush2.msra.mxu0 %v8089
    %8237 = vmatprep.subr.mxu0 0.0
    %8238 = vmatpush2.msra.mxu0 %v8088
    %8239 = vmatprep.subr.mxu0 0.0
    %8240 = vmatpush2.msra.mxu0 %v8087
    %8241 = vmatprep.subr.mxu0 0.0
    %8242 = vmatpush2.msra.mxu0 %v8086
    %8243 = vmatprep.mubr.f32.mxu0 %v8037
    %8244 = vmatmul.mubr.f32.gmra.mxu0 %v8036
    %v8245 = vpop.f32.mrf.mxu0
    %v8246 = vadd.f32 %v8176, %v8245
    %v8247 = vpop.f32.mrf.mxu0
    %8248 = vdwg.mxu0
    %8249 = vst [vmem:[%s9] sm:$0xff] %v8246
    // Predicated region
    $region63: #{mnist_forward.1} parent=1 // pred_check
      _
    $region64: #{mnist_forward.1} parent=1 // pred_check_branch
      %8251 = sbr.rel (0) target = $region66
    $region65: #{mnist_forward.1} parent=1 // pred_region
      _
    $region66: #{mnist_forward.1} parent=1 // pred_fallthru
      _
    // Predicated region
    $region67: #{mnist_forward.1} parent=1 // pred_check
      _
    $region68: #{mnist_forward.1} parent=1 // pred_check_branch
      %8253 = sbr.rel (0) target = $region70
    $region69: #{mnist_forward.1} parent=1 // pred_region
      _
    $region70: #{mnist_forward.1} parent=1 // pred_fallthru
      _
    %8254 = vsyncpa [#allocation5], 1

</llo_original>
